<compile_context>
chip_gen: v7x
topology: tpu7x:2x2x1
jax: 0.10.0
libtpu: 0.0.40
codegen_flags: <defaults>
</compile_context>

<pallas_src>
import functools

import jax
import jax.numpy as jnp
from jax.experimental import pallas as pl
from jax.experimental.pallas import tpu as pltpu

LRELU_SLOPE = 0.2
BN_EPS = 1e-5
# Raised scoped-VMEM cap for the heavy kernels: above the 16/32 MiB defaults,
# comfortably below v7x's 64 MiB physical VMEM.
_VMEM_LIMIT = 48 * 1024 * 1024


def _round_up(a, b):
    return (a + b - 1) // b * b


def _lrelu(y):
    return jnp.where(y >= 0.0, y, LRELU_SLOPE * y)


def _row_tile(m, desired):
    """Pick a row tile (multiple of 8) dividing the (possibly padded) row count."""
    mp = _round_up(m, 8)
    if mp <= desired:
        return mp, mp
    t = (desired // 8) * 8
    while t >= 8:
        if mp % t == 0:
            return t, mp
        t -= 8
    t = (desired // 8) * 8
    return t, _round_up(mp, t)


def _divisor_tile(n, desired):
    """Largest multiple of 8 <= desired dividing n, else n itself (full block)."""
    if n <= desired:
        return n
    t = (desired // 8) * 8
    while t >= 8:
        if n % t == 0:
            return t
        t -= 8
    return n


def _full_spec(shape):
    return pl.BlockSpec(shape, lambda i: (0,) * len(shape))


# ---------------------------------------------------------------------------
# kNN: negative squared pairwise distance (row-tiled, single x stream) + top_k
# ---------------------------------------------------------------------------
def _pdist_kernel(tn, x_ref, xx_ref, o_ref):
    start = pl.multiple_of(pl.program_id(1) * tn, tn)
    xa = x_ref[0]                                    # (N, C) all points of batch
    xq = x_ref[0, pl.ds(start, tn), :]               # (tn, C) query rows (in-kernel slice)
    inner = jax.lax.dot_general(
        xq, xa, (((1,), (1,)), ((), ())), preferred_element_type=jnp.float32)
    xqf = xq.astype(jnp.float32)
    sq_q = jnp.sum(xqf * xqf, axis=-1, keepdims=True)     # (tn, 1)
    o_ref[0] = 2.0 * inner - sq_q - xx_ref[0]              # xx_ref[0]: (1, N)


def neg_pairwise_dist(x):
    """x: (B, N, C) -> (B, N, N) negative squared distances (torch knn metric)."""
    B, N, C = x.shape
    xf = x.astype(jnp.float32)
    xx = jnp.sum(xf * xf, axis=-1).reshape(B, 1, N)
    tn = _divisor_tile(N, 512)
    return pl.pallas_call(
        functools.partial(_pdist_kernel, tn),
        out_shape=jax.ShapeDtypeStruct((B, N, N), jnp.float32),
        grid=(B, N // tn),
        in_specs=[
            pl.BlockSpec((1, N, C), lambda b, n: (b, 0, 0)),
            pl.BlockSpec((1, 1, N), lambda b, n: (b, 0, 0)),
        ],
        out_specs=pl.BlockSpec((1, tn, N), lambda b, n: (b, n, 0)),
        compiler_params=pltpu.CompilerParams(
            dimension_semantics=("parallel", "parallel")),
    )(x, xx)


def knn_idx(x, k):
    # TODO(synk): a streaming in-kernel partial top-k (never materializing
    # (B,N,N)) would need per-row iterative argmax/merge that is VPU-bound at
    # real k; top_k stays in XLA (tie-break order may differ from torch.topk).
    return jax.lax.top_k(neg_pairwise_dist(x), k)[1]


# ---------------------------------------------------------------------------
# Fused edge-conv stage: [conv-bn-lrelu] x (1 or 2) + max over k neighbors
# (BN scale folded into weights; one batched MXU matmul over all k slabs)
# ---------------------------------------------------------------------------
def _edgeconv_kernel(two, *refs):
    if two:
        feat_ref, ctr_ref, w1a_ref, w1d_ref, b1_ref, w2_ref, b2_ref, o_ref = refs
    else:
        feat_ref, ctr_ref, w1a_ref, w1d_ref, b1_ref, o_ref = refs
    k, tm, cin = feat_ref.shape
    c1 = w1a_ref.shape[1]

    # One batched MXU matmul over all k neighbor slabs (k*tm rows).
    fm = feat_ref[...].reshape(k * tm, cin)
    h = jnp.dot(fm, w1a_ref[...], preferred_element_type=jnp.float32)   # (k*tm, c1)
    # Folded per-point (center) term  x @ (W[C:] - W[:C]); scale already in weights.
    cc = jnp.dot(ctr_ref[...], w1d_ref[...], preferred_element_type=jnp.float32)

    if two:
        h = _lrelu(h.reshape(k, tm, c1) + (cc + b1_ref[...])[None])
        c2 = w2_ref.shape[1]
        h = jnp.dot(h.reshape(k * tm, c1).astype(w2_ref.dtype), w2_ref[...],
                    preferred_element_type=jnp.float32)                  # (k*tm, c2)
        # bias + lrelu commute with max over neighbors -> apply once after the max
        h = _lrelu(jnp.max(h.reshape(k, tm, c2), axis=0) + b2_ref[...])
    else:
        h = _lrelu(jnp.max(h.reshape(k, tm, c1), axis=0) + cc + b1_ref[...])
    o_ref[...] = h.astype(o_ref.dtype)


def edge_conv_block(x, idx, w1, s1, b1, w2=None, s2=None, b2=None,
                    desired_tm=512, out_dtype=jnp.bfloat16):
    """x: (B,N,C), idx: (B,N,k) -> (B,N,Cout): fused graph-feature conv stack + max_k."""
    B, N, C = x.shape
    k = idx.shape[-1]
    M = B * N
    assert w1.shape[0] == 2 * C
    c1 = w1.shape[1]
    two = w2 is not None
    cout = w2.shape[1] if two else c1
    feat_dtype = jnp.bfloat16 if C >= 8 else jnp.float32

    # TODO(synk): the knn neighbor gather stays in XLA: Mosaic's in-kernel vector
    # gather cannot express a (tm*k)-row gather from the resident (N, C) table,
    # and a row-by-row dynamic-ref gather is slower than the HBM round trip it
    # would save.  Gather is done once in bf16 with the (k, B*N, C) layout so
    # each per-neighbor slab is a contiguous tile for the kernel.
    x_flat = x.reshape(M, C).astype(feat_dtype)
    idx_g = idx + (jnp.arange(B, dtype=idx.dtype) * N)[:, None, None]
    idx_t = jnp.transpose(idx_g.reshape(M, k))                  # (k, M)
    feat = jnp.take(x_flat, idx_t, axis=0)                      # (k, M, C)

    # Fold BN scale into the conv weights (in-kernel epilogue = bias + lrelu only).
    w1a = (w1[:C] * s1).astype(feat_dtype)
    w1d = ((w1[C:] - w1[:C]) * s1).astype(feat_dtype)

    tm, Mp = _row_tile(M, desired_tm)
    ctr = x_flat
    if Mp != M:
        feat = jnp.pad(feat, ((0, 0), (0, Mp - M), (0, 0)))
        ctr = jnp.pad(ctr, ((0, Mp - M), (0, 0)))

    in_specs = [
        pl.BlockSpec((k, tm, C), lambda i: (0, i, 0)),
        pl.BlockSpec((tm, C), lambda i: (i, 0)),
        pl.BlockSpec((C, c1), lambda i: (0, 0)),
        pl.BlockSpec((C, c1), lambda i: (0, 0)),
        pl.BlockSpec((1, c1), lambda i: (0, 0)),
    ]
    args = [feat, ctr, w1a, w1d, b1.reshape(1, c1).astype(jnp.float32)]
    if two:
        in_specs += [pl.BlockSpec((c1, cout), lambda i: (0, 0)),
                     pl.BlockSpec((1, cout), lambda i: (0, 0))]
        args += [(w2 * s2).astype(jnp.bfloat16),
                 b2.reshape(1, cout).astype(jnp.float32)]

    out = pl.pallas_call(
        functools.partial(_edgeconv_kernel, two),
        out_shape=jax.ShapeDtypeStruct((Mp, cout), out_dtype),
        grid=(Mp // tm,),
        in_specs=in_specs,
        out_specs=pl.BlockSpec((tm, cout), lambda i: (i, 0)),
        compiler_params=pltpu.CompilerParams(
            dimension_semantics=("parallel",),
            vmem_limit_bytes=_VMEM_LIMIT),
    )(*args)
    if Mp != M:
        out = out[:M]
    return out.reshape(B, N, cout)


# ---------------------------------------------------------------------------
# Fused (multi-input) conv + max over points + bias/lrelu  ->  (B, Cout)
# ---------------------------------------------------------------------------
def _conv_rowmax_kernel(n_in, *refs):
    x_refs = refs[:n_in]
    w_refs = refs[n_in:2 * n_in]
    b_ref, o_ref = refs[2 * n_in:]
    h = None
    for xr, wr in zip(x_refs, w_refs):
        d = jnp.dot(xr[0].astype(wr.dtype), wr[...],
                    preferred_element_type=jnp.float32)
        h = d if h is None else h + d
    part = jnp.max(h, axis=0, keepdims=True)[None]    # (1, 1, Cout)

    @pl.when(pl.program_id(1) == 0)
    def _():
        o_ref[...] = part

    @pl.when(pl.program_id(1) != 0)
    def _():
        o_ref[...] = jnp.maximum(o_ref[...], part)

    # bias + lrelu commute with max over points -> apply once on the last step
    @pl.when(pl.program_id(1) == pl.num_programs(1) - 1)
    def _():
        o_ref[...] = _lrelu(o_ref[...] + b_ref[...][None])


def conv_rowmax(xs, ws_scaled, bias, desired_tn=1024):
    """max over points of lrelu(bn(sum_i x_i @ w_i)); BN scale pre-folded into w."""
    B, N, _ = xs[0].shape
    cout = ws_scaled[0].shape[1]
    tn = _divisor_tile(N, desired_tn)
    n_in = len(xs)
    in_specs, args = [], []
    for x in xs:
        ci = x.shape[-1]
        in_specs.append(pl.BlockSpec((1, tn, ci), lambda b, n: (b, n, 0)))
        args.append(x)
    for w in ws_scaled:
        in_specs.append(pl.BlockSpec(w.shape, lambda b, n: (0, 0)))
        args.append(w.astype(jnp.bfloat16))
    in_specs.append(pl.BlockSpec((1, cout), lambda b, n: (0, 0)))
    args.append(bias.reshape(1, cout).astype(jnp.float32))
    out = pl.pallas_call(
        functools.partial(_conv_rowmax_kernel, n_in),
        out_shape=jax.ShapeDtypeStruct((B, 1, cout), jnp.float32),
        grid=(B, N // tn),
        in_specs=in_specs,
        out_specs=pl.BlockSpec((1, 1, cout), lambda b, n: (b, 0, 0)),
        compiler_params=pltpu.CompilerParams(
            dimension_semantics=("parallel", "arbitrary"),
            vmem_limit_bytes=_VMEM_LIMIT),
    )(*args)
    return out.reshape(B, cout)


# ---------------------------------------------------------------------------
# Fused segmentation head: conv8 -> conv9 -> conv10 -> conv11 (transposed output)
# ---------------------------------------------------------------------------
def _head_kernel(x1_ref, x2_ref, x3_ref, glp_ref,
                 w81_ref, w82_ref, w83_ref,
                 w9_ref, b9_ref, w10_ref, b10_ref, w11t_ref, o_ref):
    h = (jnp.dot(x1_ref[0], w81_ref[...], preferred_element_type=jnp.float32)
         + jnp.dot(x2_ref[0], w82_ref[...], preferred_element_type=jnp.float32)
         + jnp.dot(x3_ref[0], w83_ref[...], preferred_element_type=jnp.float32)
         + glp_ref[0])                      # per-batch (global+label) term, b8 folded in
    h = _lrelu(h)
    h = _lrelu(jnp.dot(h.astype(w9_ref.dtype), w9_ref[...],
                       preferred_element_type=jnp.float32) + b9_ref[...])
    h = _lrelu(jnp.dot(h.astype(w10_ref.dtype), w10_ref[...],
                       preferred_element_type=jnp.float32) + b10_ref[...])
    # conv11 emitted as (seg, tn): lane-dense store, no XLA transpose afterwards
    o_ref[0] = jax.lax.dot_general(
        w11t_ref[...], h.astype(w11t_ref.dtype),
        (((1,), (1,)), ((), ())), preferred_element_type=jnp.float32)


def head_fused(x1, x2, x3, glp, w81s, w82s, w83s, w9, sb9, w10, sb10, w11,
               desired_tn=1024):
    B, N, C = x1.shape
    c8 = w81s.shape[1]
    c9 = w9.shape[1]
    c10 = w10.shape[1]
    seg = w11.shape[1]
    tn = _divisor_tile(N, desired_tn)
    bf = jnp.bfloat16

    def cspec(shape):
        return pl.BlockSpec(shape, lambda b, n: (0, 0))

    return pl.pallas_call(
        _head_kernel,
        out_shape=jax.ShapeDtypeStruct((B, seg, N), jnp.float32),
        grid=(B, N // tn),
        in_specs=[
            pl.BlockSpec((1, tn, C), lambda b, n: (b, n, 0)),
            pl.BlockSpec((1, tn, C), lambda b, n: (b, n, 0)),
            pl.BlockSpec((1, tn, C), lambda b, n: (b, n, 0)),
            pl.BlockSpec((1, 1, c8), lambda b, n: (b, 0, 0)),
            cspec((C, c8)), cspec((C, c8)), cspec((C, c8)),
            cspec((c8, c9)), cspec((1, c9)),
            cspec((c9, c10)), cspec((1, c10)),
            cspec((seg, c10)),
        ],
        out_specs=pl.BlockSpec((1, seg, tn), lambda b, n: (b, 0, n)),
        compiler_params=pltpu.CompilerParams(
            dimension_semantics=("parallel", "parallel"),
            vmem_limit_bytes=_VMEM_LIMIT),
    )(x1, x2, x3, glp.reshape(B, 1, c8),
      w81s.astype(bf), w82s.astype(bf), w83s.astype(bf),
      (w9 * sb9[0]).astype(bf), sb9[1].reshape(1, c9).astype(jnp.float32),
      (w10 * sb10[0]).astype(bf), sb10[1].reshape(1, c10).astype(jnp.float32),
      jnp.transpose(w11).astype(bf))


# ---------------------------------------------------------------------------
# Tiny per-batch fused GEMM chains (single-step kernels, no launch fan-out)
# ---------------------------------------------------------------------------
def _tnet_mlp_kernel(g_ref, w1_ref, b1_ref, w2_ref, b2_ref, wt_ref, bt_ref, o_ref):
    h = _lrelu(jnp.dot(g_ref[...], w1_ref[...],
                       preferred_element_type=jnp.float32) + b1_ref[...])
    h = _lrelu(jnp.dot(h, w2_ref[...],
                       preferred_element_type=jnp.float32) + b2_ref[...])
    o_ref[...] = jnp.dot(h, wt_ref[...],
                         preferred_element_type=jnp.float32) + bt_ref[...]


def tnet_mlp(g, tp):
    """Fused linear1 -> linear2 -> transform (BN scales folded into weights)."""
    B = g.shape[0]
    args = [g,
            (tp["l1_w"] * tp["l1_sb"][0]).astype(jnp.float32),
            tp["l1_sb"][1].reshape(1, -1).astype(jnp.float32),
            (tp["l2_w"] * tp["l2_sb"][0]).astype(jnp.float32),
            tp["l2_sb"][1].reshape(1, -1).astype(jnp.float32),
            tp["tr_w"].astype(jnp.float32),
            tp["tr_b"].reshape(1, -1).astype(jnp.float32)]
    return pl.pallas_call(
        _tnet_mlp_kernel,
        out_shape=jax.ShapeDtypeStruct((B, 9), jnp.float32),
        grid=(1,),
        in_specs=[_full_spec(a.shape) for a in args],
        out_specs=_full_spec((B, 9)),
        compiler_params=pltpu.CompilerParams(dimension_semantics=("arbitrary",)),
    )(*args)


def _glp_kernel(g_ref, l_ref, w7_ref, b7_ref, w8g_ref, w8l_ref, b8_ref, o_ref):
    lf = _lrelu(jnp.dot(l_ref[...], w7_ref[...],
                        preferred_element_type=jnp.float32) + b7_ref[...])
    o_ref[...] = (jnp.dot(g_ref[...], w8g_ref[...], preferred_element_type=jnp.float32)
                  + jnp.dot(lf, w8l_ref[...], preferred_element_type=jnp.float32)
                  + b8_ref[...])


def glp_project(g, l, w7, sb7, w8_gl, s8, b8):
    """conv7 on the label one-hot + per-batch (global,label) half of conv8.
    Returns the pre-lrelu conv8 contribution (conv8 BN scale and bias folded in)."""
    B, emb = g.shape
    c8 = w8_gl.shape[1]
    args = [g, l,
            (w7 * sb7[0]).astype(jnp.float32),
            sb7[1].reshape(1, -1).astype(jnp.float32),
            (w8_gl[:emb] * s8).astype(jnp.float32),
            (w8_gl[emb:] * s8).astype(jnp.float32),
            b8.reshape(1, c8).astype(jnp.float32)]
    return pl.pallas_call(
        _glp_kernel,
        out_shape=jax.ShapeDtypeStruct((B, c8), jnp.float32),
        grid=(1,),
        in_specs=[_full_spec(a.shape) for a in args],
        out_specs=_full_spec((B, c8)),
        compiler_params=pltpu.CompilerParams(dimension_semantics=("arbitrary",)),
    )(*args)


# ---------------------------------------------------------------------------
# Parameters (deterministic, PyTorch-default-style; BN folded for eval mode)
# ---------------------------------------------------------------------------
def _bn_fold(c):
    # Eval-mode fold with PyTorch-default stats (mean=0, var=1, gamma=1, beta=0).
    # Real checkpoints: scale = gamma/sqrt(var+eps), bias = beta - mean*scale.
    scale = jnp.full((c,), 1.0 / jnp.sqrt(1.0 + BN_EPS), jnp.float32)
    bias = jnp.zeros((c,), jnp.float32)
    return scale, bias


def init_params(key, emb_dims=1024, seg_num_all=8):
    keys = iter(jax.random.split(key, 32))

    def w(cin, cout):
        return (jax.random.normal(next(keys), (cin, cout), jnp.float32)
                * (1.0 / jnp.sqrt(jnp.float32(cin))))

    tnet = dict(
        c1_w=w(6, 64), c1_sb=_bn_fold(64),
        c2_w=w(64, 128), c2_sb=_bn_fold(128),
        c3_w=w(128, 1024), c3_sb=_bn_fold(1024),
        l1_w=w(1024, 512), l1_sb=_bn_fold(512),
        l2_w=w(512, 256), l2_sb=_bn_fold(256),
        tr_w=jnp.zeros((256, 9), jnp.float32),          # init.constant_(weight, 0)
        tr_b=jnp.eye(3, dtype=jnp.float32).reshape(9),  # init.eye_(bias.view(3,3))
    )
    main = dict(
        conv1_w=w(6, 64), conv1_sb=_bn_fold(64),
        conv2_w=w(64, 64), conv2_sb=_bn_fold(64),
        conv3_w=w(128, 64), conv3_sb=_bn_fold(64),
        conv4_w=w(64, 64), conv4_sb=_bn_fold(64),
        conv5_w=w(128, 64), conv5_sb=_bn_fold(64),
        conv6_w=w(192, emb_dims), conv6_sb=_bn_fold(emb_dims),
        conv7_w=w(16, 64), conv7_sb=_bn_fold(64),
        conv8_w=w(emb_dims + 64 + 192, 256), conv8_sb=_bn_fold(256),
        conv9_w=w(256, 256), conv9_sb=_bn_fold(256),
        conv10_w=w(256, 128), conv10_sb=_bn_fold(128),
        conv11_w=w(128, seg_num_all),
    )
    return dict(tnet=tnet, main=main)


# ---------------------------------------------------------------------------
# Forward pass
# ---------------------------------------------------------------------------
def transform_net_forward(tp, x_pts, idx0):
    """x_pts: (B, N, 3), idx0: (B, N, k) -> (B, 3, 3)."""
    B = x_pts.shape[0]
    h = edge_conv_block(x_pts, idx0, tp["c1_w"], *tp["c1_sb"],
                        tp["c2_w"], *tp["c2_sb"])                    # (B, N, 128) bf16
    g = conv_rowmax([h], [tp["c3_w"] * tp["c3_sb"][0]], tp["c3_sb"][1])  # (B, 1024)
    return tnet_mlp(g, tp).reshape(B, 3, 3)


def dgcnn_partseg_forward(params, x_pts, l, k):
    """x_pts: (B, N, 3) (PyTorch input is (B, 3, N)); l: (B, 16) one-hot.
    Returns (B, seg_num_all, N) matching the PyTorch output layout."""
    p = params["main"]
    tp = params["tnet"]
    B, N, _ = x_pts.shape
    emb = p["conv6_w"].shape[1]
    w8 = p["conv8_w"]
    s8, b8 = p["conv8_sb"]

    idx0 = knn_idx(x_pts, k)
    t = transform_net_forward(tp, x_pts, idx0)                       # (B, 3, 3)
    xt = jnp.einsum("bnc,bcd->bnd", x_pts, t)                        # tiny 3x3 bmm -> XLA

    idx1 = knn_idx(xt, k)
    x1 = edge_conv_block(xt, idx1, p["conv1_w"], *p["conv1_sb"],
                         p["conv2_w"], *p["conv2_sb"])               # (B, N, 64) bf16
    idx2 = knn_idx(x1, k)
    x2 = edge_conv_block(x1, idx2, p["conv3_w"], *p["conv3_sb"],
                         p["conv4_w"], *p["conv4_sb"])               # (B, N, 64) bf16
    idx3 = knn_idx(x2, k)
    x3 = edge_conv_block(x2, idx3, p["conv5_w"], *p["conv5_sb"])     # (B, N, 64) bf16

    # conv6 + global max (weight split over x1/x2/x3 -> no 192-wide concat in HBM)
    w6 = p["conv6_w"]
    s6, b6 = p["conv6_sb"]
    g = conv_rowmax([x1, x2, x3],
                    [w6[:64] * s6, w6[64:128] * s6, w6[128:192] * s6],
                    b6)                                              # (B, emb)

    # per-batch part of conv8 (global embedding + label channels), scale+bias folded
    glp = glp_project(g, l, p["conv7_w"], p["conv7_sb"],
                      w8[:emb + 64], s8, b8)                         # (B, 256)

    # fused head: conv8 -> (dp1) -> conv9 -> (dp2) -> conv10 -> conv11 (eval: dropout=id)
    out = head_fused(x1, x2, x3, glp,
                     w8[emb + 64:emb + 128] * s8,
                     w8[emb + 128:emb + 192] * s8,
                     w8[emb + 192:emb + 256] * s8,
                     p["conv9_w"], p["conv9_sb"],
                     p["conv10_w"], p["conv10_sb"],
                     p["conv11_w"])                                  # (B, seg, N)
    return out


# ---------------------------------------------------------------------------
if __name__ == "__main__":
    B, N, K_NEIGH = 2, 16, 4
    EMB_DIMS, SEG_NUM_ALL, NUM_CATS = 1024, 8, 16

    root = jax.random.PRNGKey(0)
    kp, kx, kl = jax.random.split(root, 3)

    params = init_params(kp, emb_dims=EMB_DIMS, seg_num_all=SEG_NUM_ALL)
    # point cloud: PyTorch expects (B, 3, N); kernel layout is (B, N, 3).
    x_pts = jax.random.normal(kx, (B, N, 3), jnp.float32)
    lbl = jax.nn.one_hot(jax.random.randint(kl, (B,), 0, NUM_CATS), NUM_CATS,
                         dtype=jnp.float32)

    fwd = jax.jit(functools.partial(dgcnn_partseg_forward, k=K_NEIGH))
    out = jax.block_until_ready(fwd(params, x_pts, lbl))

    assert out.shape == (B, SEG_NUM_ALL, N), out.shape
    assert jnp.all(jnp.isfinite(out))
    print("KERNEL_OK")
</pallas_src>

<mosaic_0001>
module attributes {stable_mosaic.version = 11 : i64} {
  func.func @_pdist_kernel(%arg0: i32, %arg1: i32, %arg2: memref<1x16x3xf32, #tpu.memory_space<vmem>>, %arg3: memref<1x1x16xf32, #tpu.memory_space<vmem>>, %arg4: memref<1x16x16xf32, #tpu.memory_space<vmem>>) attributes {dimension_semantics = [#tpu.dimension_semantics<parallel>, #tpu.dimension_semantics<parallel>], iteration_bounds = array<i64: 2, 1>, scalar_prefetch = 0 : i64, scratch_operands = 0 : i64, tpu.core_type = #tpu.core_type<tc>, window_params = [{transform_indices = @transform_0, window_bounds = array<i64: 1, 16, 3>}, {transform_indices = @transform_1, window_bounds = array<i64: 1, 1, 16>}, {transform_indices = @transform_2, window_bounds = array<i64: 1, 16, 16>}]} {
    %c16_i32 = arith.constant 16 : i32
    %0 = arith.muli %arg1, %c16_i32 : i32
    %1 = tpu.assume_multiple %0, 16 : i32
    %c0 = arith.constant 0 : index
    %c0_0 = arith.constant 0 : index
    %c0_1 = arith.constant 0 : index
    %2 = vector.load %arg2[%c0, %c0_0, %c0_1] : memref<1x16x3xf32, #tpu.memory_space<vmem>>, vector<1x16x3xf32>
    %3 = vector.shape_cast %2 : vector<1x16x3xf32> to vector<16x3xf32>
    %c0_2 = arith.constant 0 : index
    %4 = arith.index_cast %1 : i32 to index
    %c0_3 = arith.constant 0 : index
    %5 = vector.load %arg2[%c0_2, %4, %c0_3] : memref<1x16x3xf32, #tpu.memory_space<vmem>>, vector<1x16x3xf32>
    %6 = vector.shape_cast %5 : vector<1x16x3xf32> to vector<16x3xf32>
    %cst = arith.constant dense<0.000000e+00> : vector<16x16xf32>
    %7 = tpu.matmul %6, %3, %cst {dimension_numbers = #tpu.dot_dimension_numbers<[1], [1], [0], [0], [0, 0, 1, 0], [], []>} : vector<16x3xf32>, vector<16x3xf32>, vector<16x16xf32> -> vector<16x16xf32>
    %8 = arith.mulf %6, %6 : vector<16x3xf32>
    %cst_4 = arith.constant dense<0.000000e+00> : vector<16xf32>
    %9 = vector.multi_reduction <add>, %8, %cst_4 [1] : vector<16x3xf32> to vector<16xf32>
    %10 = vector.shape_cast %9 : vector<16xf32> to vector<16x1xf32>
    %cst_5 = arith.constant 2.000000e+00 : f32
    %11 = vector.broadcast %cst_5 : f32 to vector<16x16xf32>
    %12 = arith.mulf %11, %7 : vector<16x16xf32>
    %13 = vector.broadcast %10 : vector<16x1xf32> to vector<16x16xf32>
    %14 = arith.subf %12, %13 : vector<16x16xf32>
    %c0_6 = arith.constant 0 : index
    %c0_7 = arith.constant 0 : index
    %c0_8 = arith.constant 0 : index
    %15 = vector.load %arg3[%c0_6, %c0_7, %c0_8] : memref<1x1x16xf32, #tpu.memory_space<vmem>>, vector<1x1x16xf32>
    %16 = vector.shape_cast %15 : vector<1x1x16xf32> to vector<1x16xf32>
    %17 = vector.broadcast %16 : vector<1x16xf32> to vector<16x16xf32>
    %18 = arith.subf %14, %17 : vector<16x16xf32>
    %c0_9 = arith.constant 0 : index
    %c0_10 = arith.constant 0 : index
    %c0_11 = arith.constant 0 : index
    %19 = vector.load %arg4[%c0_9, %c0_10, %c0_11] : memref<1x16x16xf32, #tpu.memory_space<vmem>>, vector<1x16x16xf32>
    %20 = vector.shape_cast %19 : vector<1x16x16xf32> to vector<16x16xf32>
    %21 = vector.shape_cast %18 : vector<16x16xf32> to vector<1x16x16xf32>
    tpu.vector_store %arg4[%c0_9, %c0_10, %c0_11], %21 {strides = array<i32>} : memref<1x16x16xf32, #tpu.memory_space<vmem>>, vector<1x16x16xf32>,
    return
  }
  func.func @transform_0(%arg0: i32, %arg1: i32) -> (i32, i32, i32) {
    %c0_i32 = arith.constant 0 : i32
    %c0_i32_0 = arith.constant 0 : i32
    %c0_i32_1 = arith.constant 0 : i32
    return %arg0, %c0_i32, %c0_i32_0 : i32, i32, i32
  }
  func.func @transform_1(%arg0: i32, %arg1: i32) -> (i32, i32, i32) {
    %c0_i32 = arith.constant 0 : i32
    %c0_i32_0 = arith.constant 0 : i32
    %c0_i32_1 = arith.constant 0 : i32
    return %arg0, %c0_i32, %c0_i32_0 : i32, i32, i32
  }
  func.func @transform_2(%arg0: i32, %arg1: i32) -> (i32, i32, i32) {
    %c0_i32 = arith.constant 0 : i32
    %c0_i32_0 = arith.constant 0 : i32
    return %arg0, %arg1, %c0_i32 : i32, i32, i32
  }
}

module attributes {stable_mosaic.version = 11 : i64} {
  func.func @_edgeconv_kernel(%arg0: i32, %arg1: memref<4x32x3xf32, #tpu.memory_space<vmem>>, %arg2: memref<32x3xf32, #tpu.memory_space<vmem>>, %arg3: memref<3x64xf32, #tpu.memory_space<vmem>>, %arg4: memref<3x64xf32, #tpu.memory_space<vmem>>, %arg5: memref<1x64xf32, #tpu.memory_space<vmem>>, %arg6: memref<64x128xbf16, #tpu.memory_space<vmem>>, %arg7: memref<1x128xf32, #tpu.memory_space<vmem>>, %arg8: memref<32x128xbf16, #tpu.memory_space<vmem>>) attributes {dimension_semantics = [#tpu.dimension_semantics<parallel>], iteration_bounds = array<i64: 1>, scalar_prefetch = 0 : i64, scratch_operands = 0 : i64, tpu.core_type = #tpu.core_type<tc>, window_params = [{transform_indices = @transform_0, window_bounds = array<i64: 4, 32, 3>}, {transform_indices = @transform_1, window_bounds = array<i64: 32, 3>}, {pipeline_mode = #tpu.pipeline_mode<synchronous>, transform_indices = @transform_2, window_bounds = array<i64: 3, 64>}, {pipeline_mode = #tpu.pipeline_mode<synchronous>, transform_indices = @transform_3, window_bounds = array<i64: 3, 64>}, {pipeline_mode = #tpu.pipeline_mode<synchronous>, transform_indices = @transform_4, window_bounds = array<i64: 1, 64>}, {pipeline_mode = #tpu.pipeline_mode<synchronous>, transform_indices = @transform_5, window_bounds = array<i64: 64, 128>}, {pipeline_mode = #tpu.pipeline_mode<synchronous>, transform_indices = @transform_6, window_bounds = array<i64: 1, 128>}, {transform_indices = @transform_7, window_bounds = array<i64: 32, 128>}]} {
    %c0 = arith.constant 0 : index
    %c0_0 = arith.constant 0 : index
    %c0_1 = arith.constant 0 : index
    %0 = vector.load %arg1[%c0, %c0_0, %c0_1] : memref<4x32x3xf32, #tpu.memory_space<vmem>>, vector<4x32x3xf32>
    %1 = vector.shape_cast %0 : vector<4x32x3xf32> to vector<128x3xf32>
    %c0_2 = arith.constant 0 : index
    %c0_3 = arith.constant 0 : index
    %2 = vector.load %arg3[%c0_2, %c0_3] : memref<3x64xf32, #tpu.memory_space<vmem>>, vector<3x64xf32>
    %cst = arith.constant dense<0.000000e+00> : vector<128x64xf32>
    %3 = tpu.matmul %1, %2, %cst {dimension_numbers = #tpu.dot_dimension_numbers<[1], [0], [0], [1], [0, 0, 1, 1], [], []>} : vector<128x3xf32>, vector<3x64xf32>, vector<128x64xf32> -> vector<128x64xf32>
    %c0_4 = arith.constant 0 : index
    %c0_5 = arith.constant 0 : index
    %4 = vector.load %arg2[%c0_4, %c0_5] : memref<32x3xf32, #tpu.memory_space<vmem>>, vector<32x3xf32>
    %c0_6 = arith.constant 0 : index
    %c0_7 = arith.constant 0 : index
    %5 = vector.load %arg4[%c0_6, %c0_7] : memref<3x64xf32, #tpu.memory_space<vmem>>, vector<3x64xf32>
    %cst_8 = arith.constant dense<0.000000e+00> : vector<32x64xf32>
    %6 = tpu.matmul %4, %5, %cst_8 {dimension_numbers = #tpu.dot_dimension_numbers<[1], [0], [0], [1], [0, 0, 1, 1], [], []>} : vector<32x3xf32>, vector<3x64xf32>, vector<32x64xf32> -> vector<32x64xf32>
    %7 = vector.shape_cast %3 : vector<128x64xf32> to vector<4x32x64xf32>
    %c0_9 = arith.constant 0 : index
    %c0_10 = arith.constant 0 : index
    %8 = vector.load %arg5[%c0_9, %c0_10] : memref<1x64xf32, #tpu.memory_space<vmem>>, vector<1x64xf32>
    %9 = vector.broadcast %8 : vector<1x64xf32> to vector<32x64xf32>
    %10 = arith.addf %6, %9 : vector<32x64xf32>
    %11 = vector.shape_cast %10 : vector<32x64xf32> to vector<1x32x64xf32>
    %12 = vector.broadcast %11 : vector<1x32x64xf32> to vector<4x32x64xf32>
    %13 = arith.addf %7, %12 : vector<4x32x64xf32>
    %cst_11 = arith.constant 0.000000e+00 : f32
    %14 = vector.broadcast %cst_11 : f32 to vector<4x32x64xf32>
    %15 = arith.cmpf oge, %13, %14 : vector<4x32x64xf32>
    %cst_12 = arith.constant 2.000000e-01 : f32
    %16 = vector.broadcast %cst_12 : f32 to vector<4x32x64xf32>
    %17 = arith.mulf %16, %13 : vector<4x32x64xf32>
    %18 = arith.select %15, %13, %17 : vector<4x32x64xi1>, vector<4x32x64xf32>
    %19 = vector.shape_cast %18 : vector<4x32x64xf32> to vector<128x64xf32>
    %20 = arith.truncf %19 : vector<128x64xf32> to vector<128x64xbf16>
    %c0_13 = arith.constant 0 : index
    %c0_14 = arith.constant 0 : index
    %21 = vector.load %arg6[%c0_13, %c0_14] : memref<64x128xbf16, #tpu.memory_space<vmem>>, vector<64x128xbf16>
    %cst_15 = arith.constant dense<0.000000e+00> : vector<128x128xf32>
    %22 = tpu.matmul %20, %21, %cst_15 {dimension_numbers = #tpu.dot_dimension_numbers<[1], [0], [0], [1], [0, 0, 1, 1], [], []>} : vector<128x64xbf16>, vector<64x128xbf16>, vector<128x128xf32> -> vector<128x128xf32>
    %23 = vector.shape_cast %22 : vector<128x128xf32> to vector<4x32x128xf32>
    %cst_16 = arith.constant dense<0xFF800000> : vector<32x128xf32>
    %24 = vector.multi_reduction <maximumf>, %23, %cst_16 [0] : vector<4x32x128xf32> to vector<32x128xf32>
    %c0_17 = arith.constant 0 : index
    %c0_18 = arith.constant 0 : index
    %25 = vector.load %arg7[%c0_17, %c0_18] : memref<1x128xf32, #tpu.memory_space<vmem>>, vector<1x128xf32>
    %26 = vector.broadcast %25 : vector<1x128xf32> to vector<32x128xf32>
    %27 = arith.addf %24, %26 : vector<32x128xf32>
    %cst_19 = arith.constant 0.000000e+00 : f32
    %28 = vector.broadcast %cst_19 : f32 to vector<32x128xf32>
    %29 = arith.cmpf oge, %27, %28 : vector<32x128xf32>
    %cst_20 = arith.constant 2.000000e-01 : f32
    %30 = vector.broadcast %cst_20 : f32 to vector<32x128xf32>
    %31 = arith.mulf %30, %27 : vector<32x128xf32>
    %32 = arith.select %29, %27, %31 : vector<32x128xi1>, vector<32x128xf32>
    %33 = arith.truncf %32 : vector<32x128xf32> to vector<32x128xbf16>
    %c0_21 = arith.constant 0 : index
    %c0_22 = arith.constant 0 : index
    %34 = vector.load %arg8[%c0_21, %c0_22] : memref<32x128xbf16, #tpu.memory_space<vmem>>, vector<32x128xbf16>
    tpu.vector_store %arg8[%c0_21, %c0_22], %33 {strides = array<i32>} : memref<32x128xbf16, #tpu.memory_space<vmem>>, vector<32x128xbf16>,
    return
  }
  func.func @transform_0(%arg0: i32) -> (i32, i32, i32) {
    %c0_i32 = arith.constant 0 : i32
    %c0_i32_0 = arith.constant 0 : i32
    %c0_i32_1 = arith.constant 0 : i32
    return %c0_i32, %arg0, %c0_i32_0 : i32, i32, i32
  }
  func.func @transform_1(%arg0: i32) -> (i32, i32) {
    %c0_i32 = arith.constant 0 : i32
    %c0_i32_0 = arith.constant 0 : i32
    return %arg0, %c0_i32 : i32, i32
  }
  func.func @transform_2(%arg0: i32) -> (i32, i32) {
    %c0_i32 = arith.constant 0 : i32
    %c0_i32_0 = arith.constant 0 : i32
    %c0_i32_1 = arith.constant 0 : i32
    return %c0_i32, %c0_i32_0 : i32, i32
  }
  func.func @transform_3(%arg0: i32) -> (i32, i32) {
    %c0_i32 = arith.constant 0 : i32
    %c0_i32_0 = arith.constant 0 : i32
    %c0_i32_1 = arith.constant 0 : i32
    return %c0_i32, %c0_i32_0 : i32, i32
  }
  func.func @transform_4(%arg0: i32) -> (i32, i32) {
    %c0_i32 = arith.constant 0 : i32
    %c0_i32_0 = arith.constant 0 : i32
    %c0_i32_1 = arith.constant 0 : i32
    return %c0_i32, %c0_i32_0 : i32, i32
  }
  func.func @transform_5(%arg0: i32) -> (i32, i32) {
    %c0_i32 = arith.constant 0 : i32
    %c0_i32_0 = arith.constant 0 : i32
    %c0_i32_1 = arith.constant 0 : i32
    return %c0_i32, %c0_i32_0 : i32, i32
  }
  func.func @transform_6(%arg0: i32) -> (i32, i32) {
    %c0_i32 = arith.constant 0 : i32
    %c0_i32_0 = arith.constant 0 : i32
    %c0_i32_1 = arith.constant 0 : i32
    return %c0_i32, %c0_i32_0 : i32, i32
  }
  func.func @transform_7(%arg0: i32) -> (i32, i32) {
    %c0_i32 = arith.constant 0 : i32
    %c0_i32_0 = arith.constant 0 : i32
    return %arg0, %c0_i32 : i32, i32
  }
}

module attributes {stable_mosaic.version = 11 : i64} {
  func.func @_conv_rowmax_kernel(%arg0: i32, %arg1: i32, %arg2: memref<1x16x128xbf16, #tpu.memory_space<vmem>>, %arg3: memref<128x1024xbf16, #tpu.memory_space<vmem>>, %arg4: memref<1x1024xf32, #tpu.memory_space<vmem>>, %arg5: memref<1x1x1024xf32, #tpu.memory_space<vmem>>) attributes {dimension_semantics = [#tpu.dimension_semantics<parallel>, #tpu.dimension_semantics<arbitrary>], iteration_bounds = array<i64: 2, 1>, scalar_prefetch = 0 : i64, scratch_operands = 0 : i64, tpu.core_type = #tpu.core_type<tc>, window_params = [{transform_indices = @transform_0, window_bounds = array<i64: 1, 16, 128>}, {pipeline_mode = #tpu.pipeline_mode<synchronous>, transform_indices = @transform_1, window_bounds = array<i64: 128, 1024>}, {pipeline_mode = #tpu.pipeline_mode<synchronous>, transform_indices = @transform_2, window_bounds = array<i64: 1, 1024>}, {transform_indices = @transform_3, window_bounds = array<i64: 1, 1, 1024>}]} {
    %c0 = arith.constant 0 : index
    %c0_0 = arith.constant 0 : index
    %c0_1 = arith.constant 0 : index
    %0 = vector.load %arg2[%c0, %c0_0, %c0_1] : memref<1x16x128xbf16, #tpu.memory_space<vmem>>, vector<1x16x128xbf16>
    %1 = vector.shape_cast %0 : vector<1x16x128xbf16> to vector<16x128xbf16>
    %c0_2 = arith.constant 0 : index
    %c0_3 = arith.constant 0 : index
    %2 = vector.load %arg3[%c0_2, %c0_3] : memref<128x1024xbf16, #tpu.memory_space<vmem>>, vector<128x1024xbf16>
    %cst = arith.constant dense<0.000000e+00> : vector<16x1024xf32>
    %3 = tpu.matmul %1, %2, %cst {dimension_numbers = #tpu.dot_dimension_numbers<[1], [0], [0], [1], [0, 0, 1, 1], [], []>} : vector<16x128xbf16>, vector<128x1024xbf16>, vector<16x1024xf32> -> vector<16x1024xf32>
    %cst_4 = arith.constant dense<0xFF800000> : vector<1024xf32>
    %4 = vector.multi_reduction <maximumf>, %3, %cst_4 [0] : vector<16x1024xf32> to vector<1024xf32>
    %5 = vector.shape_cast %4 : vector<1024xf32> to vector<1x1024xf32>
    %6 = vector.shape_cast %5 : vector<1x1024xf32> to vector<1x1x1024xf32>
    %c0_i32 = arith.constant 0 : i32
    %7 = arith.cmpi eq, %arg1, %c0_i32 : i32
    %8 = arith.extui %7 : i1 to i32
    %c0_i32_5 = arith.constant 0 : i32
    %9 = arith.cmpi ne, %8, %c0_i32_5 : i32
    scf.if %9 {
      %c0_10 = arith.constant 0 : index
      %c0_11 = arith.constant 0 : index
      %c0_12 = arith.constant 0 : index
      %16 = vector.load %arg5[%c0_10, %c0_11, %c0_12] : memref<1x1x1024xf32, #tpu.memory_space<vmem>>, vector<1x1x1024xf32>
      tpu.vector_store %arg5[%c0_10, %c0_11, %c0_12], %6 {strides = array<i32>} : memref<1x1x1024xf32, #tpu.memory_space<vmem>>, vector<1x1x1024xf32>,
    } else {
    }
    %c0_i32_6 = arith.constant 0 : i32
    %10 = arith.cmpi ne, %arg1, %c0_i32_6 : i32
    %11 = arith.extui %10 : i1 to i32
    %c0_i32_7 = arith.constant 0 : i32
    %12 = arith.cmpi ne, %11, %c0_i32_7 : i32
    scf.if %12 {
      %c0_10 = arith.constant 0 : index
      %c0_11 = arith.constant 0 : index
      %c0_12 = arith.constant 0 : index
      %16 = vector.load %arg5[%c0_10, %c0_11, %c0_12] : memref<1x1x1024xf32, #tpu.memory_space<vmem>>, vector<1x1x1024xf32>
      %17 = arith.maximumf %16, %6 : vector<1x1x1024xf32>
      %c0_13 = arith.constant 0 : index
      %c0_14 = arith.constant 0 : index
      %c0_15 = arith.constant 0 : index
      %18 = vector.load %arg5[%c0_13, %c0_14, %c0_15] : memref<1x1x1024xf32, #tpu.memory_space<vmem>>, vector<1x1x1024xf32>
      tpu.vector_store %arg5[%c0_13, %c0_14, %c0_15], %17 {strides = array<i32>} : memref<1x1x1024xf32, #tpu.memory_space<vmem>>, vector<1x1x1024xf32>,
    } else {
    }
    %c0_i32_8 = arith.constant 0 : i32
    %13 = arith.cmpi eq, %arg1, %c0_i32_8 : i32
    %14 = arith.extui %13 : i1 to i32
    %c0_i32_9 = arith.constant 0 : i32
    %15 = arith.cmpi ne, %14, %c0_i32_9 : i32
    scf.if %15 {
      %c0_10 = arith.constant 0 : index
      %c0_11 = arith.constant 0 : index
      %c0_12 = arith.constant 0 : index
      %16 = vector.load %arg5[%c0_10, %c0_11, %c0_12] : memref<1x1x1024xf32, #tpu.memory_space<vmem>>, vector<1x1x1024xf32>
      %c0_13 = arith.constant 0 : index
      %c0_14 = arith.constant 0 : index
      %17 = vector.load %arg4[%c0_13, %c0_14] : memref<1x1024xf32, #tpu.memory_space<vmem>>, vector<1x1024xf32>
      %18 = vector.shape_cast %17 : vector<1x1024xf32> to vector<1x1x1024xf32>
      %19 = arith.addf %16, %18 : vector<1x1x1024xf32>
      %cst_15 = arith.constant 0.000000e+00 : f32
      %20 = vector.broadcast %cst_15 : f32 to vector<1x1x1024xf32>
      %21 = arith.cmpf oge, %19, %20 : vector<1x1x1024xf32>
      %cst_16 = arith.constant 2.000000e-01 : f32
      %22 = vector.broadcast %cst_16 : f32 to vector<1x1x1024xf32>
      %23 = arith.mulf %22, %19 : vector<1x1x1024xf32>
      %24 = arith.select %21, %19, %23 : vector<1x1x1024xi1>, vector<1x1x1024xf32>
      %c0_17 = arith.constant 0 : index
      %c0_18 = arith.constant 0 : index
      %c0_19 = arith.constant 0 : index
      %25 = vector.load %arg5[%c0_17, %c0_18, %c0_19] : memref<1x1x1024xf32, #tpu.memory_space<vmem>>, vector<1x1x1024xf32>
      tpu.vector_store %arg5[%c0_17, %c0_18, %c0_19], %24 {strides = array<i32>} : memref<1x1x1024xf32, #tpu.memory_space<vmem>>, vector<1x1x1024xf32>,
    } else {
    }
    return
  }
  func.func @transform_0(%arg0: i32, %arg1: i32) -> (i32, i32, i32) {
    %c0_i32 = arith.constant 0 : i32
    %c0_i32_0 = arith.constant 0 : i32
    return %arg0, %arg1, %c0_i32 : i32, i32, i32
  }
  func.func @transform_1(%arg0: i32, %arg1: i32) -> (i32, i32) {
    %c0_i32 = arith.constant 0 : i32
    %c0_i32_0 = arith.constant 0 : i32
    %c0_i32_1 = arith.constant 0 : i32
    return %c0_i32, %c0_i32_0 : i32, i32
  }
  func.func @transform_2(%arg0: i32, %arg1: i32) -> (i32, i32) {
    %c0_i32 = arith.constant 0 : i32
    %c0_i32_0 = arith.constant 0 : i32
    %c0_i32_1 = arith.constant 0 : i32
    return %c0_i32, %c0_i32_0 : i32, i32
  }
  func.func @transform_3(%arg0: i32, %arg1: i32) -> (i32, i32, i32) {
    %c0_i32 = arith.constant 0 : i32
    %c0_i32_0 = arith.constant 0 : i32
    %c0_i32_1 = arith.constant 0 : i32
    return %arg0, %c0_i32, %c0_i32_0 : i32, i32, i32
  }
}

module attributes {stable_mosaic.version = 11 : i64} {
  func.func @_tnet_mlp_kernel(%arg0: i32, %arg1: memref<2x1024xf32, #tpu.memory_space<vmem>>, %arg2: memref<1024x512xf32, #tpu.memory_space<vmem>>, %arg3: memref<1x512xf32, #tpu.memory_space<vmem>>, %arg4: memref<512x256xf32, #tpu.memory_space<vmem>>, %arg5: memref<1x256xf32, #tpu.memory_space<vmem>>, %arg6: memref<256x9xf32, #tpu.memory_space<vmem>>, %arg7: memref<1x9xf32, #tpu.memory_space<vmem>>, %arg8: memref<2x9xf32, #tpu.memory_space<vmem>>) attributes {dimension_semantics = [#tpu.dimension_semantics<arbitrary>], iteration_bounds = array<i64: 1>, scalar_prefetch = 0 : i64, scratch_operands = 0 : i64, tpu.core_type = #tpu.core_type<tc>, window_params = [{pipeline_mode = #tpu.pipeline_mode<synchronous>, transform_indices = @transform_0, window_bounds = array<i64: 2, 1024>}, {pipeline_mode = #tpu.pipeline_mode<synchronous>, transform_indices = @transform_1, window_bounds = array<i64: 1024, 512>}, {pipeline_mode = #tpu.pipeline_mode<synchronous>, transform_indices = @transform_2, window_bounds = array<i64: 1, 512>}, {pipeline_mode = #tpu.pipeline_mode<synchronous>, transform_indices = @transform_3, window_bounds = array<i64: 512, 256>}, {pipeline_mode = #tpu.pipeline_mode<synchronous>, transform_indices = @transform_4, window_bounds = array<i64: 1, 256>}, {pipeline_mode = #tpu.pipeline_mode<synchronous>, transform_indices = @transform_5, window_bounds = array<i64: 256, 9>}, {pipeline_mode = #tpu.pipeline_mode<synchronous>, transform_indices = @transform_6, window_bounds = array<i64: 1, 9>}, {pipeline_mode = #tpu.pipeline_mode<synchronous>, transform_indices = @transform_7, window_bounds = array<i64: 2, 9>}]} {
    %c0 = arith.constant 0 : index
    %c0_0 = arith.constant 0 : index
    %0 = vector.load %arg1[%c0, %c0_0] : memref<2x1024xf32, #tpu.memory_space<vmem>>, vector<2x1024xf32>
    %c0_1 = arith.constant 0 : index
    %c0_2 = arith.constant 0 : index
    %1 = vector.load %arg2[%c0_1, %c0_2] : memref<1024x512xf32, #tpu.memory_space<vmem>>, vector<1024x512xf32>
    %cst = arith.constant dense<0.000000e+00> : vector<2x512xf32>
    %2 = tpu.matmul %0, %1, %cst {dimension_numbers = #tpu.dot_dimension_numbers<[1], [0], [0], [1], [0, 0, 1, 1], [], []>} : vector<2x1024xf32>, vector<1024x512xf32>, vector<2x512xf32> -> vector<2x512xf32>
    %c0_3 = arith.constant 0 : index
    %c0_4 = arith.constant 0 : index
    %3 = vector.load %arg3[%c0_3, %c0_4] : memref<1x512xf32, #tpu.memory_space<vmem>>, vector<1x512xf32>
    %4 = vector.broadcast %3 : vector<1x512xf32> to vector<2x512xf32>
    %5 = arith.addf %2, %4 : vector<2x512xf32>
    %cst_5 = arith.constant 0.000000e+00 : f32
    %6 = vector.broadcast %cst_5 : f32 to vector<2x512xf32>
    %7 = arith.cmpf oge, %5, %6 : vector<2x512xf32>
    %cst_6 = arith.constant 2.000000e-01 : f32
    %8 = vector.broadcast %cst_6 : f32 to vector<2x512xf32>
    %9 = arith.mulf %8, %5 : vector<2x512xf32>
    %10 = arith.select %7, %5, %9 : vector<2x512xi1>, vector<2x512xf32>
    %c0_7 = arith.constant 0 : index
    %c0_8 = arith.constant 0 : index
    %11 = vector.load %arg4[%c0_7, %c0_8] : memref<512x256xf32, #tpu.memory_space<vmem>>, vector<512x256xf32>
    %cst_9 = arith.constant dense<0.000000e+00> : vector<2x256xf32>
    %12 = tpu.matmul %10, %11, %cst_9 {dimension_numbers = #tpu.dot_dimension_numbers<[1], [0], [0], [1], [0, 0, 1, 1], [], []>} : vector<2x512xf32>, vector<512x256xf32>, vector<2x256xf32> -> vector<2x256xf32>
    %c0_10 = arith.constant 0 : index
    %c0_11 = arith.constant 0 : index
    %13 = vector.load %arg5[%c0_10, %c0_11] : memref<1x256xf32, #tpu.memory_space<vmem>>, vector<1x256xf32>
    %14 = vector.broadcast %13 : vector<1x256xf32> to vector<2x256xf32>
    %15 = arith.addf %12, %14 : vector<2x256xf32>
    %cst_12 = arith.constant 0.000000e+00 : f32
    %16 = vector.broadcast %cst_12 : f32 to vector<2x256xf32>
    %17 = arith.cmpf oge, %15, %16 : vector<2x256xf32>
    %cst_13 = arith.constant 2.000000e-01 : f32
    %18 = vector.broadcast %cst_13 : f32 to vector<2x256xf32>
    %19 = arith.mulf %18, %15 : vector<2x256xf32>
    %20 = arith.select %17, %15, %19 : vector<2x256xi1>, vector<2x256xf32>
    %c0_14 = arith.constant 0 : index
    %c0_15 = arith.constant 0 : index
    %21 = vector.load %arg6[%c0_14, %c0_15] : memref<256x9xf32, #tpu.memory_space<vmem>>, vector<256x9xf32>
    %cst_16 = arith.constant dense<0.000000e+00> : vector<2x9xf32>
    %22 = tpu.matmul %20, %21, %cst_16 {dimension_numbers = #tpu.dot_dimension_numbers<[1], [0], [0], [1], [0, 0, 1, 1], [], []>} : vector<2x256xf32>, vector<256x9xf32>, vector<2x9xf32> -> vector<2x9xf32>
    %c0_17 = arith.constant 0 : index
    %c0_18 = arith.constant 0 : index
    %23 = vector.load %arg7[%c0_17, %c0_18] : memref<1x9xf32, #tpu.memory_space<vmem>>, vector<1x9xf32>
    %24 = vector.broadcast %23 : vector<1x9xf32> to vector<2x9xf32>
    %25 = arith.addf %22, %24 : vector<2x9xf32>
    %c0_19 = arith.constant 0 : index
    %c0_20 = arith.constant 0 : index
    %26 = vector.load %arg8[%c0_19, %c0_20] : memref<2x9xf32, #tpu.memory_space<vmem>>, vector<2x9xf32>
    tpu.vector_store %arg8[%c0_19, %c0_20], %25 {strides = array<i32>} : memref<2x9xf32, #tpu.memory_space<vmem>>, vector<2x9xf32>,
    return
  }
  func.func @transform_0(%arg0: i32) -> (i32, i32) {
    %c0_i32 = arith.constant 0 : i32
    %c0_i32_0 = arith.constant 0 : i32
    %c0_i32_1 = arith.constant 0 : i32
    return %c0_i32, %c0_i32_0 : i32, i32
  }
  func.func @transform_1(%arg0: i32) -> (i32, i32) {
    %c0_i32 = arith.constant 0 : i32
    %c0_i32_0 = arith.constant 0 : i32
    %c0_i32_1 = arith.constant 0 : i32
    return %c0_i32, %c0_i32_0 : i32, i32
  }
  func.func @transform_2(%arg0: i32) -> (i32, i32) {
    %c0_i32 = arith.constant 0 : i32
    %c0_i32_0 = arith.constant 0 : i32
    %c0_i32_1 = arith.constant 0 : i32
    return %c0_i32, %c0_i32_0 : i32, i32
  }
  func.func @transform_3(%arg0: i32) -> (i32, i32) {
    %c0_i32 = arith.constant 0 : i32
    %c0_i32_0 = arith.constant 0 : i32
    %c0_i32_1 = arith.constant 0 : i32
    return %c0_i32, %c0_i32_0 : i32, i32
  }
  func.func @transform_4(%arg0: i32) -> (i32, i32) {
    %c0_i32 = arith.constant 0 : i32
    %c0_i32_0 = arith.constant 0 : i32
    %c0_i32_1 = arith.constant 0 : i32
    return %c0_i32, %c0_i32_0 : i32, i32
  }
  func.func @transform_5(%arg0: i32) -> (i32, i32) {
    %c0_i32 = arith.constant 0 : i32
    %c0_i32_0 = arith.constant 0 : i32
    %c0_i32_1 = arith.constant 0 : i32
    return %c0_i32, %c0_i32_0 : i32, i32
  }
  func.func @transform_6(%arg0: i32) -> (i32, i32) {
    %c0_i32 = arith.constant 0 : i32
    %c0_i32_0 = arith.constant 0 : i32
    %c0_i32_1 = arith.constant 0 : i32
    return %c0_i32, %c0_i32_0 : i32, i32
  }
  func.func @transform_7(%arg0: i32) -> (i32, i32) {
    %c0_i32 = arith.constant 0 : i32
    %c0_i32_0 = arith.constant 0 : i32
    %c0_i32_1 = arith.constant 0 : i32
    return %c0_i32, %c0_i32_0 : i32, i32
  }
}

module attributes {stable_mosaic.version = 11 : i64} {
  func.func @_edgeconv_kernel(%arg0: i32, %arg1: memref<4x32x3xf32, #tpu.memory_space<vmem>>, %arg2: memref<32x3xf32, #tpu.memory_space<vmem>>, %arg3: memref<3x64xf32, #tpu.memory_space<vmem>>, %arg4: memref<3x64xf32, #tpu.memory_space<vmem>>, %arg5: memref<1x64xf32, #tpu.memory_space<vmem>>, %arg6: memref<64x64xbf16, #tpu.memory_space<vmem>>, %arg7: memref<1x64xf32, #tpu.memory_space<vmem>>, %arg8: memref<32x64xbf16, #tpu.memory_space<vmem>>) attributes {dimension_semantics = [#tpu.dimension_semantics<parallel>], iteration_bounds = array<i64: 1>, scalar_prefetch = 0 : i64, scratch_operands = 0 : i64, tpu.core_type = #tpu.core_type<tc>, window_params = [{transform_indices = @transform_0, window_bounds = array<i64: 4, 32, 3>}, {transform_indices = @transform_1, window_bounds = array<i64: 32, 3>}, {pipeline_mode = #tpu.pipeline_mode<synchronous>, transform_indices = @transform_2, window_bounds = array<i64: 3, 64>}, {pipeline_mode = #tpu.pipeline_mode<synchronous>, transform_indices = @transform_3, window_bounds = array<i64: 3, 64>}, {pipeline_mode = #tpu.pipeline_mode<synchronous>, transform_indices = @transform_4, window_bounds = array<i64: 1, 64>}, {pipeline_mode = #tpu.pipeline_mode<synchronous>, transform_indices = @transform_5, window_bounds = array<i64: 64, 64>}, {pipeline_mode = #tpu.pipeline_mode<synchronous>, transform_indices = @transform_6, window_bounds = array<i64: 1, 64>}, {transform_indices = @transform_7, window_bounds = array<i64: 32, 64>}]} {
    %c0 = arith.constant 0 : index
    %c0_0 = arith.constant 0 : index
    %c0_1 = arith.constant 0 : index
    %0 = vector.load %arg1[%c0, %c0_0, %c0_1] : memref<4x32x3xf32, #tpu.memory_space<vmem>>, vector<4x32x3xf32>
    %1 = vector.shape_cast %0 : vector<4x32x3xf32> to vector<128x3xf32>
    %c0_2 = arith.constant 0 : index
    %c0_3 = arith.constant 0 : index
    %2 = vector.load %arg3[%c0_2, %c0_3] : memref<3x64xf32, #tpu.memory_space<vmem>>, vector<3x64xf32>
    %cst = arith.constant dense<0.000000e+00> : vector<128x64xf32>
    %3 = tpu.matmul %1, %2, %cst {dimension_numbers = #tpu.dot_dimension_numbers<[1], [0], [0], [1], [0, 0, 1, 1], [], []>} : vector<128x3xf32>, vector<3x64xf32>, vector<128x64xf32> -> vector<128x64xf32>
    %c0_4 = arith.constant 0 : index
    %c0_5 = arith.constant 0 : index
    %4 = vector.load %arg2[%c0_4, %c0_5] : memref<32x3xf32, #tpu.memory_space<vmem>>, vector<32x3xf32>
    %c0_6 = arith.constant 0 : index
    %c0_7 = arith.constant 0 : index
    %5 = vector.load %arg4[%c0_6, %c0_7] : memref<3x64xf32, #tpu.memory_space<vmem>>, vector<3x64xf32>
    %cst_8 = arith.constant dense<0.000000e+00> : vector<32x64xf32>
    %6 = tpu.matmul %4, %5, %cst_8 {dimension_numbers = #tpu.dot_dimension_numbers<[1], [0], [0], [1], [0, 0, 1, 1], [], []>} : vector<32x3xf32>, vector<3x64xf32>, vector<32x64xf32> -> vector<32x64xf32>
    %7 = vector.shape_cast %3 : vector<128x64xf32> to vector<4x32x64xf32>
    %c0_9 = arith.constant 0 : index
    %c0_10 = arith.constant 0 : index
    %8 = vector.load %arg5[%c0_9, %c0_10] : memref<1x64xf32, #tpu.memory_space<vmem>>, vector<1x64xf32>
    %9 = vector.broadcast %8 : vector<1x64xf32> to vector<32x64xf32>
    %10 = arith.addf %6, %9 : vector<32x64xf32>
    %11 = vector.shape_cast %10 : vector<32x64xf32> to vector<1x32x64xf32>
    %12 = vector.broadcast %11 : vector<1x32x64xf32> to vector<4x32x64xf32>
    %13 = arith.addf %7, %12 : vector<4x32x64xf32>
    %cst_11 = arith.constant 0.000000e+00 : f32
    %14 = vector.broadcast %cst_11 : f32 to vector<4x32x64xf32>
    %15 = arith.cmpf oge, %13, %14 : vector<4x32x64xf32>
    %cst_12 = arith.constant 2.000000e-01 : f32
    %16 = vector.broadcast %cst_12 : f32 to vector<4x32x64xf32>
    %17 = arith.mulf %16, %13 : vector<4x32x64xf32>
    %18 = arith.select %15, %13, %17 : vector<4x32x64xi1>, vector<4x32x64xf32>
    %19 = vector.shape_cast %18 : vector<4x32x64xf32> to vector<128x64xf32>
    %20 = arith.truncf %19 : vector<128x64xf32> to vector<128x64xbf16>
    %c0_13 = arith.constant 0 : index
    %c0_14 = arith.constant 0 : index
    %21 = vector.load %arg6[%c0_13, %c0_14] : memref<64x64xbf16, #tpu.memory_space<vmem>>, vector<64x64xbf16>
    %cst_15 = arith.constant dense<0.000000e+00> : vector<128x64xf32>
    %22 = tpu.matmul %20, %21, %cst_15 {dimension_numbers = #tpu.dot_dimension_numbers<[1], [0], [0], [1], [0, 0, 1, 1], [], []>} : vector<128x64xbf16>, vector<64x64xbf16>, vector<128x64xf32> -> vector<128x64xf32>
    %23 = vector.shape_cast %22 : vector<128x64xf32> to vector<4x32x64xf32>
    %cst_16 = arith.constant dense<0xFF800000> : vector<32x64xf32>
    %24 = vector.multi_reduction <maximumf>, %23, %cst_16 [0] : vector<4x32x64xf32> to vector<32x64xf32>
    %c0_17 = arith.constant 0 : index
    %c0_18 = arith.constant 0 : index
    %25 = vector.load %arg7[%c0_17, %c0_18] : memref<1x64xf32, #tpu.memory_space<vmem>>, vector<1x64xf32>
    %26 = vector.broadcast %25 : vector<1x64xf32> to vector<32x64xf32>
    %27 = arith.addf %24, %26 : vector<32x64xf32>
    %cst_19 = arith.constant 0.000000e+00 : f32
    %28 = vector.broadcast %cst_19 : f32 to vector<32x64xf32>
    %29 = arith.cmpf oge, %27, %28 : vector<32x64xf32>
    %cst_20 = arith.constant 2.000000e-01 : f32
    %30 = vector.broadcast %cst_20 : f32 to vector<32x64xf32>
    %31 = arith.mulf %30, %27 : vector<32x64xf32>
    %32 = arith.select %29, %27, %31 : vector<32x64xi1>, vector<32x64xf32>
    %33 = arith.truncf %32 : vector<32x64xf32> to vector<32x64xbf16>
    %c0_21 = arith.constant 0 : index
    %c0_22 = arith.constant 0 : index
    %34 = vector.load %arg8[%c0_21, %c0_22] : memref<32x64xbf16, #tpu.memory_space<vmem>>, vector<32x64xbf16>
    tpu.vector_store %arg8[%c0_21, %c0_22], %33 {strides = array<i32>} : memref<32x64xbf16, #tpu.memory_space<vmem>>, vector<32x64xbf16>,
    return
  }
  func.func @transform_0(%arg0: i32) -> (i32, i32, i32) {
    %c0_i32 = arith.constant 0 : i32
    %c0_i32_0 = arith.constant 0 : i32
    %c0_i32_1 = arith.constant 0 : i32
    return %c0_i32, %arg0, %c0_i32_0 : i32, i32, i32
  }
  func.func @transform_1(%arg0: i32) -> (i32, i32) {
    %c0_i32 = arith.constant 0 : i32
    %c0_i32_0 = arith.constant 0 : i32
    return %arg0, %c0_i32 : i32, i32
  }
  func.func @transform_2(%arg0: i32) -> (i32, i32) {
    %c0_i32 = arith.constant 0 : i32
    %c0_i32_0 = arith.constant 0 : i32
    %c0_i32_1 = arith.constant 0 : i32
    return %c0_i32, %c0_i32_0 : i32, i32
  }
  func.func @transform_3(%arg0: i32) -> (i32, i32) {
    %c0_i32 = arith.constant 0 : i32
    %c0_i32_0 = arith.constant 0 : i32
    %c0_i32_1 = arith.constant 0 : i32
    return %c0_i32, %c0_i32_0 : i32, i32
  }
  func.func @transform_4(%arg0: i32) -> (i32, i32) {
    %c0_i32 = arith.constant 0 : i32
    %c0_i32_0 = arith.constant 0 : i32
    %c0_i32_1 = arith.constant 0 : i32
    return %c0_i32, %c0_i32_0 : i32, i32
  }
  func.func @transform_5(%arg0: i32) -> (i32, i32) {
    %c0_i32 = arith.constant 0 : i32
    %c0_i32_0 = arith.constant 0 : i32
    %c0_i32_1 = arith.constant 0 : i32
    return %c0_i32, %c0_i32_0 : i32, i32
  }
  func.func @transform_6(%arg0: i32) -> (i32, i32) {
    %c0_i32 = arith.constant 0 : i32
    %c0_i32_0 = arith.constant 0 : i32
    %c0_i32_1 = arith.constant 0 : i32
    return %c0_i32, %c0_i32_0 : i32, i32
  }
  func.func @transform_7(%arg0: i32) -> (i32, i32) {
    %c0_i32 = arith.constant 0 : i32
    %c0_i32_0 = arith.constant 0 : i32
    return %arg0, %c0_i32 : i32, i32
  }
}

module attributes {stable_mosaic.version = 11 : i64} {
  func.func @_pdist_kernel(%arg0: i32, %arg1: i32, %arg2: memref<1x16x64xbf16, #tpu.memory_space<vmem>>, %arg3: memref<1x1x16xf32, #tpu.memory_space<vmem>>, %arg4: memref<1x16x16xf32, #tpu.memory_space<vmem>>) attributes {dimension_semantics = [#tpu.dimension_semantics<parallel>, #tpu.dimension_semantics<parallel>], iteration_bounds = array<i64: 2, 1>, scalar_prefetch = 0 : i64, scratch_operands = 0 : i64, tpu.core_type = #tpu.core_type<tc>, window_params = [{transform_indices = @transform_0, window_bounds = array<i64: 1, 16, 64>}, {transform_indices = @transform_1, window_bounds = array<i64: 1, 1, 16>}, {transform_indices = @transform_2, window_bounds = array<i64: 1, 16, 16>}]} {
    %c16_i32 = arith.constant 16 : i32
    %0 = arith.muli %arg1, %c16_i32 : i32
    %1 = tpu.assume_multiple %0, 16 : i32
    %c0 = arith.constant 0 : index
    %c0_0 = arith.constant 0 : index
    %c0_1 = arith.constant 0 : index
    %2 = vector.load %arg2[%c0, %c0_0, %c0_1] : memref<1x16x64xbf16, #tpu.memory_space<vmem>>, vector<1x16x64xbf16>
    %3 = vector.shape_cast %2 : vector<1x16x64xbf16> to vector<16x64xbf16>
    %c0_2 = arith.constant 0 : index
    %4 = arith.index_cast %1 : i32 to index
    %c0_3 = arith.constant 0 : index
    %5 = vector.load %arg2[%c0_2, %4, %c0_3] : memref<1x16x64xbf16, #tpu.memory_space<vmem>>, vector<1x16x64xbf16>
    %6 = vector.shape_cast %5 : vector<1x16x64xbf16> to vector<16x64xbf16>
    %cst = arith.constant dense<0.000000e+00> : vector<16x16xf32>
    %7 = tpu.matmul %6, %3, %cst {dimension_numbers = #tpu.dot_dimension_numbers<[1], [1], [0], [0], [0, 0, 1, 0], [], []>} : vector<16x64xbf16>, vector<16x64xbf16>, vector<16x16xf32> -> vector<16x16xf32>
    %8 = arith.extf %6 : vector<16x64xbf16> to vector<16x64xf32>
    %9 = arith.mulf %8, %8 : vector<16x64xf32>
    %cst_4 = arith.constant dense<0.000000e+00> : vector<16xf32>
    %10 = vector.multi_reduction <add>, %9, %cst_4 [1] : vector<16x64xf32> to vector<16xf32>
    %11 = vector.shape_cast %10 : vector<16xf32> to vector<16x1xf32>
    %cst_5 = arith.constant 2.000000e+00 : f32
    %12 = vector.broadcast %cst_5 : f32 to vector<16x16xf32>
    %13 = arith.mulf %12, %7 : vector<16x16xf32>
    %14 = vector.broadcast %11 : vector<16x1xf32> to vector<16x16xf32>
    %15 = arith.subf %13, %14 : vector<16x16xf32>
    %c0_6 = arith.constant 0 : index
    %c0_7 = arith.constant 0 : index
    %c0_8 = arith.constant 0 : index
    %16 = vector.load %arg3[%c0_6, %c0_7, %c0_8] : memref<1x1x16xf32, #tpu.memory_space<vmem>>, vector<1x1x16xf32>
    %17 = vector.shape_cast %16 : vector<1x1x16xf32> to vector<1x16xf32>
    %18 = vector.broadcast %17 : vector<1x16xf32> to vector<16x16xf32>
    %19 = arith.subf %15, %18 : vector<16x16xf32>
    %c0_9 = arith.constant 0 : index
    %c0_10 = arith.constant 0 : index
    %c0_11 = arith.constant 0 : index
    %20 = vector.load %arg4[%c0_9, %c0_10, %c0_11] : memref<1x16x16xf32, #tpu.memory_space<vmem>>, vector<1x16x16xf32>
    %21 = vector.shape_cast %20 : vector<1x16x16xf32> to vector<16x16xf32>
    %22 = vector.shape_cast %19 : vector<16x16xf32> to vector<1x16x16xf32>
    tpu.vector_store %arg4[%c0_9, %c0_10, %c0_11], %22 {strides = array<i32>} : memref<1x16x16xf32, #tpu.memory_space<vmem>>, vector<1x16x16xf32>,
    return
  }
  func.func @transform_0(%arg0: i32, %arg1: i32) -> (i32, i32, i32) {
    %c0_i32 = arith.constant 0 : i32
    %c0_i32_0 = arith.constant 0 : i32
    %c0_i32_1 = arith.constant 0 : i32
    return %arg0, %c0_i32, %c0_i32_0 : i32, i32, i32
  }
  func.func @transform_1(%arg0: i32, %arg1: i32) -> (i32, i32, i32) {
    %c0_i32 = arith.constant 0 : i32
    %c0_i32_0 = arith.constant 0 : i32
    %c0_i32_1 = arith.constant 0 : i32
    return %arg0, %c0_i32, %c0_i32_0 : i32, i32, i32
  }
  func.func @transform_2(%arg0: i32, %arg1: i32) -> (i32, i32, i32) {
    %c0_i32 = arith.constant 0 : i32
    %c0_i32_0 = arith.constant 0 : i32
    return %arg0, %arg1, %c0_i32 : i32, i32, i32
  }
}

module attributes {stable_mosaic.version = 11 : i64} {
  func.func @_edgeconv_kernel(%arg0: i32, %arg1: memref<4x32x64xbf16, #tpu.memory_space<vmem>>, %arg2: memref<32x64xbf16, #tpu.memory_space<vmem>>, %arg3: memref<64x64xbf16, #tpu.memory_space<vmem>>, %arg4: memref<64x64xbf16, #tpu.memory_space<vmem>>, %arg5: memref<1x64xf32, #tpu.memory_space<vmem>>, %arg6: memref<64x64xbf16, #tpu.memory_space<vmem>>, %arg7: memref<1x64xf32, #tpu.memory_space<vmem>>, %arg8: memref<32x64xbf16, #tpu.memory_space<vmem>>) attributes {dimension_semantics = [#tpu.dimension_semantics<parallel>], iteration_bounds = array<i64: 1>, scalar_prefetch = 0 : i64, scratch_operands = 0 : i64, tpu.core_type = #tpu.core_type<tc>, window_params = [{transform_indices = @transform_0, window_bounds = array<i64: 4, 32, 64>}, {transform_indices = @transform_1, window_bounds = array<i64: 32, 64>}, {pipeline_mode = #tpu.pipeline_mode<synchronous>, transform_indices = @transform_2, window_bounds = array<i64: 64, 64>}, {pipeline_mode = #tpu.pipeline_mode<synchronous>, transform_indices = @transform_3, window_bounds = array<i64: 64, 64>}, {pipeline_mode = #tpu.pipeline_mode<synchronous>, transform_indices = @transform_4, window_bounds = array<i64: 1, 64>}, {pipeline_mode = #tpu.pipeline_mode<synchronous>, transform_indices = @transform_5, window_bounds = array<i64: 64, 64>}, {pipeline_mode = #tpu.pipeline_mode<synchronous>, transform_indices = @transform_6, window_bounds = array<i64: 1, 64>}, {transform_indices = @transform_7, window_bounds = array<i64: 32, 64>}]} {
    %c0 = arith.constant 0 : index
    %c0_0 = arith.constant 0 : index
    %c0_1 = arith.constant 0 : index
    %0 = vector.load %arg1[%c0, %c0_0, %c0_1] : memref<4x32x64xbf16, #tpu.memory_space<vmem>>, vector<4x32x64xbf16>
    %1 = vector.shape_cast %0 : vector<4x32x64xbf16> to vector<128x64xbf16>
    %c0_2 = arith.constant 0 : index
    %c0_3 = arith.constant 0 : index
    %2 = vector.load %arg3[%c0_2, %c0_3] : memref<64x64xbf16, #tpu.memory_space<vmem>>, vector<64x64xbf16>
    %cst = arith.constant dense<0.000000e+00> : vector<128x64xf32>
    %3 = tpu.matmul %1, %2, %cst {dimension_numbers = #tpu.dot_dimension_numbers<[1], [0], [0], [1], [0, 0, 1, 1], [], []>} : vector<128x64xbf16>, vector<64x64xbf16>, vector<128x64xf32> -> vector<128x64xf32>
    %c0_4 = arith.constant 0 : index
    %c0_5 = arith.constant 0 : index
    %4 = vector.load %arg2[%c0_4, %c0_5] : memref<32x64xbf16, #tpu.memory_space<vmem>>, vector<32x64xbf16>
    %c0_6 = arith.constant 0 : index
    %c0_7 = arith.constant 0 : index
    %5 = vector.load %arg4[%c0_6, %c0_7] : memref<64x64xbf16, #tpu.memory_space<vmem>>, vector<64x64xbf16>
    %cst_8 = arith.constant dense<0.000000e+00> : vector<32x64xf32>
    %6 = tpu.matmul %4, %5, %cst_8 {dimension_numbers = #tpu.dot_dimension_numbers<[1], [0], [0], [1], [0, 0, 1, 1], [], []>} : vector<32x64xbf16>, vector<64x64xbf16>, vector<32x64xf32> -> vector<32x64xf32>
    %7 = vector.shape_cast %3 : vector<128x64xf32> to vector<4x32x64xf32>
    %c0_9 = arith.constant 0 : index
    %c0_10 = arith.constant 0 : index
    %8 = vector.load %arg5[%c0_9, %c0_10] : memref<1x64xf32, #tpu.memory_space<vmem>>, vector<1x64xf32>
    %9 = vector.broadcast %8 : vector<1x64xf32> to vector<32x64xf32>
    %10 = arith.addf %6, %9 : vector<32x64xf32>
    %11 = vector.shape_cast %10 : vector<32x64xf32> to vector<1x32x64xf32>
    %12 = vector.broadcast %11 : vector<1x32x64xf32> to vector<4x32x64xf32>
    %13 = arith.addf %7, %12 : vector<4x32x64xf32>
    %cst_11 = arith.constant 0.000000e+00 : f32
    %14 = vector.broadcast %cst_11 : f32 to vector<4x32x64xf32>
    %15 = arith.cmpf oge, %13, %14 : vector<4x32x64xf32>
    %cst_12 = arith.constant 2.000000e-01 : f32
    %16 = vector.broadcast %cst_12 : f32 to vector<4x32x64xf32>
    %17 = arith.mulf %16, %13 : vector<4x32x64xf32>
    %18 = arith.select %15, %13, %17 : vector<4x32x64xi1>, vector<4x32x64xf32>
    %19 = vector.shape_cast %18 : vector<4x32x64xf32> to vector<128x64xf32>
    %20 = arith.truncf %19 : vector<128x64xf32> to vector<128x64xbf16>
    %c0_13 = arith.constant 0 : index
    %c0_14 = arith.constant 0 : index
    %21 = vector.load %arg6[%c0_13, %c0_14] : memref<64x64xbf16, #tpu.memory_space<vmem>>, vector<64x64xbf16>
    %cst_15 = arith.constant dense<0.000000e+00> : vector<128x64xf32>
    %22 = tpu.matmul %20, %21, %cst_15 {dimension_numbers = #tpu.dot_dimension_numbers<[1], [0], [0], [1], [0, 0, 1, 1], [], []>} : vector<128x64xbf16>, vector<64x64xbf16>, vector<128x64xf32> -> vector<128x64xf32>
    %23 = vector.shape_cast %22 : vector<128x64xf32> to vector<4x32x64xf32>
    %cst_16 = arith.constant dense<0xFF800000> : vector<32x64xf32>
    %24 = vector.multi_reduction <maximumf>, %23, %cst_16 [0] : vector<4x32x64xf32> to vector<32x64xf32>
    %c0_17 = arith.constant 0 : index
    %c0_18 = arith.constant 0 : index
    %25 = vector.load %arg7[%c0_17, %c0_18] : memref<1x64xf32, #tpu.memory_space<vmem>>, vector<1x64xf32>
    %26 = vector.broadcast %25 : vector<1x64xf32> to vector<32x64xf32>
    %27 = arith.addf %24, %26 : vector<32x64xf32>
    %cst_19 = arith.constant 0.000000e+00 : f32
    %28 = vector.broadcast %cst_19 : f32 to vector<32x64xf32>
    %29 = arith.cmpf oge, %27, %28 : vector<32x64xf32>
    %cst_20 = arith.constant 2.000000e-01 : f32
    %30 = vector.broadcast %cst_20 : f32 to vector<32x64xf32>
    %31 = arith.mulf %30, %27 : vector<32x64xf32>
    %32 = arith.select %29, %27, %31 : vector<32x64xi1>, vector<32x64xf32>
    %33 = arith.truncf %32 : vector<32x64xf32> to vector<32x64xbf16>
    %c0_21 = arith.constant 0 : index
    %c0_22 = arith.constant 0 : index
    %34 = vector.load %arg8[%c0_21, %c0_22] : memref<32x64xbf16, #tpu.memory_space<vmem>>, vector<32x64xbf16>
    tpu.vector_store %arg8[%c0_21, %c0_22], %33 {strides = array<i32>} : memref<32x64xbf16, #tpu.memory_space<vmem>>, vector<32x64xbf16>,
    return
  }
  func.func @transform_0(%arg0: i32) -> (i32, i32, i32) {
    %c0_i32 = arith.constant 0 : i32
    %c0_i32_0 = arith.constant 0 : i32
    %c0_i32_1 = arith.constant 0 : i32
    return %c0_i32, %arg0, %c0_i32_0 : i32, i32, i32
  }
  func.func @transform_1(%arg0: i32) -> (i32, i32) {
    %c0_i32 = arith.constant 0 : i32
    %c0_i32_0 = arith.constant 0 : i32
    return %arg0, %c0_i32 : i32, i32
  }
  func.func @transform_2(%arg0: i32) -> (i32, i32) {
    %c0_i32 = arith.constant 0 : i32
    %c0_i32_0 = arith.constant 0 : i32
    %c0_i32_1 = arith.constant 0 : i32
    return %c0_i32, %c0_i32_0 : i32, i32
  }
  func.func @transform_3(%arg0: i32) -> (i32, i32) {
    %c0_i32 = arith.constant 0 : i32
    %c0_i32_0 = arith.constant 0 : i32
    %c0_i32_1 = arith.constant 0 : i32
    return %c0_i32, %c0_i32_0 : i32, i32
  }
  func.func @transform_4(%arg0: i32) -> (i32, i32) {
    %c0_i32 = arith.constant 0 : i32
    %c0_i32_0 = arith.constant 0 : i32
    %c0_i32_1 = arith.constant 0 : i32
    return %c0_i32, %c0_i32_0 : i32, i32
  }
  func.func @transform_5(%arg0: i32) -> (i32, i32) {
    %c0_i32 = arith.constant 0 : i32
    %c0_i32_0 = arith.constant 0 : i32
    %c0_i32_1 = arith.constant 0 : i32
    return %c0_i32, %c0_i32_0 : i32, i32
  }
  func.func @transform_6(%arg0: i32) -> (i32, i32) {
    %c0_i32 = arith.constant 0 : i32
    %c0_i32_0 = arith.constant 0 : i32
    %c0_i32_1 = arith.constant 0 : i32
    return %c0_i32, %c0_i32_0 : i32, i32
  }
  func.func @transform_7(%arg0: i32) -> (i32, i32) {
    %c0_i32 = arith.constant 0 : i32
    %c0_i32_0 = arith.constant 0 : i32
    return %arg0, %c0_i32 : i32, i32
  }
}

module attributes {stable_mosaic.version = 11 : i64} {
  func.func @_edgeconv_kernel(%arg0: i32, %arg1: memref<4x32x64xbf16, #tpu.memory_space<vmem>>, %arg2: memref<32x64xbf16, #tpu.memory_space<vmem>>, %arg3: memref<64x64xbf16, #tpu.memory_space<vmem>>, %arg4: memref<64x64xbf16, #tpu.memory_space<vmem>>, %arg5: memref<1x64xf32, #tpu.memory_space<vmem>>, %arg6: memref<32x64xbf16, #tpu.memory_space<vmem>>) attributes {dimension_semantics = [#tpu.dimension_semantics<parallel>], iteration_bounds = array<i64: 1>, scalar_prefetch = 0 : i64, scratch_operands = 0 : i64, tpu.core_type = #tpu.core_type<tc>, window_params = [{transform_indices = @transform_0, window_bounds = array<i64: 4, 32, 64>}, {transform_indices = @transform_1, window_bounds = array<i64: 32, 64>}, {pipeline_mode = #tpu.pipeline_mode<synchronous>, transform_indices = @transform_2, window_bounds = array<i64: 64, 64>}, {pipeline_mode = #tpu.pipeline_mode<synchronous>, transform_indices = @transform_3, window_bounds = array<i64: 64, 64>}, {pipeline_mode = #tpu.pipeline_mode<synchronous>, transform_indices = @transform_4, window_bounds = array<i64: 1, 64>}, {transform_indices = @transform_5, window_bounds = array<i64: 32, 64>}]} {
    %c0 = arith.constant 0 : index
    %c0_0 = arith.constant 0 : index
    %c0_1 = arith.constant 0 : index
    %0 = vector.load %arg1[%c0, %c0_0, %c0_1] : memref<4x32x64xbf16, #tpu.memory_space<vmem>>, vector<4x32x64xbf16>
    %1 = vector.shape_cast %0 : vector<4x32x64xbf16> to vector<128x64xbf16>
    %c0_2 = arith.constant 0 : index
    %c0_3 = arith.constant 0 : index
    %2 = vector.load %arg3[%c0_2, %c0_3] : memref<64x64xbf16, #tpu.memory_space<vmem>>, vector<64x64xbf16>
    %cst = arith.constant dense<0.000000e+00> : vector<128x64xf32>
    %3 = tpu.matmul %1, %2, %cst {dimension_numbers = #tpu.dot_dimension_numbers<[1], [0], [0], [1], [0, 0, 1, 1], [], []>} : vector<128x64xbf16>, vector<64x64xbf16>, vector<128x64xf32> -> vector<128x64xf32>
    %c0_4 = arith.constant 0 : index
    %c0_5 = arith.constant 0 : index
    %4 = vector.load %arg2[%c0_4, %c0_5] : memref<32x64xbf16, #tpu.memory_space<vmem>>, vector<32x64xbf16>
    %c0_6 = arith.constant 0 : index
    %c0_7 = arith.constant 0 : index
    %5 = vector.load %arg4[%c0_6, %c0_7] : memref<64x64xbf16, #tpu.memory_space<vmem>>, vector<64x64xbf16>
    %cst_8 = arith.constant dense<0.000000e+00> : vector<32x64xf32>
    %6 = tpu.matmul %4, %5, %cst_8 {dimension_numbers = #tpu.dot_dimension_numbers<[1], [0], [0], [1], [0, 0, 1, 1], [], []>} : vector<32x64xbf16>, vector<64x64xbf16>, vector<32x64xf32> -> vector<32x64xf32>
    %7 = vector.shape_cast %3 : vector<128x64xf32> to vector<4x32x64xf32>
    %cst_9 = arith.constant dense<0xFF800000> : vector<32x64xf32>
    %8 = vector.multi_reduction <maximumf>, %7, %cst_9 [0] : vector<4x32x64xf32> to vector<32x64xf32>
    %9 = arith.addf %8, %6 : vector<32x64xf32>
    %c0_10 = arith.constant 0 : index
    %c0_11 = arith.constant 0 : index
    %10 = vector.load %arg5[%c0_10, %c0_11] : memref<1x64xf32, #tpu.memory_space<vmem>>, vector<1x64xf32>
    %11 = vector.broadcast %10 : vector<1x64xf32> to vector<32x64xf32>
    %12 = arith.addf %9, %11 : vector<32x64xf32>
    %cst_12 = arith.constant 0.000000e+00 : f32
    %13 = vector.broadcast %cst_12 : f32 to vector<32x64xf32>
    %14 = arith.cmpf oge, %12, %13 : vector<32x64xf32>
    %cst_13 = arith.constant 2.000000e-01 : f32
    %15 = vector.broadcast %cst_13 : f32 to vector<32x64xf32>
    %16 = arith.mulf %15, %12 : vector<32x64xf32>
    %17 = arith.select %14, %12, %16 : vector<32x64xi1>, vector<32x64xf32>
    %18 = arith.truncf %17 : vector<32x64xf32> to vector<32x64xbf16>
    %c0_14 = arith.constant 0 : index
    %c0_15 = arith.constant 0 : index
    %19 = vector.load %arg6[%c0_14, %c0_15] : memref<32x64xbf16, #tpu.memory_space<vmem>>, vector<32x64xbf16>
    tpu.vector_store %arg6[%c0_14, %c0_15], %18 {strides = array<i32>} : memref<32x64xbf16, #tpu.memory_space<vmem>>, vector<32x64xbf16>,
    return
  }
  func.func @transform_0(%arg0: i32) -> (i32, i32, i32) {
    %c0_i32 = arith.constant 0 : i32
    %c0_i32_0 = arith.constant 0 : i32
    %c0_i32_1 = arith.constant 0 : i32
    return %c0_i32, %arg0, %c0_i32_0 : i32, i32, i32
  }
  func.func @transform_1(%arg0: i32) -> (i32, i32) {
    %c0_i32 = arith.constant 0 : i32
    %c0_i32_0 = arith.constant 0 : i32
    return %arg0, %c0_i32 : i32, i32
  }
  func.func @transform_2(%arg0: i32) -> (i32, i32) {
    %c0_i32 = arith.constant 0 : i32
    %c0_i32_0 = arith.constant 0 : i32
    %c0_i32_1 = arith.constant 0 : i32
    return %c0_i32, %c0_i32_0 : i32, i32
  }
  func.func @transform_3(%arg0: i32) -> (i32, i32) {
    %c0_i32 = arith.constant 0 : i32
    %c0_i32_0 = arith.constant 0 : i32
    %c0_i32_1 = arith.constant 0 : i32
    return %c0_i32, %c0_i32_0 : i32, i32
  }
  func.func @transform_4(%arg0: i32) -> (i32, i32) {
    %c0_i32 = arith.constant 0 : i32
    %c0_i32_0 = arith.constant 0 : i32
    %c0_i32_1 = arith.constant 0 : i32
    return %c0_i32, %c0_i32_0 : i32, i32
  }
  func.func @transform_5(%arg0: i32) -> (i32, i32) {
    %c0_i32 = arith.constant 0 : i32
    %c0_i32_0 = arith.constant 0 : i32
    return %arg0, %c0_i32 : i32, i32
  }
}

module attributes {stable_mosaic.version = 11 : i64} {
  func.func @_conv_rowmax_kernel(%arg0: i32, %arg1: i32, %arg2: memref<1x16x64xbf16, #tpu.memory_space<vmem>>, %arg3: memref<1x16x64xbf16, #tpu.memory_space<vmem>>, %arg4: memref<1x16x64xbf16, #tpu.memory_space<vmem>>, %arg5: memref<64x1024xbf16, #tpu.memory_space<vmem>>, %arg6: memref<64x1024xbf16, #tpu.memory_space<vmem>>, %arg7: memref<64x1024xbf16, #tpu.memory_space<vmem>>, %arg8: memref<1x1024xf32, #tpu.memory_space<vmem>>, %arg9: memref<1x1x1024xf32, #tpu.memory_space<vmem>>) attributes {dimension_semantics = [#tpu.dimension_semantics<parallel>, #tpu.dimension_semantics<arbitrary>], iteration_bounds = array<i64: 2, 1>, scalar_prefetch = 0 : i64, scratch_operands = 0 : i64, tpu.core_type = #tpu.core_type<tc>, window_params = [{transform_indices = @transform_0, window_bounds = array<i64: 1, 16, 64>}, {transform_indices = @transform_1, window_bounds = array<i64: 1, 16, 64>}, {transform_indices = @transform_2, window_bounds = array<i64: 1, 16, 64>}, {pipeline_mode = #tpu.pipeline_mode<synchronous>, transform_indices = @transform_3, window_bounds = array<i64: 64, 1024>}, {pipeline_mode = #tpu.pipeline_mode<synchronous>, transform_indices = @transform_4, window_bounds = array<i64: 64, 1024>}, {pipeline_mode = #tpu.pipeline_mode<synchronous>, transform_indices = @transform_5, window_bounds = array<i64: 64, 1024>}, {pipeline_mode = #tpu.pipeline_mode<synchronous>, transform_indices = @transform_6, window_bounds = array<i64: 1, 1024>}, {transform_indices = @transform_7, window_bounds = array<i64: 1, 1, 1024>}]} {
    %c0 = arith.constant 0 : index
    %c0_0 = arith.constant 0 : index
    %c0_1 = arith.constant 0 : index
    %0 = vector.load %arg2[%c0, %c0_0, %c0_1] : memref<1x16x64xbf16, #tpu.memory_space<vmem>>, vector<1x16x64xbf16>
    %1 = vector.shape_cast %0 : vector<1x16x64xbf16> to vector<16x64xbf16>
    %c0_2 = arith.constant 0 : index
    %c0_3 = arith.constant 0 : index
    %2 = vector.load %arg5[%c0_2, %c0_3] : memref<64x1024xbf16, #tpu.memory_space<vmem>>, vector<64x1024xbf16>
    %cst = arith.constant dense<0.000000e+00> : vector<16x1024xf32>
    %3 = tpu.matmul %1, %2, %cst {dimension_numbers = #tpu.dot_dimension_numbers<[1], [0], [0], [1], [0, 0, 1, 1], [], []>} : vector<16x64xbf16>, vector<64x1024xbf16>, vector<16x1024xf32> -> vector<16x1024xf32>
    %c0_4 = arith.constant 0 : index
    %c0_5 = arith.constant 0 : index
    %c0_6 = arith.constant 0 : index
    %4 = vector.load %arg3[%c0_4, %c0_5, %c0_6] : memref<1x16x64xbf16, #tpu.memory_space<vmem>>, vector<1x16x64xbf16>
    %5 = vector.shape_cast %4 : vector<1x16x64xbf16> to vector<16x64xbf16>
    %c0_7 = arith.constant 0 : index
    %c0_8 = arith.constant 0 : index
    %6 = vector.load %arg6[%c0_7, %c0_8] : memref<64x1024xbf16, #tpu.memory_space<vmem>>, vector<64x1024xbf16>
    %cst_9 = arith.constant dense<0.000000e+00> : vector<16x1024xf32>
    %7 = tpu.matmul %5, %6, %cst_9 {dimension_numbers = #tpu.dot_dimension_numbers<[1], [0], [0], [1], [0, 0, 1, 1], [], []>} : vector<16x64xbf16>, vector<64x1024xbf16>, vector<16x1024xf32> -> vector<16x1024xf32>
    %8 = arith.addf %3, %7 : vector<16x1024xf32>
    %c0_10 = arith.constant 0 : index
    %c0_11 = arith.constant 0 : index
    %c0_12 = arith.constant 0 : index
    %9 = vector.load %arg4[%c0_10, %c0_11, %c0_12] : memref<1x16x64xbf16, #tpu.memory_space<vmem>>, vector<1x16x64xbf16>
    %10 = vector.shape_cast %9 : vector<1x16x64xbf16> to vector<16x64xbf16>
    %c0_13 = arith.constant 0 : index
    %c0_14 = arith.constant 0 : index
    %11 = vector.load %arg7[%c0_13, %c0_14] : memref<64x1024xbf16, #tpu.memory_space<vmem>>, vector<64x1024xbf16>
    %cst_15 = arith.constant dense<0.000000e+00> : vector<16x1024xf32>
    %12 = tpu.matmul %10, %11, %cst_15 {dimension_numbers = #tpu.dot_dimension_numbers<[1], [0], [0], [1], [0, 0, 1, 1], [], []>} : vector<16x64xbf16>, vector<64x1024xbf16>, vector<16x1024xf32> -> vector<16x1024xf32>
    %13 = arith.addf %8, %12 : vector<16x1024xf32>
    %cst_16 = arith.constant dense<0xFF800000> : vector<1024xf32>
    %14 = vector.multi_reduction <maximumf>, %13, %cst_16 [0] : vector<16x1024xf32> to vector<1024xf32>
    %15 = vector.shape_cast %14 : vector<1024xf32> to vector<1x1024xf32>
    %16 = vector.shape_cast %15 : vector<1x1024xf32> to vector<1x1x1024xf32>
    %c0_i32 = arith.constant 0 : i32
    %17 = arith.cmpi eq, %arg1, %c0_i32 : i32
    %18 = arith.extui %17 : i1 to i32
    %c0_i32_17 = arith.constant 0 : i32
    %19 = arith.cmpi ne, %18, %c0_i32_17 : i32
    scf.if %19 {
      %c0_22 = arith.constant 0 : index
      %c0_23 = arith.constant 0 : index
      %c0_24 = arith.constant 0 : index
      %26 = vector.load %arg9[%c0_22, %c0_23, %c0_24] : memref<1x1x1024xf32, #tpu.memory_space<vmem>>, vector<1x1x1024xf32>
      tpu.vector_store %arg9[%c0_22, %c0_23, %c0_24], %16 {strides = array<i32>} : memref<1x1x1024xf32, #tpu.memory_space<vmem>>, vector<1x1x1024xf32>,
    } else {
    }
    %c0_i32_18 = arith.constant 0 : i32
    %20 = arith.cmpi ne, %arg1, %c0_i32_18 : i32
    %21 = arith.extui %20 : i1 to i32
    %c0_i32_19 = arith.constant 0 : i32
    %22 = arith.cmpi ne, %21, %c0_i32_19 : i32
    scf.if %22 {
      %c0_22 = arith.constant 0 : index
      %c0_23 = arith.constant 0 : index
      %c0_24 = arith.constant 0 : index
      %26 = vector.load %arg9[%c0_22, %c0_23, %c0_24] : memref<1x1x1024xf32, #tpu.memory_space<vmem>>, vector<1x1x1024xf32>
      %27 = arith.maximumf %26, %16 : vector<1x1x1024xf32>
      %c0_25 = arith.constant 0 : index
      %c0_26 = arith.constant 0 : index
      %c0_27 = arith.constant 0 : index
      %28 = vector.load %arg9[%c0_25, %c0_26, %c0_27] : memref<1x1x1024xf32, #tpu.memory_space<vmem>>, vector<1x1x1024xf32>
      tpu.vector_store %arg9[%c0_25, %c0_26, %c0_27], %27 {strides = array<i32>} : memref<1x1x1024xf32, #tpu.memory_space<vmem>>, vector<1x1x1024xf32>,
    } else {
    }
    %c0_i32_20 = arith.constant 0 : i32
    %23 = arith.cmpi eq, %arg1, %c0_i32_20 : i32
    %24 = arith.extui %23 : i1 to i32
    %c0_i32_21 = arith.constant 0 : i32
    %25 = arith.cmpi ne, %24, %c0_i32_21 : i32
    scf.if %25 {
      %c0_22 = arith.constant 0 : index
      %c0_23 = arith.constant 0 : index
      %c0_24 = arith.constant 0 : index
      %26 = vector.load %arg9[%c0_22, %c0_23, %c0_24] : memref<1x1x1024xf32, #tpu.memory_space<vmem>>, vector<1x1x1024xf32>
      %c0_25 = arith.constant 0 : index
      %c0_26 = arith.constant 0 : index
      %27 = vector.load %arg8[%c0_25, %c0_26] : memref<1x1024xf32, #tpu.memory_space<vmem>>, vector<1x1024xf32>
      %28 = vector.shape_cast %27 : vector<1x1024xf32> to vector<1x1x1024xf32>
      %29 = arith.addf %26, %28 : vector<1x1x1024xf32>
      %cst_27 = arith.constant 0.000000e+00 : f32
      %30 = vector.broadcast %cst_27 : f32 to vector<1x1x1024xf32>
      %31 = arith.cmpf oge, %29, %30 : vector<1x1x1024xf32>
      %cst_28 = arith.constant 2.000000e-01 : f32
      %32 = vector.broadcast %cst_28 : f32 to vector<1x1x1024xf32>
      %33 = arith.mulf %32, %29 : vector<1x1x1024xf32>
      %34 = arith.select %31, %29, %33 : vector<1x1x1024xi1>, vector<1x1x1024xf32>
      %c0_29 = arith.constant 0 : index
      %c0_30 = arith.constant 0 : index
      %c0_31 = arith.constant 0 : index
      %35 = vector.load %arg9[%c0_29, %c0_30, %c0_31] : memref<1x1x1024xf32, #tpu.memory_space<vmem>>, vector<1x1x1024xf32>
      tpu.vector_store %arg9[%c0_29, %c0_30, %c0_31], %34 {strides = array<i32>} : memref<1x1x1024xf32, #tpu.memory_space<vmem>>, vector<1x1x1024xf32>,
    } else {
    }
    return
  }
  func.func @transform_0(%arg0: i32, %arg1: i32) -> (i32, i32, i32) {
    %c0_i32 = arith.constant 0 : i32
    %c0_i32_0 = arith.constant 0 : i32
    return %arg0, %arg1, %c0_i32 : i32, i32, i32
  }
  func.func @transform_1(%arg0: i32, %arg1: i32) -> (i32, i32, i32) {
    %c0_i32 = arith.constant 0 : i32
    %c0_i32_0 = arith.constant 0 : i32
    return %arg0, %arg1, %c0_i32 : i32, i32, i32
  }
  func.func @transform_2(%arg0: i32, %arg1: i32) -> (i32, i32, i32) {
    %c0_i32 = arith.constant 0 : i32
    %c0_i32_0 = arith.constant 0 : i32
    return %arg0, %arg1, %c0_i32 : i32, i32, i32
  }
  func.func @transform_3(%arg0: i32, %arg1: i32) -> (i32, i32) {
    %c0_i32 = arith.constant 0 : i32
    %c0_i32_0 = arith.constant 0 : i32
    %c0_i32_1 = arith.constant 0 : i32
    return %c0_i32, %c0_i32_0 : i32, i32
  }
  func.func @transform_4(%arg0: i32, %arg1: i32) -> (i32, i32) {
    %c0_i32 = arith.constant 0 : i32
    %c0_i32_0 = arith.constant 0 : i32
    %c0_i32_1 = arith.constant 0 : i32
    return %c0_i32, %c0_i32_0 : i32, i32
  }
  func.func @transform_5(%arg0: i32, %arg1: i32) -> (i32, i32) {
    %c0_i32 = arith.constant 0 : i32
    %c0_i32_0 = arith.constant 0 : i32
    %c0_i32_1 = arith.constant 0 : i32
    return %c0_i32, %c0_i32_0 : i32, i32
  }
  func.func @transform_6(%arg0: i32, %arg1: i32) -> (i32, i32) {
    %c0_i32 = arith.constant 0 : i32
    %c0_i32_0 = arith.constant 0 : i32
    %c0_i32_1 = arith.constant 0 : i32
    return %c0_i32, %c0_i32_0 : i32, i32
  }
  func.func @transform_7(%arg0: i32, %arg1: i32) -> (i32, i32, i32) {
    %c0_i32 = arith.constant 0 : i32
    %c0_i32_0 = arith.constant 0 : i32
    %c0_i32_1 = arith.constant 0 : i32
    return %arg0, %c0_i32, %c0_i32_0 : i32, i32, i32
  }
}

module attributes {stable_mosaic.version = 11 : i64} {
  func.func @_glp_kernel(%arg0: i32, %arg1: memref<2x1024xf32, #tpu.memory_space<vmem>>, %arg2: memref<2x16xf32, #tpu.memory_space<vmem>>, %arg3: memref<16x64xf32, #tpu.memory_space<vmem>>, %arg4: memref<1x64xf32, #tpu.memory_space<vmem>>, %arg5: memref<1024x256xf32, #tpu.memory_space<vmem>>, %arg6: memref<64x256xf32, #tpu.memory_space<vmem>>, %arg7: memref<1x256xf32, #tpu.memory_space<vmem>>, %arg8: memref<2x256xf32, #tpu.memory_space<vmem>>) attributes {dimension_semantics = [#tpu.dimension_semantics<arbitrary>], iteration_bounds = array<i64: 1>, scalar_prefetch = 0 : i64, scratch_operands = 0 : i64, tpu.core_type = #tpu.core_type<tc>, window_params = [{pipeline_mode = #tpu.pipeline_mode<synchronous>, transform_indices = @transform_0, window_bounds = array<i64: 2, 1024>}, {pipeline_mode = #tpu.pipeline_mode<synchronous>, transform_indices = @transform_1, window_bounds = array<i64: 2, 16>}, {pipeline_mode = #tpu.pipeline_mode<synchronous>, transform_indices = @transform_2, window_bounds = array<i64: 16, 64>}, {pipeline_mode = #tpu.pipeline_mode<synchronous>, transform_indices = @transform_3, window_bounds = array<i64: 1, 64>}, {pipeline_mode = #tpu.pipeline_mode<synchronous>, transform_indices = @transform_4, window_bounds = array<i64: 1024, 256>}, {pipeline_mode = #tpu.pipeline_mode<synchronous>, transform_indices = @transform_5, window_bounds = array<i64: 64, 256>}, {pipeline_mode = #tpu.pipeline_mode<synchronous>, transform_indices = @transform_6, window_bounds = array<i64: 1, 256>}, {pipeline_mode = #tpu.pipeline_mode<synchronous>, transform_indices = @transform_7, window_bounds = array<i64: 2, 256>}]} {
    %c0 = arith.constant 0 : index
    %c0_0 = arith.constant 0 : index
    %0 = vector.load %arg2[%c0, %c0_0] : memref<2x16xf32, #tpu.memory_space<vmem>>, vector<2x16xf32>
    %c0_1 = arith.constant 0 : index
    %c0_2 = arith.constant 0 : index
    %1 = vector.load %arg3[%c0_1, %c0_2] : memref<16x64xf32, #tpu.memory_space<vmem>>, vector<16x64xf32>
    %cst = arith.constant dense<0.000000e+00> : vector<2x64xf32>
    %2 = tpu.matmul %0, %1, %cst {dimension_numbers = #tpu.dot_dimension_numbers<[1], [0], [0], [1], [0, 0, 1, 1], [], []>} : vector<2x16xf32>, vector<16x64xf32>, vector<2x64xf32> -> vector<2x64xf32>
    %c0_3 = arith.constant 0 : index
    %c0_4 = arith.constant 0 : index
    %3 = vector.load %arg4[%c0_3, %c0_4] : memref<1x64xf32, #tpu.memory_space<vmem>>, vector<1x64xf32>
    %4 = vector.broadcast %3 : vector<1x64xf32> to vector<2x64xf32>
    %5 = arith.addf %2, %4 : vector<2x64xf32>
    %cst_5 = arith.constant 0.000000e+00 : f32
    %6 = vector.broadcast %cst_5 : f32 to vector<2x64xf32>
    %7 = arith.cmpf oge, %5, %6 : vector<2x64xf32>
    %cst_6 = arith.constant 2.000000e-01 : f32
    %8 = vector.broadcast %cst_6 : f32 to vector<2x64xf32>
    %9 = arith.mulf %8, %5 : vector<2x64xf32>
    %10 = arith.select %7, %5, %9 : vector<2x64xi1>, vector<2x64xf32>
    %c0_7 = arith.constant 0 : index
    %c0_8 = arith.constant 0 : index
    %11 = vector.load %arg1[%c0_7, %c0_8] : memref<2x1024xf32, #tpu.memory_space<vmem>>, vector<2x1024xf32>
    %c0_9 = arith.constant 0 : index
    %c0_10 = arith.constant 0 : index
    %12 = vector.load %arg5[%c0_9, %c0_10] : memref<1024x256xf32, #tpu.memory_space<vmem>>, vector<1024x256xf32>
    %cst_11 = arith.constant dense<0.000000e+00> : vector<2x256xf32>
    %13 = tpu.matmul %11, %12, %cst_11 {dimension_numbers = #tpu.dot_dimension_numbers<[1], [0], [0], [1], [0, 0, 1, 1], [], []>} : vector<2x1024xf32>, vector<1024x256xf32>, vector<2x256xf32> -> vector<2x256xf32>
    %c0_12 = arith.constant 0 : index
    %c0_13 = arith.constant 0 : index
    %14 = vector.load %arg6[%c0_12, %c0_13] : memref<64x256xf32, #tpu.memory_space<vmem>>, vector<64x256xf32>
    %cst_14 = arith.constant dense<0.000000e+00> : vector<2x256xf32>
    %15 = tpu.matmul %10, %14, %cst_14 {dimension_numbers = #tpu.dot_dimension_numbers<[1], [0], [0], [1], [0, 0, 1, 1], [], []>} : vector<2x64xf32>, vector<64x256xf32>, vector<2x256xf32> -> vector<2x256xf32>
    %16 = arith.addf %13, %15 : vector<2x256xf32>
    %c0_15 = arith.constant 0 : index
    %c0_16 = arith.constant 0 : index
    %17 = vector.load %arg7[%c0_15, %c0_16] : memref<1x256xf32, #tpu.memory_space<vmem>>, vector<1x256xf32>
    %18 = vector.broadcast %17 : vector<1x256xf32> to vector<2x256xf32>
    %19 = arith.addf %16, %18 : vector<2x256xf32>
    %c0_17 = arith.constant 0 : index
    %c0_18 = arith.constant 0 : index
    %20 = vector.load %arg8[%c0_17, %c0_18] : memref<2x256xf32, #tpu.memory_space<vmem>>, vector<2x256xf32>
    tpu.vector_store %arg8[%c0_17, %c0_18], %19 {strides = array<i32>} : memref<2x256xf32, #tpu.memory_space<vmem>>, vector<2x256xf32>,
    return
  }
  func.func @transform_0(%arg0: i32) -> (i32, i32) {
    %c0_i32 = arith.constant 0 : i32
    %c0_i32_0 = arith.constant 0 : i32
    %c0_i32_1 = arith.constant 0 : i32
    return %c0_i32, %c0_i32_0 : i32, i32
  }
  func.func @transform_1(%arg0: i32) -> (i32, i32) {
    %c0_i32 = arith.constant 0 : i32
    %c0_i32_0 = arith.constant 0 : i32
    %c0_i32_1 = arith.constant 0 : i32
    return %c0_i32, %c0_i32_0 : i32, i32
  }
  func.func @transform_2(%arg0: i32) -> (i32, i32) {
    %c0_i32 = arith.constant 0 : i32
    %c0_i32_0 = arith.constant 0 : i32
    %c0_i32_1 = arith.constant 0 : i32
    return %c0_i32, %c0_i32_0 : i32, i32
  }
  func.func @transform_3(%arg0: i32) -> (i32, i32) {
    %c0_i32 = arith.constant 0 : i32
    %c0_i32_0 = arith.constant 0 : i32
    %c0_i32_1 = arith.constant 0 : i32
    return %c0_i32, %c0_i32_0 : i32, i32
  }
  func.func @transform_4(%arg0: i32) -> (i32, i32) {
    %c0_i32 = arith.constant 0 : i32
    %c0_i32_0 = arith.constant 0 : i32
    %c0_i32_1 = arith.constant 0 : i32
    return %c0_i32, %c0_i32_0 : i32, i32
  }
  func.func @transform_5(%arg0: i32) -> (i32, i32) {
    %c0_i32 = arith.constant 0 : i32
    %c0_i32_0 = arith.constant 0 : i32
    %c0_i32_1 = arith.constant 0 : i32
    return %c0_i32, %c0_i32_0 : i32, i32
  }
  func.func @transform_6(%arg0: i32) -> (i32, i32) {
    %c0_i32 = arith.constant 0 : i32
    %c0_i32_0 = arith.constant 0 : i32
    %c0_i32_1 = arith.constant 0 : i32
    return %c0_i32, %c0_i32_0 : i32, i32
  }
  func.func @transform_7(%arg0: i32) -> (i32, i32) {
    %c0_i32 = arith.constant 0 : i32
    %c0_i32_0 = arith.constant 0 : i32
    %c0_i32_1 = arith.constant 0 : i32
    return %c0_i32, %c0_i32_0 : i32, i32
  }
}

module attributes {stable_mosaic.version = 11 : i64} {
  func.func @_head_kernel(%arg0: i32, %arg1: i32, %arg2: memref<1x16x64xbf16, #tpu.memory_space<vmem>>, %arg3: memref<1x16x64xbf16, #tpu.memory_space<vmem>>, %arg4: memref<1x16x64xbf16, #tpu.memory_space<vmem>>, %arg5: memref<1x1x256xf32, #tpu.memory_space<vmem>>, %arg6: memref<64x256xbf16, #tpu.memory_space<vmem>>, %arg7: memref<64x256xbf16, #tpu.memory_space<vmem>>, %arg8: memref<64x256xbf16, #tpu.memory_space<vmem>>, %arg9: memref<256x256xbf16, #tpu.memory_space<vmem>>, %arg10: memref<1x256xf32, #tpu.memory_space<vmem>>, %arg11: memref<256x128xbf16, #tpu.memory_space<vmem>>, %arg12: memref<1x128xf32, #tpu.memory_space<vmem>>, %arg13: memref<8x128xbf16, #tpu.memory_space<vmem>>, %arg14: memref<1x8x16xf32, #tpu.memory_space<vmem>>) attributes {dimension_semantics = [#tpu.dimension_semantics<parallel>, #tpu.dimension_semantics<parallel>], iteration_bounds = array<i64: 2, 1>, scalar_prefetch = 0 : i64, scratch_operands = 0 : i64, tpu.core_type = #tpu.core_type<tc>, window_params = [{transform_indices = @transform_0, window_bounds = array<i64: 1, 16, 64>}, {transform_indices = @transform_1, window_bounds = array<i64: 1, 16, 64>}, {transform_indices = @transform_2, window_bounds = array<i64: 1, 16, 64>}, {transform_indices = @transform_3, window_bounds = array<i64: 1, 1, 256>}, {pipeline_mode = #tpu.pipeline_mode<synchronous>, transform_indices = @transform_4, window_bounds = array<i64: 64, 256>}, {pipeline_mode = #tpu.pipeline_mode<synchronous>, transform_indices = @transform_5, window_bounds = array<i64: 64, 256>}, {pipeline_mode = #tpu.pipeline_mode<synchronous>, transform_indices = @transform_6, window_bounds = array<i64: 64, 256>}, {pipeline_mode = #tpu.pipeline_mode<synchronous>, transform_indices = @transform_7, window_bounds = array<i64: 256, 256>}, {pipeline_mode = #tpu.pipeline_mode<synchronous>, transform_indices = @transform_8, window_bounds = array<i64: 1, 256>}, {pipeline_mode = #tpu.pipeline_mode<synchronous>, transform_indices = @transform_9, window_bounds = array<i64: 256, 128>}, {pipeline_mode = #tpu.pipeline_mode<synchronous>, transform_indices = @transform_10, window_bounds = array<i64: 1, 128>}, {pipeline_mode = #tpu.pipeline_mode<synchronous>, transform_indices = @transform_11, window_bounds = array<i64: 8, 128>}, {transform_indices = @transform_12, window_bounds = array<i64: 1, 8, 16>}]} {
    %c0 = arith.constant 0 : index
    %c0_0 = arith.constant 0 : index
    %c0_1 = arith.constant 0 : index
    %0 = vector.load %arg2[%c0, %c0_0, %c0_1] : memref<1x16x64xbf16, #tpu.memory_space<vmem>>, vector<1x16x64xbf16>
    %1 = vector.shape_cast %0 : vector<1x16x64xbf16> to vector<16x64xbf16>
    %c0_2 = arith.constant 0 : index
    %c0_3 = arith.constant 0 : index
    %2 = vector.load %arg6[%c0_2, %c0_3] : memref<64x256xbf16, #tpu.memory_space<vmem>>, vector<64x256xbf16>
    %cst = arith.constant dense<0.000000e+00> : vector<16x256xf32>
    %3 = tpu.matmul %1, %2, %cst {dimension_numbers = #tpu.dot_dimension_numbers<[1], [0], [0], [1], [0, 0, 1, 1], [], []>} : vector<16x64xbf16>, vector<64x256xbf16>, vector<16x256xf32> -> vector<16x256xf32>
    %c0_4 = arith.constant 0 : index
    %c0_5 = arith.constant 0 : index
    %c0_6 = arith.constant 0 : index
    %4 = vector.load %arg3[%c0_4, %c0_5, %c0_6] : memref<1x16x64xbf16, #tpu.memory_space<vmem>>, vector<1x16x64xbf16>
    %5 = vector.shape_cast %4 : vector<1x16x64xbf16> to vector<16x64xbf16>
    %c0_7 = arith.constant 0 : index
    %c0_8 = arith.constant 0 : index
    %6 = vector.load %arg7[%c0_7, %c0_8] : memref<64x256xbf16, #tpu.memory_space<vmem>>, vector<64x256xbf16>
    %cst_9 = arith.constant dense<0.000000e+00> : vector<16x256xf32>
    %7 = tpu.matmul %5, %6, %cst_9 {dimension_numbers = #tpu.dot_dimension_numbers<[1], [0], [0], [1], [0, 0, 1, 1], [], []>} : vector<16x64xbf16>, vector<64x256xbf16>, vector<16x256xf32> -> vector<16x256xf32>
    %8 = arith.addf %3, %7 : vector<16x256xf32>
    %c0_10 = arith.constant 0 : index
    %c0_11 = arith.constant 0 : index
    %c0_12 = arith.constant 0 : index
    %9 = vector.load %arg4[%c0_10, %c0_11, %c0_12] : memref<1x16x64xbf16, #tpu.memory_space<vmem>>, vector<1x16x64xbf16>
    %10 = vector.shape_cast %9 : vector<1x16x64xbf16> to vector<16x64xbf16>
    %c0_13 = arith.constant 0 : index
    %c0_14 = arith.constant 0 : index
    %11 = vector.load %arg8[%c0_13, %c0_14] : memref<64x256xbf16, #tpu.memory_space<vmem>>, vector<64x256xbf16>
    %cst_15 = arith.constant dense<0.000000e+00> : vector<16x256xf32>
    %12 = tpu.matmul %10, %11, %cst_15 {dimension_numbers = #tpu.dot_dimension_numbers<[1], [0], [0], [1], [0, 0, 1, 1], [], []>} : vector<16x64xbf16>, vector<64x256xbf16>, vector<16x256xf32> -> vector<16x256xf32>
    %13 = arith.addf %8, %12 : vector<16x256xf32>
    %c0_16 = arith.constant 0 : index
    %c0_17 = arith.constant 0 : index
    %c0_18 = arith.constant 0 : index
    %14 = vector.load %arg5[%c0_16, %c0_17, %c0_18] : memref<1x1x256xf32, #tpu.memory_space<vmem>>, vector<1x1x256xf32>
    %15 = vector.shape_cast %14 : vector<1x1x256xf32> to vector<1x256xf32>
    %16 = vector.broadcast %15 : vector<1x256xf32> to vector<16x256xf32>
    %17 = arith.addf %13, %16 : vector<16x256xf32>
    %cst_19 = arith.constant 0.000000e+00 : f32
    %18 = vector.broadcast %cst_19 : f32 to vector<16x256xf32>
    %19 = arith.cmpf oge, %17, %18 : vector<16x256xf32>
    %cst_20 = arith.constant 2.000000e-01 : f32
    %20 = vector.broadcast %cst_20 : f32 to vector<16x256xf32>
    %21 = arith.mulf %20, %17 : vector<16x256xf32>
    %22 = arith.select %19, %17, %21 : vector<16x256xi1>, vector<16x256xf32>
    %23 = arith.truncf %22 : vector<16x256xf32> to vector<16x256xbf16>
    %c0_21 = arith.constant 0 : index
    %c0_22 = arith.constant 0 : index
    %24 = vector.load %arg9[%c0_21, %c0_22] : memref<256x256xbf16, #tpu.memory_space<vmem>>, vector<256x256xbf16>
    %cst_23 = arith.constant dense<0.000000e+00> : vector<16x256xf32>
    %25 = tpu.matmul %23, %24, %cst_23 {dimension_numbers = #tpu.dot_dimension_numbers<[1], [0], [0], [1], [0, 0, 1, 1], [], []>} : vector<16x256xbf16>, vector<256x256xbf16>, vector<16x256xf32> -> vector<16x256xf32>
    %c0_24 = arith.constant 0 : index
    %c0_25 = arith.constant 0 : index
    %26 = vector.load %arg10[%c0_24, %c0_25] : memref<1x256xf32, #tpu.memory_space<vmem>>, vector<1x256xf32>
    %27 = vector.broadcast %26 : vector<1x256xf32> to vector<16x256xf32>
    %28 = arith.addf %25, %27 : vector<16x256xf32>
    %cst_26 = arith.constant 0.000000e+00 : f32
    %29 = vector.broadcast %cst_26 : f32 to vector<16x256xf32>
    %30 = arith.cmpf oge, %28, %29 : vector<16x256xf32>
    %cst_27 = arith.constant 2.000000e-01 : f32
    %31 = vector.broadcast %cst_27 : f32 to vector<16x256xf32>
    %32 = arith.mulf %31, %28 : vector<16x256xf32>
    %33 = arith.select %30, %28, %32 : vector<16x256xi1>, vector<16x256xf32>
    %34 = arith.truncf %33 : vector<16x256xf32> to vector<16x256xbf16>
    %c0_28 = arith.constant 0 : index
    %c0_29 = arith.constant 0 : index
    %35 = vector.load %arg11[%c0_28, %c0_29] : memref<256x128xbf16, #tpu.memory_space<vmem>>, vector<256x128xbf16>
    %cst_30 = arith.constant dense<0.000000e+00> : vector<16x128xf32>
    %36 = tpu.matmul %34, %35, %cst_30 {dimension_numbers = #tpu.dot_dimension_numbers<[1], [0], [0], [1], [0, 0, 1, 1], [], []>} : vector<16x256xbf16>, vector<256x128xbf16>, vector<16x128xf32> -> vector<16x128xf32>
    %c0_31 = arith.constant 0 : index
    %c0_32 = arith.constant 0 : index
    %37 = vector.load %arg12[%c0_31, %c0_32] : memref<1x128xf32, #tpu.memory_space<vmem>>, vector<1x128xf32>
    %38 = vector.broadcast %37 : vector<1x128xf32> to vector<16x128xf32>
    %39 = arith.addf %36, %38 : vector<16x128xf32>
    %cst_33 = arith.constant 0.000000e+00 : f32
    %40 = vector.broadcast %cst_33 : f32 to vector<16x128xf32>
    %41 = arith.cmpf oge, %39, %40 : vector<16x128xf32>
    %cst_34 = arith.constant 2.000000e-01 : f32
    %42 = vector.broadcast %cst_34 : f32 to vector<16x128xf32>
    %43 = arith.mulf %42, %39 : vector<16x128xf32>
    %44 = arith.select %41, %39, %43 : vector<16x128xi1>, vector<16x128xf32>
    %c0_35 = arith.constant 0 : index
    %c0_36 = arith.constant 0 : index
    %45 = vector.load %arg13[%c0_35, %c0_36] : memref<8x128xbf16, #tpu.memory_space<vmem>>, vector<8x128xbf16>
    %46 = arith.truncf %44 : vector<16x128xf32> to vector<16x128xbf16>
    %cst_37 = arith.constant dense<0.000000e+00> : vector<8x16xf32>
    %47 = tpu.matmul %45, %46, %cst_37 {dimension_numbers = #tpu.dot_dimension_numbers<[1], [1], [0], [0], [0, 0, 1, 0], [], []>} : vector<8x128xbf16>, vector<16x128xbf16>, vector<8x16xf32> -> vector<8x16xf32>
    %c0_38 = arith.constant 0 : index
    %c0_39 = arith.constant 0 : index
    %c0_40 = arith.constant 0 : index
    %48 = vector.load %arg14[%c0_38, %c0_39, %c0_40] : memref<1x8x16xf32, #tpu.memory_space<vmem>>, vector<1x8x16xf32>
    %49 = vector.shape_cast %48 : vector<1x8x16xf32> to vector<8x16xf32>
    %50 = vector.shape_cast %47 : vector<8x16xf32> to vector<1x8x16xf32>
    tpu.vector_store %arg14[%c0_38, %c0_39, %c0_40], %50 {strides = array<i32>} : memref<1x8x16xf32, #tpu.memory_space<vmem>>, vector<1x8x16xf32>,
    return
  }
  func.func @transform_0(%arg0: i32, %arg1: i32) -> (i32, i32, i32) {
    %c0_i32 = arith.constant 0 : i32
    %c0_i32_0 = arith.constant 0 : i32
    return %arg0, %arg1, %c0_i32 : i32, i32, i32
  }
  func.func @transform_1(%arg0: i32, %arg1: i32) -> (i32, i32, i32) {
    %c0_i32 = arith.constant 0 : i32
    %c0_i32_0 = arith.constant 0 : i32
    return %arg0, %arg1, %c0_i32 : i32, i32, i32
  }
  func.func @transform_2(%arg0: i32, %arg1: i32) -> (i32, i32, i32) {
    %c0_i32 = arith.constant 0 : i32
    %c0_i32_0 = arith.constant 0 : i32
    return %arg0, %arg1, %c0_i32 : i32, i32, i32
  }
  func.func @transform_3(%arg0: i32, %arg1: i32) -> (i32, i32, i32) {
    %c0_i32 = arith.constant 0 : i32
    %c0_i32_0 = arith.constant 0 : i32
    %c0_i32_1 = arith.constant 0 : i32
    return %arg0, %c0_i32, %c0_i32_0 : i32, i32, i32
  }
  func.func @transform_4(%arg0: i32, %arg1: i32) -> (i32, i32) {
    %c0_i32 = arith.constant 0 : i32
    %c0_i32_0 = arith.constant 0 : i32
    %c0_i32_1 = arith.constant 0 : i32
    return %c0_i32, %c0_i32_0 : i32, i32
  }
  func.func @transform_5(%arg0: i32, %arg1: i32) -> (i32, i32) {
    %c0_i32 = arith.constant 0 : i32
    %c0_i32_0 = arith.constant 0 : i32
    %c0_i32_1 = arith.constant 0 : i32
    return %c0_i32, %c0_i32_0 : i32, i32
  }
  func.func @transform_6(%arg0: i32, %arg1: i32) -> (i32, i32) {
    %c0_i32 = arith.constant 0 : i32
    %c0_i32_0 = arith.constant 0 : i32
    %c0_i32_1 = arith.constant 0 : i32
    return %c0_i32, %c0_i32_0 : i32, i32
  }
  func.func @transform_7(%arg0: i32, %arg1: i32) -> (i32, i32) {
    %c0_i32 = arith.constant 0 : i32
    %c0_i32_0 = arith.constant 0 : i32
    %c0_i32_1 = arith.constant 0 : i32
    return %c0_i32, %c0_i32_0 : i32, i32
  }
  func.func @transform_8(%arg0: i32, %arg1: i32) -> (i32, i32) {
    %c0_i32 = arith.constant 0 : i32
    %c0_i32_0 = arith.constant 0 : i32
    %c0_i32_1 = arith.constant 0 : i32
    return %c0_i32, %c0_i32_0 : i32, i32
  }
  func.func @transform_9(%arg0: i32, %arg1: i32) -> (i32, i32) {
    %c0_i32 = arith.constant 0 : i32
    %c0_i32_0 = arith.constant 0 : i32
    %c0_i32_1 = arith.constant 0 : i32
    return %c0_i32, %c0_i32_0 : i32, i32
  }
  func.func @transform_10(%arg0: i32, %arg1: i32) -> (i32, i32) {
    %c0_i32 = arith.constant 0 : i32
    %c0_i32_0 = arith.constant 0 : i32
    %c0_i32_1 = arith.constant 0 : i32
    return %c0_i32, %c0_i32_0 : i32, i32
  }
  func.func @transform_11(%arg0: i32, %arg1: i32) -> (i32, i32) {
    %c0_i32 = arith.constant 0 : i32
    %c0_i32_0 = arith.constant 0 : i32
    %c0_i32_1 = arith.constant 0 : i32
    return %c0_i32, %c0_i32_0 : i32, i32
  }
  func.func @transform_12(%arg0: i32, %arg1: i32) -> (i32, i32, i32) {
    %c0_i32 = arith.constant 0 : i32
    %c0_i32_0 = arith.constant 0 : i32
    return %arg0, %c0_i32, %arg1 : i32, i32, i32
  }
}

</mosaic_0001>

<llo_original>
// kernel: dgcnn_partseg_forward.13
$region0: #{dgcnn_partseg_forward.13}
  #allocation0 [shape = 'u32[]', space=smem, size = 0x4, offset = 0x4, fixed_abs, tag = 'smem constant byte address 0x4 - core index']
  #allocation1 [shape = 'u32[144,128]{1,0:T(1,128)}', space=vmem, size = 0x12000, scoped, tag = 'internal scratch']
  %s0 = inlined_call_operand.vmem [shape: f32[2,16,3], index: 0, kind: input, shape index: {}]
  %s1 = inlined_call_operand.vmem [shape: f32[2,1,16], index: 1, kind: input, shape index: {}]
  %s2 = inlined_call_operand.vmem [shape: f32[2,16,16], index: 2, kind: output, shape index: {}]
  %s3 = sld [smem:[#allocation0]]
  $region41: #{dgcnn_partseg_forward.13} parent=0
    _
  %s5 = ssub.s32 1, %s3
  %s6 = scalar_select 0, %s5, %s3
  loop: start=0, step=1, limit=4
  $region2: #{dgcnn_partseg_forward.13} parent=0 // loop_pre_header
    _
  $region3: #{dgcnn_partseg_forward.13} parent=0 // loop_header
    %s8 = sphi 0, %s12
    %p9 = scmp.ge.s32.totalorder %s8, 4
    %s15 = sphi 0, %s27
    %s16 = sphi 0, %s23
    %s17 = sphi 0, %s15
    %s18 = sphi 0, %s16
    %s19 = sphi 0, %s17
    %s20 = sphi 0, %s18
    %s30 = sphi 0, %s32
    %s33 = sphi 0, %s30
    %s34 = sphi 0, %s33
    %s50 = sphi 0, %s34
    %s56 = sphi 0, %s58
    %s59 = sphi 0, %s56
    %s60 = sphi 0, %s59
    %s76 = sphi 0, %s60
    %s84 = sphi 0, %s86
    %s87 = sphi 0, %s84
    %s88 = sphi 0, %s87
    %s104 = sphi 0, %s88
  $region4: #{dgcnn_partseg_forward.13} parent=0 // loop_header_branch
    %11 = sbr.rel (%p9) target = $region8
  $region5: #{dgcnn_partseg_forward.13} parent=0 // loop_body
    %s13 = ssub.s32 %s8, 1
    %s14 = ssub.s32 %s8, 2
    %s21 = sadd.s32 1, %s16
    %p22 = scmp.ge.s32.totalorder %s21, 1
    %s23 = scalar_select %p22, 0, %s21
    %s24 = sadd.s32 1, %s15
    %s25 = scalar_select %p22, %s24, %s15
    %p26 = scmp.ge.s32.totalorder %s25, 2
    %s27 = scalar_select %p26, 0, %s25
    %s28 = ssub.s32 %s15, %s27
    %p29 = scmp.eq.s32.totalorder %s28, 0
    %s31 = sadd.s32 %s30, 1
    %s32 = scalar_select %p29, %s30, %s31
    %p35 = pneg %p29
    %p36 = scmp.eq.s32.totalorder %s8, 1
    %p37 = por %p35, %p36
    %p38 = scmp.ne.s32.totalorder %s30, %s33
    %p39 = scmp.eq.s32.totalorder %s8, 0
    %p40 = por %p38, %p39
    %p41 = scmp.ne.s32.totalorder %s30, %s33
    %p42 = scmp.eq.s32.totalorder %s13, 1
    %p43 = por %p41, %p42
    %p44 = scmp.ne.s32.totalorder %s33, %s34
    %p45 = scmp.eq.s32.totalorder %s13, 0
    %p46 = por %p44, %p45
    %p47 = scmp.ne.s32.totalorder %s33, %s34
    %p48 = scmp.eq.s32.totalorder %s14, 1
    %p49 = por %p47, %p48
    %p51 = scmp.ne.s32.totalorder %s34, %s50
    %p52 = scmp.eq.s32.totalorder %s14, 0
    %p53 = por %p51, %p52
    %s54 = ssub.s32 %s15, %s27
    %p55 = scmp.eq.s32.totalorder %s54, 0
    %s57 = sadd.s32 %s56, 1
    %s58 = scalar_select %p55, %s56, %s57
    %p61 = pneg %p55
    %p62 = scmp.eq.s32.totalorder %s8, 1
    %p63 = por %p61, %p62
    %p64 = scmp.ne.s32.totalorder %s56, %s59
    %p65 = scmp.eq.s32.totalorder %s8, 0
    %p66 = por %p64, %p65
    %p67 = scmp.ne.s32.totalorder %s56, %s59
    %p68 = scmp.eq.s32.totalorder %s13, 1
    %p69 = por %p67, %p68
    %p70 = scmp.ne.s32.totalorder %s59, %s60
    %p71 = scmp.eq.s32.totalorder %s13, 0
    %p72 = por %p70, %p71
    %p73 = scmp.ne.s32.totalorder %s59, %s60
    %p74 = scmp.eq.s32.totalorder %s14, 1
    %p75 = por %p73, %p74
    %p77 = scmp.ne.s32.totalorder %s60, %s76
    %p78 = scmp.eq.s32.totalorder %s14, 0
    %p79 = por %p77, %p78
    %s80 = ssub.s32 %s15, %s27
    %s81 = ssub.s32 %s16, %s23
    %s82 = sor.u32 %s80, %s81
    %p83 = scmp.eq.s32.totalorder %s82, 0
    %s85 = sadd.s32 %s84, 1
    %s86 = scalar_select %p83, %s84, %s85
    %p89 = pneg %p83
    %p90 = scmp.eq.s32.totalorder %s8, 1
    %p91 = por %p89, %p90
    %p92 = scmp.ne.s32.totalorder %s84, %s87
    %p93 = scmp.eq.s32.totalorder %s8, 0
    %p94 = por %p92, %p93
    %p95 = scmp.ne.s32.totalorder %s84, %s87
    %p96 = scmp.eq.s32.totalorder %s13, 1
    %p97 = por %p95, %p96
    %p98 = scmp.ne.s32.totalorder %s87, %s88
    %p99 = scmp.eq.s32.totalorder %s13, 0
    %p100 = por %p98, %p99
    %p101 = scmp.ne.s32.totalorder %s87, %s88
    %p102 = scmp.eq.s32.totalorder %s14, 1
    %p103 = por %p101, %p102
    %p105 = scmp.ne.s32.totalorder %s88, %s104
    %p106 = scmp.eq.s32.totalorder %s14, 0
    %p107 = por %p105, %p106
    %p108 = scmp.le.s32.totalorder 1, %s8
    %p109 = scmp.lt.s32.totalorder %s8, 3
    %p110 = pnand %p108, %p109
    %p111 = pneg %p110
    // Predicated region
    $region9: #{dgcnn_partseg_forward.13} parent=5 // pred_check
      _
    $region10: #{dgcnn_partseg_forward.13} parent=5 // pred_check_branch
      %113 = sbr.rel (%p110) target = $region12
    $region11: #{dgcnn_partseg_forward.13} parent=5 // pred_region
      %s114 = ssub.s32 %s8, 1
    $region12: #{dgcnn_partseg_forward.13} parent=5 // pred_fallthru
      _
    %p115 = scmp.lt.s32.totalorder %s8, 2
    // Predicated region
    $region13: #{dgcnn_partseg_forward.13} parent=5 // pred_check
      %p116 = pneg %p115
    $region14: #{dgcnn_partseg_forward.13} parent=5 // pred_check_branch
      %118 = sbr.rel (%p116) target = $region16
    $region15: #{dgcnn_partseg_forward.13} parent=5 // pred_region
      // Predicated region
      $region17: #{dgcnn_partseg_forward.13} parent=15 // pred_check
        %p119 = pneg %p40
      $region18: #{dgcnn_partseg_forward.13} parent=15 // pred_check_branch
        %121 = sbr.rel (%p119) target = $region20
      $region19: #{dgcnn_partseg_forward.13} parent=15 // pred_region
        %p122 = scmp.lt.s32.totalorder %s15, 1
        %s123 = scalar_select %p122, %s15, 1
        %s124 = smul.addr %s123, 2
        %s125 = smul.addr %s124, 8
        %s126 = scalar_lea.vmem %s0, %s125
      $region20: #{dgcnn_partseg_forward.13} parent=15 // pred_fallthru
        _
      // Predicated region
      $region21: #{dgcnn_partseg_forward.13} parent=15 // pred_check
        %p127 = pneg %p66
      $region22: #{dgcnn_partseg_forward.13} parent=15 // pred_check_branch
        %129 = sbr.rel (%p127) target = $region24
      $region23: #{dgcnn_partseg_forward.13} parent=15 // pred_region
        %p130 = scmp.lt.s32.totalorder %s15, 1
        %s131 = scalar_select %p130, %s15, 1
        %s132 = scalar_lea.vmem %s1, %s131
      $region24: #{dgcnn_partseg_forward.13} parent=15 // pred_fallthru
        _
    $region16: #{dgcnn_partseg_forward.13} parent=5 // pred_fallthru
      _
    %p133 = scmp.le.s32.totalorder 1, %s8
    %p134 = scmp.lt.s32.totalorder %s8, 3
    %p135 = pnand %p133, %p134
    %p136 = pneg %p135
    // Predicated region
    $region25: #{dgcnn_partseg_forward.13} parent=5 // pred_check
      _
    $region26: #{dgcnn_partseg_forward.13} parent=5 // pred_check_branch
      %138 = sbr.rel (%p135) target = $region28
    $region27: #{dgcnn_partseg_forward.13} parent=5 // pred_region
      %s139 = ssub.s32 %s8, 1
      %p140 = scmp.lt.s32.totalorder %s17, 1
      %s141 = scalar_select %p140, %s17, 1
      %s142 = smul.addr %s141, 2
      %s143 = smul.addr %s142, 8
      %s144 = scalar_lea.vmem %s0, %s143
      %p145 = pneg %p46
      %p146 = pneg %p43
      %p147 = scmp.lt.s32.totalorder %s17, 1
      %s148 = scalar_select %p147, %s17, 1
      %s149 = scalar_lea.vmem %s1, %s148
      %p150 = pneg %p72
      %p151 = pneg %p69
      %p152 = pneg %p100
      %p153 = pneg %p97
      %s154 = smul.u32 2, %s18
      %p155 = scmp.lt.s32.totalorder %s17, 1
      %s156 = scalar_select %p155, %s17, 1
      %p157 = scmp.lt.s32.totalorder %s154, 1
      %s158 = scalar_select %p157, %s154, 1
      %s159 = smul.addr %s156, 2
      %s160 = sadd.s32 %s158, %s159
      %s161 = smul.addr %s160, 8
      %s162 = scalar_lea.vmem %s2, %s161
      %p163 = scmp.lt.s32.totalorder %s17, 1
      %s164 = scalar_select %p163, %s17, 1
      %s165 = smul.addr %s164, 2
      %s166 = smul.addr %s165, 8
      %s167 = scalar_lea.vmem %s0, %s166
      %p168 = scmp.lt.s32.totalorder %s17, 1
      %s169 = scalar_select %p168, %s17, 1
      %s170 = scalar_lea.vmem %s1, %s169
      %s171 = smul.u32 2, %s18
      %p172 = scmp.lt.s32.totalorder %s17, 1
      %s173 = scalar_select %p172, %s17, 1
      %p174 = scmp.lt.s32.totalorder %s171, 1
      %s175 = scalar_select %p174, %s171, 1
      %s176 = smul.addr %s173, 2
      %s177 = sadd.s32 %s175, %s176
      %s178 = smul.addr %s177, 8
      %s179 = scalar_lea.vmem %s2, %s178
      %s180 = smul.u32 2, %s18
      %s181 = smul.u32 %s18, 16
      %v182 = vld [vmem:[%s167] sm:$0xff]
      %v183 = vld [vmem:[%s167 + $0x8] sm:$0xff]
      %s184 = scalar_lea.vmem %s167, %s181
      %v185 = vld [vmem:[%s184] sm:$0xff]
      %v186 = vld [vmem:[%s184 + $0x8] sm:$0xff]
      %vm187 = vcmask 23552
      %v189 = vsel %vm187, %v185, 0
      %v192 = vsel %vm187, %v186, 0
      %v195 = vsel %vm187, %v182, 0
      %v198 = vsel %vm187, %v183, 0
      %200 = vmatprep.subr.mxu0 0.0
      %201 = vmatpush1.xpose.msra.mxu0 %v195
      %202 = vmatprep.subr.mxu0 0.0
      %203 = vmatpush1.xpose.msra.mxu0 %v198
      %204 = vmatprep.subr.mxu0 0.0
      %205 = vmatpush1.xpose.msra.mxu0 0.0
      %206 = vmatprep.subr.mxu0 0.0
      %207 = vmatpush1.xpose.msra.mxu0 0.0
      %208 = vmatprep.subr.mxu0 0.0
      %209 = vmatpush1.xpose.msra.mxu0 0.0
      %210 = vmatprep.subr.mxu0 0.0
      %211 = vmatpush1.xpose.msra.mxu0 0.0
      %212 = vmatprep.subr.mxu0 0.0
      %213 = vmatpush1.xpose.msra.mxu0 0.0
      %214 = vmatprep.subr.mxu0 0.0
      %215 = vmatpush1.xpose.msra.mxu0 0.0
      %216 = vmatprep.subr.mxu0 0.0
      %217 = vmatpush1.xpose.msra.mxu0 0.0
      %218 = vmatprep.subr.mxu0 0.0
      %219 = vmatpush1.xpose.msra.mxu0 0.0
      %220 = vmatprep.subr.mxu0 0.0
      %221 = vmatpush1.xpose.msra.mxu0 0.0
      %222 = vmatprep.subr.mxu0 0.0
      %223 = vmatpush1.xpose.msra.mxu0 0.0
      %224 = vmatprep.subr.mxu0 0.0
      %225 = vmatpush1.xpose.msra.mxu0 0.0
      %226 = vmatprep.subr.mxu0 0.0
      %227 = vmatpush1.xpose.msra.mxu0 0.0
      %228 = vmatprep.subr.mxu0 0.0
      %229 = vmatpush1.xpose.msra.mxu0 0.0
      %230 = vmatprep.subr.mxu0 0.0
      %231 = vmatpush1.xpose.msra.mxu0 0.0
      %232 = vmatprep.subr.mxu0 0.0
      %233 = vmatpush1.xpose.msra.mxu0 0.0
      %234 = vmatprep.subr.mxu0 0.0
      %235 = vmatpush1.xpose.msra.mxu0 0.0
      %236 = vmatprep.subr.mxu0 0.0
      %237 = vmatpush1.xpose.msra.mxu0 0.0
      %238 = vmatprep.subr.mxu0 0.0
      %239 = vmatpush1.xpose.msra.mxu0 0.0
      %240 = vmatprep.subr.mxu0 0.0
      %241 = vmatpush1.xpose.msra.mxu0 0.0
      %242 = vmatprep.subr.mxu0 0.0
      %243 = vmatpush1.xpose.msra.mxu0 0.0
      %244 = vmatprep.subr.mxu0 0.0
      %245 = vmatpush1.xpose.msra.mxu0 0.0
      %246 = vmatprep.subr.mxu0 0.0
      %247 = vmatpush1.xpose.msra.mxu0 0.0
      %248 = vmatprep.subr.mxu0 0.0
      %249 = vmatpush1.xpose.msra.mxu0 0.0
      %250 = vmatprep.subr.mxu0 0.0
      %251 = vmatpush1.xpose.msra.mxu0 0.0
      %252 = vmatprep.subr.mxu0 0.0
      %253 = vmatpush1.xpose.msra.mxu0 0.0
      %254 = vmatprep.subr.mxu0 0.0
      %255 = vmatpush1.xpose.msra.mxu0 0.0
      %256 = vmatprep.subr.mxu0 0.0
      %257 = vmatpush1.xpose.msra.mxu0 0.0
      %258 = vmatprep.subr.mxu0 0.0
      %259 = vmatpush1.xpose.msra.mxu0 0.0
      %260 = vmatprep.subr.mxu0 0.0
      %261 = vmatpush1.xpose.msra.mxu0 0.0
      %262 = vmatprep.subr.mxu0 0.0
      %263 = vmatpush1.xpose.msra.mxu0 0.0
      %264 = vmatprep.mubr.f32.mxu0 0.0
      %265 = vmatmul.mubr.f32.gmra.mrb[0].mxu0 %v189
      %v266 = vpop.f32.mrb[0].mxu0
      %v267 = vadd.f32 0.0, %v266
      %v268 = vpop.f32.mrb[0].mxu0
      %269 = vmatprep.mubr.f32.mxu0 0.0
      %270 = vmatmul.mubr.f32.gmra.mrb[0].mxu0 %v192
      %v271 = vpop.f32.mrb[0].mxu0
      %v272 = vadd.f32 0.0, %v271
      %v273 = vpop.f32.mrb[0].mxu0
      %274 = vdwg.mxu0
      %v275 = vmul.f32 %v185, %v185
      %v276 = vmul.f32 %v186, %v186
      %v277 = vsel %vm187, %v275, 0.0
      %278 = vadd.xlane.f32.xlu0 %v277
      %v279 = vpop.xlane.xlu0 %278
      %v280 = vsel %vm187, %v276, 0.0
      %281 = vadd.xlane.f32.xlu0 %v280
      %v282 = vpop.xlane.xlu0 %281
      %v283 = vmul.f32 %v267, 2.0
      %v284 = vmul.f32 %v272, 2.0
      %v285 = vsub.f32 %v283, %v279
      %v286 = vsub.f32 %v284, %v282
      %v287 = vld [vmem:[%s170] sm:$0x1]
      %v289 = vlaneseq
      %v290 = vshrl.u32 %v289, 7
      %v291 = vsub.s32 0, %v290
      %v292 = vrot.slane %v287, %v291
      %v294 = vsub.f32 %v285, %v292
      %v295 = vsub.f32 %v286, %v292
      %vm296 = vcmask 130048
      %297 = vst.msk [vmem:[%s179] sm:$0xff] %vm296, %v294
      %298 = vst.msk [vmem:[%s179 + $0x8] sm:$0xff] %vm296, %v295
      %s299 = smul.u32 2, %s18
      %p300 = scmp.lt.s32.totalorder %s17, 1
      %s301 = scalar_select %p300, %s17, 1
      %p302 = scmp.lt.s32.totalorder %s299, 1
      %s303 = scalar_select %p302, %s299, 1
      %s304 = smul.addr %s301, 2
      %s305 = sadd.s32 %s303, %s304
      %s306 = smul.addr %s305, 8
      %s307 = scalar_lea.vmem %s2, %s306
      // Predicated region
      $region29: #{dgcnn_partseg_forward.13} parent=27 // pred_check
        %p308 = pneg %p97
      $region30: #{dgcnn_partseg_forward.13} parent=27 // pred_check_branch
        %310 = sbr.rel (%p308) target = $region32
      $region31: #{dgcnn_partseg_forward.13} parent=27 // pred_region
        %s311 = smul.u32 2, %s18
      $region32: #{dgcnn_partseg_forward.13} parent=27 // pred_fallthru
        _
    $region28: #{dgcnn_partseg_forward.13} parent=5 // pred_fallthru
      _
    %p312 = scmp.le.s32.totalorder 2, %s8
    // Predicated region
    $region33: #{dgcnn_partseg_forward.13} parent=5 // pred_check
      %p313 = pneg %p312
    $region34: #{dgcnn_partseg_forward.13} parent=5 // pred_check_branch
      %315 = sbr.rel (%p313) target = $region36
    $region35: #{dgcnn_partseg_forward.13} parent=5 // pred_region
      %s316 = ssub.s32 %s8, 2
      // Predicated region
      $region37: #{dgcnn_partseg_forward.13} parent=35 // pred_check
        %p317 = pneg %p103
      $region38: #{dgcnn_partseg_forward.13} parent=35 // pred_check_branch
        %319 = sbr.rel (%p317) target = $region40
      $region39: #{dgcnn_partseg_forward.13} parent=35 // pred_region
        %s320 = smul.u32 2, %s20
        %p321 = scmp.lt.s32.totalorder %s19, 1
        %s322 = scalar_select %p321, %s19, 1
        %p323 = scmp.lt.s32.totalorder %s320, 1
        %s324 = scalar_select %p323, %s320, 1
        %s325 = smul.addr %s322, 2
        %s326 = sadd.s32 %s324, %s325
        %s327 = smul.addr %s326, 8
        %s328 = scalar_lea.vmem %s2, %s327
      $region40: #{dgcnn_partseg_forward.13} parent=35 // pred_fallthru
        _
    $region36: #{dgcnn_partseg_forward.13} parent=5 // pred_fallthru
      _
  $region6: #{dgcnn_partseg_forward.13} parent=0 // loop_footer
    %s12 = sadd.s32 1, %s8
  $region7: #{dgcnn_partseg_forward.13} parent=0 // loop_footer_branch
    %7 = sbr.rel target = $region3
  $region8: #{dgcnn_partseg_forward.13} parent=0 // loop_exit
    _

// kernel: dgcnn_partseg_forward.14
$region0: #{dgcnn_partseg_forward.14}
  #allocation0 [shape = 'u32[]', space=smem, size = 0x4, offset = 0x4, fixed_abs, tag = 'smem constant byte address 0x4 - core index']
  #allocation1 [shape = 'u32[144,128]{1,0:T(1,128)}', space=vmem, size = 0x12000, scoped, tag = 'internal scratch']
  %s0 = inlined_call_operand.vmem [shape: f32[4,32,3], index: 0, kind: input, shape index: {}]
  %s1 = inlined_call_operand.vmem [shape: f32[32,3], index: 1, kind: input, shape index: {}]
  %s2 = inlined_call_operand.vmem [shape: f32[3,64], index: 2, kind: input, shape index: {}]
  %s3 = inlined_call_operand.vmem [shape: f32[3,64], index: 3, kind: input, shape index: {}]
  %s4 = inlined_call_operand.hbm [shape: f32[1,64], index: 4, kind: input, shape index: {}]
  %s5 = inlined_call_operand.vmem [shape: bf16[64,128], index: 5, kind: input, shape index: {}]
  %s6 = inlined_call_operand.hbm [shape: f32[1,128], index: 6, kind: input, shape index: {}]
  %s7 = inlined_call_operand.vmem [shape: bf16[32,128], index: 7, kind: output, shape index: {}]
  %s8 = sld [smem:[#allocation0]]
  $region46: #{dgcnn_partseg_forward.14} parent=0
    _
  %s10 = ssub.s32 1, %s8
  %s11 = scalar_select 0, %s10, %s8
  $region1: #{dgcnn_partseg_forward.14} parent=0
    #allocation2 [shape = 'u8[512]{0}', space=vmem, size = 0x400, scoped, tag = 'input window, operand 4, single buffered']
    #allocation3 [shape = 's32[1]{0}', space=sflag, size = 0x4, scoped, tag = 'scoped memory for dgcnn_partseg_forward.14']
    #allocation4 [shape = 'u8[512]{0}', space=vmem, size = 0x400, scoped, tag = 'input window, operand 6, single buffered']
    #allocation5 [shape = 's32[1]{0}', space=sflag, size = 0x4, scoped, tag = 'scoped memory for dgcnn_partseg_forward.14']
    %12 = vsyncpa [#allocation3], 0
    %13 = vsyncpa [#allocation5], 0
    // Predicated region
    $region2: #{dgcnn_partseg_forward.14} parent=1 // pred_check
      _
    $region3: #{dgcnn_partseg_forward.14} parent=1 // pred_check_branch
      %15 = sbr.rel (0) target = $region5
    $region4: #{dgcnn_partseg_forward.14} parent=1 // pred_region
      _
    $region5: #{dgcnn_partseg_forward.14} parent=1 // pred_fallthru
      _
    // Predicated region
    $region6: #{dgcnn_partseg_forward.14} parent=1 // pred_check
      _
    $region7: #{dgcnn_partseg_forward.14} parent=1 // pred_check_branch
      %17 = sbr.rel (0) target = $region9
    $region8: #{dgcnn_partseg_forward.14} parent=1 // pred_region
      _
    $region9: #{dgcnn_partseg_forward.14} parent=1 // pred_fallthru
      _
    // Predicated region
    $region10: #{dgcnn_partseg_forward.14} parent=1 // pred_check
      _
    $region11: #{dgcnn_partseg_forward.14} parent=1 // pred_check_branch
      %19 = sbr.rel (0) target = $region13
    $region12: #{dgcnn_partseg_forward.14} parent=1 // pred_region
      _
    $region13: #{dgcnn_partseg_forward.14} parent=1 // pred_fallthru
      _
    // Predicated region
    $region14: #{dgcnn_partseg_forward.14} parent=1 // pred_check
      _
    $region15: #{dgcnn_partseg_forward.14} parent=1 // pred_check_branch
      %21 = sbr.rel (0) target = $region17
    $region16: #{dgcnn_partseg_forward.14} parent=1 // pred_region
      _
    $region17: #{dgcnn_partseg_forward.14} parent=1 // pred_fallthru
      _
    // Predicated region
    $region18: #{dgcnn_partseg_forward.14} parent=1 // pred_check
      _
    $region19: #{dgcnn_partseg_forward.14} parent=1 // pred_check_branch
      %23 = sbr.rel (0) target = $region21
    $region20: #{dgcnn_partseg_forward.14} parent=1 // pred_region
      %s25 = ssub.s32 16, 16
      %26 = vsyncadd [#allocation3], %s25
      %s28 = sshll.u32 [#allocation2], 4
      %s29 = int_to_ptr.vmem [resolvable:$true] %s28
      %31 = dma.hbm_to_vmem [thread:$0]  %s4, 16, %s29, [#allocation3]
    $region21: #{dgcnn_partseg_forward.14} parent=1 // pred_fallthru
      _
    // Predicated region
    $region22: #{dgcnn_partseg_forward.14} parent=1 // pred_check
      _
    $region23: #{dgcnn_partseg_forward.14} parent=1 // pred_check_branch
      %33 = sbr.rel (0) target = $region25
    $region24: #{dgcnn_partseg_forward.14} parent=1 // pred_region
      _
    $region25: #{dgcnn_partseg_forward.14} parent=1 // pred_fallthru
      _
    // Predicated region
    $region26: #{dgcnn_partseg_forward.14} parent=1 // pred_check
      _
    $region27: #{dgcnn_partseg_forward.14} parent=1 // pred_check_branch
      %35 = sbr.rel (0) target = $region29
    $region28: #{dgcnn_partseg_forward.14} parent=1 // pred_region
      %s37 = ssub.s32 16, 16
      %38 = vsyncadd [#allocation5], %s37
      %s40 = sshll.u32 [#allocation4], 4
      %s41 = int_to_ptr.vmem [resolvable:$true] %s40
      %43 = dma.hbm_to_vmem [thread:$0]  %s6, 16, %s41, [#allocation5]
    $region29: #{dgcnn_partseg_forward.14} parent=1 // pred_fallthru
      _
    // Predicated region
    $region30: #{dgcnn_partseg_forward.14} parent=1 // pred_check
      _
    $region31: #{dgcnn_partseg_forward.14} parent=1 // pred_check_branch
      %45 = sbr.rel (0) target = $region33
    $region32: #{dgcnn_partseg_forward.14} parent=1 // pred_region
      %46 = dma.done [#allocation3], 16
    $region33: #{dgcnn_partseg_forward.14} parent=1 // pred_fallthru
      _
    // Predicated region
    $region34: #{dgcnn_partseg_forward.14} parent=1 // pred_check
      _
    $region35: #{dgcnn_partseg_forward.14} parent=1 // pred_check_branch
      %48 = sbr.rel (0) target = $region37
    $region36: #{dgcnn_partseg_forward.14} parent=1 // pred_region
      %49 = dma.done [#allocation5], 16
    $region37: #{dgcnn_partseg_forward.14} parent=1 // pred_fallthru
      _
    %v51 = vld [vmem:[%s0] sm:$0xff]
    %v52 = vld [vmem:[%s0 + $0x8] sm:$0xff]
    %v53 = vld [vmem:[%s0 + $0x10] sm:$0xff]
    %v54 = vld [vmem:[%s0 + $0x18] sm:$0xff]
    %v55 = vld [vmem:[%s0 + $0x20] sm:$0xff]
    %v56 = vld [vmem:[%s0 + $0x28] sm:$0xff]
    %v57 = vld [vmem:[%s0 + $0x30] sm:$0xff]
    %v58 = vld [vmem:[%s0 + $0x38] sm:$0xff]
    %v59 = vld [vmem:[%s0 + $0x40] sm:$0xff]
    %v60 = vld [vmem:[%s0 + $0x48] sm:$0xff]
    %v61 = vld [vmem:[%s0 + $0x50] sm:$0xff]
    %v62 = vld [vmem:[%s0 + $0x58] sm:$0xff]
    %v63 = vld [vmem:[%s0 + $0x60] sm:$0xff]
    %v64 = vld [vmem:[%s0 + $0x68] sm:$0xff]
    %v65 = vld [vmem:[%s0 + $0x70] sm:$0xff]
    %v66 = vld [vmem:[%s0 + $0x78] sm:$0xff]
    %v67 = vld [vmem:[%s2] sm:$0x7]
    %vm68 = vcmask 23552
    %v70 = vsel %vm68, %v51, 0
    %v73 = vsel %vm68, %v52, 0
    %v76 = vsel %vm68, %v53, 0
    %v79 = vsel %vm68, %v54, 0
    %v82 = vsel %vm68, %v55, 0
    %v85 = vsel %vm68, %v56, 0
    %v88 = vsel %vm68, %v57, 0
    %v91 = vsel %vm68, %v58, 0
    %v94 = vsel %vm68, %v59, 0
    %v97 = vsel %vm68, %v60, 0
    %v100 = vsel %vm68, %v61, 0
    %v103 = vsel %vm68, %v62, 0
    %v106 = vsel %vm68, %v63, 0
    %v109 = vsel %vm68, %v64, 0
    %v112 = vsel %vm68, %v65, 0
    %v115 = vsel %vm68, %v66, 0
    %vm117 = vcmask 1042432
    %v119 = vsel %vm117, %v67, 0
    %121 = vmatprep.subr.mxu0 0.0
    %122 = vmatpush1.msra.mxu0 %v119
    %123 = vmatprep.subr.mxu0 0.0
    %124 = vmatpush1.msra.mxu0 0.0
    %125 = vmatprep.subr.mxu0 0.0
    %126 = vmatpush1.msra.mxu0 0.0
    %127 = vmatprep.subr.mxu0 0.0
    %128 = vmatpush1.msra.mxu0 0.0
    %129 = vmatprep.subr.mxu0 0.0
    %130 = vmatpush1.msra.mxu0 0.0
    %131 = vmatprep.subr.mxu0 0.0
    %132 = vmatpush1.msra.mxu0 0.0
    %133 = vmatprep.subr.mxu0 0.0
    %134 = vmatpush1.msra.mxu0 0.0
    %135 = vmatprep.subr.mxu0 0.0
    %136 = vmatpush1.msra.mxu0 0.0
    %137 = vmatprep.subr.mxu0 0.0
    %138 = vmatpush1.msra.mxu0 0.0
    %139 = vmatprep.subr.mxu0 0.0
    %140 = vmatpush1.msra.mxu0 0.0
    %141 = vmatprep.subr.mxu0 0.0
    %142 = vmatpush1.msra.mxu0 0.0
    %143 = vmatprep.subr.mxu0 0.0
    %144 = vmatpush1.msra.mxu0 0.0
    %145 = vmatprep.subr.mxu0 0.0
    %146 = vmatpush1.msra.mxu0 0.0
    %147 = vmatprep.subr.mxu0 0.0
    %148 = vmatpush1.msra.mxu0 0.0
    %149 = vmatprep.subr.mxu0 0.0
    %150 = vmatpush1.msra.mxu0 0.0
    %151 = vmatprep.subr.mxu0 0.0
    %152 = vmatpush1.msra.mxu0 0.0
    %153 = vmatprep.subr.mxu0 0.0
    %154 = vmatpush1.msra.mxu0 0.0
    %155 = vmatprep.subr.mxu0 0.0
    %156 = vmatpush1.msra.mxu0 0.0
    %157 = vmatprep.subr.mxu0 0.0
    %158 = vmatpush1.msra.mxu0 0.0
    %159 = vmatprep.subr.mxu0 0.0
    %160 = vmatpush1.msra.mxu0 0.0
    %161 = vmatprep.subr.mxu0 0.0
    %162 = vmatpush1.msra.mxu0 0.0
    %163 = vmatprep.subr.mxu0 0.0
    %164 = vmatpush1.msra.mxu0 0.0
    %165 = vmatprep.subr.mxu0 0.0
    %166 = vmatpush1.msra.mxu0 0.0
    %167 = vmatprep.subr.mxu0 0.0
    %168 = vmatpush1.msra.mxu0 0.0
    %169 = vmatprep.subr.mxu0 0.0
    %170 = vmatpush1.msra.mxu0 0.0
    %171 = vmatprep.subr.mxu0 0.0
    %172 = vmatpush1.msra.mxu0 0.0
    %173 = vmatprep.subr.mxu0 0.0
    %174 = vmatpush1.msra.mxu0 0.0
    %175 = vmatprep.subr.mxu0 0.0
    %176 = vmatpush1.msra.mxu0 0.0
    %177 = vmatprep.subr.mxu0 0.0
    %178 = vmatpush1.msra.mxu0 0.0
    %179 = vmatprep.subr.mxu0 0.0
    %180 = vmatpush1.msra.mxu0 0.0
    %181 = vmatprep.subr.mxu0 0.0
    %182 = vmatpush1.msra.mxu0 0.0
    %183 = vmatprep.subr.mxu0 0.0
    %184 = vmatpush1.msra.mxu0 0.0
    %185 = vmatprep.mubr.f32.mxu0 0.0
    %186 = vmatmul.mubr.f32.gmra.mrb[0].mxu0 %v70
    %v187 = vpop.f32.mrb[0].mxu0
    %v188 = vadd.f32 0.0, %v187
    %v189 = vpop.f32.mrb[0].mxu0
    %190 = vmatprep.mubr.f32.mxu0 0.0
    %191 = vmatmul.mubr.f32.gmra.mrb[0].mxu0 %v73
    %v192 = vpop.f32.mrb[0].mxu0
    %v193 = vadd.f32 0.0, %v192
    %v194 = vpop.f32.mrb[0].mxu0
    %195 = vmatprep.mubr.f32.mxu0 0.0
    %196 = vmatmul.mubr.f32.gmra.mrb[0].mxu0 %v76
    %v197 = vpop.f32.mrb[0].mxu0
    %v198 = vadd.f32 0.0, %v197
    %v199 = vpop.f32.mrb[0].mxu0
    %200 = vmatprep.mubr.f32.mxu0 0.0
    %201 = vmatmul.mubr.f32.gmra.mrb[0].mxu0 %v79
    %v202 = vpop.f32.mrb[0].mxu0
    %v203 = vadd.f32 0.0, %v202
    %v204 = vpop.f32.mrb[0].mxu0
    %205 = vmatprep.mubr.f32.mxu0 0.0
    %206 = vmatmul.mubr.f32.gmra.mrb[0].mxu0 %v82
    %v207 = vpop.f32.mrb[0].mxu0
    %v208 = vadd.f32 0.0, %v207
    %v209 = vpop.f32.mrb[0].mxu0
    %210 = vmatprep.mubr.f32.mxu0 0.0
    %211 = vmatmul.mubr.f32.gmra.mrb[0].mxu0 %v85
    %v212 = vpop.f32.mrb[0].mxu0
    %v213 = vadd.f32 0.0, %v212
    %v214 = vpop.f32.mrb[0].mxu0
    %215 = vmatprep.mubr.f32.mxu0 0.0
    %216 = vmatmul.mubr.f32.gmra.mrb[0].mxu0 %v88
    %v217 = vpop.f32.mrb[0].mxu0
    %v218 = vadd.f32 0.0, %v217
    %v219 = vpop.f32.mrb[0].mxu0
    %220 = vmatprep.mubr.f32.mxu0 0.0
    %221 = vmatmul.mubr.f32.gmra.mrb[0].mxu0 %v91
    %v222 = vpop.f32.mrb[0].mxu0
    %v223 = vadd.f32 0.0, %v222
    %v224 = vpop.f32.mrb[0].mxu0
    %225 = vmatprep.mubr.f32.mxu0 0.0
    %226 = vmatmul.mubr.f32.gmra.mrb[0].mxu0 %v94
    %v227 = vpop.f32.mrb[0].mxu0
    %v228 = vadd.f32 0.0, %v227
    %v229 = vpop.f32.mrb[0].mxu0
    %230 = vmatprep.mubr.f32.mxu0 0.0
    %231 = vmatmul.mubr.f32.gmra.mrb[0].mxu0 %v97
    %v232 = vpop.f32.mrb[0].mxu0
    %v233 = vadd.f32 0.0, %v232
    %v234 = vpop.f32.mrb[0].mxu0
    %235 = vmatprep.mubr.f32.mxu0 0.0
    %236 = vmatmul.mubr.f32.gmra.mrb[0].mxu0 %v100
    %v237 = vpop.f32.mrb[0].mxu0
    %v238 = vadd.f32 0.0, %v237
    %v239 = vpop.f32.mrb[0].mxu0
    %240 = vmatprep.mubr.f32.mxu0 0.0
    %241 = vmatmul.mubr.f32.gmra.mrb[0].mxu0 %v103
    %v242 = vpop.f32.mrb[0].mxu0
    %v243 = vadd.f32 0.0, %v242
    %v244 = vpop.f32.mrb[0].mxu0
    %245 = vmatprep.mubr.f32.mxu0 0.0
    %246 = vmatmul.mubr.f32.gmra.mrb[0].mxu0 %v106
    %v247 = vpop.f32.mrb[0].mxu0
    %v248 = vadd.f32 0.0, %v247
    %v249 = vpop.f32.mrb[0].mxu0
    %250 = vmatprep.mubr.f32.mxu0 0.0
    %251 = vmatmul.mubr.f32.gmra.mrb[0].mxu0 %v109
    %v252 = vpop.f32.mrb[0].mxu0
    %v253 = vadd.f32 0.0, %v252
    %v254 = vpop.f32.mrb[0].mxu0
    %255 = vmatprep.mubr.f32.mxu0 0.0
    %256 = vmatmul.mubr.f32.gmra.mrb[0].mxu0 %v112
    %v257 = vpop.f32.mrb[0].mxu0
    %v258 = vadd.f32 0.0, %v257
    %v259 = vpop.f32.mrb[0].mxu0
    %260 = vmatprep.mubr.f32.mxu0 0.0
    %261 = vmatmul.mubr.f32.gmra.mrb[0].mxu0 %v115
    %v262 = vpop.f32.mrb[0].mxu0
    %v263 = vadd.f32 0.0, %v262
    %v264 = vpop.f32.mrb[0].mxu0
    %265 = vdwg.mxu0
    %v266 = vld [vmem:[%s1] sm:$0xff]
    %v267 = vld [vmem:[%s1 + $0x8] sm:$0xff]
    %v268 = vld [vmem:[%s1 + $0x10] sm:$0xff]
    %v269 = vld [vmem:[%s1 + $0x18] sm:$0xff]
    %v270 = vld [vmem:[%s3] sm:$0x7]
    %v271 = vld [vmem:[#allocation2] sm:$0x1]
    %v273 = vlaneseq
    %v274 = vshrl.u32 %v273, 7
    %v275 = vsub.s32 0, %v274
    %v276 = vrot.slane %v271, %v275
    %v279 = vsel %vm68, %v266, 0
    %v282 = vsel %vm68, %v267, 0
    %v285 = vsel %vm68, %v268, 0
    %v288 = vsel %vm68, %v269, 0
    %v291 = vsel %vm117, %v270, 0
    %293 = vmatprep.subr.mxu0 0.0
    %294 = vmatpush1.msra.mxu0 %v291
    %295 = vmatprep.subr.mxu0 0.0
    %296 = vmatpush1.msra.mxu0 0.0
    %297 = vmatprep.subr.mxu0 0.0
    %298 = vmatpush1.msra.mxu0 0.0
    %299 = vmatprep.subr.mxu0 0.0
    %300 = vmatpush1.msra.mxu0 0.0
    %301 = vmatprep.subr.mxu0 0.0
    %302 = vmatpush1.msra.mxu0 0.0
    %303 = vmatprep.subr.mxu0 0.0
    %304 = vmatpush1.msra.mxu0 0.0
    %305 = vmatprep.subr.mxu0 0.0
    %306 = vmatpush1.msra.mxu0 0.0
    %307 = vmatprep.subr.mxu0 0.0
    %308 = vmatpush1.msra.mxu0 0.0
    %309 = vmatprep.subr.mxu0 0.0
    %310 = vmatpush1.msra.mxu0 0.0
    %311 = vmatprep.subr.mxu0 0.0
    %312 = vmatpush1.msra.mxu0 0.0
    %313 = vmatprep.subr.mxu0 0.0
    %314 = vmatpush1.msra.mxu0 0.0
    %315 = vmatprep.subr.mxu0 0.0
    %316 = vmatpush1.msra.mxu0 0.0
    %317 = vmatprep.subr.mxu0 0.0
    %318 = vmatpush1.msra.mxu0 0.0
    %319 = vmatprep.subr.mxu0 0.0
    %320 = vmatpush1.msra.mxu0 0.0
    %321 = vmatprep.subr.mxu0 0.0
    %322 = vmatpush1.msra.mxu0 0.0
    %323 = vmatprep.subr.mxu0 0.0
    %324 = vmatpush1.msra.mxu0 0.0
    %325 = vmatprep.subr.mxu0 0.0
    %326 = vmatpush1.msra.mxu0 0.0
    %327 = vmatprep.subr.mxu0 0.0
    %328 = vmatpush1.msra.mxu0 0.0
    %329 = vmatprep.subr.mxu0 0.0
    %330 = vmatpush1.msra.mxu0 0.0
    %331 = vmatprep.subr.mxu0 0.0
    %332 = vmatpush1.msra.mxu0 0.0
    %333 = vmatprep.subr.mxu0 0.0
    %334 = vmatpush1.msra.mxu0 0.0
    %335 = vmatprep.subr.mxu0 0.0
    %336 = vmatpush1.msra.mxu0 0.0
    %337 = vmatprep.subr.mxu0 0.0
    %338 = vmatpush1.msra.mxu0 0.0
    %339 = vmatprep.subr.mxu0 0.0
    %340 = vmatpush1.msra.mxu0 0.0
    %341 = vmatprep.subr.mxu0 0.0
    %342 = vmatpush1.msra.mxu0 0.0
    %343 = vmatprep.subr.mxu0 0.0
    %344 = vmatpush1.msra.mxu0 0.0
    %345 = vmatprep.subr.mxu0 0.0
    %346 = vmatpush1.msra.mxu0 0.0
    %347 = vmatprep.subr.mxu0 0.0
    %348 = vmatpush1.msra.mxu0 0.0
    %349 = vmatprep.subr.mxu0 0.0
    %350 = vmatpush1.msra.mxu0 0.0
    %351 = vmatprep.subr.mxu0 0.0
    %352 = vmatpush1.msra.mxu0 0.0
    %353 = vmatprep.subr.mxu0 0.0
    %354 = vmatpush1.msra.mxu0 0.0
    %355 = vmatprep.subr.mxu0 0.0
    %356 = vmatpush1.msra.mxu0 0.0
    %357 = vmatprep.mubr.f32.mxu0 0.0
    %358 = vmatmul.mubr.f32.gmra.mrb[0].mxu0 %v279
    %v359 = vpop.f32.mrb[0].mxu0
    %v360 = vadd.f32 %v276, %v359
    %v361 = vpop.f32.mrb[0].mxu0
    %362 = vmatprep.mubr.f32.mxu0 0.0
    %363 = vmatmul.mubr.f32.gmra.mrb[0].mxu0 %v282
    %v364 = vpop.f32.mrb[0].mxu0
    %v365 = vadd.f32 %v276, %v364
    %v366 = vpop.f32.mrb[0].mxu0
    %367 = vmatprep.mubr.f32.mxu0 0.0
    %368 = vmatmul.mubr.f32.gmra.mrb[0].mxu0 %v285
    %v369 = vpop.f32.mrb[0].mxu0
    %v370 = vadd.f32 %v276, %v369
    %v371 = vpop.f32.mrb[0].mxu0
    %372 = vmatprep.mubr.f32.mxu0 0.0
    %373 = vmatmul.mubr.f32.gmra.mrb[0].mxu0 %v288
    %v374 = vpop.f32.mrb[0].mxu0
    %v375 = vadd.f32 %v276, %v374
    %v376 = vpop.f32.mrb[0].mxu0
    %377 = vdwg.mxu0
    %v378 = vadd.f32 %v188, %v360
    %v379 = vadd.f32 %v193, %v365
    %v380 = vadd.f32 %v198, %v370
    %v381 = vadd.f32 %v203, %v375
    %v382 = vadd.f32 %v208, %v360
    %v383 = vadd.f32 %v213, %v365
    %v384 = vadd.f32 %v218, %v370
    %v385 = vadd.f32 %v223, %v375
    %v386 = vadd.f32 %v228, %v360
    %v387 = vadd.f32 %v233, %v365
    %v388 = vadd.f32 %v238, %v370
    %v389 = vadd.f32 %v243, %v375
    %v390 = vadd.f32 %v248, %v360
    %v391 = vadd.f32 %v253, %v365
    %v392 = vadd.f32 %v258, %v370
    %v393 = vadd.f32 %v263, %v375
    %vm394 = vcmp.ge.f32.partialorder %v378, 0.0
    %vm395 = vcmp.ge.f32.partialorder %v379, 0.0
    %vm396 = vcmp.ge.f32.partialorder %v380, 0.0
    %vm397 = vcmp.ge.f32.partialorder %v381, 0.0
    %vm398 = vcmp.ge.f32.partialorder %v382, 0.0
    %vm399 = vcmp.ge.f32.partialorder %v383, 0.0
    %vm400 = vcmp.ge.f32.partialorder %v384, 0.0
    %vm401 = vcmp.ge.f32.partialorder %v385, 0.0
    %vm402 = vcmp.ge.f32.partialorder %v386, 0.0
    %vm403 = vcmp.ge.f32.partialorder %v387, 0.0
    %vm404 = vcmp.ge.f32.partialorder %v388, 0.0
    %vm405 = vcmp.ge.f32.partialorder %v389, 0.0
    %vm406 = vcmp.ge.f32.partialorder %v390, 0.0
    %vm407 = vcmp.ge.f32.partialorder %v391, 0.0
    %vm408 = vcmp.ge.f32.partialorder %v392, 0.0
    %vm409 = vcmp.ge.f32.partialorder %v393, 0.0
    %v410 = vmul.f32 %v378, 0.2
    %v411 = vmul.f32 %v379, 0.2
    %v412 = vmul.f32 %v380, 0.2
    %v413 = vmul.f32 %v381, 0.2
    %v414 = vmul.f32 %v382, 0.2
    %v415 = vmul.f32 %v383, 0.2
    %v416 = vmul.f32 %v384, 0.2
    %v417 = vmul.f32 %v385, 0.2
    %v418 = vmul.f32 %v386, 0.2
    %v419 = vmul.f32 %v387, 0.2
    %v420 = vmul.f32 %v388, 0.2
    %v421 = vmul.f32 %v389, 0.2
    %v422 = vmul.f32 %v390, 0.2
    %v423 = vmul.f32 %v391, 0.2
    %v424 = vmul.f32 %v392, 0.2
    %v425 = vmul.f32 %v393, 0.2
    %v426 = vsel %vm394, %v378, %v410
    %v427 = vsel %vm395, %v379, %v411
    %v428 = vsel %vm396, %v380, %v412
    %v429 = vsel %vm397, %v381, %v413
    %v430 = vsel %vm398, %v382, %v414
    %v431 = vsel %vm399, %v383, %v415
    %v432 = vsel %vm400, %v384, %v416
    %v433 = vsel %vm401, %v385, %v417
    %v434 = vsel %vm402, %v386, %v418
    %v435 = vsel %vm403, %v387, %v419
    %v436 = vsel %vm404, %v388, %v420
    %v437 = vsel %vm405, %v389, %v421
    %v438 = vsel %vm406, %v390, %v422
    %v439 = vsel %vm407, %v391, %v423
    %v440 = vsel %vm408, %v392, %v424
    %v441 = vsel %vm409, %v393, %v425
    %v442 = vpack.c.bf16 %v427, %v426
    %v443 = vpack.c.bf16 %v429, %v428
    %v444 = vpack.c.bf16 %v431, %v430
    %v445 = vpack.c.bf16 %v433, %v432
    %v446 = vpack.c.bf16 %v435, %v434
    %v447 = vpack.c.bf16 %v437, %v436
    %v448 = vpack.c.bf16 %v439, %v438
    %v449 = vpack.c.bf16 %v441, %v440
    %v450 = vld [vmem:[%s5] sm:$0xf]
    %v451 = vld [vmem:[%s5 + $0x4] sm:$0xf]
    %v452 = vld [vmem:[%s5 + $0x8] sm:$0xf]
    %v453 = vld [vmem:[%s5 + $0xc] sm:$0xf]
    %v454 = vld [vmem:[%s5 + $0x10] sm:$0xf]
    %v455 = vld [vmem:[%s5 + $0x14] sm:$0xf]
    %v456 = vld [vmem:[%s5 + $0x18] sm:$0xf]
    %v457 = vld [vmem:[%s5 + $0x1c] sm:$0xf]
    %v466 = vunpack.c.l.b16 %v450
    %v467 = vunpack.c.l.b16 %v451
    %v468 = vunpack.c.l.b16 %v452
    %v469 = vunpack.c.l.b16 %v453
    %v470 = vunpack.c.l.b16 %v454
    %v471 = vunpack.c.l.b16 %v455
    %v472 = vunpack.c.l.b16 %v456
    %v473 = vunpack.c.l.b16 %v457
    %v474 = vpack.c.b16 %v467, %v466
    %v475 = vpack.c.b16 %v469, %v468
    %v476 = vpack.c.b16 %v471, %v470
    %v477 = vpack.c.b16 %v473, %v472
    %vm482 = vcmask 523264
    %v484 = vsel %vm482, %v442, 0
    %v487 = vsel %vm482, %v443, 0
    %v490 = vsel %vm482, %v444, 0
    %v493 = vsel %vm482, %v445, 0
    %v496 = vsel %vm482, %v446, 0
    %v499 = vsel %vm482, %v447, 0
    %v502 = vsel %vm482, %v448, 0
    %v505 = vsel %vm482, %v449, 0
    %507 = vmatprep.subr.bf16.mxu0 0
    %508 = vmatpush1.bf16.msra.mxu0 %v474
    %509 = vmatprep.subr.bf16.mxu0 0
    %510 = vmatpush1.bf16.msra.mxu0 %v475
    %511 = vmatprep.subr.bf16.mxu0 0
    %512 = vmatpush1.bf16.msra.mxu0 %v476
    %513 = vmatprep.subr.bf16.mxu0 0
    %514 = vmatpush1.bf16.msra.mxu0 %v477
    %515 = vmatprep.subr.bf16.mxu0 0
    %516 = vmatpush1.bf16.msra.mxu0 0
    %517 = vmatprep.subr.bf16.mxu0 0
    %518 = vmatpush1.bf16.msra.mxu0 0
    %519 = vmatprep.subr.bf16.mxu0 0
    %520 = vmatpush1.bf16.msra.mxu0 0
    %521 = vmatprep.subr.bf16.mxu0 0
    %522 = vmatpush1.bf16.msra.mxu0 0
    %523 = vmatprep.subr.bf16.mxu0 0
    %524 = vmatpush1.bf16.msra.mxu0 0
    %525 = vmatprep.subr.bf16.mxu0 0
    %526 = vmatpush1.bf16.msra.mxu0 0
    %527 = vmatprep.subr.bf16.mxu0 0
    %528 = vmatpush1.bf16.msra.mxu0 0
    %529 = vmatprep.subr.bf16.mxu0 0
    %530 = vmatpush1.bf16.msra.mxu0 0
    %531 = vmatprep.subr.bf16.mxu0 0
    %532 = vmatpush1.bf16.msra.mxu0 0
    %533 = vmatprep.subr.bf16.mxu0 0
    %534 = vmatpush1.bf16.msra.mxu0 0
    %535 = vmatprep.subr.bf16.mxu0 0
    %536 = vmatpush1.bf16.msra.mxu0 0
    %537 = vmatprep.subr.bf16.mxu0 0
    %538 = vmatpush1.bf16.msra.mxu0 0
    %539 = vmatprep.mubr.bf16.mxu0 0
    %540 = vmatmul.mubr.bf16.gmra.mrb[0].mxu0 %v484
    %v541 = vpop.f32.mrb[0].mxu0
    %v542 = vadd.f32 0.0, %v541
    %v543 = vpop.f32.mrb[0].mxu0
    %v544 = vpop.f32.mrb[0].mxu0
    %v545 = vadd.f32 0.0, %v544
    %v546 = vpop.f32.mrb[0].mxu0
    %547 = vmatprep.mubr.bf16.mxu0 0
    %548 = vmatmul.mubr.bf16.gmra.mrb[0].mxu0 %v487
    %v549 = vpop.f32.mrb[0].mxu0
    %v550 = vadd.f32 0.0, %v549
    %v551 = vpop.f32.mrb[0].mxu0
    %v552 = vpop.f32.mrb[0].mxu0
    %v553 = vadd.f32 0.0, %v552
    %v554 = vpop.f32.mrb[0].mxu0
    %555 = vmatprep.mubr.bf16.mxu0 0
    %556 = vmatmul.mubr.bf16.gmra.mrb[0].mxu0 %v490
    %v557 = vpop.f32.mrb[0].mxu0
    %v558 = vadd.f32 0.0, %v557
    %v559 = vpop.f32.mrb[0].mxu0
    %v560 = vpop.f32.mrb[0].mxu0
    %v561 = vadd.f32 0.0, %v560
    %v562 = vpop.f32.mrb[0].mxu0
    %563 = vmatprep.mubr.bf16.mxu0 0
    %564 = vmatmul.mubr.bf16.gmra.mrb[0].mxu0 %v493
    %v565 = vpop.f32.mrb[0].mxu0
    %v566 = vadd.f32 0.0, %v565
    %v567 = vpop.f32.mrb[0].mxu0
    %v568 = vpop.f32.mrb[0].mxu0
    %v569 = vadd.f32 0.0, %v568
    %v570 = vpop.f32.mrb[0].mxu0
    %571 = vmatprep.mubr.bf16.mxu0 0
    %572 = vmatmul.mubr.bf16.gmra.mrb[0].mxu0 %v496
    %v573 = vpop.f32.mrb[0].mxu0
    %v574 = vadd.f32 0.0, %v573
    %v575 = vpop.f32.mrb[0].mxu0
    %v576 = vpop.f32.mrb[0].mxu0
    %v577 = vadd.f32 0.0, %v576
    %v578 = vpop.f32.mrb[0].mxu0
    %579 = vmatprep.mubr.bf16.mxu0 0
    %580 = vmatmul.mubr.bf16.gmra.mrb[0].mxu0 %v499
    %v581 = vpop.f32.mrb[0].mxu0
    %v582 = vadd.f32 0.0, %v581
    %v583 = vpop.f32.mrb[0].mxu0
    %v584 = vpop.f32.mrb[0].mxu0
    %v585 = vadd.f32 0.0, %v584
    %v586 = vpop.f32.mrb[0].mxu0
    %587 = vmatprep.mubr.bf16.mxu0 0
    %588 = vmatmul.mubr.bf16.gmra.mrb[0].mxu0 %v502
    %v589 = vpop.f32.mrb[0].mxu0
    %v590 = vadd.f32 0.0, %v589
    %v591 = vpop.f32.mrb[0].mxu0
    %v592 = vpop.f32.mrb[0].mxu0
    %v593 = vadd.f32 0.0, %v592
    %v594 = vpop.f32.mrb[0].mxu0
    %595 = vmatprep.mubr.bf16.mxu0 0
    %596 = vmatmul.mubr.bf16.gmra.mrb[0].mxu0 %v505
    %v597 = vpop.f32.mrb[0].mxu0
    %v598 = vadd.f32 0.0, %v597
    %v599 = vpop.f32.mrb[0].mxu0
    %v600 = vpop.f32.mrb[0].mxu0
    %v601 = vadd.f32 0.0, %v600
    %v602 = vpop.f32.mrb[0].mxu0
    %603 = vdwg.mxu0
    %v604 = vmax.f32 %v542, %v558
    %v605 = vmax.f32 %v604, %v574
    %v606 = vmax.f32 %v605, %v590
    %v607 = vmax.f32 %v545, %v561
    %v608 = vmax.f32 %v607, %v577
    %v609 = vmax.f32 %v608, %v593
    %v610 = vmax.f32 %v550, %v566
    %v611 = vmax.f32 %v610, %v582
    %v612 = vmax.f32 %v611, %v598
    %v613 = vmax.f32 %v553, %v569
    %v614 = vmax.f32 %v613, %v585
    %v615 = vmax.f32 %v614, %v601
    %v616 = vld [vmem:[#allocation4] sm:$0x1]
    %v618 = vlaneseq
    %v619 = vshrl.u32 %v618, 7
    %v620 = vsub.s32 0, %v619
    %v621 = vrot.slane %v616, %v620
    %v623 = vadd.f32 %v606, %v621
    %v624 = vadd.f32 %v609, %v621
    %v625 = vadd.f32 %v612, %v621
    %v626 = vadd.f32 %v615, %v621
    %vm627 = vcmp.ge.f32.partialorder %v623, 0.0
    %vm628 = vcmp.ge.f32.partialorder %v624, 0.0
    %vm629 = vcmp.ge.f32.partialorder %v625, 0.0
    %vm630 = vcmp.ge.f32.partialorder %v626, 0.0
    %v631 = vmul.f32 %v623, 0.2
    %v632 = vmul.f32 %v624, 0.2
    %v633 = vmul.f32 %v625, 0.2
    %v634 = vmul.f32 %v626, 0.2
    %v635 = vsel %vm627, %v623, %v631
    %v636 = vsel %vm628, %v624, %v632
    %v637 = vsel %vm629, %v625, %v633
    %v638 = vsel %vm630, %v626, %v634
    %v639 = vpack.c.bf16 %v636, %v635
    %v640 = vpack.c.bf16 %v638, %v637
    %v643 = vunpack.c.l.b16 %v639
    %v644 = vunpack.c.h.b16 %v639
    %v645 = vunpack.c.l.b16 %v640
    %v646 = vunpack.c.h.b16 %v640
    %v647 = vpack.c.b16 %v643, %v643
    %v648 = vpack.c.b16 %v644, %v644
    %v649 = vpack.c.b16 %v645, %v645
    %v650 = vpack.c.b16 %v646, %v646
    %655 = vst [vmem:[%s7] sm:$0xf] %v647
    %656 = vst [vmem:[%s7 + $0x4] sm:$0xf] %v648
    %657 = vst [vmem:[%s7 + $0x8] sm:$0xf] %v649
    %658 = vst [vmem:[%s7 + $0xc] sm:$0xf] %v650
    // Predicated region
    $region38: #{dgcnn_partseg_forward.14} parent=1 // pred_check
      _
    $region39: #{dgcnn_partseg_forward.14} parent=1 // pred_check_branch
      %660 = sbr.rel (0) target = $region41
    $region40: #{dgcnn_partseg_forward.14} parent=1 // pred_region
      _
    $region41: #{dgcnn_partseg_forward.14} parent=1 // pred_fallthru
      _
    // Predicated region
    $region42: #{dgcnn_partseg_forward.14} parent=1 // pred_check
      _
    $region43: #{dgcnn_partseg_forward.14} parent=1 // pred_check_branch
      %662 = sbr.rel (0) target = $region45
    $region44: #{dgcnn_partseg_forward.14} parent=1 // pred_region
      _
    $region45: #{dgcnn_partseg_forward.14} parent=1 // pred_fallthru
      _
    %663 = vsyncpa [#allocation3], 1
    %664 = vsyncpa [#allocation5], 1

// kernel: dgcnn_partseg_forward.15
$region0: #{dgcnn_partseg_forward.15}
  #allocation0 [shape = 'u32[]', space=smem, size = 0x4, offset = 0x4, fixed_abs, tag = 'smem constant byte address 0x4 - core index']
  #allocation1 [shape = 'u32[144,128]{1,0:T(1,128)}', space=vmem, size = 0x12000, scoped, tag = 'internal scratch']
  %s0 = inlined_call_operand.vmem [shape: bf16[2,16,128], index: 0, kind: input, shape index: {}]
  %s1 = inlined_call_operand.vmem [shape: bf16[128,1024], index: 1, kind: input, shape index: {}]
  %s2 = inlined_call_operand.hbm [shape: f32[1,1024], index: 2, kind: input, shape index: {}]
  %s3 = inlined_call_operand.vmem [shape: f32[2,1,1024], index: 3, kind: output, shape index: {}]
  %s4 = sld [smem:[#allocation0]]
  $region61: #{dgcnn_partseg_forward.15} parent=0
    _
  %s6 = ssub.s32 1, %s4
  %s7 = scalar_select 0, %s6, %s4
  $region1: #{dgcnn_partseg_forward.15} parent=0
    #allocation2 [shape = 'u8[4096]{0}', space=vmem, size = 0x1000, scoped, tag = 'input window, operand 2, single buffered']
    #allocation3 [shape = 's32[2]{0}', space=sflag, size = 0x8, scoped, tag = 'scoped memory for dgcnn_partseg_forward.15']
    %8 = vsyncpa [#allocation3], 0
    loop: start=0, step=1, limit=4
    $region2: #{dgcnn_partseg_forward.15} parent=1 // loop_pre_header
      _
    $region3: #{dgcnn_partseg_forward.15} parent=1 // loop_header
      %s10 = sphi 0, %s14
      %p11 = scmp.ge.s32.totalorder %s10, 4
      %s17 = sphi 0, %s29
      %s18 = sphi 0, %s25
      %s19 = sphi 0, %s17
      %s20 = sphi 0, %s18
      %s21 = sphi 0, %s19
      %s22 = sphi 0, %s20
      %s34 = sphi 0, %s36
      %s37 = sphi 0, %s34
      %s38 = sphi 0, %s37
      %s54 = sphi 0, %s38
      %s58 = sphi 0, %s58
      %s60 = sphi 0, %s58
      %s61 = sphi 0, %s60
      %s75 = sphi 0, %s61
      %s79 = sphi 0, %s79
      %s81 = sphi 0, %s79
      %s82 = sphi 0, %s81
      %s96 = sphi 0, %s82
      %s102 = sphi 0, %s104
      %s105 = sphi 0, %s102
      %s106 = sphi 0, %s105
      %s122 = sphi 0, %s106
    $region4: #{dgcnn_partseg_forward.15} parent=1 // loop_header_branch
      %13 = sbr.rel (%p11) target = $region8
    $region5: #{dgcnn_partseg_forward.15} parent=1 // loop_body
      %s15 = ssub.s32 %s10, 1
      %s16 = ssub.s32 %s10, 2
      %s23 = sadd.s32 1, %s18
      %p24 = scmp.ge.s32.totalorder %s23, 1
      %s25 = scalar_select %p24, 0, %s23
      %s26 = sadd.s32 1, %s17
      %s27 = scalar_select %p24, %s26, %s17
      %p28 = scmp.ge.s32.totalorder %s27, 2
      %s29 = scalar_select %p28, 0, %s27
      %s30 = ssub.s32 %s17, %s29
      %s31 = ssub.s32 %s18, %s25
      %s32 = sor.u32 %s30, %s31
      %p33 = scmp.eq.s32.totalorder %s32, 0
      %s35 = sadd.s32 %s34, 1
      %s36 = scalar_select %p33, %s34, %s35
      %p39 = pneg %p33
      %p40 = scmp.eq.s32.totalorder %s10, 1
      %p41 = por %p39, %p40
      %p42 = scmp.ne.s32.totalorder %s34, %s37
      %p43 = scmp.eq.s32.totalorder %s10, 0
      %p44 = por %p42, %p43
      %p45 = scmp.ne.s32.totalorder %s34, %s37
      %p46 = scmp.eq.s32.totalorder %s15, 1
      %p47 = por %p45, %p46
      %p48 = scmp.ne.s32.totalorder %s37, %s38
      %p49 = scmp.eq.s32.totalorder %s15, 0
      %p50 = por %p48, %p49
      %p51 = scmp.ne.s32.totalorder %s37, %s38
      %p52 = scmp.eq.s32.totalorder %s16, 1
      %p53 = por %p51, %p52
      %p55 = scmp.ne.s32.totalorder %s38, %s54
      %p56 = scmp.eq.s32.totalorder %s16, 0
      %p57 = por %p55, %p56
      %s59 = sadd.s32 %s58, 1
      %p62 = scmp.eq.s32.totalorder %s10, 1
      %p63 = scmp.ne.s32.totalorder %s58, %s60
      %p64 = scmp.eq.s32.totalorder %s10, 0
      %p65 = por %p63, %p64
      %p66 = scmp.ne.s32.totalorder %s58, %s60
      %p67 = scmp.eq.s32.totalorder %s15, 1
      %p68 = por %p66, %p67
      %p69 = scmp.ne.s32.totalorder %s60, %s61
      %p70 = scmp.eq.s32.totalorder %s15, 0
      %p71 = por %p69, %p70
      %p72 = scmp.ne.s32.totalorder %s60, %s61
      %p73 = scmp.eq.s32.totalorder %s16, 1
      %p74 = por %p72, %p73
      %p76 = scmp.ne.s32.totalorder %s61, %s75
      %p77 = scmp.eq.s32.totalorder %s16, 0
      %p78 = por %p76, %p77
      %s80 = sadd.s32 %s79, 1
      %p83 = scmp.eq.s32.totalorder %s10, 1
      %p84 = scmp.ne.s32.totalorder %s79, %s81
      %p85 = scmp.eq.s32.totalorder %s10, 0
      %p86 = por %p84, %p85
      %p87 = scmp.ne.s32.totalorder %s79, %s81
      %p88 = scmp.eq.s32.totalorder %s15, 1
      %p89 = por %p87, %p88
      %p90 = scmp.ne.s32.totalorder %s81, %s82
      %p91 = scmp.eq.s32.totalorder %s15, 0
      %p92 = por %p90, %p91
      %p93 = scmp.ne.s32.totalorder %s81, %s82
      %p94 = scmp.eq.s32.totalorder %s16, 1
      %p95 = por %p93, %p94
      %p97 = scmp.ne.s32.totalorder %s82, %s96
      %p98 = scmp.eq.s32.totalorder %s16, 0
      %p99 = por %p97, %p98
      %s100 = ssub.s32 %s17, %s29
      %p101 = scmp.eq.s32.totalorder %s100, 0
      %s103 = sadd.s32 %s102, 1
      %s104 = scalar_select %p101, %s102, %s103
      %p107 = pneg %p101
      %p108 = scmp.eq.s32.totalorder %s10, 1
      %p109 = por %p107, %p108
      %p110 = scmp.ne.s32.totalorder %s102, %s105
      %p111 = scmp.eq.s32.totalorder %s10, 0
      %p112 = por %p110, %p111
      %p113 = scmp.ne.s32.totalorder %s102, %s105
      %p114 = scmp.eq.s32.totalorder %s15, 1
      %p115 = por %p113, %p114
      %p116 = scmp.ne.s32.totalorder %s105, %s106
      %p117 = scmp.eq.s32.totalorder %s15, 0
      %p118 = por %p116, %p117
      %p119 = scmp.ne.s32.totalorder %s105, %s106
      %p120 = scmp.eq.s32.totalorder %s16, 1
      %p121 = por %p119, %p120
      %p123 = scmp.ne.s32.totalorder %s106, %s122
      %p124 = scmp.eq.s32.totalorder %s16, 0
      %p125 = por %p123, %p124
      %p126 = scmp.le.s32.totalorder 1, %s10
      %p127 = scmp.lt.s32.totalorder %s10, 3
      %p128 = pnand %p126, %p127
      %p129 = pneg %p128
      // Predicated region
      $region9: #{dgcnn_partseg_forward.15} parent=5 // pred_check
        _
      $region10: #{dgcnn_partseg_forward.15} parent=5 // pred_check_branch
        %131 = sbr.rel (%p128) target = $region12
      $region11: #{dgcnn_partseg_forward.15} parent=5 // pred_region
        %s132 = ssub.s32 %s10, 1
        // Predicated region
        $region13: #{dgcnn_partseg_forward.15} parent=11 // pred_check
          %p133 = pneg %p71
        $region14: #{dgcnn_partseg_forward.15} parent=11 // pred_check_branch
          %135 = sbr.rel (%p133) target = $region16
        $region15: #{dgcnn_partseg_forward.15} parent=11 // pred_region
          _
        $region16: #{dgcnn_partseg_forward.15} parent=11 // pred_fallthru
          _
        // Predicated region
        $region17: #{dgcnn_partseg_forward.15} parent=11 // pred_check
          %p136 = pneg %p92
        $region18: #{dgcnn_partseg_forward.15} parent=11 // pred_check_branch
          %138 = sbr.rel (%p136) target = $region20
        $region19: #{dgcnn_partseg_forward.15} parent=11 // pred_region
          %s140 = ssub.s32 128, 128
          %141 = vsyncadd [#allocation3], %s140
          %s143 = sshll.u32 [#allocation2], 4
          %s144 = int_to_ptr.vmem [resolvable:$true] %s143
          %146 = dma.hbm_to_vmem [thread:$0]  %s2, 128, %s144, [#allocation3]
        $region20: #{dgcnn_partseg_forward.15} parent=11 // pred_fallthru
          _
      $region12: #{dgcnn_partseg_forward.15} parent=5 // pred_fallthru
        _
      %p147 = scmp.lt.s32.totalorder %s10, 2
      // Predicated region
      $region21: #{dgcnn_partseg_forward.15} parent=5 // pred_check
        %p148 = pneg %p147
      $region22: #{dgcnn_partseg_forward.15} parent=5 // pred_check_branch
        %150 = sbr.rel (%p148) target = $region24
      $region23: #{dgcnn_partseg_forward.15} parent=5 // pred_region
        // Predicated region
        $region25: #{dgcnn_partseg_forward.15} parent=23 // pred_check
          %p151 = pneg %p44
        $region26: #{dgcnn_partseg_forward.15} parent=23 // pred_check_branch
          %153 = sbr.rel (%p151) target = $region28
        $region27: #{dgcnn_partseg_forward.15} parent=23 // pred_region
          %s154 = smul.u32 2, %s18
          %p155 = scmp.lt.s32.totalorder %s17, 1
          %s156 = scalar_select %p155, %s17, 1
          %p157 = scmp.lt.s32.totalorder %s154, 1
          %s158 = scalar_select %p157, %s154, 1
          %s159 = smul.addr %s156, 2
          %s160 = sadd.s32 %s158, %s159
          %s161 = smul.addr %s160, 4
          %s162 = scalar_lea.vmem %s0, %s161
          %s163 = smul.u32 2, %s18
        $region28: #{dgcnn_partseg_forward.15} parent=23 // pred_fallthru
          _
      $region24: #{dgcnn_partseg_forward.15} parent=5 // pred_fallthru
        _
      %p164 = scmp.le.s32.totalorder 1, %s10
      %p165 = scmp.lt.s32.totalorder %s10, 3
      %p166 = pnand %p164, %p165
      %p167 = pneg %p166
      // Predicated region
      $region29: #{dgcnn_partseg_forward.15} parent=5 // pred_check
        _
      $region30: #{dgcnn_partseg_forward.15} parent=5 // pred_check_branch
        %169 = sbr.rel (%p166) target = $region32
      $region31: #{dgcnn_partseg_forward.15} parent=5 // pred_region
        %s170 = ssub.s32 %s10, 1
        // Predicated region
        $region33: #{dgcnn_partseg_forward.15} parent=31 // pred_check
          %p171 = pneg %p92
        $region34: #{dgcnn_partseg_forward.15} parent=31 // pred_check_branch
          %173 = sbr.rel (%p171) target = $region36
        $region35: #{dgcnn_partseg_forward.15} parent=31 // pred_region
          %174 = dma.done [#allocation3], 128
        $region36: #{dgcnn_partseg_forward.15} parent=31 // pred_fallthru
          _
        %s175 = smul.u32 2, %s20
        %p176 = scmp.lt.s32.totalorder %s19, 1
        %s177 = scalar_select %p176, %s19, 1
        %p178 = scmp.lt.s32.totalorder %s175, 1
        %s179 = scalar_select %p178, %s175, 1
        %s180 = smul.addr %s177, 2
        %s181 = sadd.s32 %s179, %s180
        %s182 = smul.addr %s181, 4
        %s183 = scalar_lea.vmem %s0, %s182
        %p184 = pneg %p50
        %p185 = pneg %p47
        %p186 = pneg %p71
        %p187 = pneg %p68
        %p188 = pneg %p92
        %p189 = pneg %p89
        %p190 = pneg %p118
        %p191 = pneg %p115
        %p192 = scmp.lt.s32.totalorder %s19, 1
        %s193 = scalar_select %p192, %s19, 1
        %s194 = smul.addr %s193, 8
        %s195 = scalar_lea.vmem %s3, %s194
        %s196 = smul.u32 2, %s20
        %p197 = scmp.lt.s32.totalorder %s19, 1
        %s198 = scalar_select %p197, %s19, 1
        %p199 = scmp.lt.s32.totalorder %s196, 1
        %s200 = scalar_select %p199, %s196, 1
        %s201 = smul.addr %s198, 2
        %s202 = sadd.s32 %s200, %s201
        %s203 = smul.addr %s202, 4
        %s204 = scalar_lea.vmem %s0, %s203
        %s205 = smul.u32 2, %s20
        %p206 = scmp.lt.s32.totalorder %s19, 1
        %s207 = scalar_select %p206, %s19, 1
        %s208 = smul.addr %s207, 8
        %s209 = scalar_lea.vmem %s3, %s208
        %v211 = vld [vmem:[%s204] sm:$0xf]
        %v212 = vld [vmem:[%s204 + $0x4] sm:$0xf]
        %v213 = vld [vmem:[%s1] sm:$0xff]
        %v214 = vld [vmem:[%s1 + $0x8] sm:$0xff]
        %v215 = vld [vmem:[%s1 + $0x10] sm:$0xff]
        %v216 = vld [vmem:[%s1 + $0x18] sm:$0xff]
        %v217 = vld [vmem:[%s1 + $0x20] sm:$0xff]
        %v218 = vld [vmem:[%s1 + $0x28] sm:$0xff]
        %v219 = vld [vmem:[%s1 + $0x30] sm:$0xff]
        %v220 = vld [vmem:[%s1 + $0x38] sm:$0xff]
        %v221 = vld [vmem:[%s1 + $0x40] sm:$0xff]
        %v222 = vld [vmem:[%s1 + $0x48] sm:$0xff]
        %v223 = vld [vmem:[%s1 + $0x50] sm:$0xff]
        %v224 = vld [vmem:[%s1 + $0x58] sm:$0xff]
        %v225 = vld [vmem:[%s1 + $0x60] sm:$0xff]
        %v226 = vld [vmem:[%s1 + $0x68] sm:$0xff]
        %v227 = vld [vmem:[%s1 + $0x70] sm:$0xff]
        %v228 = vld [vmem:[%s1 + $0x78] sm:$0xff]
        %v229 = vld [vmem:[%s1 + $0x80] sm:$0xff]
        %v230 = vld [vmem:[%s1 + $0x88] sm:$0xff]
        %v231 = vld [vmem:[%s1 + $0x90] sm:$0xff]
        %v232 = vld [vmem:[%s1 + $0x98] sm:$0xff]
        %v233 = vld [vmem:[%s1 + $0xa0] sm:$0xff]
        %v234 = vld [vmem:[%s1 + $0xa8] sm:$0xff]
        %v235 = vld [vmem:[%s1 + $0xb0] sm:$0xff]
        %v236 = vld [vmem:[%s1 + $0xb8] sm:$0xff]
        %v237 = vld [vmem:[%s1 + $0xc0] sm:$0xff]
        %v238 = vld [vmem:[%s1 + $0xc8] sm:$0xff]
        %v239 = vld [vmem:[%s1 + $0xd0] sm:$0xff]
        %v240 = vld [vmem:[%s1 + $0xd8] sm:$0xff]
        %v241 = vld [vmem:[%s1 + $0xe0] sm:$0xff]
        %v242 = vld [vmem:[%s1 + $0xe8] sm:$0xff]
        %v243 = vld [vmem:[%s1 + $0xf0] sm:$0xff]
        %v244 = vld [vmem:[%s1 + $0xf8] sm:$0xff]
        %v245 = vld [vmem:[%s1 + $0x100] sm:$0xff]
        %v246 = vld [vmem:[%s1 + $0x108] sm:$0xff]
        %v247 = vld [vmem:[%s1 + $0x110] sm:$0xff]
        %v248 = vld [vmem:[%s1 + $0x118] sm:$0xff]
        %v249 = vld [vmem:[%s1 + $0x120] sm:$0xff]
        %v250 = vld [vmem:[%s1 + $0x128] sm:$0xff]
        %v251 = vld [vmem:[%s1 + $0x130] sm:$0xff]
        %v252 = vld [vmem:[%s1 + $0x138] sm:$0xff]
        %v253 = vld [vmem:[%s1 + $0x140] sm:$0xff]
        %v254 = vld [vmem:[%s1 + $0x148] sm:$0xff]
        %v255 = vld [vmem:[%s1 + $0x150] sm:$0xff]
        %v256 = vld [vmem:[%s1 + $0x158] sm:$0xff]
        %v257 = vld [vmem:[%s1 + $0x160] sm:$0xff]
        %v258 = vld [vmem:[%s1 + $0x168] sm:$0xff]
        %v259 = vld [vmem:[%s1 + $0x170] sm:$0xff]
        %v260 = vld [vmem:[%s1 + $0x178] sm:$0xff]
        %v261 = vld [vmem:[%s1 + $0x180] sm:$0xff]
        %v262 = vld [vmem:[%s1 + $0x188] sm:$0xff]
        %v263 = vld [vmem:[%s1 + $0x190] sm:$0xff]
        %v264 = vld [vmem:[%s1 + $0x198] sm:$0xff]
        %v265 = vld [vmem:[%s1 + $0x1a0] sm:$0xff]
        %v266 = vld [vmem:[%s1 + $0x1a8] sm:$0xff]
        %v267 = vld [vmem:[%s1 + $0x1b0] sm:$0xff]
        %v268 = vld [vmem:[%s1 + $0x1b8] sm:$0xff]
        %v269 = vld [vmem:[%s1 + $0x1c0] sm:$0xff]
        %v270 = vld [vmem:[%s1 + $0x1c8] sm:$0xff]
        %v271 = vld [vmem:[%s1 + $0x1d0] sm:$0xff]
        %v272 = vld [vmem:[%s1 + $0x1d8] sm:$0xff]
        %v273 = vld [vmem:[%s1 + $0x1e0] sm:$0xff]
        %v274 = vld [vmem:[%s1 + $0x1e8] sm:$0xff]
        %v275 = vld [vmem:[%s1 + $0x1f0] sm:$0xff]
        %v276 = vld [vmem:[%s1 + $0x1f8] sm:$0xff]
        %v279 = vunpack.c.l.b16 %v211
        %v280 = vunpack.c.l.b16 %v212
        %v281 = vpack.c.b16 %v280, %v279
        %v347 = vunpack.c.l.b16 %v213
        %v348 = vunpack.c.h.b16 %v213
        %v349 = vunpack.c.l.b16 %v214
        %v350 = vunpack.c.h.b16 %v214
        %v351 = vunpack.c.l.b16 %v215
        %v352 = vunpack.c.h.b16 %v215
        %v353 = vunpack.c.l.b16 %v216
        %v354 = vunpack.c.h.b16 %v216
        %v355 = vunpack.c.l.b16 %v217
        %v356 = vunpack.c.h.b16 %v217
        %v357 = vunpack.c.l.b16 %v218
        %v358 = vunpack.c.h.b16 %v218
        %v359 = vunpack.c.l.b16 %v219
        %v360 = vunpack.c.h.b16 %v219
        %v361 = vunpack.c.l.b16 %v220
        %v362 = vunpack.c.h.b16 %v220
        %v363 = vunpack.c.l.b16 %v221
        %v364 = vunpack.c.h.b16 %v221
        %v365 = vunpack.c.l.b16 %v222
        %v366 = vunpack.c.h.b16 %v222
        %v367 = vunpack.c.l.b16 %v223
        %v368 = vunpack.c.h.b16 %v223
        %v369 = vunpack.c.l.b16 %v224
        %v370 = vunpack.c.h.b16 %v224
        %v371 = vunpack.c.l.b16 %v225
        %v372 = vunpack.c.h.b16 %v225
        %v373 = vunpack.c.l.b16 %v226
        %v374 = vunpack.c.h.b16 %v226
        %v375 = vunpack.c.l.b16 %v227
        %v376 = vunpack.c.h.b16 %v227
        %v377 = vunpack.c.l.b16 %v228
        %v378 = vunpack.c.h.b16 %v228
        %v379 = vunpack.c.l.b16 %v229
        %v380 = vunpack.c.h.b16 %v229
        %v381 = vunpack.c.l.b16 %v230
        %v382 = vunpack.c.h.b16 %v230
        %v383 = vunpack.c.l.b16 %v231
        %v384 = vunpack.c.h.b16 %v231
        %v385 = vunpack.c.l.b16 %v232
        %v386 = vunpack.c.h.b16 %v232
        %v387 = vunpack.c.l.b16 %v233
        %v388 = vunpack.c.h.b16 %v233
        %v389 = vunpack.c.l.b16 %v234
        %v390 = vunpack.c.h.b16 %v234
        %v391 = vunpack.c.l.b16 %v235
        %v392 = vunpack.c.h.b16 %v235
        %v393 = vunpack.c.l.b16 %v236
        %v394 = vunpack.c.h.b16 %v236
        %v395 = vunpack.c.l.b16 %v237
        %v396 = vunpack.c.h.b16 %v237
        %v397 = vunpack.c.l.b16 %v238
        %v398 = vunpack.c.h.b16 %v238
        %v399 = vunpack.c.l.b16 %v239
        %v400 = vunpack.c.h.b16 %v239
        %v401 = vunpack.c.l.b16 %v240
        %v402 = vunpack.c.h.b16 %v240
        %v403 = vunpack.c.l.b16 %v241
        %v404 = vunpack.c.h.b16 %v241
        %v405 = vunpack.c.l.b16 %v242
        %v406 = vunpack.c.h.b16 %v242
        %v407 = vunpack.c.l.b16 %v243
        %v408 = vunpack.c.h.b16 %v243
        %v409 = vunpack.c.l.b16 %v244
        %v410 = vunpack.c.h.b16 %v244
        %v411 = vunpack.c.l.b16 %v245
        %v412 = vunpack.c.h.b16 %v245
        %v413 = vunpack.c.l.b16 %v246
        %v414 = vunpack.c.h.b16 %v246
        %v415 = vunpack.c.l.b16 %v247
        %v416 = vunpack.c.h.b16 %v247
        %v417 = vunpack.c.l.b16 %v248
        %v418 = vunpack.c.h.b16 %v248
        %v419 = vunpack.c.l.b16 %v249
        %v420 = vunpack.c.h.b16 %v249
        %v421 = vunpack.c.l.b16 %v250
        %v422 = vunpack.c.h.b16 %v250
        %v423 = vunpack.c.l.b16 %v251
        %v424 = vunpack.c.h.b16 %v251
        %v425 = vunpack.c.l.b16 %v252
        %v426 = vunpack.c.h.b16 %v252
        %v427 = vunpack.c.l.b16 %v253
        %v428 = vunpack.c.h.b16 %v253
        %v429 = vunpack.c.l.b16 %v254
        %v430 = vunpack.c.h.b16 %v254
        %v431 = vunpack.c.l.b16 %v255
        %v432 = vunpack.c.h.b16 %v255
        %v433 = vunpack.c.l.b16 %v256
        %v434 = vunpack.c.h.b16 %v256
        %v435 = vunpack.c.l.b16 %v257
        %v436 = vunpack.c.h.b16 %v257
        %v437 = vunpack.c.l.b16 %v258
        %v438 = vunpack.c.h.b16 %v258
        %v439 = vunpack.c.l.b16 %v259
        %v440 = vunpack.c.h.b16 %v259
        %v441 = vunpack.c.l.b16 %v260
        %v442 = vunpack.c.h.b16 %v260
        %v443 = vunpack.c.l.b16 %v261
        %v444 = vunpack.c.h.b16 %v261
        %v445 = vunpack.c.l.b16 %v262
        %v446 = vunpack.c.h.b16 %v262
        %v447 = vunpack.c.l.b16 %v263
        %v448 = vunpack.c.h.b16 %v263
        %v449 = vunpack.c.l.b16 %v264
        %v450 = vunpack.c.h.b16 %v264
        %v451 = vunpack.c.l.b16 %v265
        %v452 = vunpack.c.h.b16 %v265
        %v453 = vunpack.c.l.b16 %v266
        %v454 = vunpack.c.h.b16 %v266
        %v455 = vunpack.c.l.b16 %v267
        %v456 = vunpack.c.h.b16 %v267
        %v457 = vunpack.c.l.b16 %v268
        %v458 = vunpack.c.h.b16 %v268
        %v459 = vunpack.c.l.b16 %v269
        %v460 = vunpack.c.h.b16 %v269
        %v461 = vunpack.c.l.b16 %v270
        %v462 = vunpack.c.h.b16 %v270
        %v463 = vunpack.c.l.b16 %v271
        %v464 = vunpack.c.h.b16 %v271
        %v465 = vunpack.c.l.b16 %v272
        %v466 = vunpack.c.h.b16 %v272
        %v467 = vunpack.c.l.b16 %v273
        %v468 = vunpack.c.h.b16 %v273
        %v469 = vunpack.c.l.b16 %v274
        %v470 = vunpack.c.h.b16 %v274
        %v471 = vunpack.c.l.b16 %v275
        %v472 = vunpack.c.h.b16 %v275
        %v473 = vunpack.c.l.b16 %v276
        %v474 = vunpack.c.h.b16 %v276
        %v475 = vpack.c.b16 %v355, %v347
        %v476 = vpack.c.b16 %v356, %v348
        %v477 = vpack.c.b16 %v357, %v349
        %v478 = vpack.c.b16 %v358, %v350
        %v479 = vpack.c.b16 %v359, %v351
        %v480 = vpack.c.b16 %v360, %v352
        %v481 = vpack.c.b16 %v361, %v353
        %v482 = vpack.c.b16 %v362, %v354
        %v483 = vpack.c.b16 %v371, %v363
        %v484 = vpack.c.b16 %v372, %v364
        %v485 = vpack.c.b16 %v373, %v365
        %v486 = vpack.c.b16 %v374, %v366
        %v487 = vpack.c.b16 %v375, %v367
        %v488 = vpack.c.b16 %v376, %v368
        %v489 = vpack.c.b16 %v377, %v369
        %v490 = vpack.c.b16 %v378, %v370
        %v491 = vpack.c.b16 %v387, %v379
        %v492 = vpack.c.b16 %v388, %v380
        %v493 = vpack.c.b16 %v389, %v381
        %v494 = vpack.c.b16 %v390, %v382
        %v495 = vpack.c.b16 %v391, %v383
        %v496 = vpack.c.b16 %v392, %v384
        %v497 = vpack.c.b16 %v393, %v385
        %v498 = vpack.c.b16 %v394, %v386
        %v499 = vpack.c.b16 %v403, %v395
        %v500 = vpack.c.b16 %v404, %v396
        %v501 = vpack.c.b16 %v405, %v397
        %v502 = vpack.c.b16 %v406, %v398
        %v503 = vpack.c.b16 %v407, %v399
        %v504 = vpack.c.b16 %v408, %v400
        %v505 = vpack.c.b16 %v409, %v401
        %v506 = vpack.c.b16 %v410, %v402
        %v507 = vpack.c.b16 %v419, %v411
        %v508 = vpack.c.b16 %v420, %v412
        %v509 = vpack.c.b16 %v421, %v413
        %v510 = vpack.c.b16 %v422, %v414
        %v511 = vpack.c.b16 %v423, %v415
        %v512 = vpack.c.b16 %v424, %v416
        %v513 = vpack.c.b16 %v425, %v417
        %v514 = vpack.c.b16 %v426, %v418
        %v515 = vpack.c.b16 %v435, %v427
        %v516 = vpack.c.b16 %v436, %v428
        %v517 = vpack.c.b16 %v437, %v429
        %v518 = vpack.c.b16 %v438, %v430
        %v519 = vpack.c.b16 %v439, %v431
        %v520 = vpack.c.b16 %v440, %v432
        %v521 = vpack.c.b16 %v441, %v433
        %v522 = vpack.c.b16 %v442, %v434
        %v523 = vpack.c.b16 %v451, %v443
        %v524 = vpack.c.b16 %v452, %v444
        %v525 = vpack.c.b16 %v453, %v445
        %v526 = vpack.c.b16 %v454, %v446
        %v527 = vpack.c.b16 %v455, %v447
        %v528 = vpack.c.b16 %v456, %v448
        %v529 = vpack.c.b16 %v457, %v449
        %v530 = vpack.c.b16 %v458, %v450
        %v531 = vpack.c.b16 %v467, %v459
        %v532 = vpack.c.b16 %v468, %v460
        %v533 = vpack.c.b16 %v469, %v461
        %v534 = vpack.c.b16 %v470, %v462
        %v535 = vpack.c.b16 %v471, %v463
        %v536 = vpack.c.b16 %v472, %v464
        %v537 = vpack.c.b16 %v473, %v465
        %v538 = vpack.c.b16 %v474, %v466
        %603 = vmatprep.subr.bf16.mxu0 %v476
        %604 = vmatpush1.bf16.msra.mxu0 %v475
        %605 = vmatprep.subr.bf16.mxu0 %v484
        %606 = vmatpush1.bf16.msra.mxu0 %v483
        %607 = vmatprep.subr.bf16.mxu0 %v492
        %608 = vmatpush1.bf16.msra.mxu0 %v491
        %609 = vmatprep.subr.bf16.mxu0 %v500
        %610 = vmatpush1.bf16.msra.mxu0 %v499
        %611 = vmatprep.subr.bf16.mxu0 %v508
        %612 = vmatpush1.bf16.msra.mxu0 %v507
        %613 = vmatprep.subr.bf16.mxu0 %v516
        %614 = vmatpush1.bf16.msra.mxu0 %v515
        %615 = vmatprep.subr.bf16.mxu0 %v524
        %616 = vmatpush1.bf16.msra.mxu0 %v523
        %617 = vmatprep.subr.bf16.mxu0 %v532
        %618 = vmatpush1.bf16.msra.mxu0 %v531
        %619 = vmatprep.subr.bf16.mxu0 0
        %620 = vmatpush1.bf16.msra.mxu0 0
        %621 = vmatprep.subr.bf16.mxu0 0
        %622 = vmatpush1.bf16.msra.mxu0 0
        %623 = vmatprep.subr.bf16.mxu0 0
        %624 = vmatpush1.bf16.msra.mxu0 0
        %625 = vmatprep.subr.bf16.mxu0 0
        %626 = vmatpush1.bf16.msra.mxu0 0
        %627 = vmatprep.subr.bf16.mxu0 0
        %628 = vmatpush1.bf16.msra.mxu0 0
        %629 = vmatprep.subr.bf16.mxu0 0
        %630 = vmatpush1.bf16.msra.mxu0 0
        %631 = vmatprep.subr.bf16.mxu0 0
        %632 = vmatpush1.bf16.msra.mxu0 0
        %633 = vmatprep.subr.bf16.mxu0 0
        %634 = vmatpush1.bf16.msra.mxu0 0
        %635 = vmatprep.mubr.bf16.mxu0 0
        %636 = vmatmul.mubr.bf16.gmra.mrb[0].mxu0 %v281
        %v637 = vpop.f32.mrb[0].mxu0
        %v638 = vadd.f32 0.0, %v637
        %v639 = vpop.f32.mrb[0].mxu0
        %v640 = vadd.f32 0.0, %v639
        %v641 = vpop.f32.mrb[0].mxu0
        %v642 = vadd.f32 0.0, %v641
        %v643 = vpop.f32.mrb[0].mxu0
        %v644 = vadd.f32 0.0, %v643
        %645 = vdwg.mxu0
        %646 = vmatprep.subr.bf16.mxu0 %v478
        %647 = vmatpush1.bf16.msra.mxu0 %v477
        %648 = vmatprep.subr.bf16.mxu0 %v486
        %649 = vmatpush1.bf16.msra.mxu0 %v485
        %650 = vmatprep.subr.bf16.mxu0 %v494
        %651 = vmatpush1.bf16.msra.mxu0 %v493
        %652 = vmatprep.subr.bf16.mxu0 %v502
        %653 = vmatpush1.bf16.msra.mxu0 %v501
        %654 = vmatprep.subr.bf16.mxu0 %v510
        %655 = vmatpush1.bf16.msra.mxu0 %v509
        %656 = vmatprep.subr.bf16.mxu0 %v518
        %657 = vmatpush1.bf16.msra.mxu0 %v517
        %658 = vmatprep.subr.bf16.mxu0 %v526
        %659 = vmatpush1.bf16.msra.mxu0 %v525
        %660 = vmatprep.subr.bf16.mxu0 %v534
        %661 = vmatpush1.bf16.msra.mxu0 %v533
        %662 = vmatprep.subr.bf16.mxu0 0
        %663 = vmatpush1.bf16.msra.mxu0 0
        %664 = vmatprep.subr.bf16.mxu0 0
        %665 = vmatpush1.bf16.msra.mxu0 0
        %666 = vmatprep.subr.bf16.mxu0 0
        %667 = vmatpush1.bf16.msra.mxu0 0
        %668 = vmatprep.subr.bf16.mxu0 0
        %669 = vmatpush1.bf16.msra.mxu0 0
        %670 = vmatprep.subr.bf16.mxu0 0
        %671 = vmatpush1.bf16.msra.mxu0 0
        %672 = vmatprep.subr.bf16.mxu0 0
        %673 = vmatpush1.bf16.msra.mxu0 0
        %674 = vmatprep.subr.bf16.mxu0 0
        %675 = vmatpush1.bf16.msra.mxu0 0
        %676 = vmatprep.subr.bf16.mxu0 0
        %677 = vmatpush1.bf16.msra.mxu0 0
        %678 = vmatprep.mubr.bf16.mxu0 0
        %679 = vmatmul.mubr.bf16.gmra.mrb[0].mxu0 %v281
        %v680 = vpop.f32.mrb[0].mxu0
        %v681 = vadd.f32 0.0, %v680
        %v682 = vpop.f32.mrb[0].mxu0
        %v683 = vadd.f32 0.0, %v682
        %v684 = vpop.f32.mrb[0].mxu0
        %v685 = vadd.f32 0.0, %v684
        %v686 = vpop.f32.mrb[0].mxu0
        %v687 = vadd.f32 0.0, %v686
        %688 = vdwg.mxu0
        %689 = vmatprep.subr.bf16.mxu0 %v480
        %690 = vmatpush1.bf16.msra.mxu0 %v479
        %691 = vmatprep.subr.bf16.mxu0 %v488
        %692 = vmatpush1.bf16.msra.mxu0 %v487
        %693 = vmatprep.subr.bf16.mxu0 %v496
        %694 = vmatpush1.bf16.msra.mxu0 %v495
        %695 = vmatprep.subr.bf16.mxu0 %v504
        %696 = vmatpush1.bf16.msra.mxu0 %v503
        %697 = vmatprep.subr.bf16.mxu0 %v512
        %698 = vmatpush1.bf16.msra.mxu0 %v511
        %699 = vmatprep.subr.bf16.mxu0 %v520
        %700 = vmatpush1.bf16.msra.mxu0 %v519
        %701 = vmatprep.subr.bf16.mxu0 %v528
        %702 = vmatpush1.bf16.msra.mxu0 %v527
        %703 = vmatprep.subr.bf16.mxu0 %v536
        %704 = vmatpush1.bf16.msra.mxu0 %v535
        %705 = vmatprep.subr.bf16.mxu0 0
        %706 = vmatpush1.bf16.msra.mxu0 0
        %707 = vmatprep.subr.bf16.mxu0 0
        %708 = vmatpush1.bf16.msra.mxu0 0
        %709 = vmatprep.subr.bf16.mxu0 0
        %710 = vmatpush1.bf16.msra.mxu0 0
        %711 = vmatprep.subr.bf16.mxu0 0
        %712 = vmatpush1.bf16.msra.mxu0 0
        %713 = vmatprep.subr.bf16.mxu0 0
        %714 = vmatpush1.bf16.msra.mxu0 0
        %715 = vmatprep.subr.bf16.mxu0 0
        %716 = vmatpush1.bf16.msra.mxu0 0
        %717 = vmatprep.subr.bf16.mxu0 0
        %718 = vmatpush1.bf16.msra.mxu0 0
        %719 = vmatprep.subr.bf16.mxu0 0
        %720 = vmatpush1.bf16.msra.mxu0 0
        %721 = vmatprep.mubr.bf16.mxu0 0
        %722 = vmatmul.mubr.bf16.gmra.mrb[0].mxu0 %v281
        %v723 = vpop.f32.mrb[0].mxu0
        %v724 = vadd.f32 0.0, %v723
        %v725 = vpop.f32.mrb[0].mxu0
        %v726 = vadd.f32 0.0, %v725
        %v727 = vpop.f32.mrb[0].mxu0
        %v728 = vadd.f32 0.0, %v727
        %v729 = vpop.f32.mrb[0].mxu0
        %v730 = vadd.f32 0.0, %v729
        %731 = vdwg.mxu0
        %732 = vmatprep.subr.bf16.mxu0 %v482
        %733 = vmatpush1.bf16.msra.mxu0 %v481
        %734 = vmatprep.subr.bf16.mxu0 %v490
        %735 = vmatpush1.bf16.msra.mxu0 %v489
        %736 = vmatprep.subr.bf16.mxu0 %v498
        %737 = vmatpush1.bf16.msra.mxu0 %v497
        %738 = vmatprep.subr.bf16.mxu0 %v506
        %739 = vmatpush1.bf16.msra.mxu0 %v505
        %740 = vmatprep.subr.bf16.mxu0 %v514
        %741 = vmatpush1.bf16.msra.mxu0 %v513
        %742 = vmatprep.subr.bf16.mxu0 %v522
        %743 = vmatpush1.bf16.msra.mxu0 %v521
        %744 = vmatprep.subr.bf16.mxu0 %v530
        %745 = vmatpush1.bf16.msra.mxu0 %v529
        %746 = vmatprep.subr.bf16.mxu0 %v538
        %747 = vmatpush1.bf16.msra.mxu0 %v537
        %748 = vmatprep.subr.bf16.mxu0 0
        %749 = vmatpush1.bf16.msra.mxu0 0
        %750 = vmatprep.subr.bf16.mxu0 0
        %751 = vmatpush1.bf16.msra.mxu0 0
        %752 = vmatprep.subr.bf16.mxu0 0
        %753 = vmatpush1.bf16.msra.mxu0 0
        %754 = vmatprep.subr.bf16.mxu0 0
        %755 = vmatpush1.bf16.msra.mxu0 0
        %756 = vmatprep.subr.bf16.mxu0 0
        %757 = vmatpush1.bf16.msra.mxu0 0
        %758 = vmatprep.subr.bf16.mxu0 0
        %759 = vmatpush1.bf16.msra.mxu0 0
        %760 = vmatprep.subr.bf16.mxu0 0
        %761 = vmatpush1.bf16.msra.mxu0 0
        %762 = vmatprep.subr.bf16.mxu0 0
        %763 = vmatpush1.bf16.msra.mxu0 0
        %764 = vmatprep.mubr.bf16.mxu0 0
        %765 = vmatmul.mubr.bf16.gmra.mrb[0].mxu0 %v281
        %v766 = vpop.f32.mrb[0].mxu0
        %v767 = vadd.f32 0.0, %v766
        %v768 = vpop.f32.mrb[0].mxu0
        %v769 = vadd.f32 0.0, %v768
        %v770 = vpop.f32.mrb[0].mxu0
        %v771 = vadd.f32 0.0, %v770
        %v772 = vpop.f32.mrb[0].mxu0
        %v773 = vadd.f32 0.0, %v772
        %774 = vdwg.mxu0
        %v775 = vmax.f32 %v638, %v642
        %v776 = vrot.slane %v775, 4
        %v777 = vmax.f32 %v775, %v776
        %v778 = vrot.slane %v777, 2
        %v779 = vmax.f32 %v777, %v778
        %v780 = vrot.slane %v779, 1
        %v781 = vmax.f32 %v779, %v780
        %v782 = vmax.f32 %v640, %v644
        %v783 = vrot.slane %v782, 4
        %v784 = vmax.f32 %v782, %v783
        %v785 = vrot.slane %v784, 2
        %v786 = vmax.f32 %v784, %v785
        %v787 = vrot.slane %v786, 1
        %v788 = vmax.f32 %v786, %v787
        %v789 = vmax.f32 %v681, %v685
        %v790 = vrot.slane %v789, 4
        %v791 = vmax.f32 %v789, %v790
        %v792 = vrot.slane %v791, 2
        %v793 = vmax.f32 %v791, %v792
        %v794 = vrot.slane %v793, 1
        %v795 = vmax.f32 %v793, %v794
        %v796 = vmax.f32 %v683, %v687
        %v797 = vrot.slane %v796, 4
        %v798 = vmax.f32 %v796, %v797
        %v799 = vrot.slane %v798, 2
        %v800 = vmax.f32 %v798, %v799
        %v801 = vrot.slane %v800, 1
        %v802 = vmax.f32 %v800, %v801
        %v803 = vmax.f32 %v724, %v728
        %v804 = vrot.slane %v803, 4
        %v805 = vmax.f32 %v803, %v804
        %v806 = vrot.slane %v805, 2
        %v807 = vmax.f32 %v805, %v806
        %v808 = vrot.slane %v807, 1
        %v809 = vmax.f32 %v807, %v808
        %v810 = vmax.f32 %v726, %v730
        %v811 = vrot.slane %v810, 4
        %v812 = vmax.f32 %v810, %v811
        %v813 = vrot.slane %v812, 2
        %v814 = vmax.f32 %v812, %v813
        %v815 = vrot.slane %v814, 1
        %v816 = vmax.f32 %v814, %v815
        %v817 = vmax.f32 %v767, %v771
        %v818 = vrot.slane %v817, 4
        %v819 = vmax.f32 %v817, %v818
        %v820 = vrot.slane %v819, 2
        %v821 = vmax.f32 %v819, %v820
        %v822 = vrot.slane %v821, 1
        %v823 = vmax.f32 %v821, %v822
        %v824 = vmax.f32 %v769, %v773
        %v825 = vrot.slane %v824, 4
        %v826 = vmax.f32 %v824, %v825
        %v827 = vrot.slane %v826, 2
        %v828 = vmax.f32 %v826, %v827
        %v829 = vrot.slane %v828, 1
        %v830 = vmax.f32 %v828, %v829
        %p831 = scmp.eq.s32.totalorder %s20, 0
        // Predicated region
        $region37: #{dgcnn_partseg_forward.15} parent=31 // pred_check
          %p832 = pneg %p831
        $region38: #{dgcnn_partseg_forward.15} parent=31 // pred_check_branch
          %834 = sbr.rel (%p832) target = $region40
        $region39: #{dgcnn_partseg_forward.15} parent=31 // pred_region
          %v843 = vcombine.low %v781, %v788
          %v844 = vcombine.low %v795, %v802
          %v845 = vcombine.low %v809, %v816
          %v846 = vcombine.low %v823, %v830
          %v848 = vunpack.c.l.s4 1966171168
          %v849 = vunpack.c.0.s8 %v848
          %v850 = vlaneseq
          %v851 = vshrl.u32 %v850, 7
          %v852 = vsub.s32 %v849, %v851
          %v853 = vrot.slane %v843, %v852
          %v855 = vunpack.c.l.s4 1966171168
          %v856 = vunpack.c.0.s8 %v855
          %v857 = vlaneseq
          %v858 = vshrl.u32 %v857, 7
          %v859 = vsub.s32 %v856, %v858
          %v860 = vrot.slane %v844, %v859
          %v862 = vunpack.c.l.s4 1966171168
          %v863 = vunpack.c.0.s8 %v862
          %v864 = vlaneseq
          %v865 = vshrl.u32 %v864, 7
          %v866 = vsub.s32 %v863, %v865
          %v867 = vrot.slane %v845, %v866
          %v869 = vunpack.c.l.s4 1966171168
          %v870 = vunpack.c.0.s8 %v869
          %v871 = vlaneseq
          %v872 = vshrl.u32 %v871, 7
          %v873 = vsub.s32 %v870, %v872
          %v874 = vrot.slane %v846, %v873
          %v875 = vcombine.low %v853, %v860
          %v876 = vcombine.low %v867, %v874
          %v878 = vunpack.c.l.s4 1966171168
          %v879 = vunpack.c.0.s8 %v878
          %v880 = vlaneseq
          %v881 = vshrl.u32 %v880, 7
          %v882 = vsub.s32 %v879, %v881
          %v883 = vrot.slane %v875, %v882
          %v885 = vunpack.c.l.s4 1966171168
          %v886 = vunpack.c.0.s8 %v885
          %v887 = vlaneseq
          %v888 = vshrl.u32 %v887, 7
          %v889 = vsub.s32 %v886, %v888
          %v890 = vrot.slane %v876, %v889
          %v891 = vcombine.low %v883, %v890
          %893 = vst [vmem:[%s209] sm:$0xff] %v891
        $region40: #{dgcnn_partseg_forward.15} parent=31 // pred_fallthru
          _
        %p894 = scmp.ne.s32.totalorder %s20, 0
        // Predicated region
        $region41: #{dgcnn_partseg_forward.15} parent=31 // pred_check
          %p895 = pneg %p894
        $region42: #{dgcnn_partseg_forward.15} parent=31 // pred_check_branch
          %897 = sbr.rel (%p895) target = $region44
        $region43: #{dgcnn_partseg_forward.15} parent=31 // pred_region
          %v898 = vld [vmem:[%s209] sm:$0xff]
          %v907 = vcombine.low %v781, %v788
          %v908 = vcombine.low %v795, %v802
          %v909 = vcombine.low %v809, %v816
          %v910 = vcombine.low %v823, %v830
          %v912 = vunpack.c.l.s4 1966171168
          %v913 = vunpack.c.0.s8 %v912
          %v914 = vlaneseq
          %v915 = vshrl.u32 %v914, 7
          %v916 = vsub.s32 %v913, %v915
          %v917 = vrot.slane %v907, %v916
          %v919 = vunpack.c.l.s4 1966171168
          %v920 = vunpack.c.0.s8 %v919
          %v921 = vlaneseq
          %v922 = vshrl.u32 %v921, 7
          %v923 = vsub.s32 %v920, %v922
          %v924 = vrot.slane %v908, %v923
          %v926 = vunpack.c.l.s4 1966171168
          %v927 = vunpack.c.0.s8 %v926
          %v928 = vlaneseq
          %v929 = vshrl.u32 %v928, 7
          %v930 = vsub.s32 %v927, %v929
          %v931 = vrot.slane %v909, %v930
          %v933 = vunpack.c.l.s4 1966171168
          %v934 = vunpack.c.0.s8 %v933
          %v935 = vlaneseq
          %v936 = vshrl.u32 %v935, 7
          %v937 = vsub.s32 %v934, %v936
          %v938 = vrot.slane %v910, %v937
          %v939 = vcombine.low %v917, %v924
          %v940 = vcombine.low %v931, %v938
          %v942 = vunpack.c.l.s4 1966171168
          %v943 = vunpack.c.0.s8 %v942
          %v944 = vlaneseq
          %v945 = vshrl.u32 %v944, 7
          %v946 = vsub.s32 %v943, %v945
          %v947 = vrot.slane %v939, %v946
          %v949 = vunpack.c.l.s4 1966171168
          %v950 = vunpack.c.0.s8 %v949
          %v951 = vlaneseq
          %v952 = vshrl.u32 %v951, 7
          %v953 = vsub.s32 %v950, %v952
          %v954 = vrot.slane %v940, %v953
          %v955 = vcombine.low %v947, %v954
          %v957 = vmax.f32 %v898, %v955
          %958 = vst [vmem:[%s209] sm:$0xff] %v957
        $region44: #{dgcnn_partseg_forward.15} parent=31 // pred_fallthru
          _
        // Predicated region
        $region45: #{dgcnn_partseg_forward.15} parent=31 // pred_check
          %p959 = pneg %p831
        $region46: #{dgcnn_partseg_forward.15} parent=31 // pred_check_branch
          %961 = sbr.rel (%p959) target = $region48
        $region47: #{dgcnn_partseg_forward.15} parent=31 // pred_region
          %v962 = vld [vmem:[%s209] sm:$0xff]
          %v963 = vld [vmem:[#allocation2] sm:$0xff]
          %v964 = vadd.f32 %v962, %v963
          %vm965 = vcmp.ge.f32.partialorder %v964, 0.0
          %v966 = vmul.f32 %v964, 0.2
          %v967 = vsel %vm965, %v964, %v966
          %968 = vst [vmem:[%s209] sm:$0xff] %v967
        $region48: #{dgcnn_partseg_forward.15} parent=31 // pred_fallthru
          _
        %p969 = scmp.lt.s32.totalorder %s19, 1
        %s970 = scalar_select %p969, %s19, 1
        %s971 = smul.addr %s970, 8
        %s972 = scalar_lea.vmem %s3, %s971
        // Predicated region
        $region49: #{dgcnn_partseg_forward.15} parent=31 // pred_check
          %p973 = pneg %p115
        $region50: #{dgcnn_partseg_forward.15} parent=31 // pred_check_branch
          %975 = sbr.rel (%p973) target = $region52
        $region51: #{dgcnn_partseg_forward.15} parent=31 // pred_region
          _
        $region52: #{dgcnn_partseg_forward.15} parent=31 // pred_fallthru
          _
      $region32: #{dgcnn_partseg_forward.15} parent=5 // pred_fallthru
        _
      %p976 = scmp.le.s32.totalorder 2, %s10
      // Predicated region
      $region53: #{dgcnn_partseg_forward.15} parent=5 // pred_check
        %p977 = pneg %p976
      $region54: #{dgcnn_partseg_forward.15} parent=5 // pred_check_branch
        %979 = sbr.rel (%p977) target = $region56
      $region55: #{dgcnn_partseg_forward.15} parent=5 // pred_region
        %s980 = ssub.s32 %s10, 2
        // Predicated region
        $region57: #{dgcnn_partseg_forward.15} parent=55 // pred_check
          %p981 = pneg %p121
        $region58: #{dgcnn_partseg_forward.15} parent=55 // pred_check_branch
          %983 = sbr.rel (%p981) target = $region60
        $region59: #{dgcnn_partseg_forward.15} parent=55 // pred_region
          %p984 = scmp.lt.s32.totalorder %s21, 1
          %s985 = scalar_select %p984, %s21, 1
          %s986 = smul.addr %s985, 8
          %s987 = scalar_lea.vmem %s3, %s986
        $region60: #{dgcnn_partseg_forward.15} parent=55 // pred_fallthru
          _
      $region56: #{dgcnn_partseg_forward.15} parent=5 // pred_fallthru
        _
    $region6: #{dgcnn_partseg_forward.15} parent=1 // loop_footer
      %s14 = sadd.s32 1, %s10
    $region7: #{dgcnn_partseg_forward.15} parent=1 // loop_footer_branch
      %9 = sbr.rel target = $region3
    $region8: #{dgcnn_partseg_forward.15} parent=1 // loop_exit
      _
    %988 = vsyncpa [#allocation3], 1
    %s989 = scalar_lea.sflag [#allocation3], 1
    %990 = vsyncpa %s989, 1

// kernel: dgcnn_partseg_forward.19
$region0: #{dgcnn_partseg_forward.19}
  #allocation0 [shape = 'u32[]', space=smem, size = 0x4, offset = 0x4, fixed_abs, tag = 'smem constant byte address 0x4 - core index']
  #allocation1 [shape = 'u32[144,128]{1,0:T(1,128)}', space=vmem, size = 0x12000, scoped, tag = 'internal scratch']
  %s0 = inlined_call_operand.vmem [shape: bf16[2,16,64], index: 0, kind: input, shape index: {}]
  %s1 = inlined_call_operand.vmem [shape: f32[2,1,16], index: 1, kind: input, shape index: {}]
  %s2 = inlined_call_operand.vmem [shape: f32[2,16,16], index: 2, kind: output, shape index: {}]
  %s3 = sld [smem:[#allocation0]]
  $region41: #{dgcnn_partseg_forward.19} parent=0
    _
  %s5 = ssub.s32 1, %s3
  %s6 = scalar_select 0, %s5, %s3
  loop: start=0, step=1, limit=4
  $region2: #{dgcnn_partseg_forward.19} parent=0 // loop_pre_header
    _
  $region3: #{dgcnn_partseg_forward.19} parent=0 // loop_header
    %s8 = sphi 0, %s12
    %p9 = scmp.ge.s32.totalorder %s8, 4
    %s15 = sphi 0, %s27
    %s16 = sphi 0, %s23
    %s17 = sphi 0, %s15
    %s18 = sphi 0, %s16
    %s19 = sphi 0, %s17
    %s20 = sphi 0, %s18
    %s30 = sphi 0, %s32
    %s33 = sphi 0, %s30
    %s34 = sphi 0, %s33
    %s50 = sphi 0, %s34
    %s56 = sphi 0, %s58
    %s59 = sphi 0, %s56
    %s60 = sphi 0, %s59
    %s76 = sphi 0, %s60
    %s84 = sphi 0, %s86
    %s87 = sphi 0, %s84
    %s88 = sphi 0, %s87
    %s104 = sphi 0, %s88
  $region4: #{dgcnn_partseg_forward.19} parent=0 // loop_header_branch
    %11 = sbr.rel (%p9) target = $region8
  $region5: #{dgcnn_partseg_forward.19} parent=0 // loop_body
    %s13 = ssub.s32 %s8, 1
    %s14 = ssub.s32 %s8, 2
    %s21 = sadd.s32 1, %s16
    %p22 = scmp.ge.s32.totalorder %s21, 1
    %s23 = scalar_select %p22, 0, %s21
    %s24 = sadd.s32 1, %s15
    %s25 = scalar_select %p22, %s24, %s15
    %p26 = scmp.ge.s32.totalorder %s25, 2
    %s27 = scalar_select %p26, 0, %s25
    %s28 = ssub.s32 %s15, %s27
    %p29 = scmp.eq.s32.totalorder %s28, 0
    %s31 = sadd.s32 %s30, 1
    %s32 = scalar_select %p29, %s30, %s31
    %p35 = pneg %p29
    %p36 = scmp.eq.s32.totalorder %s8, 1
    %p37 = por %p35, %p36
    %p38 = scmp.ne.s32.totalorder %s30, %s33
    %p39 = scmp.eq.s32.totalorder %s8, 0
    %p40 = por %p38, %p39
    %p41 = scmp.ne.s32.totalorder %s30, %s33
    %p42 = scmp.eq.s32.totalorder %s13, 1
    %p43 = por %p41, %p42
    %p44 = scmp.ne.s32.totalorder %s33, %s34
    %p45 = scmp.eq.s32.totalorder %s13, 0
    %p46 = por %p44, %p45
    %p47 = scmp.ne.s32.totalorder %s33, %s34
    %p48 = scmp.eq.s32.totalorder %s14, 1
    %p49 = por %p47, %p48
    %p51 = scmp.ne.s32.totalorder %s34, %s50
    %p52 = scmp.eq.s32.totalorder %s14, 0
    %p53 = por %p51, %p52
    %s54 = ssub.s32 %s15, %s27
    %p55 = scmp.eq.s32.totalorder %s54, 0
    %s57 = sadd.s32 %s56, 1
    %s58 = scalar_select %p55, %s56, %s57
    %p61 = pneg %p55
    %p62 = scmp.eq.s32.totalorder %s8, 1
    %p63 = por %p61, %p62
    %p64 = scmp.ne.s32.totalorder %s56, %s59
    %p65 = scmp.eq.s32.totalorder %s8, 0
    %p66 = por %p64, %p65
    %p67 = scmp.ne.s32.totalorder %s56, %s59
    %p68 = scmp.eq.s32.totalorder %s13, 1
    %p69 = por %p67, %p68
    %p70 = scmp.ne.s32.totalorder %s59, %s60
    %p71 = scmp.eq.s32.totalorder %s13, 0
    %p72 = por %p70, %p71
    %p73 = scmp.ne.s32.totalorder %s59, %s60
    %p74 = scmp.eq.s32.totalorder %s14, 1
    %p75 = por %p73, %p74
    %p77 = scmp.ne.s32.totalorder %s60, %s76
    %p78 = scmp.eq.s32.totalorder %s14, 0
    %p79 = por %p77, %p78
    %s80 = ssub.s32 %s15, %s27
    %s81 = ssub.s32 %s16, %s23
    %s82 = sor.u32 %s80, %s81
    %p83 = scmp.eq.s32.totalorder %s82, 0
    %s85 = sadd.s32 %s84, 1
    %s86 = scalar_select %p83, %s84, %s85
    %p89 = pneg %p83
    %p90 = scmp.eq.s32.totalorder %s8, 1
    %p91 = por %p89, %p90
    %p92 = scmp.ne.s32.totalorder %s84, %s87
    %p93 = scmp.eq.s32.totalorder %s8, 0
    %p94 = por %p92, %p93
    %p95 = scmp.ne.s32.totalorder %s84, %s87
    %p96 = scmp.eq.s32.totalorder %s13, 1
    %p97 = por %p95, %p96
    %p98 = scmp.ne.s32.totalorder %s87, %s88
    %p99 = scmp.eq.s32.totalorder %s13, 0
    %p100 = por %p98, %p99
    %p101 = scmp.ne.s32.totalorder %s87, %s88
    %p102 = scmp.eq.s32.totalorder %s14, 1
    %p103 = por %p101, %p102
    %p105 = scmp.ne.s32.totalorder %s88, %s104
    %p106 = scmp.eq.s32.totalorder %s14, 0
    %p107 = por %p105, %p106
    %p108 = scmp.le.s32.totalorder 1, %s8
    %p109 = scmp.lt.s32.totalorder %s8, 3
    %p110 = pnand %p108, %p109
    %p111 = pneg %p110
    // Predicated region
    $region9: #{dgcnn_partseg_forward.19} parent=5 // pred_check
      _
    $region10: #{dgcnn_partseg_forward.19} parent=5 // pred_check_branch
      %113 = sbr.rel (%p110) target = $region12
    $region11: #{dgcnn_partseg_forward.19} parent=5 // pred_region
      %s114 = ssub.s32 %s8, 1
    $region12: #{dgcnn_partseg_forward.19} parent=5 // pred_fallthru
      _
    %p115 = scmp.lt.s32.totalorder %s8, 2
    // Predicated region
    $region13: #{dgcnn_partseg_forward.19} parent=5 // pred_check
      %p116 = pneg %p115
    $region14: #{dgcnn_partseg_forward.19} parent=5 // pred_check_branch
      %118 = sbr.rel (%p116) target = $region16
    $region15: #{dgcnn_partseg_forward.19} parent=5 // pred_region
      // Predicated region
      $region17: #{dgcnn_partseg_forward.19} parent=15 // pred_check
        %p119 = pneg %p40
      $region18: #{dgcnn_partseg_forward.19} parent=15 // pred_check_branch
        %121 = sbr.rel (%p119) target = $region20
      $region19: #{dgcnn_partseg_forward.19} parent=15 // pred_region
        %p122 = scmp.lt.s32.totalorder %s15, 1
        %s123 = scalar_select %p122, %s15, 1
        %s124 = smul.addr %s123, 2
        %s125 = smul.addr %s124, 4
        %s126 = scalar_lea.vmem %s0, %s125
      $region20: #{dgcnn_partseg_forward.19} parent=15 // pred_fallthru
        _
      // Predicated region
      $region21: #{dgcnn_partseg_forward.19} parent=15 // pred_check
        %p127 = pneg %p66
      $region22: #{dgcnn_partseg_forward.19} parent=15 // pred_check_branch
        %129 = sbr.rel (%p127) target = $region24
      $region23: #{dgcnn_partseg_forward.19} parent=15 // pred_region
        %p130 = scmp.lt.s32.totalorder %s15, 1
        %s131 = scalar_select %p130, %s15, 1
        %s132 = scalar_lea.vmem %s1, %s131
      $region24: #{dgcnn_partseg_forward.19} parent=15 // pred_fallthru
        _
    $region16: #{dgcnn_partseg_forward.19} parent=5 // pred_fallthru
      _
    %p133 = scmp.le.s32.totalorder 1, %s8
    %p134 = scmp.lt.s32.totalorder %s8, 3
    %p135 = pnand %p133, %p134
    %p136 = pneg %p135
    // Predicated region
    $region25: #{dgcnn_partseg_forward.19} parent=5 // pred_check
      _
    $region26: #{dgcnn_partseg_forward.19} parent=5 // pred_check_branch
      %138 = sbr.rel (%p135) target = $region28
    $region27: #{dgcnn_partseg_forward.19} parent=5 // pred_region
      %s139 = ssub.s32 %s8, 1
      %p140 = scmp.lt.s32.totalorder %s17, 1
      %s141 = scalar_select %p140, %s17, 1
      %s142 = smul.addr %s141, 2
      %s143 = smul.addr %s142, 4
      %s144 = scalar_lea.vmem %s0, %s143
      %p145 = pneg %p46
      %p146 = pneg %p43
      %p147 = scmp.lt.s32.totalorder %s17, 1
      %s148 = scalar_select %p147, %s17, 1
      %s149 = scalar_lea.vmem %s1, %s148
      %p150 = pneg %p72
      %p151 = pneg %p69
      %p152 = pneg %p100
      %p153 = pneg %p97
      %s154 = smul.u32 2, %s18
      %p155 = scmp.lt.s32.totalorder %s17, 1
      %s156 = scalar_select %p155, %s17, 1
      %p157 = scmp.lt.s32.totalorder %s154, 1
      %s158 = scalar_select %p157, %s154, 1
      %s159 = smul.addr %s156, 2
      %s160 = sadd.s32 %s158, %s159
      %s161 = smul.addr %s160, 8
      %s162 = scalar_lea.vmem %s2, %s161
      %p163 = scmp.lt.s32.totalorder %s17, 1
      %s164 = scalar_select %p163, %s17, 1
      %s165 = smul.addr %s164, 2
      %s166 = smul.addr %s165, 4
      %s167 = scalar_lea.vmem %s0, %s166
      %p168 = scmp.lt.s32.totalorder %s17, 1
      %s169 = scalar_select %p168, %s17, 1
      %s170 = scalar_lea.vmem %s1, %s169
      %s171 = smul.u32 2, %s18
      %p172 = scmp.lt.s32.totalorder %s17, 1
      %s173 = scalar_select %p172, %s17, 1
      %p174 = scmp.lt.s32.totalorder %s171, 1
      %s175 = scalar_select %p174, %s171, 1
      %s176 = smul.addr %s173, 2
      %s177 = sadd.s32 %s175, %s176
      %s178 = smul.addr %s177, 8
      %s179 = scalar_lea.vmem %s2, %s178
      %s180 = smul.u32 2, %s18
      %s182 = smul.u32 %s18, 16
      %v183 = vld [vmem:[%s167] sm:$0xf]
      %v184 = vld [vmem:[%s167 + $0x4] sm:$0xf]
      %s185 = sshra.s32 %s182, 3
      %s186 = sand.u32 %s182, 7
      %s187 = smul.addr %s185, 4
      %s188 = scalar_lea.vmem %s167, %s187
      %v189 = vld [vmem:[%s188] sm:$0xf]
      %v190 = vld [vmem:[%s188 + $0x4] sm:$0xf]
      %v193 = vunpack.c.l.b16 %v189
      %v194 = vunpack.c.l.b16 %v190
      %v195 = vpack.c.b16 %v194, %v193
      %v198 = vunpack.c.l.b16 %v183
      %v199 = vunpack.c.l.b16 %v184
      %v200 = vpack.c.b16 %v199, %v198
      %vm201 = vcmask 523264
      %v203 = vsel %vm201, %v195, 0
      %v206 = vsel %vm201, %v200, 0
      %208 = vmatprep.subr.bf16.mxu0 0
      %209 = vmatpush1.bf16.xpose.msra.mxu0 %v206
      %210 = vmatprep.subr.bf16.mxu0 0
      %211 = vmatpush1.bf16.xpose.msra.mxu0 0
      %212 = vmatprep.subr.bf16.mxu0 0
      %213 = vmatpush1.bf16.xpose.msra.mxu0 0
      %214 = vmatprep.subr.bf16.mxu0 0
      %215 = vmatpush1.bf16.xpose.msra.mxu0 0
      %216 = vmatprep.subr.bf16.mxu0 0
      %217 = vmatpush1.bf16.xpose.msra.mxu0 0
      %218 = vmatprep.subr.bf16.mxu0 0
      %219 = vmatpush1.bf16.xpose.msra.mxu0 0
      %220 = vmatprep.subr.bf16.mxu0 0
      %221 = vmatpush1.bf16.xpose.msra.mxu0 0
      %222 = vmatprep.subr.bf16.mxu0 0
      %223 = vmatpush1.bf16.xpose.msra.mxu0 0
      %224 = vmatprep.subr.bf16.mxu0 0
      %225 = vmatpush1.bf16.xpose.msra.mxu0 0
      %226 = vmatprep.subr.bf16.mxu0 0
      %227 = vmatpush1.bf16.xpose.msra.mxu0 0
      %228 = vmatprep.subr.bf16.mxu0 0
      %229 = vmatpush1.bf16.xpose.msra.mxu0 0
      %230 = vmatprep.subr.bf16.mxu0 0
      %231 = vmatpush1.bf16.xpose.msra.mxu0 0
      %232 = vmatprep.subr.bf16.mxu0 0
      %233 = vmatpush1.bf16.xpose.msra.mxu0 0
      %234 = vmatprep.subr.bf16.mxu0 0
      %235 = vmatpush1.bf16.xpose.msra.mxu0 0
      %236 = vmatprep.subr.bf16.mxu0 0
      %237 = vmatpush1.bf16.xpose.msra.mxu0 0
      %238 = vmatprep.subr.bf16.mxu0 0
      %239 = vmatpush1.bf16.xpose.msra.mxu0 0
      %240 = vmatprep.mubr.bf16.mxu0 0
      %241 = vmatmul.mubr.bf16.gmra.mrb[0].mxu0 %v203
      %v242 = vpop.f32.mrb[0].mxu0
      %v243 = vadd.f32 0.0, %v242
      %v244 = vpop.f32.mrb[0].mxu0
      %v245 = vpop.f32.mrb[0].mxu0
      %v246 = vadd.f32 0.0, %v245
      %v247 = vpop.f32.mrb[0].mxu0
      %248 = vdwg.mxu0
      %v249 = vunpack.c.l.bf16 %v189
      %v250 = vunpack.c.l.bf16 %v190
      %v251 = vmul.f32 %v249, %v249
      %v252 = vmul.f32 %v250, %v250
      %v253 = vsel %vm201, %v251, 0.0
      %254 = vadd.xlane.f32.xlu0 %v253
      %v255 = vpop.xlane.xlu0 %254
      %v256 = vsel %vm201, %v252, 0.0
      %257 = vadd.xlane.f32.xlu0 %v256
      %v258 = vpop.xlane.xlu0 %257
      %v259 = vmul.f32 %v243, 2.0
      %v260 = vmul.f32 %v246, 2.0
      %v261 = vsub.f32 %v259, %v255
      %v262 = vsub.f32 %v260, %v258
      %v263 = vld [vmem:[%s170] sm:$0x1]
      %v265 = vlaneseq
      %v266 = vshrl.u32 %v265, 7
      %v267 = vsub.s32 0, %v266
      %v268 = vrot.slane %v263, %v267
      %v270 = vsub.f32 %v261, %v268
      %v271 = vsub.f32 %v262, %v268
      %vm272 = vcmask 130048
      %273 = vst.msk [vmem:[%s179] sm:$0xff] %vm272, %v270
      %274 = vst.msk [vmem:[%s179 + $0x8] sm:$0xff] %vm272, %v271
      %s275 = smul.u32 2, %s18
      %p276 = scmp.lt.s32.totalorder %s17, 1
      %s277 = scalar_select %p276, %s17, 1
      %p278 = scmp.lt.s32.totalorder %s275, 1
      %s279 = scalar_select %p278, %s275, 1
      %s280 = smul.addr %s277, 2
      %s281 = sadd.s32 %s279, %s280
      %s282 = smul.addr %s281, 8
      %s283 = scalar_lea.vmem %s2, %s282
      // Predicated region
      $region29: #{dgcnn_partseg_forward.19} parent=27 // pred_check
        %p284 = pneg %p97
      $region30: #{dgcnn_partseg_forward.19} parent=27 // pred_check_branch
        %286 = sbr.rel (%p284) target = $region32
      $region31: #{dgcnn_partseg_forward.19} parent=27 // pred_region
        %s287 = smul.u32 2, %s18
      $region32: #{dgcnn_partseg_forward.19} parent=27 // pred_fallthru
        _
    $region28: #{dgcnn_partseg_forward.19} parent=5 // pred_fallthru
      _
    %p288 = scmp.le.s32.totalorder 2, %s8
    // Predicated region
    $region33: #{dgcnn_partseg_forward.19} parent=5 // pred_check
      %p289 = pneg %p288
    $region34: #{dgcnn_partseg_forward.19} parent=5 // pred_check_branch
      %291 = sbr.rel (%p289) target = $region36
    $region35: #{dgcnn_partseg_forward.19} parent=5 // pred_region
      %s292 = ssub.s32 %s8, 2
      // Predicated region
      $region37: #{dgcnn_partseg_forward.19} parent=35 // pred_check
        %p293 = pneg %p103
      $region38: #{dgcnn_partseg_forward.19} parent=35 // pred_check_branch
        %295 = sbr.rel (%p293) target = $region40
      $region39: #{dgcnn_partseg_forward.19} parent=35 // pred_region
        %s296 = smul.u32 2, %s20
        %p297 = scmp.lt.s32.totalorder %s19, 1
        %s298 = scalar_select %p297, %s19, 1
        %p299 = scmp.lt.s32.totalorder %s296, 1
        %s300 = scalar_select %p299, %s296, 1
        %s301 = smul.addr %s298, 2
        %s302 = sadd.s32 %s300, %s301
        %s303 = smul.addr %s302, 8
        %s304 = scalar_lea.vmem %s2, %s303
      $region40: #{dgcnn_partseg_forward.19} parent=35 // pred_fallthru
        _
    $region36: #{dgcnn_partseg_forward.19} parent=5 // pred_fallthru
      _
  $region6: #{dgcnn_partseg_forward.19} parent=0 // loop_footer
    %s12 = sadd.s32 1, %s8
  $region7: #{dgcnn_partseg_forward.19} parent=0 // loop_footer_branch
    %7 = sbr.rel target = $region3
  $region8: #{dgcnn_partseg_forward.19} parent=0 // loop_exit
    _

// kernel: dgcnn_partseg_forward.18
$region0: #{dgcnn_partseg_forward.18}
  #allocation0 [shape = 'u32[]', space=smem, size = 0x4, offset = 0x4, fixed_abs, tag = 'smem constant byte address 0x4 - core index']
  #allocation1 [shape = 'u32[144,128]{1,0:T(1,128)}', space=vmem, size = 0x12000, scoped, tag = 'internal scratch']
  %s0 = inlined_call_operand.vmem [shape: f32[4,32,3], index: 0, kind: input, shape index: {}]
  %s1 = inlined_call_operand.vmem [shape: f32[32,3], index: 1, kind: input, shape index: {}]
  %s2 = inlined_call_operand.vmem [shape: f32[3,64], index: 2, kind: input, shape index: {}]
  %s3 = inlined_call_operand.vmem [shape: f32[3,64], index: 3, kind: input, shape index: {}]
  %s4 = inlined_call_operand.vmem [shape: f32[1,64], index: 4, kind: input, shape index: {}]
  %s5 = inlined_call_operand.vmem [shape: bf16[64,64], index: 5, kind: input, shape index: {}]
  %s6 = inlined_call_operand.vmem [shape: f32[1,64], index: 6, kind: input, shape index: {}]
  %s7 = inlined_call_operand.vmem [shape: bf16[32,64], index: 7, kind: output, shape index: {}]
  %s8 = sld [smem:[#allocation0]]
  $region38: #{dgcnn_partseg_forward.18} parent=0
    _
  %s10 = ssub.s32 1, %s8
  %s11 = scalar_select 0, %s10, %s8
  // Predicated region
  $region2: #{dgcnn_partseg_forward.18} parent=0 // pred_check
    _
  $region3: #{dgcnn_partseg_forward.18} parent=0 // pred_check_branch
    %13 = sbr.rel (0) target = $region5
  $region4: #{dgcnn_partseg_forward.18} parent=0 // pred_region
    _
  $region5: #{dgcnn_partseg_forward.18} parent=0 // pred_fallthru
    _
  // Predicated region
  $region6: #{dgcnn_partseg_forward.18} parent=0 // pred_check
    _
  $region7: #{dgcnn_partseg_forward.18} parent=0 // pred_check_branch
    %15 = sbr.rel (0) target = $region9
  $region8: #{dgcnn_partseg_forward.18} parent=0 // pred_region
    _
  $region9: #{dgcnn_partseg_forward.18} parent=0 // pred_fallthru
    _
  // Predicated region
  $region10: #{dgcnn_partseg_forward.18} parent=0 // pred_check
    _
  $region11: #{dgcnn_partseg_forward.18} parent=0 // pred_check_branch
    %17 = sbr.rel (0) target = $region13
  $region12: #{dgcnn_partseg_forward.18} parent=0 // pred_region
    _
  $region13: #{dgcnn_partseg_forward.18} parent=0 // pred_fallthru
    _
  // Predicated region
  $region14: #{dgcnn_partseg_forward.18} parent=0 // pred_check
    _
  $region15: #{dgcnn_partseg_forward.18} parent=0 // pred_check_branch
    %19 = sbr.rel (0) target = $region17
  $region16: #{dgcnn_partseg_forward.18} parent=0 // pred_region
    _
  $region17: #{dgcnn_partseg_forward.18} parent=0 // pred_fallthru
    _
  // Predicated region
  $region18: #{dgcnn_partseg_forward.18} parent=0 // pred_check
    _
  $region19: #{dgcnn_partseg_forward.18} parent=0 // pred_check_branch
    %21 = sbr.rel (0) target = $region21
  $region20: #{dgcnn_partseg_forward.18} parent=0 // pred_region
    _
  $region21: #{dgcnn_partseg_forward.18} parent=0 // pred_fallthru
    _
  // Predicated region
  $region22: #{dgcnn_partseg_forward.18} parent=0 // pred_check
    _
  $region23: #{dgcnn_partseg_forward.18} parent=0 // pred_check_branch
    %23 = sbr.rel (0) target = $region25
  $region24: #{dgcnn_partseg_forward.18} parent=0 // pred_region
    _
  $region25: #{dgcnn_partseg_forward.18} parent=0 // pred_fallthru
    _
  // Predicated region
  $region26: #{dgcnn_partseg_forward.18} parent=0 // pred_check
    _
  $region27: #{dgcnn_partseg_forward.18} parent=0 // pred_check_branch
    %25 = sbr.rel (0) target = $region29
  $region28: #{dgcnn_partseg_forward.18} parent=0 // pred_region
    _
  $region29: #{dgcnn_partseg_forward.18} parent=0 // pred_fallthru
    _
  %v27 = vld [vmem:[%s0] sm:$0xff]
  %v28 = vld [vmem:[%s0 + $0x8] sm:$0xff]
  %v29 = vld [vmem:[%s0 + $0x10] sm:$0xff]
  %v30 = vld [vmem:[%s0 + $0x18] sm:$0xff]
  %v31 = vld [vmem:[%s0 + $0x20] sm:$0xff]
  %v32 = vld [vmem:[%s0 + $0x28] sm:$0xff]
  %v33 = vld [vmem:[%s0 + $0x30] sm:$0xff]
  %v34 = vld [vmem:[%s0 + $0x38] sm:$0xff]
  %v35 = vld [vmem:[%s0 + $0x40] sm:$0xff]
  %v36 = vld [vmem:[%s0 + $0x48] sm:$0xff]
  %v37 = vld [vmem:[%s0 + $0x50] sm:$0xff]
  %v38 = vld [vmem:[%s0 + $0x58] sm:$0xff]
  %v39 = vld [vmem:[%s0 + $0x60] sm:$0xff]
  %v40 = vld [vmem:[%s0 + $0x68] sm:$0xff]
  %v41 = vld [vmem:[%s0 + $0x70] sm:$0xff]
  %v42 = vld [vmem:[%s0 + $0x78] sm:$0xff]
  %v43 = vld [vmem:[%s2] sm:$0x7]
  %vm44 = vcmask 23552
  %v46 = vsel %vm44, %v27, 0
  %v49 = vsel %vm44, %v28, 0
  %v52 = vsel %vm44, %v29, 0
  %v55 = vsel %vm44, %v30, 0
  %v58 = vsel %vm44, %v31, 0
  %v61 = vsel %vm44, %v32, 0
  %v64 = vsel %vm44, %v33, 0
  %v67 = vsel %vm44, %v34, 0
  %v70 = vsel %vm44, %v35, 0
  %v73 = vsel %vm44, %v36, 0
  %v76 = vsel %vm44, %v37, 0
  %v79 = vsel %vm44, %v38, 0
  %v82 = vsel %vm44, %v39, 0
  %v85 = vsel %vm44, %v40, 0
  %v88 = vsel %vm44, %v41, 0
  %v91 = vsel %vm44, %v42, 0
  %vm93 = vcmask 1042432
  %v95 = vsel %vm93, %v43, 0
  %97 = vmatprep.subr.mxu0 0.0
  %98 = vmatpush1.msra.mxu0 %v95
  %99 = vmatprep.subr.mxu0 0.0
  %100 = vmatpush1.msra.mxu0 0.0
  %101 = vmatprep.subr.mxu0 0.0
  %102 = vmatpush1.msra.mxu0 0.0
  %103 = vmatprep.subr.mxu0 0.0
  %104 = vmatpush1.msra.mxu0 0.0
  %105 = vmatprep.subr.mxu0 0.0
  %106 = vmatpush1.msra.mxu0 0.0
  %107 = vmatprep.subr.mxu0 0.0
  %108 = vmatpush1.msra.mxu0 0.0
  %109 = vmatprep.subr.mxu0 0.0
  %110 = vmatpush1.msra.mxu0 0.0
  %111 = vmatprep.subr.mxu0 0.0
  %112 = vmatpush1.msra.mxu0 0.0
  %113 = vmatprep.subr.mxu0 0.0
  %114 = vmatpush1.msra.mxu0 0.0
  %115 = vmatprep.subr.mxu0 0.0
  %116 = vmatpush1.msra.mxu0 0.0
  %117 = vmatprep.subr.mxu0 0.0
  %118 = vmatpush1.msra.mxu0 0.0
  %119 = vmatprep.subr.mxu0 0.0
  %120 = vmatpush1.msra.mxu0 0.0
  %121 = vmatprep.subr.mxu0 0.0
  %122 = vmatpush1.msra.mxu0 0.0
  %123 = vmatprep.subr.mxu0 0.0
  %124 = vmatpush1.msra.mxu0 0.0
  %125 = vmatprep.subr.mxu0 0.0
  %126 = vmatpush1.msra.mxu0 0.0
  %127 = vmatprep.subr.mxu0 0.0
  %128 = vmatpush1.msra.mxu0 0.0
  %129 = vmatprep.subr.mxu0 0.0
  %130 = vmatpush1.msra.mxu0 0.0
  %131 = vmatprep.subr.mxu0 0.0
  %132 = vmatpush1.msra.mxu0 0.0
  %133 = vmatprep.subr.mxu0 0.0
  %134 = vmatpush1.msra.mxu0 0.0
  %135 = vmatprep.subr.mxu0 0.0
  %136 = vmatpush1.msra.mxu0 0.0
  %137 = vmatprep.subr.mxu0 0.0
  %138 = vmatpush1.msra.mxu0 0.0
  %139 = vmatprep.subr.mxu0 0.0
  %140 = vmatpush1.msra.mxu0 0.0
  %141 = vmatprep.subr.mxu0 0.0
  %142 = vmatpush1.msra.mxu0 0.0
  %143 = vmatprep.subr.mxu0 0.0
  %144 = vmatpush1.msra.mxu0 0.0
  %145 = vmatprep.subr.mxu0 0.0
  %146 = vmatpush1.msra.mxu0 0.0
  %147 = vmatprep.subr.mxu0 0.0
  %148 = vmatpush1.msra.mxu0 0.0
  %149 = vmatprep.subr.mxu0 0.0
  %150 = vmatpush1.msra.mxu0 0.0
  %151 = vmatprep.subr.mxu0 0.0
  %152 = vmatpush1.msra.mxu0 0.0
  %153 = vmatprep.subr.mxu0 0.0
  %154 = vmatpush1.msra.mxu0 0.0
  %155 = vmatprep.subr.mxu0 0.0
  %156 = vmatpush1.msra.mxu0 0.0
  %157 = vmatprep.subr.mxu0 0.0
  %158 = vmatpush1.msra.mxu0 0.0
  %159 = vmatprep.subr.mxu0 0.0
  %160 = vmatpush1.msra.mxu0 0.0
  %161 = vmatprep.mubr.f32.mxu0 0.0
  %162 = vmatmul.mubr.f32.gmra.mrb[0].mxu0 %v46
  %v163 = vpop.f32.mrb[0].mxu0
  %v164 = vadd.f32 0.0, %v163
  %v165 = vpop.f32.mrb[0].mxu0
  %166 = vmatprep.mubr.f32.mxu0 0.0
  %167 = vmatmul.mubr.f32.gmra.mrb[0].mxu0 %v49
  %v168 = vpop.f32.mrb[0].mxu0
  %v169 = vadd.f32 0.0, %v168
  %v170 = vpop.f32.mrb[0].mxu0
  %171 = vmatprep.mubr.f32.mxu0 0.0
  %172 = vmatmul.mubr.f32.gmra.mrb[0].mxu0 %v52
  %v173 = vpop.f32.mrb[0].mxu0
  %v174 = vadd.f32 0.0, %v173
  %v175 = vpop.f32.mrb[0].mxu0
  %176 = vmatprep.mubr.f32.mxu0 0.0
  %177 = vmatmul.mubr.f32.gmra.mrb[0].mxu0 %v55
  %v178 = vpop.f32.mrb[0].mxu0
  %v179 = vadd.f32 0.0, %v178
  %v180 = vpop.f32.mrb[0].mxu0
  %181 = vmatprep.mubr.f32.mxu0 0.0
  %182 = vmatmul.mubr.f32.gmra.mrb[0].mxu0 %v58
  %v183 = vpop.f32.mrb[0].mxu0
  %v184 = vadd.f32 0.0, %v183
  %v185 = vpop.f32.mrb[0].mxu0
  %186 = vmatprep.mubr.f32.mxu0 0.0
  %187 = vmatmul.mubr.f32.gmra.mrb[0].mxu0 %v61
  %v188 = vpop.f32.mrb[0].mxu0
  %v189 = vadd.f32 0.0, %v188
  %v190 = vpop.f32.mrb[0].mxu0
  %191 = vmatprep.mubr.f32.mxu0 0.0
  %192 = vmatmul.mubr.f32.gmra.mrb[0].mxu0 %v64
  %v193 = vpop.f32.mrb[0].mxu0
  %v194 = vadd.f32 0.0, %v193
  %v195 = vpop.f32.mrb[0].mxu0
  %196 = vmatprep.mubr.f32.mxu0 0.0
  %197 = vmatmul.mubr.f32.gmra.mrb[0].mxu0 %v67
  %v198 = vpop.f32.mrb[0].mxu0
  %v199 = vadd.f32 0.0, %v198
  %v200 = vpop.f32.mrb[0].mxu0
  %201 = vmatprep.mubr.f32.mxu0 0.0
  %202 = vmatmul.mubr.f32.gmra.mrb[0].mxu0 %v70
  %v203 = vpop.f32.mrb[0].mxu0
  %v204 = vadd.f32 0.0, %v203
  %v205 = vpop.f32.mrb[0].mxu0
  %206 = vmatprep.mubr.f32.mxu0 0.0
  %207 = vmatmul.mubr.f32.gmra.mrb[0].mxu0 %v73
  %v208 = vpop.f32.mrb[0].mxu0
  %v209 = vadd.f32 0.0, %v208
  %v210 = vpop.f32.mrb[0].mxu0
  %211 = vmatprep.mubr.f32.mxu0 0.0
  %212 = vmatmul.mubr.f32.gmra.mrb[0].mxu0 %v76
  %v213 = vpop.f32.mrb[0].mxu0
  %v214 = vadd.f32 0.0, %v213
  %v215 = vpop.f32.mrb[0].mxu0
  %216 = vmatprep.mubr.f32.mxu0 0.0
  %217 = vmatmul.mubr.f32.gmra.mrb[0].mxu0 %v79
  %v218 = vpop.f32.mrb[0].mxu0
  %v219 = vadd.f32 0.0, %v218
  %v220 = vpop.f32.mrb[0].mxu0
  %221 = vmatprep.mubr.f32.mxu0 0.0
  %222 = vmatmul.mubr.f32.gmra.mrb[0].mxu0 %v82
  %v223 = vpop.f32.mrb[0].mxu0
  %v224 = vadd.f32 0.0, %v223
  %v225 = vpop.f32.mrb[0].mxu0
  %226 = vmatprep.mubr.f32.mxu0 0.0
  %227 = vmatmul.mubr.f32.gmra.mrb[0].mxu0 %v85
  %v228 = vpop.f32.mrb[0].mxu0
  %v229 = vadd.f32 0.0, %v228
  %v230 = vpop.f32.mrb[0].mxu0
  %231 = vmatprep.mubr.f32.mxu0 0.0
  %232 = vmatmul.mubr.f32.gmra.mrb[0].mxu0 %v88
  %v233 = vpop.f32.mrb[0].mxu0
  %v234 = vadd.f32 0.0, %v233
  %v235 = vpop.f32.mrb[0].mxu0
  %236 = vmatprep.mubr.f32.mxu0 0.0
  %237 = vmatmul.mubr.f32.gmra.mrb[0].mxu0 %v91
  %v238 = vpop.f32.mrb[0].mxu0
  %v239 = vadd.f32 0.0, %v238
  %v240 = vpop.f32.mrb[0].mxu0
  %241 = vdwg.mxu0
  %v242 = vld [vmem:[%s1] sm:$0xff]
  %v243 = vld [vmem:[%s1 + $0x8] sm:$0xff]
  %v244 = vld [vmem:[%s1 + $0x10] sm:$0xff]
  %v245 = vld [vmem:[%s1 + $0x18] sm:$0xff]
  %v246 = vld [vmem:[%s3] sm:$0x7]
  %v247 = vld [vmem:[%s4] sm:$0x1]
  %v249 = vlaneseq
  %v250 = vshrl.u32 %v249, 7
  %v251 = vsub.s32 0, %v250
  %v252 = vrot.slane %v247, %v251
  %v255 = vsel %vm44, %v242, 0
  %v258 = vsel %vm44, %v243, 0
  %v261 = vsel %vm44, %v244, 0
  %v264 = vsel %vm44, %v245, 0
  %v267 = vsel %vm93, %v246, 0
  %269 = vmatprep.subr.mxu0 0.0
  %270 = vmatpush1.msra.mxu0 %v267
  %271 = vmatprep.subr.mxu0 0.0
  %272 = vmatpush1.msra.mxu0 0.0
  %273 = vmatprep.subr.mxu0 0.0
  %274 = vmatpush1.msra.mxu0 0.0
  %275 = vmatprep.subr.mxu0 0.0
  %276 = vmatpush1.msra.mxu0 0.0
  %277 = vmatprep.subr.mxu0 0.0
  %278 = vmatpush1.msra.mxu0 0.0
  %279 = vmatprep.subr.mxu0 0.0
  %280 = vmatpush1.msra.mxu0 0.0
  %281 = vmatprep.subr.mxu0 0.0
  %282 = vmatpush1.msra.mxu0 0.0
  %283 = vmatprep.subr.mxu0 0.0
  %284 = vmatpush1.msra.mxu0 0.0
  %285 = vmatprep.subr.mxu0 0.0
  %286 = vmatpush1.msra.mxu0 0.0
  %287 = vmatprep.subr.mxu0 0.0
  %288 = vmatpush1.msra.mxu0 0.0
  %289 = vmatprep.subr.mxu0 0.0
  %290 = vmatpush1.msra.mxu0 0.0
  %291 = vmatprep.subr.mxu0 0.0
  %292 = vmatpush1.msra.mxu0 0.0
  %293 = vmatprep.subr.mxu0 0.0
  %294 = vmatpush1.msra.mxu0 0.0
  %295 = vmatprep.subr.mxu0 0.0
  %296 = vmatpush1.msra.mxu0 0.0
  %297 = vmatprep.subr.mxu0 0.0
  %298 = vmatpush1.msra.mxu0 0.0
  %299 = vmatprep.subr.mxu0 0.0
  %300 = vmatpush1.msra.mxu0 0.0
  %301 = vmatprep.subr.mxu0 0.0
  %302 = vmatpush1.msra.mxu0 0.0
  %303 = vmatprep.subr.mxu0 0.0
  %304 = vmatpush1.msra.mxu0 0.0
  %305 = vmatprep.subr.mxu0 0.0
  %306 = vmatpush1.msra.mxu0 0.0
  %307 = vmatprep.subr.mxu0 0.0
  %308 = vmatpush1.msra.mxu0 0.0
  %309 = vmatprep.subr.mxu0 0.0
  %310 = vmatpush1.msra.mxu0 0.0
  %311 = vmatprep.subr.mxu0 0.0
  %312 = vmatpush1.msra.mxu0 0.0
  %313 = vmatprep.subr.mxu0 0.0
  %314 = vmatpush1.msra.mxu0 0.0
  %315 = vmatprep.subr.mxu0 0.0
  %316 = vmatpush1.msra.mxu0 0.0
  %317 = vmatprep.subr.mxu0 0.0
  %318 = vmatpush1.msra.mxu0 0.0
  %319 = vmatprep.subr.mxu0 0.0
  %320 = vmatpush1.msra.mxu0 0.0
  %321 = vmatprep.subr.mxu0 0.0
  %322 = vmatpush1.msra.mxu0 0.0
  %323 = vmatprep.subr.mxu0 0.0
  %324 = vmatpush1.msra.mxu0 0.0
  %325 = vmatprep.subr.mxu0 0.0
  %326 = vmatpush1.msra.mxu0 0.0
  %327 = vmatprep.subr.mxu0 0.0
  %328 = vmatpush1.msra.mxu0 0.0
  %329 = vmatprep.subr.mxu0 0.0
  %330 = vmatpush1.msra.mxu0 0.0
  %331 = vmatprep.subr.mxu0 0.0
  %332 = vmatpush1.msra.mxu0 0.0
  %333 = vmatprep.mubr.f32.mxu0 0.0
  %334 = vmatmul.mubr.f32.gmra.mrb[0].mxu0 %v255
  %v335 = vpop.f32.mrb[0].mxu0
  %v336 = vadd.f32 %v252, %v335
  %v337 = vpop.f32.mrb[0].mxu0
  %338 = vmatprep.mubr.f32.mxu0 0.0
  %339 = vmatmul.mubr.f32.gmra.mrb[0].mxu0 %v258
  %v340 = vpop.f32.mrb[0].mxu0
  %v341 = vadd.f32 %v252, %v340
  %v342 = vpop.f32.mrb[0].mxu0
  %343 = vmatprep.mubr.f32.mxu0 0.0
  %344 = vmatmul.mubr.f32.gmra.mrb[0].mxu0 %v261
  %v345 = vpop.f32.mrb[0].mxu0
  %v346 = vadd.f32 %v252, %v345
  %v347 = vpop.f32.mrb[0].mxu0
  %348 = vmatprep.mubr.f32.mxu0 0.0
  %349 = vmatmul.mubr.f32.gmra.mrb[0].mxu0 %v264
  %v350 = vpop.f32.mrb[0].mxu0
  %v351 = vadd.f32 %v252, %v350
  %v352 = vpop.f32.mrb[0].mxu0
  %353 = vdwg.mxu0
  %v354 = vadd.f32 %v164, %v336
  %v355 = vadd.f32 %v169, %v341
  %v356 = vadd.f32 %v174, %v346
  %v357 = vadd.f32 %v179, %v351
  %v358 = vadd.f32 %v184, %v336
  %v359 = vadd.f32 %v189, %v341
  %v360 = vadd.f32 %v194, %v346
  %v361 = vadd.f32 %v199, %v351
  %v362 = vadd.f32 %v204, %v336
  %v363 = vadd.f32 %v209, %v341
  %v364 = vadd.f32 %v214, %v346
  %v365 = vadd.f32 %v219, %v351
  %v366 = vadd.f32 %v224, %v336
  %v367 = vadd.f32 %v229, %v341
  %v368 = vadd.f32 %v234, %v346
  %v369 = vadd.f32 %v239, %v351
  %vm370 = vcmp.ge.f32.partialorder %v354, 0.0
  %vm371 = vcmp.ge.f32.partialorder %v355, 0.0
  %vm372 = vcmp.ge.f32.partialorder %v356, 0.0
  %vm373 = vcmp.ge.f32.partialorder %v357, 0.0
  %vm374 = vcmp.ge.f32.partialorder %v358, 0.0
  %vm375 = vcmp.ge.f32.partialorder %v359, 0.0
  %vm376 = vcmp.ge.f32.partialorder %v360, 0.0
  %vm377 = vcmp.ge.f32.partialorder %v361, 0.0
  %vm378 = vcmp.ge.f32.partialorder %v362, 0.0
  %vm379 = vcmp.ge.f32.partialorder %v363, 0.0
  %vm380 = vcmp.ge.f32.partialorder %v364, 0.0
  %vm381 = vcmp.ge.f32.partialorder %v365, 0.0
  %vm382 = vcmp.ge.f32.partialorder %v366, 0.0
  %vm383 = vcmp.ge.f32.partialorder %v367, 0.0
  %vm384 = vcmp.ge.f32.partialorder %v368, 0.0
  %vm385 = vcmp.ge.f32.partialorder %v369, 0.0
  %v386 = vmul.f32 %v354, 0.2
  %v387 = vmul.f32 %v355, 0.2
  %v388 = vmul.f32 %v356, 0.2
  %v389 = vmul.f32 %v357, 0.2
  %v390 = vmul.f32 %v358, 0.2
  %v391 = vmul.f32 %v359, 0.2
  %v392 = vmul.f32 %v360, 0.2
  %v393 = vmul.f32 %v361, 0.2
  %v394 = vmul.f32 %v362, 0.2
  %v395 = vmul.f32 %v363, 0.2
  %v396 = vmul.f32 %v364, 0.2
  %v397 = vmul.f32 %v365, 0.2
  %v398 = vmul.f32 %v366, 0.2
  %v399 = vmul.f32 %v367, 0.2
  %v400 = vmul.f32 %v368, 0.2
  %v401 = vmul.f32 %v369, 0.2
  %v402 = vsel %vm370, %v354, %v386
  %v403 = vsel %vm371, %v355, %v387
  %v404 = vsel %vm372, %v356, %v388
  %v405 = vsel %vm373, %v357, %v389
  %v406 = vsel %vm374, %v358, %v390
  %v407 = vsel %vm375, %v359, %v391
  %v408 = vsel %vm376, %v360, %v392
  %v409 = vsel %vm377, %v361, %v393
  %v410 = vsel %vm378, %v362, %v394
  %v411 = vsel %vm379, %v363, %v395
  %v412 = vsel %vm380, %v364, %v396
  %v413 = vsel %vm381, %v365, %v397
  %v414 = vsel %vm382, %v366, %v398
  %v415 = vsel %vm383, %v367, %v399
  %v416 = vsel %vm384, %v368, %v400
  %v417 = vsel %vm385, %v369, %v401
  %v418 = vpack.c.bf16 %v403, %v402
  %v419 = vpack.c.bf16 %v405, %v404
  %v420 = vpack.c.bf16 %v407, %v406
  %v421 = vpack.c.bf16 %v409, %v408
  %v422 = vpack.c.bf16 %v411, %v410
  %v423 = vpack.c.bf16 %v413, %v412
  %v424 = vpack.c.bf16 %v415, %v414
  %v425 = vpack.c.bf16 %v417, %v416
  %v426 = vld [vmem:[%s5] sm:$0xf]
  %v427 = vld [vmem:[%s5 + $0x4] sm:$0xf]
  %v428 = vld [vmem:[%s5 + $0x8] sm:$0xf]
  %v429 = vld [vmem:[%s5 + $0xc] sm:$0xf]
  %v430 = vld [vmem:[%s5 + $0x10] sm:$0xf]
  %v431 = vld [vmem:[%s5 + $0x14] sm:$0xf]
  %v432 = vld [vmem:[%s5 + $0x18] sm:$0xf]
  %v433 = vld [vmem:[%s5 + $0x1c] sm:$0xf]
  %v442 = vunpack.c.l.b16 %v426
  %v443 = vunpack.c.l.b16 %v427
  %v444 = vunpack.c.l.b16 %v428
  %v445 = vunpack.c.l.b16 %v429
  %v446 = vunpack.c.l.b16 %v430
  %v447 = vunpack.c.l.b16 %v431
  %v448 = vunpack.c.l.b16 %v432
  %v449 = vunpack.c.l.b16 %v433
  %v450 = vpack.c.b16 %v443, %v442
  %v451 = vpack.c.b16 %v445, %v444
  %v452 = vpack.c.b16 %v447, %v446
  %v453 = vpack.c.b16 %v449, %v448
  %vm458 = vcmask 523264
  %v460 = vsel %vm458, %v418, 0
  %v463 = vsel %vm458, %v419, 0
  %v466 = vsel %vm458, %v420, 0
  %v469 = vsel %vm458, %v421, 0
  %v472 = vsel %vm458, %v422, 0
  %v475 = vsel %vm458, %v423, 0
  %v478 = vsel %vm458, %v424, 0
  %v481 = vsel %vm458, %v425, 0
  %483 = vmatprep.subr.bf16.mxu0 0
  %484 = vmatpush1.bf16.msra.mxu0 %v450
  %485 = vmatprep.subr.bf16.mxu0 0
  %486 = vmatpush1.bf16.msra.mxu0 %v451
  %487 = vmatprep.subr.bf16.mxu0 0
  %488 = vmatpush1.bf16.msra.mxu0 %v452
  %489 = vmatprep.subr.bf16.mxu0 0
  %490 = vmatpush1.bf16.msra.mxu0 %v453
  %491 = vmatprep.subr.bf16.mxu0 0
  %492 = vmatpush1.bf16.msra.mxu0 0
  %493 = vmatprep.subr.bf16.mxu0 0
  %494 = vmatpush1.bf16.msra.mxu0 0
  %495 = vmatprep.subr.bf16.mxu0 0
  %496 = vmatpush1.bf16.msra.mxu0 0
  %497 = vmatprep.subr.bf16.mxu0 0
  %498 = vmatpush1.bf16.msra.mxu0 0
  %499 = vmatprep.subr.bf16.mxu0 0
  %500 = vmatpush1.bf16.msra.mxu0 0
  %501 = vmatprep.subr.bf16.mxu0 0
  %502 = vmatpush1.bf16.msra.mxu0 0
  %503 = vmatprep.subr.bf16.mxu0 0
  %504 = vmatpush1.bf16.msra.mxu0 0
  %505 = vmatprep.subr.bf16.mxu0 0
  %506 = vmatpush1.bf16.msra.mxu0 0
  %507 = vmatprep.subr.bf16.mxu0 0
  %508 = vmatpush1.bf16.msra.mxu0 0
  %509 = vmatprep.subr.bf16.mxu0 0
  %510 = vmatpush1.bf16.msra.mxu0 0
  %511 = vmatprep.subr.bf16.mxu0 0
  %512 = vmatpush1.bf16.msra.mxu0 0
  %513 = vmatprep.subr.bf16.mxu0 0
  %514 = vmatpush1.bf16.msra.mxu0 0
  %515 = vmatprep.mubr.bf16.mxu0 0
  %516 = vmatmul.mubr.bf16.gmra.mrb[0].mxu0 %v460
  %v517 = vpop.f32.mrb[0].mxu0
  %v518 = vadd.f32 0.0, %v517
  %v519 = vpop.f32.mrb[0].mxu0
  %v520 = vpop.f32.mrb[0].mxu0
  %v521 = vadd.f32 0.0, %v520
  %v522 = vpop.f32.mrb[0].mxu0
  %523 = vmatprep.mubr.bf16.mxu0 0
  %524 = vmatmul.mubr.bf16.gmra.mrb[0].mxu0 %v463
  %v525 = vpop.f32.mrb[0].mxu0
  %v526 = vadd.f32 0.0, %v525
  %v527 = vpop.f32.mrb[0].mxu0
  %v528 = vpop.f32.mrb[0].mxu0
  %v529 = vadd.f32 0.0, %v528
  %v530 = vpop.f32.mrb[0].mxu0
  %531 = vmatprep.mubr.bf16.mxu0 0
  %532 = vmatmul.mubr.bf16.gmra.mrb[0].mxu0 %v466
  %v533 = vpop.f32.mrb[0].mxu0
  %v534 = vadd.f32 0.0, %v533
  %v535 = vpop.f32.mrb[0].mxu0
  %v536 = vpop.f32.mrb[0].mxu0
  %v537 = vadd.f32 0.0, %v536
  %v538 = vpop.f32.mrb[0].mxu0
  %539 = vmatprep.mubr.bf16.mxu0 0
  %540 = vmatmul.mubr.bf16.gmra.mrb[0].mxu0 %v469
  %v541 = vpop.f32.mrb[0].mxu0
  %v542 = vadd.f32 0.0, %v541
  %v543 = vpop.f32.mrb[0].mxu0
  %v544 = vpop.f32.mrb[0].mxu0
  %v545 = vadd.f32 0.0, %v544
  %v546 = vpop.f32.mrb[0].mxu0
  %547 = vmatprep.mubr.bf16.mxu0 0
  %548 = vmatmul.mubr.bf16.gmra.mrb[0].mxu0 %v472
  %v549 = vpop.f32.mrb[0].mxu0
  %v550 = vadd.f32 0.0, %v549
  %v551 = vpop.f32.mrb[0].mxu0
  %v552 = vpop.f32.mrb[0].mxu0
  %v553 = vadd.f32 0.0, %v552
  %v554 = vpop.f32.mrb[0].mxu0
  %555 = vmatprep.mubr.bf16.mxu0 0
  %556 = vmatmul.mubr.bf16.gmra.mrb[0].mxu0 %v475
  %v557 = vpop.f32.mrb[0].mxu0
  %v558 = vadd.f32 0.0, %v557
  %v559 = vpop.f32.mrb[0].mxu0
  %v560 = vpop.f32.mrb[0].mxu0
  %v561 = vadd.f32 0.0, %v560
  %v562 = vpop.f32.mrb[0].mxu0
  %563 = vmatprep.mubr.bf16.mxu0 0
  %564 = vmatmul.mubr.bf16.gmra.mrb[0].mxu0 %v478
  %v565 = vpop.f32.mrb[0].mxu0
  %v566 = vadd.f32 0.0, %v565
  %v567 = vpop.f32.mrb[0].mxu0
  %v568 = vpop.f32.mrb[0].mxu0
  %v569 = vadd.f32 0.0, %v568
  %v570 = vpop.f32.mrb[0].mxu0
  %571 = vmatprep.mubr.bf16.mxu0 0
  %572 = vmatmul.mubr.bf16.gmra.mrb[0].mxu0 %v481
  %v573 = vpop.f32.mrb[0].mxu0
  %v574 = vadd.f32 0.0, %v573
  %v575 = vpop.f32.mrb[0].mxu0
  %v576 = vpop.f32.mrb[0].mxu0
  %v577 = vadd.f32 0.0, %v576
  %v578 = vpop.f32.mrb[0].mxu0
  %579 = vdwg.mxu0
  %v580 = vsel %vm458, %v518, -inf
  %v581 = vsel %vm458, %v534, -inf
  %v582 = vmax.f32 %v580, %v581
  %v583 = vsel %vm458, %v550, -inf
  %v584 = vmax.f32 %v582, %v583
  %v585 = vsel %vm458, %v566, -inf
  %v586 = vmax.f32 %v584, %v585
  %v587 = vsel %vm458, %v521, -inf
  %v588 = vsel %vm458, %v537, -inf
  %v589 = vmax.f32 %v587, %v588
  %v590 = vsel %vm458, %v553, -inf
  %v591 = vmax.f32 %v589, %v590
  %v592 = vsel %vm458, %v569, -inf
  %v593 = vmax.f32 %v591, %v592
  %v594 = vsel %vm458, %v526, -inf
  %v595 = vsel %vm458, %v542, -inf
  %v596 = vmax.f32 %v594, %v595
  %v597 = vsel %vm458, %v558, -inf
  %v598 = vmax.f32 %v596, %v597
  %v599 = vsel %vm458, %v574, -inf
  %v600 = vmax.f32 %v598, %v599
  %v601 = vsel %vm458, %v529, -inf
  %v602 = vsel %vm458, %v545, -inf
  %v603 = vmax.f32 %v601, %v602
  %v604 = vsel %vm458, %v561, -inf
  %v605 = vmax.f32 %v603, %v604
  %v606 = vsel %vm458, %v577, -inf
  %v607 = vmax.f32 %v605, %v606
  %v608 = vld [vmem:[%s6] sm:$0x1]
  %v610 = vlaneseq
  %v611 = vshrl.u32 %v610, 7
  %v612 = vsub.s32 0, %v611
  %v613 = vrot.slane %v608, %v612
  %v615 = vadd.f32 %v586, %v613
  %v616 = vadd.f32 %v593, %v613
  %v617 = vadd.f32 %v600, %v613
  %v618 = vadd.f32 %v607, %v613
  %vm619 = vcmp.ge.f32.partialorder %v615, 0.0
  %vm620 = vcmp.ge.f32.partialorder %v616, 0.0
  %vm621 = vcmp.ge.f32.partialorder %v617, 0.0
  %vm622 = vcmp.ge.f32.partialorder %v618, 0.0
  %v623 = vmul.f32 %v615, 0.2
  %v624 = vmul.f32 %v616, 0.2
  %v625 = vmul.f32 %v617, 0.2
  %v626 = vmul.f32 %v618, 0.2
  %v627 = vsel %vm619, %v615, %v623
  %v628 = vsel %vm620, %v616, %v624
  %v629 = vsel %vm621, %v617, %v625
  %v630 = vsel %vm622, %v618, %v626
  %v631 = vpack.c.bf16 %v628, %v627
  %v632 = vpack.c.bf16 %v630, %v629
  %v635 = vunpack.c.l.b16 %v631
  %v636 = vunpack.c.h.b16 %v631
  %v637 = vunpack.c.l.b16 %v632
  %v638 = vunpack.c.h.b16 %v632
  %v639 = vpack.c.b16 %v635, %v635
  %v640 = vpack.c.b16 %v636, %v636
  %v641 = vpack.c.b16 %v637, %v637
  %v642 = vpack.c.b16 %v638, %v638
  %vm647 = vcmask 519168
  %648 = vst.msk [vmem:[%s7] sm:$0xf] %vm647, %v639
  %649 = vst.msk [vmem:[%s7 + $0x4] sm:$0xf] %vm647, %v640
  %650 = vst.msk [vmem:[%s7 + $0x8] sm:$0xf] %vm647, %v641
  %651 = vst.msk [vmem:[%s7 + $0xc] sm:$0xf] %vm647, %v642
  // Predicated region
  $region30: #{dgcnn_partseg_forward.18} parent=0 // pred_check
    _
  $region31: #{dgcnn_partseg_forward.18} parent=0 // pred_check_branch
    %653 = sbr.rel (0) target = $region33
  $region32: #{dgcnn_partseg_forward.18} parent=0 // pred_region
    _
  $region33: #{dgcnn_partseg_forward.18} parent=0 // pred_fallthru
    _
  // Predicated region
  $region34: #{dgcnn_partseg_forward.18} parent=0 // pred_check
    _
  $region35: #{dgcnn_partseg_forward.18} parent=0 // pred_check_branch
    %655 = sbr.rel (0) target = $region37
  $region36: #{dgcnn_partseg_forward.18} parent=0 // pred_region
    _
  $region37: #{dgcnn_partseg_forward.18} parent=0 // pred_fallthru
    _

// kernel: dgcnn_partseg_forward.16
$region0: #{dgcnn_partseg_forward.16}
  #allocation0 [shape = 'u32[]', space=smem, size = 0x4, offset = 0x4, fixed_abs, tag = 'smem constant byte address 0x4 - core index']
  #allocation1 [shape = 'u32[144,128]{1,0:T(1,128)}', space=vmem, size = 0x12000, scoped, tag = 'internal scratch']
  %s0 = inlined_call_operand.vmem [shape: f32[2,1024], index: 0, kind: input, shape index: {}]
  %s1 = inlined_call_operand.vmem [shape: f32[1024,512], index: 1, kind: input, shape index: {}]
  %s2 = inlined_call_operand.vmem [shape: f32[1,512], index: 2, kind: input, shape index: {}]
  %s3 = inlined_call_operand.vmem [shape: f32[512,256], index: 3, kind: input, shape index: {}]
  %s4 = inlined_call_operand.vmem [shape: f32[1,256], index: 4, kind: input, shape index: {}]
  %s5 = inlined_call_operand.vmem [shape: f32[256,9], index: 5, kind: input, shape index: {}]
  %s6 = inlined_call_operand.vmem [shape: f32[1,9], index: 6, kind: input, shape index: {}]
  %s7 = inlined_call_operand.vmem [shape: f32[2,9], index: 7, kind: output, shape index: {}]
  %s8 = sld [smem:[#allocation0]]
  $region38: #{dgcnn_partseg_forward.16} parent=0
    _
  %s10 = ssub.s32 1, %s8
  %s11 = scalar_select 0, %s10, %s8
  // Predicated region
  $region2: #{dgcnn_partseg_forward.16} parent=0 // pred_check
    _
  $region3: #{dgcnn_partseg_forward.16} parent=0 // pred_check_branch
    %13 = sbr.rel (0) target = $region5
  $region4: #{dgcnn_partseg_forward.16} parent=0 // pred_region
    _
  $region5: #{dgcnn_partseg_forward.16} parent=0 // pred_fallthru
    _
  // Predicated region
  $region6: #{dgcnn_partseg_forward.16} parent=0 // pred_check
    _
  $region7: #{dgcnn_partseg_forward.16} parent=0 // pred_check_branch
    %15 = sbr.rel (0) target = $region9
  $region8: #{dgcnn_partseg_forward.16} parent=0 // pred_region
    _
  $region9: #{dgcnn_partseg_forward.16} parent=0 // pred_fallthru
    _
  // Predicated region
  $region10: #{dgcnn_partseg_forward.16} parent=0 // pred_check
    _
  $region11: #{dgcnn_partseg_forward.16} parent=0 // pred_check_branch
    %17 = sbr.rel (0) target = $region13
  $region12: #{dgcnn_partseg_forward.16} parent=0 // pred_region
    _
  $region13: #{dgcnn_partseg_forward.16} parent=0 // pred_fallthru
    _
  // Predicated region
  $region14: #{dgcnn_partseg_forward.16} parent=0 // pred_check
    _
  $region15: #{dgcnn_partseg_forward.16} parent=0 // pred_check_branch
    %19 = sbr.rel (0) target = $region17
  $region16: #{dgcnn_partseg_forward.16} parent=0 // pred_region
    _
  $region17: #{dgcnn_partseg_forward.16} parent=0 // pred_fallthru
    _
  // Predicated region
  $region18: #{dgcnn_partseg_forward.16} parent=0 // pred_check
    _
  $region19: #{dgcnn_partseg_forward.16} parent=0 // pred_check_branch
    %21 = sbr.rel (0) target = $region21
  $region20: #{dgcnn_partseg_forward.16} parent=0 // pred_region
    _
  $region21: #{dgcnn_partseg_forward.16} parent=0 // pred_fallthru
    _
  // Predicated region
  $region22: #{dgcnn_partseg_forward.16} parent=0 // pred_check
    _
  $region23: #{dgcnn_partseg_forward.16} parent=0 // pred_check_branch
    %23 = sbr.rel (0) target = $region25
  $region24: #{dgcnn_partseg_forward.16} parent=0 // pred_region
    _
  $region25: #{dgcnn_partseg_forward.16} parent=0 // pred_fallthru
    _
  // Predicated region
  $region26: #{dgcnn_partseg_forward.16} parent=0 // pred_check
    _
  $region27: #{dgcnn_partseg_forward.16} parent=0 // pred_check_branch
    %25 = sbr.rel (0) target = $region29
  $region28: #{dgcnn_partseg_forward.16} parent=0 // pred_region
    _
  $region29: #{dgcnn_partseg_forward.16} parent=0 // pred_fallthru
    _
  %v26 = vld [vmem:[%s0] sm:$0xff]
  %v27 = vld [vmem:[%s0 + $0x8] sm:$0xff]
  %v28 = vld [vmem:[%s1] sm:$0xff]
  %v29 = vld [vmem:[%s1 + $0x8] sm:$0xff]
  %v30 = vld [vmem:[%s1 + $0x10] sm:$0xff]
  %v31 = vld [vmem:[%s1 + $0x18] sm:$0xff]
  %v32 = vld [vmem:[%s1 + $0x20] sm:$0xff]
  %v33 = vld [vmem:[%s1 + $0x28] sm:$0xff]
  %v34 = vld [vmem:[%s1 + $0x30] sm:$0xff]
  %v35 = vld [vmem:[%s1 + $0x38] sm:$0xff]
  %v36 = vld [vmem:[%s1 + $0x40] sm:$0xff]
  %v37 = vld [vmem:[%s1 + $0x48] sm:$0xff]
  %v38 = vld [vmem:[%s1 + $0x50] sm:$0xff]
  %v39 = vld [vmem:[%s1 + $0x58] sm:$0xff]
  %v40 = vld [vmem:[%s1 + $0x60] sm:$0xff]
  %v41 = vld [vmem:[%s1 + $0x68] sm:$0xff]
  %v42 = vld [vmem:[%s1 + $0x70] sm:$0xff]
  %v43 = vld [vmem:[%s1 + $0x78] sm:$0xff]
  %v44 = vld [vmem:[%s1 + $0x80] sm:$0xff]
  %v45 = vld [vmem:[%s1 + $0x88] sm:$0xff]
  %v46 = vld [vmem:[%s1 + $0x90] sm:$0xff]
  %v47 = vld [vmem:[%s1 + $0x98] sm:$0xff]
  %v48 = vld [vmem:[%s1 + $0xa0] sm:$0xff]
  %v49 = vld [vmem:[%s1 + $0xa8] sm:$0xff]
  %v50 = vld [vmem:[%s1 + $0xb0] sm:$0xff]
  %v51 = vld [vmem:[%s1 + $0xb8] sm:$0xff]
  %v52 = vld [vmem:[%s1 + $0xc0] sm:$0xff]
  %v53 = vld [vmem:[%s1 + $0xc8] sm:$0xff]
  %v54 = vld [vmem:[%s1 + $0xd0] sm:$0xff]
  %v55 = vld [vmem:[%s1 + $0xd8] sm:$0xff]
  %v56 = vld [vmem:[%s1 + $0xe0] sm:$0xff]
  %v57 = vld [vmem:[%s1 + $0xe8] sm:$0xff]
  %v58 = vld [vmem:[%s1 + $0xf0] sm:$0xff]
  %v59 = vld [vmem:[%s1 + $0xf8] sm:$0xff]
  %v60 = vld [vmem:[%s1 + $0x100] sm:$0xff]
  %v61 = vld [vmem:[%s1 + $0x108] sm:$0xff]
  %v62 = vld [vmem:[%s1 + $0x110] sm:$0xff]
  %v63 = vld [vmem:[%s1 + $0x118] sm:$0xff]
  %v64 = vld [vmem:[%s1 + $0x120] sm:$0xff]
  %v65 = vld [vmem:[%s1 + $0x128] sm:$0xff]
  %v66 = vld [vmem:[%s1 + $0x130] sm:$0xff]
  %v67 = vld [vmem:[%s1 + $0x138] sm:$0xff]
  %v68 = vld [vmem:[%s1 + $0x140] sm:$0xff]
  %v69 = vld [vmem:[%s1 + $0x148] sm:$0xff]
  %v70 = vld [vmem:[%s1 + $0x150] sm:$0xff]
  %v71 = vld [vmem:[%s1 + $0x158] sm:$0xff]
  %v72 = vld [vmem:[%s1 + $0x160] sm:$0xff]
  %v73 = vld [vmem:[%s1 + $0x168] sm:$0xff]
  %v74 = vld [vmem:[%s1 + $0x170] sm:$0xff]
  %v75 = vld [vmem:[%s1 + $0x178] sm:$0xff]
  %v76 = vld [vmem:[%s1 + $0x180] sm:$0xff]
  %v77 = vld [vmem:[%s1 + $0x188] sm:$0xff]
  %v78 = vld [vmem:[%s1 + $0x190] sm:$0xff]
  %v79 = vld [vmem:[%s1 + $0x198] sm:$0xff]
  %v80 = vld [vmem:[%s1 + $0x1a0] sm:$0xff]
  %v81 = vld [vmem:[%s1 + $0x1a8] sm:$0xff]
  %v82 = vld [vmem:[%s1 + $0x1b0] sm:$0xff]
  %v83 = vld [vmem:[%s1 + $0x1b8] sm:$0xff]
  %v84 = vld [vmem:[%s1 + $0x1c0] sm:$0xff]
  %v85 = vld [vmem:[%s1 + $0x1c8] sm:$0xff]
  %v86 = vld [vmem:[%s1 + $0x1d0] sm:$0xff]
  %v87 = vld [vmem:[%s1 + $0x1d8] sm:$0xff]
  %v88 = vld [vmem:[%s1 + $0x1e0] sm:$0xff]
  %v89 = vld [vmem:[%s1 + $0x1e8] sm:$0xff]
  %v90 = vld [vmem:[%s1 + $0x1f0] sm:$0xff]
  %v91 = vld [vmem:[%s1 + $0x1f8] sm:$0xff]
  %v92 = vld [vmem:[%s1 + $0x200] sm:$0xff]
  %v93 = vld [vmem:[%s1 + $0x208] sm:$0xff]
  %v94 = vld [vmem:[%s1 + $0x210] sm:$0xff]
  %v95 = vld [vmem:[%s1 + $0x218] sm:$0xff]
  %v96 = vld [vmem:[%s1 + $0x220] sm:$0xff]
  %v97 = vld [vmem:[%s1 + $0x228] sm:$0xff]
  %v98 = vld [vmem:[%s1 + $0x230] sm:$0xff]
  %v99 = vld [vmem:[%s1 + $0x238] sm:$0xff]
  %v100 = vld [vmem:[%s1 + $0x240] sm:$0xff]
  %v101 = vld [vmem:[%s1 + $0x248] sm:$0xff]
  %v102 = vld [vmem:[%s1 + $0x250] sm:$0xff]
  %v103 = vld [vmem:[%s1 + $0x258] sm:$0xff]
  %v104 = vld [vmem:[%s1 + $0x260] sm:$0xff]
  %v105 = vld [vmem:[%s1 + $0x268] sm:$0xff]
  %v106 = vld [vmem:[%s1 + $0x270] sm:$0xff]
  %v107 = vld [vmem:[%s1 + $0x278] sm:$0xff]
  %v108 = vld [vmem:[%s1 + $0x280] sm:$0xff]
  %v109 = vld [vmem:[%s1 + $0x288] sm:$0xff]
  %v110 = vld [vmem:[%s1 + $0x290] sm:$0xff]
  %v111 = vld [vmem:[%s1 + $0x298] sm:$0xff]
  %v112 = vld [vmem:[%s1 + $0x2a0] sm:$0xff]
  %v113 = vld [vmem:[%s1 + $0x2a8] sm:$0xff]
  %v114 = vld [vmem:[%s1 + $0x2b0] sm:$0xff]
  %v115 = vld [vmem:[%s1 + $0x2b8] sm:$0xff]
  %v116 = vld [vmem:[%s1 + $0x2c0] sm:$0xff]
  %v117 = vld [vmem:[%s1 + $0x2c8] sm:$0xff]
  %v118 = vld [vmem:[%s1 + $0x2d0] sm:$0xff]
  %v119 = vld [vmem:[%s1 + $0x2d8] sm:$0xff]
  %v120 = vld [vmem:[%s1 + $0x2e0] sm:$0xff]
  %v121 = vld [vmem:[%s1 + $0x2e8] sm:$0xff]
  %v122 = vld [vmem:[%s1 + $0x2f0] sm:$0xff]
  %v123 = vld [vmem:[%s1 + $0x2f8] sm:$0xff]
  %v124 = vld [vmem:[%s1 + $0x300] sm:$0xff]
  %v125 = vld [vmem:[%s1 + $0x308] sm:$0xff]
  %v126 = vld [vmem:[%s1 + $0x310] sm:$0xff]
  %v127 = vld [vmem:[%s1 + $0x318] sm:$0xff]
  %v128 = vld [vmem:[%s1 + $0x320] sm:$0xff]
  %v129 = vld [vmem:[%s1 + $0x328] sm:$0xff]
  %v130 = vld [vmem:[%s1 + $0x330] sm:$0xff]
  %v131 = vld [vmem:[%s1 + $0x338] sm:$0xff]
  %v132 = vld [vmem:[%s1 + $0x340] sm:$0xff]
  %v133 = vld [vmem:[%s1 + $0x348] sm:$0xff]
  %v134 = vld [vmem:[%s1 + $0x350] sm:$0xff]
  %v135 = vld [vmem:[%s1 + $0x358] sm:$0xff]
  %v136 = vld [vmem:[%s1 + $0x360] sm:$0xff]
  %v137 = vld [vmem:[%s1 + $0x368] sm:$0xff]
  %v138 = vld [vmem:[%s1 + $0x370] sm:$0xff]
  %v139 = vld [vmem:[%s1 + $0x378] sm:$0xff]
  %v140 = vld [vmem:[%s1 + $0x380] sm:$0xff]
  %v141 = vld [vmem:[%s1 + $0x388] sm:$0xff]
  %v142 = vld [vmem:[%s1 + $0x390] sm:$0xff]
  %v143 = vld [vmem:[%s1 + $0x398] sm:$0xff]
  %v144 = vld [vmem:[%s1 + $0x3a0] sm:$0xff]
  %v145 = vld [vmem:[%s1 + $0x3a8] sm:$0xff]
  %v146 = vld [vmem:[%s1 + $0x3b0] sm:$0xff]
  %v147 = vld [vmem:[%s1 + $0x3b8] sm:$0xff]
  %v148 = vld [vmem:[%s1 + $0x3c0] sm:$0xff]
  %v149 = vld [vmem:[%s1 + $0x3c8] sm:$0xff]
  %v150 = vld [vmem:[%s1 + $0x3d0] sm:$0xff]
  %v151 = vld [vmem:[%s1 + $0x3d8] sm:$0xff]
  %v152 = vld [vmem:[%s1 + $0x3e0] sm:$0xff]
  %v153 = vld [vmem:[%s1 + $0x3e8] sm:$0xff]
  %v154 = vld [vmem:[%s1 + $0x3f0] sm:$0xff]
  %v155 = vld [vmem:[%s1 + $0x3f8] sm:$0xff]
  %v156 = vld [vmem:[%s1 + $0x400] sm:$0xff]
  %v157 = vld [vmem:[%s1 + $0x408] sm:$0xff]
  %v158 = vld [vmem:[%s1 + $0x410] sm:$0xff]
  %v159 = vld [vmem:[%s1 + $0x418] sm:$0xff]
  %v160 = vld [vmem:[%s1 + $0x420] sm:$0xff]
  %v161 = vld [vmem:[%s1 + $0x428] sm:$0xff]
  %v162 = vld [vmem:[%s1 + $0x430] sm:$0xff]
  %v163 = vld [vmem:[%s1 + $0x438] sm:$0xff]
  %v164 = vld [vmem:[%s1 + $0x440] sm:$0xff]
  %v165 = vld [vmem:[%s1 + $0x448] sm:$0xff]
  %v166 = vld [vmem:[%s1 + $0x450] sm:$0xff]
  %v167 = vld [vmem:[%s1 + $0x458] sm:$0xff]
  %v168 = vld [vmem:[%s1 + $0x460] sm:$0xff]
  %v169 = vld [vmem:[%s1 + $0x468] sm:$0xff]
  %v170 = vld [vmem:[%s1 + $0x470] sm:$0xff]
  %v171 = vld [vmem:[%s1 + $0x478] sm:$0xff]
  %v172 = vld [vmem:[%s1 + $0x480] sm:$0xff]
  %v173 = vld [vmem:[%s1 + $0x488] sm:$0xff]
  %v174 = vld [vmem:[%s1 + $0x490] sm:$0xff]
  %v175 = vld [vmem:[%s1 + $0x498] sm:$0xff]
  %v176 = vld [vmem:[%s1 + $0x4a0] sm:$0xff]
  %v177 = vld [vmem:[%s1 + $0x4a8] sm:$0xff]
  %v178 = vld [vmem:[%s1 + $0x4b0] sm:$0xff]
  %v179 = vld [vmem:[%s1 + $0x4b8] sm:$0xff]
  %v180 = vld [vmem:[%s1 + $0x4c0] sm:$0xff]
  %v181 = vld [vmem:[%s1 + $0x4c8] sm:$0xff]
  %v182 = vld [vmem:[%s1 + $0x4d0] sm:$0xff]
  %v183 = vld [vmem:[%s1 + $0x4d8] sm:$0xff]
  %v184 = vld [vmem:[%s1 + $0x4e0] sm:$0xff]
  %v185 = vld [vmem:[%s1 + $0x4e8] sm:$0xff]
  %v186 = vld [vmem:[%s1 + $0x4f0] sm:$0xff]
  %v187 = vld [vmem:[%s1 + $0x4f8] sm:$0xff]
  %v188 = vld [vmem:[%s1 + $0x500] sm:$0xff]
  %v189 = vld [vmem:[%s1 + $0x508] sm:$0xff]
  %v190 = vld [vmem:[%s1 + $0x510] sm:$0xff]
  %v191 = vld [vmem:[%s1 + $0x518] sm:$0xff]
  %v192 = vld [vmem:[%s1 + $0x520] sm:$0xff]
  %v193 = vld [vmem:[%s1 + $0x528] sm:$0xff]
  %v194 = vld [vmem:[%s1 + $0x530] sm:$0xff]
  %v195 = vld [vmem:[%s1 + $0x538] sm:$0xff]
  %v196 = vld [vmem:[%s1 + $0x540] sm:$0xff]
  %v197 = vld [vmem:[%s1 + $0x548] sm:$0xff]
  %v198 = vld [vmem:[%s1 + $0x550] sm:$0xff]
  %v199 = vld [vmem:[%s1 + $0x558] sm:$0xff]
  %v200 = vld [vmem:[%s1 + $0x560] sm:$0xff]
  %v201 = vld [vmem:[%s1 + $0x568] sm:$0xff]
  %v202 = vld [vmem:[%s1 + $0x570] sm:$0xff]
  %v203 = vld [vmem:[%s1 + $0x578] sm:$0xff]
  %v204 = vld [vmem:[%s1 + $0x580] sm:$0xff]
  %v205 = vld [vmem:[%s1 + $0x588] sm:$0xff]
  %v206 = vld [vmem:[%s1 + $0x590] sm:$0xff]
  %v207 = vld [vmem:[%s1 + $0x598] sm:$0xff]
  %v208 = vld [vmem:[%s1 + $0x5a0] sm:$0xff]
  %v209 = vld [vmem:[%s1 + $0x5a8] sm:$0xff]
  %v210 = vld [vmem:[%s1 + $0x5b0] sm:$0xff]
  %v211 = vld [vmem:[%s1 + $0x5b8] sm:$0xff]
  %v212 = vld [vmem:[%s1 + $0x5c0] sm:$0xff]
  %v213 = vld [vmem:[%s1 + $0x5c8] sm:$0xff]
  %v214 = vld [vmem:[%s1 + $0x5d0] sm:$0xff]
  %v215 = vld [vmem:[%s1 + $0x5d8] sm:$0xff]
  %v216 = vld [vmem:[%s1 + $0x5e0] sm:$0xff]
  %v217 = vld [vmem:[%s1 + $0x5e8] sm:$0xff]
  %v218 = vld [vmem:[%s1 + $0x5f0] sm:$0xff]
  %v219 = vld [vmem:[%s1 + $0x5f8] sm:$0xff]
  %v220 = vld [vmem:[%s1 + $0x600] sm:$0xff]
  %v221 = vld [vmem:[%s1 + $0x608] sm:$0xff]
  %v222 = vld [vmem:[%s1 + $0x610] sm:$0xff]
  %v223 = vld [vmem:[%s1 + $0x618] sm:$0xff]
  %v224 = vld [vmem:[%s1 + $0x620] sm:$0xff]
  %v225 = vld [vmem:[%s1 + $0x628] sm:$0xff]
  %v226 = vld [vmem:[%s1 + $0x630] sm:$0xff]
  %v227 = vld [vmem:[%s1 + $0x638] sm:$0xff]
  %v228 = vld [vmem:[%s1 + $0x640] sm:$0xff]
  %v229 = vld [vmem:[%s1 + $0x648] sm:$0xff]
  %v230 = vld [vmem:[%s1 + $0x650] sm:$0xff]
  %v231 = vld [vmem:[%s1 + $0x658] sm:$0xff]
  %v232 = vld [vmem:[%s1 + $0x660] sm:$0xff]
  %v233 = vld [vmem:[%s1 + $0x668] sm:$0xff]
  %v234 = vld [vmem:[%s1 + $0x670] sm:$0xff]
  %v235 = vld [vmem:[%s1 + $0x678] sm:$0xff]
  %v236 = vld [vmem:[%s1 + $0x680] sm:$0xff]
  %v237 = vld [vmem:[%s1 + $0x688] sm:$0xff]
  %v238 = vld [vmem:[%s1 + $0x690] sm:$0xff]
  %v239 = vld [vmem:[%s1 + $0x698] sm:$0xff]
  %v240 = vld [vmem:[%s1 + $0x6a0] sm:$0xff]
  %v241 = vld [vmem:[%s1 + $0x6a8] sm:$0xff]
  %v242 = vld [vmem:[%s1 + $0x6b0] sm:$0xff]
  %v243 = vld [vmem:[%s1 + $0x6b8] sm:$0xff]
  %v244 = vld [vmem:[%s1 + $0x6c0] sm:$0xff]
  %v245 = vld [vmem:[%s1 + $0x6c8] sm:$0xff]
  %v246 = vld [vmem:[%s1 + $0x6d0] sm:$0xff]
  %v247 = vld [vmem:[%s1 + $0x6d8] sm:$0xff]
  %v248 = vld [vmem:[%s1 + $0x6e0] sm:$0xff]
  %v249 = vld [vmem:[%s1 + $0x6e8] sm:$0xff]
  %v250 = vld [vmem:[%s1 + $0x6f0] sm:$0xff]
  %v251 = vld [vmem:[%s1 + $0x6f8] sm:$0xff]
  %v252 = vld [vmem:[%s1 + $0x700] sm:$0xff]
  %v253 = vld [vmem:[%s1 + $0x708] sm:$0xff]
  %v254 = vld [vmem:[%s1 + $0x710] sm:$0xff]
  %v255 = vld [vmem:[%s1 + $0x718] sm:$0xff]
  %v256 = vld [vmem:[%s1 + $0x720] sm:$0xff]
  %v257 = vld [vmem:[%s1 + $0x728] sm:$0xff]
  %v258 = vld [vmem:[%s1 + $0x730] sm:$0xff]
  %v259 = vld [vmem:[%s1 + $0x738] sm:$0xff]
  %v260 = vld [vmem:[%s1 + $0x740] sm:$0xff]
  %v261 = vld [vmem:[%s1 + $0x748] sm:$0xff]
  %v262 = vld [vmem:[%s1 + $0x750] sm:$0xff]
  %v263 = vld [vmem:[%s1 + $0x758] sm:$0xff]
  %v264 = vld [vmem:[%s1 + $0x760] sm:$0xff]
  %v265 = vld [vmem:[%s1 + $0x768] sm:$0xff]
  %v266 = vld [vmem:[%s1 + $0x770] sm:$0xff]
  %v267 = vld [vmem:[%s1 + $0x778] sm:$0xff]
  %v268 = vld [vmem:[%s1 + $0x780] sm:$0xff]
  %v269 = vld [vmem:[%s1 + $0x788] sm:$0xff]
  %v270 = vld [vmem:[%s1 + $0x790] sm:$0xff]
  %v271 = vld [vmem:[%s1 + $0x798] sm:$0xff]
  %v272 = vld [vmem:[%s1 + $0x7a0] sm:$0xff]
  %v273 = vld [vmem:[%s1 + $0x7a8] sm:$0xff]
  %v274 = vld [vmem:[%s1 + $0x7b0] sm:$0xff]
  %v275 = vld [vmem:[%s1 + $0x7b8] sm:$0xff]
  %v276 = vld [vmem:[%s1 + $0x7c0] sm:$0xff]
  %v277 = vld [vmem:[%s1 + $0x7c8] sm:$0xff]
  %v278 = vld [vmem:[%s1 + $0x7d0] sm:$0xff]
  %v279 = vld [vmem:[%s1 + $0x7d8] sm:$0xff]
  %v280 = vld [vmem:[%s1 + $0x7e0] sm:$0xff]
  %v281 = vld [vmem:[%s1 + $0x7e8] sm:$0xff]
  %v282 = vld [vmem:[%s1 + $0x7f0] sm:$0xff]
  %v283 = vld [vmem:[%s1 + $0x7f8] sm:$0xff]
  %v284 = vld [vmem:[%s1 + $0x800] sm:$0xff]
  %v285 = vld [vmem:[%s1 + $0x808] sm:$0xff]
  %v286 = vld [vmem:[%s1 + $0x810] sm:$0xff]
  %v287 = vld [vmem:[%s1 + $0x818] sm:$0xff]
  %v288 = vld [vmem:[%s1 + $0x820] sm:$0xff]
  %v289 = vld [vmem:[%s1 + $0x828] sm:$0xff]
  %v290 = vld [vmem:[%s1 + $0x830] sm:$0xff]
  %v291 = vld [vmem:[%s1 + $0x838] sm:$0xff]
  %v292 = vld [vmem:[%s1 + $0x840] sm:$0xff]
  %v293 = vld [vmem:[%s1 + $0x848] sm:$0xff]
  %v294 = vld [vmem:[%s1 + $0x850] sm:$0xff]
  %v295 = vld [vmem:[%s1 + $0x858] sm:$0xff]
  %v296 = vld [vmem:[%s1 + $0x860] sm:$0xff]
  %v297 = vld [vmem:[%s1 + $0x868] sm:$0xff]
  %v298 = vld [vmem:[%s1 + $0x870] sm:$0xff]
  %v299 = vld [vmem:[%s1 + $0x878] sm:$0xff]
  %v300 = vld [vmem:[%s1 + $0x880] sm:$0xff]
  %v301 = vld [vmem:[%s1 + $0x888] sm:$0xff]
  %v302 = vld [vmem:[%s1 + $0x890] sm:$0xff]
  %v303 = vld [vmem:[%s1 + $0x898] sm:$0xff]
  %v304 = vld [vmem:[%s1 + $0x8a0] sm:$0xff]
  %v305 = vld [vmem:[%s1 + $0x8a8] sm:$0xff]
  %v306 = vld [vmem:[%s1 + $0x8b0] sm:$0xff]
  %v307 = vld [vmem:[%s1 + $0x8b8] sm:$0xff]
  %v308 = vld [vmem:[%s1 + $0x8c0] sm:$0xff]
  %v309 = vld [vmem:[%s1 + $0x8c8] sm:$0xff]
  %v310 = vld [vmem:[%s1 + $0x8d0] sm:$0xff]
  %v311 = vld [vmem:[%s1 + $0x8d8] sm:$0xff]
  %v312 = vld [vmem:[%s1 + $0x8e0] sm:$0xff]
  %v313 = vld [vmem:[%s1 + $0x8e8] sm:$0xff]
  %v314 = vld [vmem:[%s1 + $0x8f0] sm:$0xff]
  %v315 = vld [vmem:[%s1 + $0x8f8] sm:$0xff]
  %v316 = vld [vmem:[%s1 + $0x900] sm:$0xff]
  %v317 = vld [vmem:[%s1 + $0x908] sm:$0xff]
  %v318 = vld [vmem:[%s1 + $0x910] sm:$0xff]
  %v319 = vld [vmem:[%s1 + $0x918] sm:$0xff]
  %v320 = vld [vmem:[%s1 + $0x920] sm:$0xff]
  %v321 = vld [vmem:[%s1 + $0x928] sm:$0xff]
  %v322 = vld [vmem:[%s1 + $0x930] sm:$0xff]
  %v323 = vld [vmem:[%s1 + $0x938] sm:$0xff]
  %v324 = vld [vmem:[%s1 + $0x940] sm:$0xff]
  %v325 = vld [vmem:[%s1 + $0x948] sm:$0xff]
  %v326 = vld [vmem:[%s1 + $0x950] sm:$0xff]
  %v327 = vld [vmem:[%s1 + $0x958] sm:$0xff]
  %v328 = vld [vmem:[%s1 + $0x960] sm:$0xff]
  %v329 = vld [vmem:[%s1 + $0x968] sm:$0xff]
  %v330 = vld [vmem:[%s1 + $0x970] sm:$0xff]
  %v331 = vld [vmem:[%s1 + $0x978] sm:$0xff]
  %v332 = vld [vmem:[%s1 + $0x980] sm:$0xff]
  %v333 = vld [vmem:[%s1 + $0x988] sm:$0xff]
  %v334 = vld [vmem:[%s1 + $0x990] sm:$0xff]
  %v335 = vld [vmem:[%s1 + $0x998] sm:$0xff]
  %v336 = vld [vmem:[%s1 + $0x9a0] sm:$0xff]
  %v337 = vld [vmem:[%s1 + $0x9a8] sm:$0xff]
  %v338 = vld [vmem:[%s1 + $0x9b0] sm:$0xff]
  %v339 = vld [vmem:[%s1 + $0x9b8] sm:$0xff]
  %v340 = vld [vmem:[%s1 + $0x9c0] sm:$0xff]
  %v341 = vld [vmem:[%s1 + $0x9c8] sm:$0xff]
  %v342 = vld [vmem:[%s1 + $0x9d0] sm:$0xff]
  %v343 = vld [vmem:[%s1 + $0x9d8] sm:$0xff]
  %v344 = vld [vmem:[%s1 + $0x9e0] sm:$0xff]
  %v345 = vld [vmem:[%s1 + $0x9e8] sm:$0xff]
  %v346 = vld [vmem:[%s1 + $0x9f0] sm:$0xff]
  %v347 = vld [vmem:[%s1 + $0x9f8] sm:$0xff]
  %v348 = vld [vmem:[%s1 + $0xa00] sm:$0xff]
  %v349 = vld [vmem:[%s1 + $0xa08] sm:$0xff]
  %v350 = vld [vmem:[%s1 + $0xa10] sm:$0xff]
  %v351 = vld [vmem:[%s1 + $0xa18] sm:$0xff]
  %v352 = vld [vmem:[%s1 + $0xa20] sm:$0xff]
  %v353 = vld [vmem:[%s1 + $0xa28] sm:$0xff]
  %v354 = vld [vmem:[%s1 + $0xa30] sm:$0xff]
  %v355 = vld [vmem:[%s1 + $0xa38] sm:$0xff]
  %v356 = vld [vmem:[%s1 + $0xa40] sm:$0xff]
  %v357 = vld [vmem:[%s1 + $0xa48] sm:$0xff]
  %v358 = vld [vmem:[%s1 + $0xa50] sm:$0xff]
  %v359 = vld [vmem:[%s1 + $0xa58] sm:$0xff]
  %v360 = vld [vmem:[%s1 + $0xa60] sm:$0xff]
  %v361 = vld [vmem:[%s1 + $0xa68] sm:$0xff]
  %v362 = vld [vmem:[%s1 + $0xa70] sm:$0xff]
  %v363 = vld [vmem:[%s1 + $0xa78] sm:$0xff]
  %v364 = vld [vmem:[%s1 + $0xa80] sm:$0xff]
  %v365 = vld [vmem:[%s1 + $0xa88] sm:$0xff]
  %v366 = vld [vmem:[%s1 + $0xa90] sm:$0xff]
  %v367 = vld [vmem:[%s1 + $0xa98] sm:$0xff]
  %v368 = vld [vmem:[%s1 + $0xaa0] sm:$0xff]
  %v369 = vld [vmem:[%s1 + $0xaa8] sm:$0xff]
  %v370 = vld [vmem:[%s1 + $0xab0] sm:$0xff]
  %v371 = vld [vmem:[%s1 + $0xab8] sm:$0xff]
  %v372 = vld [vmem:[%s1 + $0xac0] sm:$0xff]
  %v373 = vld [vmem:[%s1 + $0xac8] sm:$0xff]
  %v374 = vld [vmem:[%s1 + $0xad0] sm:$0xff]
  %v375 = vld [vmem:[%s1 + $0xad8] sm:$0xff]
  %v376 = vld [vmem:[%s1 + $0xae0] sm:$0xff]
  %v377 = vld [vmem:[%s1 + $0xae8] sm:$0xff]
  %v378 = vld [vmem:[%s1 + $0xaf0] sm:$0xff]
  %v379 = vld [vmem:[%s1 + $0xaf8] sm:$0xff]
  %v380 = vld [vmem:[%s1 + $0xb00] sm:$0xff]
  %v381 = vld [vmem:[%s1 + $0xb08] sm:$0xff]
  %v382 = vld [vmem:[%s1 + $0xb10] sm:$0xff]
  %v383 = vld [vmem:[%s1 + $0xb18] sm:$0xff]
  %v384 = vld [vmem:[%s1 + $0xb20] sm:$0xff]
  %v385 = vld [vmem:[%s1 + $0xb28] sm:$0xff]
  %v386 = vld [vmem:[%s1 + $0xb30] sm:$0xff]
  %v387 = vld [vmem:[%s1 + $0xb38] sm:$0xff]
  %v388 = vld [vmem:[%s1 + $0xb40] sm:$0xff]
  %v389 = vld [vmem:[%s1 + $0xb48] sm:$0xff]
  %v390 = vld [vmem:[%s1 + $0xb50] sm:$0xff]
  %v391 = vld [vmem:[%s1 + $0xb58] sm:$0xff]
  %v392 = vld [vmem:[%s1 + $0xb60] sm:$0xff]
  %v393 = vld [vmem:[%s1 + $0xb68] sm:$0xff]
  %v394 = vld [vmem:[%s1 + $0xb70] sm:$0xff]
  %v395 = vld [vmem:[%s1 + $0xb78] sm:$0xff]
  %v396 = vld [vmem:[%s1 + $0xb80] sm:$0xff]
  %v397 = vld [vmem:[%s1 + $0xb88] sm:$0xff]
  %v398 = vld [vmem:[%s1 + $0xb90] sm:$0xff]
  %v399 = vld [vmem:[%s1 + $0xb98] sm:$0xff]
  %v400 = vld [vmem:[%s1 + $0xba0] sm:$0xff]
  %v401 = vld [vmem:[%s1 + $0xba8] sm:$0xff]
  %v402 = vld [vmem:[%s1 + $0xbb0] sm:$0xff]
  %v403 = vld [vmem:[%s1 + $0xbb8] sm:$0xff]
  %v404 = vld [vmem:[%s1 + $0xbc0] sm:$0xff]
  %v405 = vld [vmem:[%s1 + $0xbc8] sm:$0xff]
  %v406 = vld [vmem:[%s1 + $0xbd0] sm:$0xff]
  %v407 = vld [vmem:[%s1 + $0xbd8] sm:$0xff]
  %v408 = vld [vmem:[%s1 + $0xbe0] sm:$0xff]
  %v409 = vld [vmem:[%s1 + $0xbe8] sm:$0xff]
  %v410 = vld [vmem:[%s1 + $0xbf0] sm:$0xff]
  %v411 = vld [vmem:[%s1 + $0xbf8] sm:$0xff]
  %v412 = vld [vmem:[%s1 + $0xc00] sm:$0xff]
  %v413 = vld [vmem:[%s1 + $0xc08] sm:$0xff]
  %v414 = vld [vmem:[%s1 + $0xc10] sm:$0xff]
  %v415 = vld [vmem:[%s1 + $0xc18] sm:$0xff]
  %v416 = vld [vmem:[%s1 + $0xc20] sm:$0xff]
  %v417 = vld [vmem:[%s1 + $0xc28] sm:$0xff]
  %v418 = vld [vmem:[%s1 + $0xc30] sm:$0xff]
  %v419 = vld [vmem:[%s1 + $0xc38] sm:$0xff]
  %v420 = vld [vmem:[%s1 + $0xc40] sm:$0xff]
  %v421 = vld [vmem:[%s1 + $0xc48] sm:$0xff]
  %v422 = vld [vmem:[%s1 + $0xc50] sm:$0xff]
  %v423 = vld [vmem:[%s1 + $0xc58] sm:$0xff]
  %v424 = vld [vmem:[%s1 + $0xc60] sm:$0xff]
  %v425 = vld [vmem:[%s1 + $0xc68] sm:$0xff]
  %v426 = vld [vmem:[%s1 + $0xc70] sm:$0xff]
  %v427 = vld [vmem:[%s1 + $0xc78] sm:$0xff]
  %v428 = vld [vmem:[%s1 + $0xc80] sm:$0xff]
  %v429 = vld [vmem:[%s1 + $0xc88] sm:$0xff]
  %v430 = vld [vmem:[%s1 + $0xc90] sm:$0xff]
  %v431 = vld [vmem:[%s1 + $0xc98] sm:$0xff]
  %v432 = vld [vmem:[%s1 + $0xca0] sm:$0xff]
  %v433 = vld [vmem:[%s1 + $0xca8] sm:$0xff]
  %v434 = vld [vmem:[%s1 + $0xcb0] sm:$0xff]
  %v435 = vld [vmem:[%s1 + $0xcb8] sm:$0xff]
  %v436 = vld [vmem:[%s1 + $0xcc0] sm:$0xff]
  %v437 = vld [vmem:[%s1 + $0xcc8] sm:$0xff]
  %v438 = vld [vmem:[%s1 + $0xcd0] sm:$0xff]
  %v439 = vld [vmem:[%s1 + $0xcd8] sm:$0xff]
  %v440 = vld [vmem:[%s1 + $0xce0] sm:$0xff]
  %v441 = vld [vmem:[%s1 + $0xce8] sm:$0xff]
  %v442 = vld [vmem:[%s1 + $0xcf0] sm:$0xff]
  %v443 = vld [vmem:[%s1 + $0xcf8] sm:$0xff]
  %v444 = vld [vmem:[%s1 + $0xd00] sm:$0xff]
  %v445 = vld [vmem:[%s1 + $0xd08] sm:$0xff]
  %v446 = vld [vmem:[%s1 + $0xd10] sm:$0xff]
  %v447 = vld [vmem:[%s1 + $0xd18] sm:$0xff]
  %v448 = vld [vmem:[%s1 + $0xd20] sm:$0xff]
  %v449 = vld [vmem:[%s1 + $0xd28] sm:$0xff]
  %v450 = vld [vmem:[%s1 + $0xd30] sm:$0xff]
  %v451 = vld [vmem:[%s1 + $0xd38] sm:$0xff]
  %v452 = vld [vmem:[%s1 + $0xd40] sm:$0xff]
  %v453 = vld [vmem:[%s1 + $0xd48] sm:$0xff]
  %v454 = vld [vmem:[%s1 + $0xd50] sm:$0xff]
  %v455 = vld [vmem:[%s1 + $0xd58] sm:$0xff]
  %v456 = vld [vmem:[%s1 + $0xd60] sm:$0xff]
  %v457 = vld [vmem:[%s1 + $0xd68] sm:$0xff]
  %v458 = vld [vmem:[%s1 + $0xd70] sm:$0xff]
  %v459 = vld [vmem:[%s1 + $0xd78] sm:$0xff]
  %v460 = vld [vmem:[%s1 + $0xd80] sm:$0xff]
  %v461 = vld [vmem:[%s1 + $0xd88] sm:$0xff]
  %v462 = vld [vmem:[%s1 + $0xd90] sm:$0xff]
  %v463 = vld [vmem:[%s1 + $0xd98] sm:$0xff]
  %v464 = vld [vmem:[%s1 + $0xda0] sm:$0xff]
  %v465 = vld [vmem:[%s1 + $0xda8] sm:$0xff]
  %v466 = vld [vmem:[%s1 + $0xdb0] sm:$0xff]
  %v467 = vld [vmem:[%s1 + $0xdb8] sm:$0xff]
  %v468 = vld [vmem:[%s1 + $0xdc0] sm:$0xff]
  %v469 = vld [vmem:[%s1 + $0xdc8] sm:$0xff]
  %v470 = vld [vmem:[%s1 + $0xdd0] sm:$0xff]
  %v471 = vld [vmem:[%s1 + $0xdd8] sm:$0xff]
  %v472 = vld [vmem:[%s1 + $0xde0] sm:$0xff]
  %v473 = vld [vmem:[%s1 + $0xde8] sm:$0xff]
  %v474 = vld [vmem:[%s1 + $0xdf0] sm:$0xff]
  %v475 = vld [vmem:[%s1 + $0xdf8] sm:$0xff]
  %v476 = vld [vmem:[%s1 + $0xe00] sm:$0xff]
  %v477 = vld [vmem:[%s1 + $0xe08] sm:$0xff]
  %v478 = vld [vmem:[%s1 + $0xe10] sm:$0xff]
  %v479 = vld [vmem:[%s1 + $0xe18] sm:$0xff]
  %v480 = vld [vmem:[%s1 + $0xe20] sm:$0xff]
  %v481 = vld [vmem:[%s1 + $0xe28] sm:$0xff]
  %v482 = vld [vmem:[%s1 + $0xe30] sm:$0xff]
  %v483 = vld [vmem:[%s1 + $0xe38] sm:$0xff]
  %v484 = vld [vmem:[%s1 + $0xe40] sm:$0xff]
  %v485 = vld [vmem:[%s1 + $0xe48] sm:$0xff]
  %v486 = vld [vmem:[%s1 + $0xe50] sm:$0xff]
  %v487 = vld [vmem:[%s1 + $0xe58] sm:$0xff]
  %v488 = vld [vmem:[%s1 + $0xe60] sm:$0xff]
  %v489 = vld [vmem:[%s1 + $0xe68] sm:$0xff]
  %v490 = vld [vmem:[%s1 + $0xe70] sm:$0xff]
  %v491 = vld [vmem:[%s1 + $0xe78] sm:$0xff]
  %v492 = vld [vmem:[%s1 + $0xe80] sm:$0xff]
  %v493 = vld [vmem:[%s1 + $0xe88] sm:$0xff]
  %v494 = vld [vmem:[%s1 + $0xe90] sm:$0xff]
  %v495 = vld [vmem:[%s1 + $0xe98] sm:$0xff]
  %v496 = vld [vmem:[%s1 + $0xea0] sm:$0xff]
  %v497 = vld [vmem:[%s1 + $0xea8] sm:$0xff]
  %v498 = vld [vmem:[%s1 + $0xeb0] sm:$0xff]
  %v499 = vld [vmem:[%s1 + $0xeb8] sm:$0xff]
  %v500 = vld [vmem:[%s1 + $0xec0] sm:$0xff]
  %v501 = vld [vmem:[%s1 + $0xec8] sm:$0xff]
  %v502 = vld [vmem:[%s1 + $0xed0] sm:$0xff]
  %v503 = vld [vmem:[%s1 + $0xed8] sm:$0xff]
  %v504 = vld [vmem:[%s1 + $0xee0] sm:$0xff]
  %v505 = vld [vmem:[%s1 + $0xee8] sm:$0xff]
  %v506 = vld [vmem:[%s1 + $0xef0] sm:$0xff]
  %v507 = vld [vmem:[%s1 + $0xef8] sm:$0xff]
  %v508 = vld [vmem:[%s1 + $0xf00] sm:$0xff]
  %v509 = vld [vmem:[%s1 + $0xf08] sm:$0xff]
  %v510 = vld [vmem:[%s1 + $0xf10] sm:$0xff]
  %v511 = vld [vmem:[%s1 + $0xf18] sm:$0xff]
  %v512 = vld [vmem:[%s1 + $0xf20] sm:$0xff]
  %v513 = vld [vmem:[%s1 + $0xf28] sm:$0xff]
  %v514 = vld [vmem:[%s1 + $0xf30] sm:$0xff]
  %v515 = vld [vmem:[%s1 + $0xf38] sm:$0xff]
  %v516 = vld [vmem:[%s1 + $0xf40] sm:$0xff]
  %v517 = vld [vmem:[%s1 + $0xf48] sm:$0xff]
  %v518 = vld [vmem:[%s1 + $0xf50] sm:$0xff]
  %v519 = vld [vmem:[%s1 + $0xf58] sm:$0xff]
  %v520 = vld [vmem:[%s1 + $0xf60] sm:$0xff]
  %v521 = vld [vmem:[%s1 + $0xf68] sm:$0xff]
  %v522 = vld [vmem:[%s1 + $0xf70] sm:$0xff]
  %v523 = vld [vmem:[%s1 + $0xf78] sm:$0xff]
  %v524 = vld [vmem:[%s1 + $0xf80] sm:$0xff]
  %v525 = vld [vmem:[%s1 + $0xf88] sm:$0xff]
  %v526 = vld [vmem:[%s1 + $0xf90] sm:$0xff]
  %v527 = vld [vmem:[%s1 + $0xf98] sm:$0xff]
  %v528 = vld [vmem:[%s1 + $0xfa0] sm:$0xff]
  %v529 = vld [vmem:[%s1 + $0xfa8] sm:$0xff]
  %v530 = vld [vmem:[%s1 + $0xfb0] sm:$0xff]
  %v531 = vld [vmem:[%s1 + $0xfb8] sm:$0xff]
  %v532 = vld [vmem:[%s1 + $0xfc0] sm:$0xff]
  %v533 = vld [vmem:[%s1 + $0xfc8] sm:$0xff]
  %v534 = vld [vmem:[%s1 + $0xfd0] sm:$0xff]
  %v535 = vld [vmem:[%s1 + $0xfd8] sm:$0xff]
  %v536 = vld [vmem:[%s1 + $0xfe0] sm:$0xff]
  %v537 = vld [vmem:[%s1 + $0xfe8] sm:$0xff]
  %v538 = vld [vmem:[%s1 + $0xff0] sm:$0xff]
  %v539 = vld [vmem:[%s1 + $0xff8] sm:$0xff]
  %v540 = vld [vmem:[%s2] sm:$0xf]
  %v542 = vlaneseq
  %v543 = vshrl.u32 %v542, 7
  %v544 = vsub.s32 0, %v543
  %v545 = vrot.slane %v540, %v544
  %v546 = vlaneseq
  %v547 = vshrl.u32 %v546, 7
  %v548 = vsub.s32 1, %v547
  %v549 = vrot.slane %v540, %v548
  %v550 = vlaneseq
  %v551 = vshrl.u32 %v550, 7
  %v552 = vsub.s32 2, %v551
  %v553 = vrot.slane %v540, %v552
  %v554 = vlaneseq
  %v555 = vshrl.u32 %v554, 7
  %v556 = vsub.s32 3, %v555
  %v557 = vrot.slane %v540, %v556
  %v564 = vcombine.high %v26, %v26
  %v566 = vunpack.c.l.s4 1983009808
  %v567 = vunpack.c.0.s8 %v566
  %v568 = vlaneseq
  %v569 = vshrl.u32 %v568, 7
  %v570 = vsub.s32 %v567, %v569
  %v571 = vrot.slane %v26, %v570
  %v573 = vunpack.c.l.s4 1983009808
  %v574 = vunpack.c.0.s8 %v573
  %v575 = vlaneseq
  %v576 = vshrl.u32 %v575, 7
  %v577 = vsub.s32 %v574, %v576
  %v578 = vrot.slane %v564, %v577
  %v579 = vcombine.high %v571, %v571
  %v580 = vcombine.high %v578, %v578
  %v581 = vcombine.high %v27, %v27
  %v583 = vunpack.c.l.s4 1983009808
  %v584 = vunpack.c.0.s8 %v583
  %v585 = vlaneseq
  %v586 = vshrl.u32 %v585, 7
  %v587 = vsub.s32 %v584, %v586
  %v588 = vrot.slane %v27, %v587
  %v590 = vunpack.c.l.s4 1983009808
  %v591 = vunpack.c.0.s8 %v590
  %v592 = vlaneseq
  %v593 = vshrl.u32 %v592, 7
  %v594 = vsub.s32 %v591, %v593
  %v595 = vrot.slane %v581, %v594
  %v596 = vcombine.high %v588, %v588
  %v597 = vcombine.high %v595, %v595
  %606 = vmatprep.subr.mxu0 %v29
  %607 = vmatpush1.msra.mxu0 %v28
  %608 = vmatprep.subr.mxu0 %v33
  %609 = vmatpush1.msra.mxu0 %v32
  %610 = vmatprep.subr.mxu0 %v37
  %611 = vmatpush1.msra.mxu0 %v36
  %612 = vmatprep.subr.mxu0 %v41
  %613 = vmatpush1.msra.mxu0 %v40
  %614 = vmatprep.subr.mxu0 %v45
  %615 = vmatpush1.msra.mxu0 %v44
  %616 = vmatprep.subr.mxu0 %v49
  %617 = vmatpush1.msra.mxu0 %v48
  %618 = vmatprep.subr.mxu0 %v53
  %619 = vmatpush1.msra.mxu0 %v52
  %620 = vmatprep.subr.mxu0 %v57
  %621 = vmatpush1.msra.mxu0 %v56
  %622 = vmatprep.subr.mxu0 %v61
  %623 = vmatpush1.msra.mxu0 %v60
  %624 = vmatprep.subr.mxu0 %v65
  %625 = vmatpush1.msra.mxu0 %v64
  %626 = vmatprep.subr.mxu0 %v69
  %627 = vmatpush1.msra.mxu0 %v68
  %628 = vmatprep.subr.mxu0 %v73
  %629 = vmatpush1.msra.mxu0 %v72
  %630 = vmatprep.subr.mxu0 %v77
  %631 = vmatpush1.msra.mxu0 %v76
  %632 = vmatprep.subr.mxu0 %v81
  %633 = vmatpush1.msra.mxu0 %v80
  %634 = vmatprep.subr.mxu0 %v85
  %635 = vmatpush1.msra.mxu0 %v84
  %636 = vmatprep.subr.mxu0 %v89
  %637 = vmatpush1.msra.mxu0 %v88
  %638 = vmatprep.subr.mxu0 %v93
  %639 = vmatpush1.msra.mxu0 %v92
  %640 = vmatprep.subr.mxu0 %v97
  %641 = vmatpush1.msra.mxu0 %v96
  %642 = vmatprep.subr.mxu0 %v101
  %643 = vmatpush1.msra.mxu0 %v100
  %644 = vmatprep.subr.mxu0 %v105
  %645 = vmatpush1.msra.mxu0 %v104
  %646 = vmatprep.subr.mxu0 %v109
  %647 = vmatpush1.msra.mxu0 %v108
  %648 = vmatprep.subr.mxu0 %v113
  %649 = vmatpush1.msra.mxu0 %v112
  %650 = vmatprep.subr.mxu0 %v117
  %651 = vmatpush1.msra.mxu0 %v116
  %652 = vmatprep.subr.mxu0 %v121
  %653 = vmatpush1.msra.mxu0 %v120
  %654 = vmatprep.subr.mxu0 %v125
  %655 = vmatpush1.msra.mxu0 %v124
  %656 = vmatprep.subr.mxu0 %v129
  %657 = vmatpush1.msra.mxu0 %v128
  %658 = vmatprep.subr.mxu0 %v133
  %659 = vmatpush1.msra.mxu0 %v132
  %660 = vmatprep.subr.mxu0 %v137
  %661 = vmatpush1.msra.mxu0 %v136
  %662 = vmatprep.subr.mxu0 %v141
  %663 = vmatpush1.msra.mxu0 %v140
  %664 = vmatprep.subr.mxu0 %v145
  %665 = vmatpush1.msra.mxu0 %v144
  %666 = vmatprep.subr.mxu0 %v149
  %667 = vmatpush1.msra.mxu0 %v148
  %668 = vmatprep.subr.mxu0 %v153
  %669 = vmatpush1.msra.mxu0 %v152
  %670 = vmatprep.mubr.f32.mxu0 %v579
  %671 = vmatmul.mubr.f32.gmra.mrb[0].mxu0 %v571
  %v672 = vpop.f32.mrb[0].mxu0
  %v673 = vadd.f32 %v545, %v672
  %v674 = vpop.f32.mrb[0].mxu0
  %v675 = vadd.f32 %v549, %v674
  %676 = vdwg.mxu0
  %677 = vmatprep.subr.mxu0 %v157
  %678 = vmatpush1.msra.mxu0 %v156
  %679 = vmatprep.subr.mxu0 %v161
  %680 = vmatpush1.msra.mxu0 %v160
  %681 = vmatprep.subr.mxu0 %v165
  %682 = vmatpush1.msra.mxu0 %v164
  %683 = vmatprep.subr.mxu0 %v169
  %684 = vmatpush1.msra.mxu0 %v168
  %685 = vmatprep.subr.mxu0 %v173
  %686 = vmatpush1.msra.mxu0 %v172
  %687 = vmatprep.subr.mxu0 %v177
  %688 = vmatpush1.msra.mxu0 %v176
  %689 = vmatprep.subr.mxu0 %v181
  %690 = vmatpush1.msra.mxu0 %v180
  %691 = vmatprep.subr.mxu0 %v185
  %692 = vmatpush1.msra.mxu0 %v184
  %693 = vmatprep.subr.mxu0 %v189
  %694 = vmatpush1.msra.mxu0 %v188
  %695 = vmatprep.subr.mxu0 %v193
  %696 = vmatpush1.msra.mxu0 %v192
  %697 = vmatprep.subr.mxu0 %v197
  %698 = vmatpush1.msra.mxu0 %v196
  %699 = vmatprep.subr.mxu0 %v201
  %700 = vmatpush1.msra.mxu0 %v200
  %701 = vmatprep.subr.mxu0 %v205
  %702 = vmatpush1.msra.mxu0 %v204
  %703 = vmatprep.subr.mxu0 %v209
  %704 = vmatpush1.msra.mxu0 %v208
  %705 = vmatprep.subr.mxu0 %v213
  %706 = vmatpush1.msra.mxu0 %v212
  %707 = vmatprep.subr.mxu0 %v217
  %708 = vmatpush1.msra.mxu0 %v216
  %709 = vmatprep.subr.mxu0 %v221
  %710 = vmatpush1.msra.mxu0 %v220
  %711 = vmatprep.subr.mxu0 %v225
  %712 = vmatpush1.msra.mxu0 %v224
  %713 = vmatprep.subr.mxu0 %v229
  %714 = vmatpush1.msra.mxu0 %v228
  %715 = vmatprep.subr.mxu0 %v233
  %716 = vmatpush1.msra.mxu0 %v232
  %717 = vmatprep.subr.mxu0 %v237
  %718 = vmatpush1.msra.mxu0 %v236
  %719 = vmatprep.subr.mxu0 %v241
  %720 = vmatpush1.msra.mxu0 %v240
  %721 = vmatprep.subr.mxu0 %v245
  %722 = vmatpush1.msra.mxu0 %v244
  %723 = vmatprep.subr.mxu0 %v249
  %724 = vmatpush1.msra.mxu0 %v248
  %725 = vmatprep.subr.mxu0 %v253
  %726 = vmatpush1.msra.mxu0 %v252
  %727 = vmatprep.subr.mxu0 %v257
  %728 = vmatpush1.msra.mxu0 %v256
  %729 = vmatprep.subr.mxu0 %v261
  %730 = vmatpush1.msra.mxu0 %v260
  %731 = vmatprep.subr.mxu0 %v265
  %732 = vmatpush1.msra.mxu0 %v264
  %733 = vmatprep.subr.mxu0 %v269
  %734 = vmatpush1.msra.mxu0 %v268
  %735 = vmatprep.subr.mxu0 %v273
  %736 = vmatpush1.msra.mxu0 %v272
  %737 = vmatprep.subr.mxu0 %v277
  %738 = vmatpush1.msra.mxu0 %v276
  %739 = vmatprep.subr.mxu0 %v281
  %740 = vmatpush1.msra.mxu0 %v280
  %741 = vmatprep.mubr.f32.mxu0 %v580
  %742 = vmatmul.mubr.f32.gmra.mrb[0].mxu0 %v578
  %v743 = vpop.f32.mrb[0].mxu0
  %v744 = vadd.f32 %v673, %v743
  %v745 = vpop.f32.mrb[0].mxu0
  %v746 = vadd.f32 %v675, %v745
  %747 = vdwg.mxu0
  %748 = vmatprep.subr.mxu0 %v285
  %749 = vmatpush1.msra.mxu0 %v284
  %750 = vmatprep.subr.mxu0 %v289
  %751 = vmatpush1.msra.mxu0 %v288
  %752 = vmatprep.subr.mxu0 %v293
  %753 = vmatpush1.msra.mxu0 %v292
  %754 = vmatprep.subr.mxu0 %v297
  %755 = vmatpush1.msra.mxu0 %v296
  %756 = vmatprep.subr.mxu0 %v301
  %757 = vmatpush1.msra.mxu0 %v300
  %758 = vmatprep.subr.mxu0 %v305
  %759 = vmatpush1.msra.mxu0 %v304
  %760 = vmatprep.subr.mxu0 %v309
  %761 = vmatpush1.msra.mxu0 %v308
  %762 = vmatprep.subr.mxu0 %v313
  %763 = vmatpush1.msra.mxu0 %v312
  %764 = vmatprep.subr.mxu0 %v317
  %765 = vmatpush1.msra.mxu0 %v316
  %766 = vmatprep.subr.mxu0 %v321
  %767 = vmatpush1.msra.mxu0 %v320
  %768 = vmatprep.subr.mxu0 %v325
  %769 = vmatpush1.msra.mxu0 %v324
  %770 = vmatprep.subr.mxu0 %v329
  %771 = vmatpush1.msra.mxu0 %v328
  %772 = vmatprep.subr.mxu0 %v333
  %773 = vmatpush1.msra.mxu0 %v332
  %774 = vmatprep.subr.mxu0 %v337
  %775 = vmatpush1.msra.mxu0 %v336
  %776 = vmatprep.subr.mxu0 %v341
  %777 = vmatpush1.msra.mxu0 %v340
  %778 = vmatprep.subr.mxu0 %v345
  %779 = vmatpush1.msra.mxu0 %v344
  %780 = vmatprep.subr.mxu0 %v349
  %781 = vmatpush1.msra.mxu0 %v348
  %782 = vmatprep.subr.mxu0 %v353
  %783 = vmatpush1.msra.mxu0 %v352
  %784 = vmatprep.subr.mxu0 %v357
  %785 = vmatpush1.msra.mxu0 %v356
  %786 = vmatprep.subr.mxu0 %v361
  %787 = vmatpush1.msra.mxu0 %v360
  %788 = vmatprep.subr.mxu0 %v365
  %789 = vmatpush1.msra.mxu0 %v364
  %790 = vmatprep.subr.mxu0 %v369
  %791 = vmatpush1.msra.mxu0 %v368
  %792 = vmatprep.subr.mxu0 %v373
  %793 = vmatpush1.msra.mxu0 %v372
  %794 = vmatprep.subr.mxu0 %v377
  %795 = vmatpush1.msra.mxu0 %v376
  %796 = vmatprep.subr.mxu0 %v381
  %797 = vmatpush1.msra.mxu0 %v380
  %798 = vmatprep.subr.mxu0 %v385
  %799 = vmatpush1.msra.mxu0 %v384
  %800 = vmatprep.subr.mxu0 %v389
  %801 = vmatpush1.msra.mxu0 %v388
  %802 = vmatprep.subr.mxu0 %v393
  %803 = vmatpush1.msra.mxu0 %v392
  %804 = vmatprep.subr.mxu0 %v397
  %805 = vmatpush1.msra.mxu0 %v396
  %806 = vmatprep.subr.mxu0 %v401
  %807 = vmatpush1.msra.mxu0 %v400
  %808 = vmatprep.subr.mxu0 %v405
  %809 = vmatpush1.msra.mxu0 %v404
  %810 = vmatprep.subr.mxu0 %v409
  %811 = vmatpush1.msra.mxu0 %v408
  %812 = vmatprep.mubr.f32.mxu0 %v596
  %813 = vmatmul.mubr.f32.gmra.mrb[0].mxu0 %v588
  %v814 = vpop.f32.mrb[0].mxu0
  %v815 = vadd.f32 %v744, %v814
  %v816 = vpop.f32.mrb[0].mxu0
  %v817 = vadd.f32 %v746, %v816
  %818 = vdwg.mxu0
  %819 = vmatprep.subr.mxu0 %v413
  %820 = vmatpush1.msra.mxu0 %v412
  %821 = vmatprep.subr.mxu0 %v417
  %822 = vmatpush1.msra.mxu0 %v416
  %823 = vmatprep.subr.mxu0 %v421
  %824 = vmatpush1.msra.mxu0 %v420
  %825 = vmatprep.subr.mxu0 %v425
  %826 = vmatpush1.msra.mxu0 %v424
  %827 = vmatprep.subr.mxu0 %v429
  %828 = vmatpush1.msra.mxu0 %v428
  %829 = vmatprep.subr.mxu0 %v433
  %830 = vmatpush1.msra.mxu0 %v432
  %831 = vmatprep.subr.mxu0 %v437
  %832 = vmatpush1.msra.mxu0 %v436
  %833 = vmatprep.subr.mxu0 %v441
  %834 = vmatpush1.msra.mxu0 %v440
  %835 = vmatprep.subr.mxu0 %v445
  %836 = vmatpush1.msra.mxu0 %v444
  %837 = vmatprep.subr.mxu0 %v449
  %838 = vmatpush1.msra.mxu0 %v448
  %839 = vmatprep.subr.mxu0 %v453
  %840 = vmatpush1.msra.mxu0 %v452
  %841 = vmatprep.subr.mxu0 %v457
  %842 = vmatpush1.msra.mxu0 %v456
  %843 = vmatprep.subr.mxu0 %v461
  %844 = vmatpush1.msra.mxu0 %v460
  %845 = vmatprep.subr.mxu0 %v465
  %846 = vmatpush1.msra.mxu0 %v464
  %847 = vmatprep.subr.mxu0 %v469
  %848 = vmatpush1.msra.mxu0 %v468
  %849 = vmatprep.subr.mxu0 %v473
  %850 = vmatpush1.msra.mxu0 %v472
  %851 = vmatprep.subr.mxu0 %v477
  %852 = vmatpush1.msra.mxu0 %v476
  %853 = vmatprep.subr.mxu0 %v481
  %854 = vmatpush1.msra.mxu0 %v480
  %855 = vmatprep.subr.mxu0 %v485
  %856 = vmatpush1.msra.mxu0 %v484
  %857 = vmatprep.subr.mxu0 %v489
  %858 = vmatpush1.msra.mxu0 %v488
  %859 = vmatprep.subr.mxu0 %v493
  %860 = vmatpush1.msra.mxu0 %v492
  %861 = vmatprep.subr.mxu0 %v497
  %862 = vmatpush1.msra.mxu0 %v496
  %863 = vmatprep.subr.mxu0 %v501
  %864 = vmatpush1.msra.mxu0 %v500
  %865 = vmatprep.subr.mxu0 %v505
  %866 = vmatpush1.msra.mxu0 %v504
  %867 = vmatprep.subr.mxu0 %v509
  %868 = vmatpush1.msra.mxu0 %v508
  %869 = vmatprep.subr.mxu0 %v513
  %870 = vmatpush1.msra.mxu0 %v512
  %871 = vmatprep.subr.mxu0 %v517
  %872 = vmatpush1.msra.mxu0 %v516
  %873 = vmatprep.subr.mxu0 %v521
  %874 = vmatpush1.msra.mxu0 %v520
  %875 = vmatprep.subr.mxu0 %v525
  %876 = vmatpush1.msra.mxu0 %v524
  %877 = vmatprep.subr.mxu0 %v529
  %878 = vmatpush1.msra.mxu0 %v528
  %879 = vmatprep.subr.mxu0 %v533
  %880 = vmatpush1.msra.mxu0 %v532
  %881 = vmatprep.subr.mxu0 %v537
  %882 = vmatpush1.msra.mxu0 %v536
  %883 = vmatprep.mubr.f32.mxu0 %v597
  %884 = vmatmul.mubr.f32.gmra.mrb[0].mxu0 %v595
  %v885 = vpop.f32.mrb[0].mxu0
  %v886 = vadd.f32 %v815, %v885
  %v887 = vpop.f32.mrb[0].mxu0
  %v888 = vadd.f32 %v817, %v887
  %889 = vdwg.mxu0
  %890 = vmatprep.subr.mxu0 %v31
  %891 = vmatpush1.msra.mxu0 %v30
  %892 = vmatprep.subr.mxu0 %v35
  %893 = vmatpush1.msra.mxu0 %v34
  %894 = vmatprep.subr.mxu0 %v39
  %895 = vmatpush1.msra.mxu0 %v38
  %896 = vmatprep.subr.mxu0 %v43
  %897 = vmatpush1.msra.mxu0 %v42
  %898 = vmatprep.subr.mxu0 %v47
  %899 = vmatpush1.msra.mxu0 %v46
  %900 = vmatprep.subr.mxu0 %v51
  %901 = vmatpush1.msra.mxu0 %v50
  %902 = vmatprep.subr.mxu0 %v55
  %903 = vmatpush1.msra.mxu0 %v54
  %904 = vmatprep.subr.mxu0 %v59
  %905 = vmatpush1.msra.mxu0 %v58
  %906 = vmatprep.subr.mxu0 %v63
  %907 = vmatpush1.msra.mxu0 %v62
  %908 = vmatprep.subr.mxu0 %v67
  %909 = vmatpush1.msra.mxu0 %v66
  %910 = vmatprep.subr.mxu0 %v71
  %911 = vmatpush1.msra.mxu0 %v70
  %912 = vmatprep.subr.mxu0 %v75
  %913 = vmatpush1.msra.mxu0 %v74
  %914 = vmatprep.subr.mxu0 %v79
  %915 = vmatpush1.msra.mxu0 %v78
  %916 = vmatprep.subr.mxu0 %v83
  %917 = vmatpush1.msra.mxu0 %v82
  %918 = vmatprep.subr.mxu0 %v87
  %919 = vmatpush1.msra.mxu0 %v86
  %920 = vmatprep.subr.mxu0 %v91
  %921 = vmatpush1.msra.mxu0 %v90
  %922 = vmatprep.subr.mxu0 %v95
  %923 = vmatpush1.msra.mxu0 %v94
  %924 = vmatprep.subr.mxu0 %v99
  %925 = vmatpush1.msra.mxu0 %v98
  %926 = vmatprep.subr.mxu0 %v103
  %927 = vmatpush1.msra.mxu0 %v102
  %928 = vmatprep.subr.mxu0 %v107
  %929 = vmatpush1.msra.mxu0 %v106
  %930 = vmatprep.subr.mxu0 %v111
  %931 = vmatpush1.msra.mxu0 %v110
  %932 = vmatprep.subr.mxu0 %v115
  %933 = vmatpush1.msra.mxu0 %v114
  %934 = vmatprep.subr.mxu0 %v119
  %935 = vmatpush1.msra.mxu0 %v118
  %936 = vmatprep.subr.mxu0 %v123
  %937 = vmatpush1.msra.mxu0 %v122
  %938 = vmatprep.subr.mxu0 %v127
  %939 = vmatpush1.msra.mxu0 %v126
  %940 = vmatprep.subr.mxu0 %v131
  %941 = vmatpush1.msra.mxu0 %v130
  %942 = vmatprep.subr.mxu0 %v135
  %943 = vmatpush1.msra.mxu0 %v134
  %944 = vmatprep.subr.mxu0 %v139
  %945 = vmatpush1.msra.mxu0 %v138
  %946 = vmatprep.subr.mxu0 %v143
  %947 = vmatpush1.msra.mxu0 %v142
  %948 = vmatprep.subr.mxu0 %v147
  %949 = vmatpush1.msra.mxu0 %v146
  %950 = vmatprep.subr.mxu0 %v151
  %951 = vmatpush1.msra.mxu0 %v150
  %952 = vmatprep.subr.mxu0 %v155
  %953 = vmatpush1.msra.mxu0 %v154
  %954 = vmatprep.mubr.f32.mxu0 %v579
  %955 = vmatmul.mubr.f32.gmra.mrb[0].mxu0 %v571
  %v956 = vpop.f32.mrb[0].mxu0
  %v957 = vadd.f32 %v553, %v956
  %v958 = vpop.f32.mrb[0].mxu0
  %v959 = vadd.f32 %v557, %v958
  %960 = vdwg.mxu0
  %961 = vmatprep.subr.mxu0 %v159
  %962 = vmatpush1.msra.mxu0 %v158
  %963 = vmatprep.subr.mxu0 %v163
  %964 = vmatpush1.msra.mxu0 %v162
  %965 = vmatprep.subr.mxu0 %v167
  %966 = vmatpush1.msra.mxu0 %v166
  %967 = vmatprep.subr.mxu0 %v171
  %968 = vmatpush1.msra.mxu0 %v170
  %969 = vmatprep.subr.mxu0 %v175
  %970 = vmatpush1.msra.mxu0 %v174
  %971 = vmatprep.subr.mxu0 %v179
  %972 = vmatpush1.msra.mxu0 %v178
  %973 = vmatprep.subr.mxu0 %v183
  %974 = vmatpush1.msra.mxu0 %v182
  %975 = vmatprep.subr.mxu0 %v187
  %976 = vmatpush1.msra.mxu0 %v186
  %977 = vmatprep.subr.mxu0 %v191
  %978 = vmatpush1.msra.mxu0 %v190
  %979 = vmatprep.subr.mxu0 %v195
  %980 = vmatpush1.msra.mxu0 %v194
  %981 = vmatprep.subr.mxu0 %v199
  %982 = vmatpush1.msra.mxu0 %v198
  %983 = vmatprep.subr.mxu0 %v203
  %984 = vmatpush1.msra.mxu0 %v202
  %985 = vmatprep.subr.mxu0 %v207
  %986 = vmatpush1.msra.mxu0 %v206
  %987 = vmatprep.subr.mxu0 %v211
  %988 = vmatpush1.msra.mxu0 %v210
  %989 = vmatprep.subr.mxu0 %v215
  %990 = vmatpush1.msra.mxu0 %v214
  %991 = vmatprep.subr.mxu0 %v219
  %992 = vmatpush1.msra.mxu0 %v218
  %993 = vmatprep.subr.mxu0 %v223
  %994 = vmatpush1.msra.mxu0 %v222
  %995 = vmatprep.subr.mxu0 %v227
  %996 = vmatpush1.msra.mxu0 %v226
  %997 = vmatprep.subr.mxu0 %v231
  %998 = vmatpush1.msra.mxu0 %v230
  %999 = vmatprep.subr.mxu0 %v235
  %1000 = vmatpush1.msra.mxu0 %v234
  %1001 = vmatprep.subr.mxu0 %v239
  %1002 = vmatpush1.msra.mxu0 %v238
  %1003 = vmatprep.subr.mxu0 %v243
  %1004 = vmatpush1.msra.mxu0 %v242
  %1005 = vmatprep.subr.mxu0 %v247
  %1006 = vmatpush1.msra.mxu0 %v246
  %1007 = vmatprep.subr.mxu0 %v251
  %1008 = vmatpush1.msra.mxu0 %v250
  %1009 = vmatprep.subr.mxu0 %v255
  %1010 = vmatpush1.msra.mxu0 %v254
  %1011 = vmatprep.subr.mxu0 %v259
  %1012 = vmatpush1.msra.mxu0 %v258
  %1013 = vmatprep.subr.mxu0 %v263
  %1014 = vmatpush1.msra.mxu0 %v262
  %1015 = vmatprep.subr.mxu0 %v267
  %1016 = vmatpush1.msra.mxu0 %v266
  %1017 = vmatprep.subr.mxu0 %v271
  %1018 = vmatpush1.msra.mxu0 %v270
  %1019 = vmatprep.subr.mxu0 %v275
  %1020 = vmatpush1.msra.mxu0 %v274
  %1021 = vmatprep.subr.mxu0 %v279
  %1022 = vmatpush1.msra.mxu0 %v278
  %1023 = vmatprep.subr.mxu0 %v283
  %1024 = vmatpush1.msra.mxu0 %v282
  %1025 = vmatprep.mubr.f32.mxu0 %v580
  %1026 = vmatmul.mubr.f32.gmra.mrb[0].mxu0 %v578
  %v1027 = vpop.f32.mrb[0].mxu0
  %v1028 = vadd.f32 %v957, %v1027
  %v1029 = vpop.f32.mrb[0].mxu0
  %v1030 = vadd.f32 %v959, %v1029
  %1031 = vdwg.mxu0
  %1032 = vmatprep.subr.mxu0 %v287
  %1033 = vmatpush1.msra.mxu0 %v286
  %1034 = vmatprep.subr.mxu0 %v291
  %1035 = vmatpush1.msra.mxu0 %v290
  %1036 = vmatprep.subr.mxu0 %v295
  %1037 = vmatpush1.msra.mxu0 %v294
  %1038 = vmatprep.subr.mxu0 %v299
  %1039 = vmatpush1.msra.mxu0 %v298
  %1040 = vmatprep.subr.mxu0 %v303
  %1041 = vmatpush1.msra.mxu0 %v302
  %1042 = vmatprep.subr.mxu0 %v307
  %1043 = vmatpush1.msra.mxu0 %v306
  %1044 = vmatprep.subr.mxu0 %v311
  %1045 = vmatpush1.msra.mxu0 %v310
  %1046 = vmatprep.subr.mxu0 %v315
  %1047 = vmatpush1.msra.mxu0 %v314
  %1048 = vmatprep.subr.mxu0 %v319
  %1049 = vmatpush1.msra.mxu0 %v318
  %1050 = vmatprep.subr.mxu0 %v323
  %1051 = vmatpush1.msra.mxu0 %v322
  %1052 = vmatprep.subr.mxu0 %v327
  %1053 = vmatpush1.msra.mxu0 %v326
  %1054 = vmatprep.subr.mxu0 %v331
  %1055 = vmatpush1.msra.mxu0 %v330
  %1056 = vmatprep.subr.mxu0 %v335
  %1057 = vmatpush1.msra.mxu0 %v334
  %1058 = vmatprep.subr.mxu0 %v339
  %1059 = vmatpush1.msra.mxu0 %v338
  %1060 = vmatprep.subr.mxu0 %v343
  %1061 = vmatpush1.msra.mxu0 %v342
  %1062 = vmatprep.subr.mxu0 %v347
  %1063 = vmatpush1.msra.mxu0 %v346
  %1064 = vmatprep.subr.mxu0 %v351
  %1065 = vmatpush1.msra.mxu0 %v350
  %1066 = vmatprep.subr.mxu0 %v355
  %1067 = vmatpush1.msra.mxu0 %v354
  %1068 = vmatprep.subr.mxu0 %v359
  %1069 = vmatpush1.msra.mxu0 %v358
  %1070 = vmatprep.subr.mxu0 %v363
  %1071 = vmatpush1.msra.mxu0 %v362
  %1072 = vmatprep.subr.mxu0 %v367
  %1073 = vmatpush1.msra.mxu0 %v366
  %1074 = vmatprep.subr.mxu0 %v371
  %1075 = vmatpush1.msra.mxu0 %v370
  %1076 = vmatprep.subr.mxu0 %v375
  %1077 = vmatpush1.msra.mxu0 %v374
  %1078 = vmatprep.subr.mxu0 %v379
  %1079 = vmatpush1.msra.mxu0 %v378
  %1080 = vmatprep.subr.mxu0 %v383
  %1081 = vmatpush1.msra.mxu0 %v382
  %1082 = vmatprep.subr.mxu0 %v387
  %1083 = vmatpush1.msra.mxu0 %v386
  %1084 = vmatprep.subr.mxu0 %v391
  %1085 = vmatpush1.msra.mxu0 %v390
  %1086 = vmatprep.subr.mxu0 %v395
  %1087 = vmatpush1.msra.mxu0 %v394
  %1088 = vmatprep.subr.mxu0 %v399
  %1089 = vmatpush1.msra.mxu0 %v398
  %1090 = vmatprep.subr.mxu0 %v403
  %1091 = vmatpush1.msra.mxu0 %v402
  %1092 = vmatprep.subr.mxu0 %v407
  %1093 = vmatpush1.msra.mxu0 %v406
  %1094 = vmatprep.subr.mxu0 %v411
  %1095 = vmatpush1.msra.mxu0 %v410
  %1096 = vmatprep.mubr.f32.mxu0 %v596
  %1097 = vmatmul.mubr.f32.gmra.mrb[0].mxu0 %v588
  %v1098 = vpop.f32.mrb[0].mxu0
  %v1099 = vadd.f32 %v1028, %v1098
  %v1100 = vpop.f32.mrb[0].mxu0
  %v1101 = vadd.f32 %v1030, %v1100
  %1102 = vdwg.mxu0
  %1103 = vmatprep.subr.mxu0 %v415
  %1104 = vmatpush1.msra.mxu0 %v414
  %1105 = vmatprep.subr.mxu0 %v419
  %1106 = vmatpush1.msra.mxu0 %v418
  %1107 = vmatprep.subr.mxu0 %v423
  %1108 = vmatpush1.msra.mxu0 %v422
  %1109 = vmatprep.subr.mxu0 %v427
  %1110 = vmatpush1.msra.mxu0 %v426
  %1111 = vmatprep.subr.mxu0 %v431
  %1112 = vmatpush1.msra.mxu0 %v430
  %1113 = vmatprep.subr.mxu0 %v435
  %1114 = vmatpush1.msra.mxu0 %v434
  %1115 = vmatprep.subr.mxu0 %v439
  %1116 = vmatpush1.msra.mxu0 %v438
  %1117 = vmatprep.subr.mxu0 %v443
  %1118 = vmatpush1.msra.mxu0 %v442
  %1119 = vmatprep.subr.mxu0 %v447
  %1120 = vmatpush1.msra.mxu0 %v446
  %1121 = vmatprep.subr.mxu0 %v451
  %1122 = vmatpush1.msra.mxu0 %v450
  %1123 = vmatprep.subr.mxu0 %v455
  %1124 = vmatpush1.msra.mxu0 %v454
  %1125 = vmatprep.subr.mxu0 %v459
  %1126 = vmatpush1.msra.mxu0 %v458
  %1127 = vmatprep.subr.mxu0 %v463
  %1128 = vmatpush1.msra.mxu0 %v462
  %1129 = vmatprep.subr.mxu0 %v467
  %1130 = vmatpush1.msra.mxu0 %v466
  %1131 = vmatprep.subr.mxu0 %v471
  %1132 = vmatpush1.msra.mxu0 %v470
  %1133 = vmatprep.subr.mxu0 %v475
  %1134 = vmatpush1.msra.mxu0 %v474
  %1135 = vmatprep.subr.mxu0 %v479
  %1136 = vmatpush1.msra.mxu0 %v478
  %1137 = vmatprep.subr.mxu0 %v483
  %1138 = vmatpush1.msra.mxu0 %v482
  %1139 = vmatprep.subr.mxu0 %v487
  %1140 = vmatpush1.msra.mxu0 %v486
  %1141 = vmatprep.subr.mxu0 %v491
  %1142 = vmatpush1.msra.mxu0 %v490
  %1143 = vmatprep.subr.mxu0 %v495
  %1144 = vmatpush1.msra.mxu0 %v494
  %1145 = vmatprep.subr.mxu0 %v499
  %1146 = vmatpush1.msra.mxu0 %v498
  %1147 = vmatprep.subr.mxu0 %v503
  %1148 = vmatpush1.msra.mxu0 %v502
  %1149 = vmatprep.subr.mxu0 %v507
  %1150 = vmatpush1.msra.mxu0 %v506
  %1151 = vmatprep.subr.mxu0 %v511
  %1152 = vmatpush1.msra.mxu0 %v510
  %1153 = vmatprep.subr.mxu0 %v515
  %1154 = vmatpush1.msra.mxu0 %v514
  %1155 = vmatprep.subr.mxu0 %v519
  %1156 = vmatpush1.msra.mxu0 %v518
  %1157 = vmatprep.subr.mxu0 %v523
  %1158 = vmatpush1.msra.mxu0 %v522
  %1159 = vmatprep.subr.mxu0 %v527
  %1160 = vmatpush1.msra.mxu0 %v526
  %1161 = vmatprep.subr.mxu0 %v531
  %1162 = vmatpush1.msra.mxu0 %v530
  %1163 = vmatprep.subr.mxu0 %v535
  %1164 = vmatpush1.msra.mxu0 %v534
  %1165 = vmatprep.subr.mxu0 %v539
  %1166 = vmatpush1.msra.mxu0 %v538
  %1167 = vmatprep.mubr.f32.mxu0 %v597
  %1168 = vmatmul.mubr.f32.gmra.mrb[0].mxu0 %v595
  %v1169 = vpop.f32.mrb[0].mxu0
  %v1170 = vadd.f32 %v1099, %v1169
  %v1171 = vpop.f32.mrb[0].mxu0
  %v1172 = vadd.f32 %v1101, %v1171
  %1173 = vdwg.mxu0
  %vm1174 = vcmp.ge.f32.partialorder %v886, 0.0
  %vm1175 = vcmp.ge.f32.partialorder %v888, 0.0
  %vm1176 = vcmp.ge.f32.partialorder %v1170, 0.0
  %vm1177 = vcmp.ge.f32.partialorder %v1172, 0.0
  %v1178 = vmul.f32 %v886, 0.2
  %v1179 = vmul.f32 %v888, 0.2
  %v1180 = vmul.f32 %v1170, 0.2
  %v1181 = vmul.f32 %v1172, 0.2
  %v1182 = vsel %vm1174, %v886, %v1178
  %v1183 = vsel %vm1175, %v888, %v1179
  %v1184 = vsel %vm1176, %v1170, %v1180
  %v1185 = vsel %vm1177, %v1172, %v1181
  %v1186 = vld [vmem:[%s3] sm:$0xff]
  %v1187 = vld [vmem:[%s3 + $0x8] sm:$0xff]
  %v1188 = vld [vmem:[%s3 + $0x10] sm:$0xff]
  %v1189 = vld [vmem:[%s3 + $0x18] sm:$0xff]
  %v1190 = vld [vmem:[%s3 + $0x20] sm:$0xff]
  %v1191 = vld [vmem:[%s3 + $0x28] sm:$0xff]
  %v1192 = vld [vmem:[%s3 + $0x30] sm:$0xff]
  %v1193 = vld [vmem:[%s3 + $0x38] sm:$0xff]
  %v1194 = vld [vmem:[%s3 + $0x40] sm:$0xff]
  %v1195 = vld [vmem:[%s3 + $0x48] sm:$0xff]
  %v1196 = vld [vmem:[%s3 + $0x50] sm:$0xff]
  %v1197 = vld [vmem:[%s3 + $0x58] sm:$0xff]
  %v1198 = vld [vmem:[%s3 + $0x60] sm:$0xff]
  %v1199 = vld [vmem:[%s3 + $0x68] sm:$0xff]
  %v1200 = vld [vmem:[%s3 + $0x70] sm:$0xff]
  %v1201 = vld [vmem:[%s3 + $0x78] sm:$0xff]
  %v1202 = vld [vmem:[%s3 + $0x80] sm:$0xff]
  %v1203 = vld [vmem:[%s3 + $0x88] sm:$0xff]
  %v1204 = vld [vmem:[%s3 + $0x90] sm:$0xff]
  %v1205 = vld [vmem:[%s3 + $0x98] sm:$0xff]
  %v1206 = vld [vmem:[%s3 + $0xa0] sm:$0xff]
  %v1207 = vld [vmem:[%s3 + $0xa8] sm:$0xff]
  %v1208 = vld [vmem:[%s3 + $0xb0] sm:$0xff]
  %v1209 = vld [vmem:[%s3 + $0xb8] sm:$0xff]
  %v1210 = vld [vmem:[%s3 + $0xc0] sm:$0xff]
  %v1211 = vld [vmem:[%s3 + $0xc8] sm:$0xff]
  %v1212 = vld [vmem:[%s3 + $0xd0] sm:$0xff]
  %v1213 = vld [vmem:[%s3 + $0xd8] sm:$0xff]
  %v1214 = vld [vmem:[%s3 + $0xe0] sm:$0xff]
  %v1215 = vld [vmem:[%s3 + $0xe8] sm:$0xff]
  %v1216 = vld [vmem:[%s3 + $0xf0] sm:$0xff]
  %v1217 = vld [vmem:[%s3 + $0xf8] sm:$0xff]
  %v1218 = vld [vmem:[%s3 + $0x100] sm:$0xff]
  %v1219 = vld [vmem:[%s3 + $0x108] sm:$0xff]
  %v1220 = vld [vmem:[%s3 + $0x110] sm:$0xff]
  %v1221 = vld [vmem:[%s3 + $0x118] sm:$0xff]
  %v1222 = vld [vmem:[%s3 + $0x120] sm:$0xff]
  %v1223 = vld [vmem:[%s3 + $0x128] sm:$0xff]
  %v1224 = vld [vmem:[%s3 + $0x130] sm:$0xff]
  %v1225 = vld [vmem:[%s3 + $0x138] sm:$0xff]
  %v1226 = vld [vmem:[%s3 + $0x140] sm:$0xff]
  %v1227 = vld [vmem:[%s3 + $0x148] sm:$0xff]
  %v1228 = vld [vmem:[%s3 + $0x150] sm:$0xff]
  %v1229 = vld [vmem:[%s3 + $0x158] sm:$0xff]
  %v1230 = vld [vmem:[%s3 + $0x160] sm:$0xff]
  %v1231 = vld [vmem:[%s3 + $0x168] sm:$0xff]
  %v1232 = vld [vmem:[%s3 + $0x170] sm:$0xff]
  %v1233 = vld [vmem:[%s3 + $0x178] sm:$0xff]
  %v1234 = vld [vmem:[%s3 + $0x180] sm:$0xff]
  %v1235 = vld [vmem:[%s3 + $0x188] sm:$0xff]
  %v1236 = vld [vmem:[%s3 + $0x190] sm:$0xff]
  %v1237 = vld [vmem:[%s3 + $0x198] sm:$0xff]
  %v1238 = vld [vmem:[%s3 + $0x1a0] sm:$0xff]
  %v1239 = vld [vmem:[%s3 + $0x1a8] sm:$0xff]
  %v1240 = vld [vmem:[%s3 + $0x1b0] sm:$0xff]
  %v1241 = vld [vmem:[%s3 + $0x1b8] sm:$0xff]
  %v1242 = vld [vmem:[%s3 + $0x1c0] sm:$0xff]
  %v1243 = vld [vmem:[%s3 + $0x1c8] sm:$0xff]
  %v1244 = vld [vmem:[%s3 + $0x1d0] sm:$0xff]
  %v1245 = vld [vmem:[%s3 + $0x1d8] sm:$0xff]
  %v1246 = vld [vmem:[%s3 + $0x1e0] sm:$0xff]
  %v1247 = vld [vmem:[%s3 + $0x1e8] sm:$0xff]
  %v1248 = vld [vmem:[%s3 + $0x1f0] sm:$0xff]
  %v1249 = vld [vmem:[%s3 + $0x1f8] sm:$0xff]
  %v1250 = vld [vmem:[%s3 + $0x200] sm:$0xff]
  %v1251 = vld [vmem:[%s3 + $0x208] sm:$0xff]
  %v1252 = vld [vmem:[%s3 + $0x210] sm:$0xff]
  %v1253 = vld [vmem:[%s3 + $0x218] sm:$0xff]
  %v1254 = vld [vmem:[%s3 + $0x220] sm:$0xff]
  %v1255 = vld [vmem:[%s3 + $0x228] sm:$0xff]
  %v1256 = vld [vmem:[%s3 + $0x230] sm:$0xff]
  %v1257 = vld [vmem:[%s3 + $0x238] sm:$0xff]
  %v1258 = vld [vmem:[%s3 + $0x240] sm:$0xff]
  %v1259 = vld [vmem:[%s3 + $0x248] sm:$0xff]
  %v1260 = vld [vmem:[%s3 + $0x250] sm:$0xff]
  %v1261 = vld [vmem:[%s3 + $0x258] sm:$0xff]
  %v1262 = vld [vmem:[%s3 + $0x260] sm:$0xff]
  %v1263 = vld [vmem:[%s3 + $0x268] sm:$0xff]
  %v1264 = vld [vmem:[%s3 + $0x270] sm:$0xff]
  %v1265 = vld [vmem:[%s3 + $0x278] sm:$0xff]
  %v1266 = vld [vmem:[%s3 + $0x280] sm:$0xff]
  %v1267 = vld [vmem:[%s3 + $0x288] sm:$0xff]
  %v1268 = vld [vmem:[%s3 + $0x290] sm:$0xff]
  %v1269 = vld [vmem:[%s3 + $0x298] sm:$0xff]
  %v1270 = vld [vmem:[%s3 + $0x2a0] sm:$0xff]
  %v1271 = vld [vmem:[%s3 + $0x2a8] sm:$0xff]
  %v1272 = vld [vmem:[%s3 + $0x2b0] sm:$0xff]
  %v1273 = vld [vmem:[%s3 + $0x2b8] sm:$0xff]
  %v1274 = vld [vmem:[%s3 + $0x2c0] sm:$0xff]
  %v1275 = vld [vmem:[%s3 + $0x2c8] sm:$0xff]
  %v1276 = vld [vmem:[%s3 + $0x2d0] sm:$0xff]
  %v1277 = vld [vmem:[%s3 + $0x2d8] sm:$0xff]
  %v1278 = vld [vmem:[%s3 + $0x2e0] sm:$0xff]
  %v1279 = vld [vmem:[%s3 + $0x2e8] sm:$0xff]
  %v1280 = vld [vmem:[%s3 + $0x2f0] sm:$0xff]
  %v1281 = vld [vmem:[%s3 + $0x2f8] sm:$0xff]
  %v1282 = vld [vmem:[%s3 + $0x300] sm:$0xff]
  %v1283 = vld [vmem:[%s3 + $0x308] sm:$0xff]
  %v1284 = vld [vmem:[%s3 + $0x310] sm:$0xff]
  %v1285 = vld [vmem:[%s3 + $0x318] sm:$0xff]
  %v1286 = vld [vmem:[%s3 + $0x320] sm:$0xff]
  %v1287 = vld [vmem:[%s3 + $0x328] sm:$0xff]
  %v1288 = vld [vmem:[%s3 + $0x330] sm:$0xff]
  %v1289 = vld [vmem:[%s3 + $0x338] sm:$0xff]
  %v1290 = vld [vmem:[%s3 + $0x340] sm:$0xff]
  %v1291 = vld [vmem:[%s3 + $0x348] sm:$0xff]
  %v1292 = vld [vmem:[%s3 + $0x350] sm:$0xff]
  %v1293 = vld [vmem:[%s3 + $0x358] sm:$0xff]
  %v1294 = vld [vmem:[%s3 + $0x360] sm:$0xff]
  %v1295 = vld [vmem:[%s3 + $0x368] sm:$0xff]
  %v1296 = vld [vmem:[%s3 + $0x370] sm:$0xff]
  %v1297 = vld [vmem:[%s3 + $0x378] sm:$0xff]
  %v1298 = vld [vmem:[%s3 + $0x380] sm:$0xff]
  %v1299 = vld [vmem:[%s3 + $0x388] sm:$0xff]
  %v1300 = vld [vmem:[%s3 + $0x390] sm:$0xff]
  %v1301 = vld [vmem:[%s3 + $0x398] sm:$0xff]
  %v1302 = vld [vmem:[%s3 + $0x3a0] sm:$0xff]
  %v1303 = vld [vmem:[%s3 + $0x3a8] sm:$0xff]
  %v1304 = vld [vmem:[%s3 + $0x3b0] sm:$0xff]
  %v1305 = vld [vmem:[%s3 + $0x3b8] sm:$0xff]
  %v1306 = vld [vmem:[%s3 + $0x3c0] sm:$0xff]
  %v1307 = vld [vmem:[%s3 + $0x3c8] sm:$0xff]
  %v1308 = vld [vmem:[%s3 + $0x3d0] sm:$0xff]
  %v1309 = vld [vmem:[%s3 + $0x3d8] sm:$0xff]
  %v1310 = vld [vmem:[%s3 + $0x3e0] sm:$0xff]
  %v1311 = vld [vmem:[%s3 + $0x3e8] sm:$0xff]
  %v1312 = vld [vmem:[%s3 + $0x3f0] sm:$0xff]
  %v1313 = vld [vmem:[%s3 + $0x3f8] sm:$0xff]
  %v1314 = vld [vmem:[%s4] sm:$0x3]
  %v1316 = vlaneseq
  %v1317 = vshrl.u32 %v1316, 7
  %v1318 = vsub.s32 0, %v1317
  %v1319 = vrot.slane %v1314, %v1318
  %v1320 = vlaneseq
  %v1321 = vshrl.u32 %v1320, 7
  %v1322 = vsub.s32 1, %v1321
  %v1323 = vrot.slane %v1314, %v1322
  %1326 = vmatprep.subr.mxu0 %v1187
  %1327 = vmatpush1.msra.mxu0 %v1186
  %1328 = vmatprep.subr.mxu0 %v1189
  %1329 = vmatpush1.msra.mxu0 %v1188
  %1330 = vmatprep.subr.mxu0 %v1191
  %1331 = vmatpush1.msra.mxu0 %v1190
  %1332 = vmatprep.subr.mxu0 %v1193
  %1333 = vmatpush1.msra.mxu0 %v1192
  %1334 = vmatprep.subr.mxu0 %v1195
  %1335 = vmatpush1.msra.mxu0 %v1194
  %1336 = vmatprep.subr.mxu0 %v1197
  %1337 = vmatpush1.msra.mxu0 %v1196
  %1338 = vmatprep.subr.mxu0 %v1199
  %1339 = vmatpush1.msra.mxu0 %v1198
  %1340 = vmatprep.subr.mxu0 %v1201
  %1341 = vmatpush1.msra.mxu0 %v1200
  %1342 = vmatprep.subr.mxu0 %v1203
  %1343 = vmatpush1.msra.mxu0 %v1202
  %1344 = vmatprep.subr.mxu0 %v1205
  %1345 = vmatpush1.msra.mxu0 %v1204
  %1346 = vmatprep.subr.mxu0 %v1207
  %1347 = vmatpush1.msra.mxu0 %v1206
  %1348 = vmatprep.subr.mxu0 %v1209
  %1349 = vmatpush1.msra.mxu0 %v1208
  %1350 = vmatprep.subr.mxu0 %v1211
  %1351 = vmatpush1.msra.mxu0 %v1210
  %1352 = vmatprep.subr.mxu0 %v1213
  %1353 = vmatpush1.msra.mxu0 %v1212
  %1354 = vmatprep.subr.mxu0 %v1215
  %1355 = vmatpush1.msra.mxu0 %v1214
  %1356 = vmatprep.subr.mxu0 %v1217
  %1357 = vmatpush1.msra.mxu0 %v1216
  %1358 = vmatprep.subr.mxu0 %v1219
  %1359 = vmatpush1.msra.mxu0 %v1218
  %1360 = vmatprep.subr.mxu0 %v1221
  %1361 = vmatpush1.msra.mxu0 %v1220
  %1362 = vmatprep.subr.mxu0 %v1223
  %1363 = vmatpush1.msra.mxu0 %v1222
  %1364 = vmatprep.subr.mxu0 %v1225
  %1365 = vmatpush1.msra.mxu0 %v1224
  %1366 = vmatprep.subr.mxu0 %v1227
  %1367 = vmatpush1.msra.mxu0 %v1226
  %1368 = vmatprep.subr.mxu0 %v1229
  %1369 = vmatpush1.msra.mxu0 %v1228
  %1370 = vmatprep.subr.mxu0 %v1231
  %1371 = vmatpush1.msra.mxu0 %v1230
  %1372 = vmatprep.subr.mxu0 %v1233
  %1373 = vmatpush1.msra.mxu0 %v1232
  %1374 = vmatprep.subr.mxu0 %v1235
  %1375 = vmatpush1.msra.mxu0 %v1234
  %1376 = vmatprep.subr.mxu0 %v1237
  %1377 = vmatpush1.msra.mxu0 %v1236
  %1378 = vmatprep.subr.mxu0 %v1239
  %1379 = vmatpush1.msra.mxu0 %v1238
  %1380 = vmatprep.subr.mxu0 %v1241
  %1381 = vmatpush1.msra.mxu0 %v1240
  %1382 = vmatprep.subr.mxu0 %v1243
  %1383 = vmatpush1.msra.mxu0 %v1242
  %1384 = vmatprep.subr.mxu0 %v1245
  %1385 = vmatpush1.msra.mxu0 %v1244
  %1386 = vmatprep.subr.mxu0 %v1247
  %1387 = vmatpush1.msra.mxu0 %v1246
  %1388 = vmatprep.subr.mxu0 %v1249
  %1389 = vmatpush1.msra.mxu0 %v1248
  %1390 = vmatprep.mubr.f32.mxu0 %v1183
  %1391 = vmatmul.mubr.f32.gmra.mrb[0].mxu0 %v1182
  %v1392 = vpop.f32.mrb[0].mxu0
  %v1393 = vadd.f32 %v1319, %v1392
  %v1394 = vpop.f32.mrb[0].mxu0
  %v1395 = vadd.f32 %v1323, %v1394
  %1396 = vdwg.mxu0
  %1397 = vmatprep.subr.mxu0 %v1251
  %1398 = vmatpush1.msra.mxu0 %v1250
  %1399 = vmatprep.subr.mxu0 %v1253
  %1400 = vmatpush1.msra.mxu0 %v1252
  %1401 = vmatprep.subr.mxu0 %v1255
  %1402 = vmatpush1.msra.mxu0 %v1254
  %1403 = vmatprep.subr.mxu0 %v1257
  %1404 = vmatpush1.msra.mxu0 %v1256
  %1405 = vmatprep.subr.mxu0 %v1259
  %1406 = vmatpush1.msra.mxu0 %v1258
  %1407 = vmatprep.subr.mxu0 %v1261
  %1408 = vmatpush1.msra.mxu0 %v1260
  %1409 = vmatprep.subr.mxu0 %v1263
  %1410 = vmatpush1.msra.mxu0 %v1262
  %1411 = vmatprep.subr.mxu0 %v1265
  %1412 = vmatpush1.msra.mxu0 %v1264
  %1413 = vmatprep.subr.mxu0 %v1267
  %1414 = vmatpush1.msra.mxu0 %v1266
  %1415 = vmatprep.subr.mxu0 %v1269
  %1416 = vmatpush1.msra.mxu0 %v1268
  %1417 = vmatprep.subr.mxu0 %v1271
  %1418 = vmatpush1.msra.mxu0 %v1270
  %1419 = vmatprep.subr.mxu0 %v1273
  %1420 = vmatpush1.msra.mxu0 %v1272
  %1421 = vmatprep.subr.mxu0 %v1275
  %1422 = vmatpush1.msra.mxu0 %v1274
  %1423 = vmatprep.subr.mxu0 %v1277
  %1424 = vmatpush1.msra.mxu0 %v1276
  %1425 = vmatprep.subr.mxu0 %v1279
  %1426 = vmatpush1.msra.mxu0 %v1278
  %1427 = vmatprep.subr.mxu0 %v1281
  %1428 = vmatpush1.msra.mxu0 %v1280
  %1429 = vmatprep.subr.mxu0 %v1283
  %1430 = vmatpush1.msra.mxu0 %v1282
  %1431 = vmatprep.subr.mxu0 %v1285
  %1432 = vmatpush1.msra.mxu0 %v1284
  %1433 = vmatprep.subr.mxu0 %v1287
  %1434 = vmatpush1.msra.mxu0 %v1286
  %1435 = vmatprep.subr.mxu0 %v1289
  %1436 = vmatpush1.msra.mxu0 %v1288
  %1437 = vmatprep.subr.mxu0 %v1291
  %1438 = vmatpush1.msra.mxu0 %v1290
  %1439 = vmatprep.subr.mxu0 %v1293
  %1440 = vmatpush1.msra.mxu0 %v1292
  %1441 = vmatprep.subr.mxu0 %v1295
  %1442 = vmatpush1.msra.mxu0 %v1294
  %1443 = vmatprep.subr.mxu0 %v1297
  %1444 = vmatpush1.msra.mxu0 %v1296
  %1445 = vmatprep.subr.mxu0 %v1299
  %1446 = vmatpush1.msra.mxu0 %v1298
  %1447 = vmatprep.subr.mxu0 %v1301
  %1448 = vmatpush1.msra.mxu0 %v1300
  %1449 = vmatprep.subr.mxu0 %v1303
  %1450 = vmatpush1.msra.mxu0 %v1302
  %1451 = vmatprep.subr.mxu0 %v1305
  %1452 = vmatpush1.msra.mxu0 %v1304
  %1453 = vmatprep.subr.mxu0 %v1307
  %1454 = vmatpush1.msra.mxu0 %v1306
  %1455 = vmatprep.subr.mxu0 %v1309
  %1456 = vmatpush1.msra.mxu0 %v1308
  %1457 = vmatprep.subr.mxu0 %v1311
  %1458 = vmatpush1.msra.mxu0 %v1310
  %1459 = vmatprep.subr.mxu0 %v1313
  %1460 = vmatpush1.msra.mxu0 %v1312
  %1461 = vmatprep.mubr.f32.mxu0 %v1185
  %1462 = vmatmul.mubr.f32.gmra.mrb[0].mxu0 %v1184
  %v1463 = vpop.f32.mrb[0].mxu0
  %v1464 = vadd.f32 %v1393, %v1463
  %v1465 = vpop.f32.mrb[0].mxu0
  %v1466 = vadd.f32 %v1395, %v1465
  %1467 = vdwg.mxu0
  %vm1468 = vcmp.ge.f32.partialorder %v1464, 0.0
  %vm1469 = vcmp.ge.f32.partialorder %v1466, 0.0
  %v1470 = vmul.f32 %v1464, 0.2
  %v1471 = vmul.f32 %v1466, 0.2
  %v1472 = vsel %vm1468, %v1464, %v1470
  %v1473 = vsel %vm1469, %v1466, %v1471
  %v1474 = vld [vmem:[%s5] sm:$0xff]
  %v1475 = vld [vmem:[%s5 + $0x8] sm:$0xff]
  %v1476 = vld [vmem:[%s5 + $0x10] sm:$0xff]
  %v1477 = vld [vmem:[%s5 + $0x18] sm:$0xff]
  %v1478 = vld [vmem:[%s5 + $0x20] sm:$0xff]
  %v1479 = vld [vmem:[%s5 + $0x28] sm:$0xff]
  %v1480 = vld [vmem:[%s5 + $0x30] sm:$0xff]
  %v1481 = vld [vmem:[%s5 + $0x38] sm:$0xff]
  %v1482 = vld [vmem:[%s5 + $0x40] sm:$0xff]
  %v1483 = vld [vmem:[%s5 + $0x48] sm:$0xff]
  %v1484 = vld [vmem:[%s5 + $0x50] sm:$0xff]
  %v1485 = vld [vmem:[%s5 + $0x58] sm:$0xff]
  %v1486 = vld [vmem:[%s5 + $0x60] sm:$0xff]
  %v1487 = vld [vmem:[%s5 + $0x68] sm:$0xff]
  %v1488 = vld [vmem:[%s5 + $0x70] sm:$0xff]
  %v1489 = vld [vmem:[%s5 + $0x78] sm:$0xff]
  %v1490 = vld [vmem:[%s5 + $0x80] sm:$0xff]
  %v1491 = vld [vmem:[%s5 + $0x88] sm:$0xff]
  %v1492 = vld [vmem:[%s5 + $0x90] sm:$0xff]
  %v1493 = vld [vmem:[%s5 + $0x98] sm:$0xff]
  %v1494 = vld [vmem:[%s5 + $0xa0] sm:$0xff]
  %v1495 = vld [vmem:[%s5 + $0xa8] sm:$0xff]
  %v1496 = vld [vmem:[%s5 + $0xb0] sm:$0xff]
  %v1497 = vld [vmem:[%s5 + $0xb8] sm:$0xff]
  %v1498 = vld [vmem:[%s5 + $0xc0] sm:$0xff]
  %v1499 = vld [vmem:[%s5 + $0xc8] sm:$0xff]
  %v1500 = vld [vmem:[%s5 + $0xd0] sm:$0xff]
  %v1501 = vld [vmem:[%s5 + $0xd8] sm:$0xff]
  %v1502 = vld [vmem:[%s5 + $0xe0] sm:$0xff]
  %v1503 = vld [vmem:[%s5 + $0xe8] sm:$0xff]
  %v1504 = vld [vmem:[%s5 + $0xf0] sm:$0xff]
  %v1505 = vld [vmem:[%s5 + $0xf8] sm:$0xff]
  %v1506 = vld [vmem:[%s6] sm:$0x1]
  %v1508 = vlaneseq
  %v1509 = vshrl.u32 %v1508, 7
  %v1510 = vsub.s32 0, %v1509
  %v1511 = vrot.slane %v1506, %v1510
  %1513 = vmatprep.subr.mxu0 0.0
  %1514 = vmatpush1.msra.mxu0 %v1474
  %1515 = vmatprep.subr.mxu0 0.0
  %1516 = vmatpush1.msra.mxu0 %v1475
  %1517 = vmatprep.subr.mxu0 0.0
  %1518 = vmatpush1.msra.mxu0 %v1476
  %1519 = vmatprep.subr.mxu0 0.0
  %1520 = vmatpush1.msra.mxu0 %v1477
  %1521 = vmatprep.subr.mxu0 0.0
  %1522 = vmatpush1.msra.mxu0 %v1478
  %1523 = vmatprep.subr.mxu0 0.0
  %1524 = vmatpush1.msra.mxu0 %v1479
  %1525 = vmatprep.subr.mxu0 0.0
  %1526 = vmatpush1.msra.mxu0 %v1480
  %1527 = vmatprep.subr.mxu0 0.0
  %1528 = vmatpush1.msra.mxu0 %v1481
  %1529 = vmatprep.subr.mxu0 0.0
  %1530 = vmatpush1.msra.mxu0 %v1482
  %1531 = vmatprep.subr.mxu0 0.0
  %1532 = vmatpush1.msra.mxu0 %v1483
  %1533 = vmatprep.subr.mxu0 0.0
  %1534 = vmatpush1.msra.mxu0 %v1484
  %1535 = vmatprep.subr.mxu0 0.0
  %1536 = vmatpush1.msra.mxu0 %v1485
  %1537 = vmatprep.subr.mxu0 0.0
  %1538 = vmatpush1.msra.mxu0 %v1486
  %1539 = vmatprep.subr.mxu0 0.0
  %1540 = vmatpush1.msra.mxu0 %v1487
  %1541 = vmatprep.subr.mxu0 0.0
  %1542 = vmatpush1.msra.mxu0 %v1488
  %1543 = vmatprep.subr.mxu0 0.0
  %1544 = vmatpush1.msra.mxu0 %v1489
  %1545 = vmatprep.subr.mxu0 0.0
  %1546 = vmatpush1.msra.mxu0 %v1490
  %1547 = vmatprep.subr.mxu0 0.0
  %1548 = vmatpush1.msra.mxu0 %v1491
  %1549 = vmatprep.subr.mxu0 0.0
  %1550 = vmatpush1.msra.mxu0 %v1492
  %1551 = vmatprep.subr.mxu0 0.0
  %1552 = vmatpush1.msra.mxu0 %v1493
  %1553 = vmatprep.subr.mxu0 0.0
  %1554 = vmatpush1.msra.mxu0 %v1494
  %1555 = vmatprep.subr.mxu0 0.0
  %1556 = vmatpush1.msra.mxu0 %v1495
  %1557 = vmatprep.subr.mxu0 0.0
  %1558 = vmatpush1.msra.mxu0 %v1496
  %1559 = vmatprep.subr.mxu0 0.0
  %1560 = vmatpush1.msra.mxu0 %v1497
  %1561 = vmatprep.subr.mxu0 0.0
  %1562 = vmatpush1.msra.mxu0 %v1498
  %1563 = vmatprep.subr.mxu0 0.0
  %1564 = vmatpush1.msra.mxu0 %v1499
  %1565 = vmatprep.subr.mxu0 0.0
  %1566 = vmatpush1.msra.mxu0 %v1500
  %1567 = vmatprep.subr.mxu0 0.0
  %1568 = vmatpush1.msra.mxu0 %v1501
  %1569 = vmatprep.subr.mxu0 0.0
  %1570 = vmatpush1.msra.mxu0 %v1502
  %1571 = vmatprep.subr.mxu0 0.0
  %1572 = vmatpush1.msra.mxu0 %v1503
  %1573 = vmatprep.subr.mxu0 0.0
  %1574 = vmatpush1.msra.mxu0 %v1504
  %1575 = vmatprep.subr.mxu0 0.0
  %1576 = vmatpush1.msra.mxu0 %v1505
  %1577 = vmatprep.mubr.f32.mxu0 %v1473
  %1578 = vmatmul.mubr.f32.gmra.mrb[0].mxu0 %v1472
  %v1579 = vpop.f32.mrb[0].mxu0
  %v1580 = vadd.f32 %v1511, %v1579
  %v1581 = vpop.f32.mrb[0].mxu0
  %1582 = vdwg.mxu0
  %vm1583 = vcmask 66560
  %1584 = vst.msk [vmem:[%s7] sm:$0x3] %vm1583, %v1580
  // Predicated region
  $region30: #{dgcnn_partseg_forward.16} parent=0 // pred_check
    _
  $region31: #{dgcnn_partseg_forward.16} parent=0 // pred_check_branch
    %1586 = sbr.rel (0) target = $region33
  $region32: #{dgcnn_partseg_forward.16} parent=0 // pred_region
    _
  $region33: #{dgcnn_partseg_forward.16} parent=0 // pred_fallthru
    _
  // Predicated region
  $region34: #{dgcnn_partseg_forward.16} parent=0 // pred_check
    _
  $region35: #{dgcnn_partseg_forward.16} parent=0 // pred_check_branch
    %1588 = sbr.rel (0) target = $region37
  $region36: #{dgcnn_partseg_forward.16} parent=0 // pred_region
    _
  $region37: #{dgcnn_partseg_forward.16} parent=0 // pred_fallthru
    _

// kernel: dgcnn_partseg_forward.22
$region0: #{dgcnn_partseg_forward.22}
  #allocation0 [shape = 'u32[]', space=smem, size = 0x4, offset = 0x4, fixed_abs, tag = 'smem constant byte address 0x4 - core index']
  #allocation1 [shape = 'u32[144,128]{1,0:T(1,128)}', space=vmem, size = 0x12000, scoped, tag = 'internal scratch']
  %s0 = inlined_call_operand.vmem [shape: bf16[4,32,64], index: 0, kind: input, shape index: {}]
  %s1 = inlined_call_operand.vmem [shape: bf16[32,64], index: 1, kind: input, shape index: {}]
  %s2 = inlined_call_operand.vmem [shape: bf16[64,64], index: 2, kind: input, shape index: {}]
  %s3 = inlined_call_operand.vmem [shape: bf16[64,64], index: 3, kind: input, shape index: {}]
  %s4 = inlined_call_operand.vmem [shape: f32[1,64], index: 4, kind: input, shape index: {}]
  %s5 = inlined_call_operand.vmem [shape: bf16[32,64], index: 5, kind: output, shape index: {}]
  %s6 = sld [smem:[#allocation0]]
  $region30: #{dgcnn_partseg_forward.22} parent=0
    _
  %s8 = ssub.s32 1, %s6
  %s9 = scalar_select 0, %s8, %s6
  // Predicated region
  $region2: #{dgcnn_partseg_forward.22} parent=0 // pred_check
    _
  $region3: #{dgcnn_partseg_forward.22} parent=0 // pred_check_branch
    %11 = sbr.rel (0) target = $region5
  $region4: #{dgcnn_partseg_forward.22} parent=0 // pred_region
    _
  $region5: #{dgcnn_partseg_forward.22} parent=0 // pred_fallthru
    _
  // Predicated region
  $region6: #{dgcnn_partseg_forward.22} parent=0 // pred_check
    _
  $region7: #{dgcnn_partseg_forward.22} parent=0 // pred_check_branch
    %13 = sbr.rel (0) target = $region9
  $region8: #{dgcnn_partseg_forward.22} parent=0 // pred_region
    _
  $region9: #{dgcnn_partseg_forward.22} parent=0 // pred_fallthru
    _
  // Predicated region
  $region10: #{dgcnn_partseg_forward.22} parent=0 // pred_check
    _
  $region11: #{dgcnn_partseg_forward.22} parent=0 // pred_check_branch
    %15 = sbr.rel (0) target = $region13
  $region12: #{dgcnn_partseg_forward.22} parent=0 // pred_region
    _
  $region13: #{dgcnn_partseg_forward.22} parent=0 // pred_fallthru
    _
  // Predicated region
  $region14: #{dgcnn_partseg_forward.22} parent=0 // pred_check
    _
  $region15: #{dgcnn_partseg_forward.22} parent=0 // pred_check_branch
    %17 = sbr.rel (0) target = $region17
  $region16: #{dgcnn_partseg_forward.22} parent=0 // pred_region
    _
  $region17: #{dgcnn_partseg_forward.22} parent=0 // pred_fallthru
    _
  // Predicated region
  $region18: #{dgcnn_partseg_forward.22} parent=0 // pred_check
    _
  $region19: #{dgcnn_partseg_forward.22} parent=0 // pred_check_branch
    %19 = sbr.rel (0) target = $region21
  $region20: #{dgcnn_partseg_forward.22} parent=0 // pred_region
    _
  $region21: #{dgcnn_partseg_forward.22} parent=0 // pred_fallthru
    _
  %v21 = vld [vmem:[%s0] sm:$0xf]
  %v22 = vld [vmem:[%s0 + $0x4] sm:$0xf]
  %v23 = vld [vmem:[%s0 + $0x8] sm:$0xf]
  %v24 = vld [vmem:[%s0 + $0xc] sm:$0xf]
  %v25 = vld [vmem:[%s0 + $0x10] sm:$0xf]
  %v26 = vld [vmem:[%s0 + $0x14] sm:$0xf]
  %v27 = vld [vmem:[%s0 + $0x18] sm:$0xf]
  %v28 = vld [vmem:[%s0 + $0x1c] sm:$0xf]
  %v29 = vld [vmem:[%s0 + $0x20] sm:$0xf]
  %v30 = vld [vmem:[%s0 + $0x24] sm:$0xf]
  %v31 = vld [vmem:[%s0 + $0x28] sm:$0xf]
  %v32 = vld [vmem:[%s0 + $0x2c] sm:$0xf]
  %v33 = vld [vmem:[%s0 + $0x30] sm:$0xf]
  %v34 = vld [vmem:[%s0 + $0x34] sm:$0xf]
  %v35 = vld [vmem:[%s0 + $0x38] sm:$0xf]
  %v36 = vld [vmem:[%s0 + $0x3c] sm:$0xf]
  %v37 = vld [vmem:[%s2] sm:$0xf]
  %v38 = vld [vmem:[%s2 + $0x4] sm:$0xf]
  %v39 = vld [vmem:[%s2 + $0x8] sm:$0xf]
  %v40 = vld [vmem:[%s2 + $0xc] sm:$0xf]
  %v41 = vld [vmem:[%s2 + $0x10] sm:$0xf]
  %v42 = vld [vmem:[%s2 + $0x14] sm:$0xf]
  %v43 = vld [vmem:[%s2 + $0x18] sm:$0xf]
  %v44 = vld [vmem:[%s2 + $0x1c] sm:$0xf]
  %v61 = vunpack.c.l.b16 %v21
  %v62 = vunpack.c.l.b16 %v22
  %v63 = vunpack.c.l.b16 %v23
  %v64 = vunpack.c.l.b16 %v24
  %v65 = vunpack.c.l.b16 %v25
  %v66 = vunpack.c.l.b16 %v26
  %v67 = vunpack.c.l.b16 %v27
  %v68 = vunpack.c.l.b16 %v28
  %v69 = vunpack.c.l.b16 %v29
  %v70 = vunpack.c.l.b16 %v30
  %v71 = vunpack.c.l.b16 %v31
  %v72 = vunpack.c.l.b16 %v32
  %v73 = vunpack.c.l.b16 %v33
  %v74 = vunpack.c.l.b16 %v34
  %v75 = vunpack.c.l.b16 %v35
  %v76 = vunpack.c.l.b16 %v36
  %v77 = vpack.c.b16 %v62, %v61
  %v78 = vpack.c.b16 %v64, %v63
  %v79 = vpack.c.b16 %v66, %v65
  %v80 = vpack.c.b16 %v68, %v67
  %v81 = vpack.c.b16 %v70, %v69
  %v82 = vpack.c.b16 %v72, %v71
  %v83 = vpack.c.b16 %v74, %v73
  %v84 = vpack.c.b16 %v76, %v75
  %v93 = vunpack.c.l.b16 %v37
  %v94 = vunpack.c.l.b16 %v38
  %v95 = vunpack.c.l.b16 %v39
  %v96 = vunpack.c.l.b16 %v40
  %v97 = vunpack.c.l.b16 %v41
  %v98 = vunpack.c.l.b16 %v42
  %v99 = vunpack.c.l.b16 %v43
  %v100 = vunpack.c.l.b16 %v44
  %v101 = vpack.c.b16 %v94, %v93
  %v102 = vpack.c.b16 %v96, %v95
  %v103 = vpack.c.b16 %v98, %v97
  %v104 = vpack.c.b16 %v100, %v99
  %vm109 = vcmask 523264
  %v111 = vsel %vm109, %v77, 0
  %v114 = vsel %vm109, %v78, 0
  %v117 = vsel %vm109, %v79, 0
  %v120 = vsel %vm109, %v80, 0
  %v123 = vsel %vm109, %v81, 0
  %v126 = vsel %vm109, %v82, 0
  %v129 = vsel %vm109, %v83, 0
  %v132 = vsel %vm109, %v84, 0
  %134 = vmatprep.subr.bf16.mxu0 0
  %135 = vmatpush1.bf16.msra.mxu0 %v101
  %136 = vmatprep.subr.bf16.mxu0 0
  %137 = vmatpush1.bf16.msra.mxu0 %v102
  %138 = vmatprep.subr.bf16.mxu0 0
  %139 = vmatpush1.bf16.msra.mxu0 %v103
  %140 = vmatprep.subr.bf16.mxu0 0
  %141 = vmatpush1.bf16.msra.mxu0 %v104
  %142 = vmatprep.subr.bf16.mxu0 0
  %143 = vmatpush1.bf16.msra.mxu0 0
  %144 = vmatprep.subr.bf16.mxu0 0
  %145 = vmatpush1.bf16.msra.mxu0 0
  %146 = vmatprep.subr.bf16.mxu0 0
  %147 = vmatpush1.bf16.msra.mxu0 0
  %148 = vmatprep.subr.bf16.mxu0 0
  %149 = vmatpush1.bf16.msra.mxu0 0
  %150 = vmatprep.subr.bf16.mxu0 0
  %151 = vmatpush1.bf16.msra.mxu0 0
  %152 = vmatprep.subr.bf16.mxu0 0
  %153 = vmatpush1.bf16.msra.mxu0 0
  %154 = vmatprep.subr.bf16.mxu0 0
  %155 = vmatpush1.bf16.msra.mxu0 0
  %156 = vmatprep.subr.bf16.mxu0 0
  %157 = vmatpush1.bf16.msra.mxu0 0
  %158 = vmatprep.subr.bf16.mxu0 0
  %159 = vmatpush1.bf16.msra.mxu0 0
  %160 = vmatprep.subr.bf16.mxu0 0
  %161 = vmatpush1.bf16.msra.mxu0 0
  %162 = vmatprep.subr.bf16.mxu0 0
  %163 = vmatpush1.bf16.msra.mxu0 0
  %164 = vmatprep.subr.bf16.mxu0 0
  %165 = vmatpush1.bf16.msra.mxu0 0
  %166 = vmatprep.mubr.bf16.mxu0 0
  %167 = vmatmul.mubr.bf16.gmra.mrb[0].mxu0 %v111
  %v168 = vpop.f32.mrb[0].mxu0
  %v169 = vadd.f32 0.0, %v168
  %v170 = vpop.f32.mrb[0].mxu0
  %v171 = vpop.f32.mrb[0].mxu0
  %v172 = vadd.f32 0.0, %v171
  %v173 = vpop.f32.mrb[0].mxu0
  %174 = vmatprep.mubr.bf16.mxu0 0
  %175 = vmatmul.mubr.bf16.gmra.mrb[0].mxu0 %v114
  %v176 = vpop.f32.mrb[0].mxu0
  %v177 = vadd.f32 0.0, %v176
  %v178 = vpop.f32.mrb[0].mxu0
  %v179 = vpop.f32.mrb[0].mxu0
  %v180 = vadd.f32 0.0, %v179
  %v181 = vpop.f32.mrb[0].mxu0
  %182 = vmatprep.mubr.bf16.mxu0 0
  %183 = vmatmul.mubr.bf16.gmra.mrb[0].mxu0 %v117
  %v184 = vpop.f32.mrb[0].mxu0
  %v185 = vadd.f32 0.0, %v184
  %v186 = vpop.f32.mrb[0].mxu0
  %v187 = vpop.f32.mrb[0].mxu0
  %v188 = vadd.f32 0.0, %v187
  %v189 = vpop.f32.mrb[0].mxu0
  %190 = vmatprep.mubr.bf16.mxu0 0
  %191 = vmatmul.mubr.bf16.gmra.mrb[0].mxu0 %v120
  %v192 = vpop.f32.mrb[0].mxu0
  %v193 = vadd.f32 0.0, %v192
  %v194 = vpop.f32.mrb[0].mxu0
  %v195 = vpop.f32.mrb[0].mxu0
  %v196 = vadd.f32 0.0, %v195
  %v197 = vpop.f32.mrb[0].mxu0
  %198 = vmatprep.mubr.bf16.mxu0 0
  %199 = vmatmul.mubr.bf16.gmra.mrb[0].mxu0 %v123
  %v200 = vpop.f32.mrb[0].mxu0
  %v201 = vadd.f32 0.0, %v200
  %v202 = vpop.f32.mrb[0].mxu0
  %v203 = vpop.f32.mrb[0].mxu0
  %v204 = vadd.f32 0.0, %v203
  %v205 = vpop.f32.mrb[0].mxu0
  %206 = vmatprep.mubr.bf16.mxu0 0
  %207 = vmatmul.mubr.bf16.gmra.mrb[0].mxu0 %v126
  %v208 = vpop.f32.mrb[0].mxu0
  %v209 = vadd.f32 0.0, %v208
  %v210 = vpop.f32.mrb[0].mxu0
  %v211 = vpop.f32.mrb[0].mxu0
  %v212 = vadd.f32 0.0, %v211
  %v213 = vpop.f32.mrb[0].mxu0
  %214 = vmatprep.mubr.bf16.mxu0 0
  %215 = vmatmul.mubr.bf16.gmra.mrb[0].mxu0 %v129
  %v216 = vpop.f32.mrb[0].mxu0
  %v217 = vadd.f32 0.0, %v216
  %v218 = vpop.f32.mrb[0].mxu0
  %v219 = vpop.f32.mrb[0].mxu0
  %v220 = vadd.f32 0.0, %v219
  %v221 = vpop.f32.mrb[0].mxu0
  %222 = vmatprep.mubr.bf16.mxu0 0
  %223 = vmatmul.mubr.bf16.gmra.mrb[0].mxu0 %v132
  %v224 = vpop.f32.mrb[0].mxu0
  %v225 = vadd.f32 0.0, %v224
  %v226 = vpop.f32.mrb[0].mxu0
  %v227 = vpop.f32.mrb[0].mxu0
  %v228 = vadd.f32 0.0, %v227
  %v229 = vpop.f32.mrb[0].mxu0
  %230 = vdwg.mxu0
  %v231 = vld [vmem:[%s1] sm:$0xf]
  %v232 = vld [vmem:[%s1 + $0x4] sm:$0xf]
  %v233 = vld [vmem:[%s1 + $0x8] sm:$0xf]
  %v234 = vld [vmem:[%s1 + $0xc] sm:$0xf]
  %v235 = vld [vmem:[%s3] sm:$0xf]
  %v236 = vld [vmem:[%s3 + $0x4] sm:$0xf]
  %v237 = vld [vmem:[%s3 + $0x8] sm:$0xf]
  %v238 = vld [vmem:[%s3 + $0xc] sm:$0xf]
  %v239 = vld [vmem:[%s3 + $0x10] sm:$0xf]
  %v240 = vld [vmem:[%s3 + $0x14] sm:$0xf]
  %v241 = vld [vmem:[%s3 + $0x18] sm:$0xf]
  %v242 = vld [vmem:[%s3 + $0x1c] sm:$0xf]
  %v247 = vunpack.c.l.b16 %v231
  %v248 = vunpack.c.l.b16 %v232
  %v249 = vunpack.c.l.b16 %v233
  %v250 = vunpack.c.l.b16 %v234
  %v251 = vpack.c.b16 %v248, %v247
  %v252 = vpack.c.b16 %v250, %v249
  %v261 = vunpack.c.l.b16 %v235
  %v262 = vunpack.c.l.b16 %v236
  %v263 = vunpack.c.l.b16 %v237
  %v264 = vunpack.c.l.b16 %v238
  %v265 = vunpack.c.l.b16 %v239
  %v266 = vunpack.c.l.b16 %v240
  %v267 = vunpack.c.l.b16 %v241
  %v268 = vunpack.c.l.b16 %v242
  %v269 = vpack.c.b16 %v262, %v261
  %v270 = vpack.c.b16 %v264, %v263
  %v271 = vpack.c.b16 %v266, %v265
  %v272 = vpack.c.b16 %v268, %v267
  %v278 = vsel %vm109, %v251, 0
  %v281 = vsel %vm109, %v252, 0
  %283 = vmatprep.subr.bf16.mxu0 0
  %284 = vmatpush1.bf16.msra.mxu0 %v269
  %285 = vmatprep.subr.bf16.mxu0 0
  %286 = vmatpush1.bf16.msra.mxu0 %v270
  %287 = vmatprep.subr.bf16.mxu0 0
  %288 = vmatpush1.bf16.msra.mxu0 %v271
  %289 = vmatprep.subr.bf16.mxu0 0
  %290 = vmatpush1.bf16.msra.mxu0 %v272
  %291 = vmatprep.subr.bf16.mxu0 0
  %292 = vmatpush1.bf16.msra.mxu0 0
  %293 = vmatprep.subr.bf16.mxu0 0
  %294 = vmatpush1.bf16.msra.mxu0 0
  %295 = vmatprep.subr.bf16.mxu0 0
  %296 = vmatpush1.bf16.msra.mxu0 0
  %297 = vmatprep.subr.bf16.mxu0 0
  %298 = vmatpush1.bf16.msra.mxu0 0
  %299 = vmatprep.subr.bf16.mxu0 0
  %300 = vmatpush1.bf16.msra.mxu0 0
  %301 = vmatprep.subr.bf16.mxu0 0
  %302 = vmatpush1.bf16.msra.mxu0 0
  %303 = vmatprep.subr.bf16.mxu0 0
  %304 = vmatpush1.bf16.msra.mxu0 0
  %305 = vmatprep.subr.bf16.mxu0 0
  %306 = vmatpush1.bf16.msra.mxu0 0
  %307 = vmatprep.subr.bf16.mxu0 0
  %308 = vmatpush1.bf16.msra.mxu0 0
  %309 = vmatprep.subr.bf16.mxu0 0
  %310 = vmatpush1.bf16.msra.mxu0 0
  %311 = vmatprep.subr.bf16.mxu0 0
  %312 = vmatpush1.bf16.msra.mxu0 0
  %313 = vmatprep.subr.bf16.mxu0 0
  %314 = vmatpush1.bf16.msra.mxu0 0
  %315 = vmatprep.mubr.bf16.mxu0 0
  %316 = vmatmul.mubr.bf16.gmra.mrb[0].mxu0 %v278
  %v317 = vpop.f32.mrb[0].mxu0
  %v318 = vadd.f32 0.0, %v317
  %v319 = vpop.f32.mrb[0].mxu0
  %v320 = vpop.f32.mrb[0].mxu0
  %v321 = vadd.f32 0.0, %v320
  %v322 = vpop.f32.mrb[0].mxu0
  %323 = vmatprep.mubr.bf16.mxu0 0
  %324 = vmatmul.mubr.bf16.gmra.mrb[0].mxu0 %v281
  %v325 = vpop.f32.mrb[0].mxu0
  %v326 = vadd.f32 0.0, %v325
  %v327 = vpop.f32.mrb[0].mxu0
  %v328 = vpop.f32.mrb[0].mxu0
  %v329 = vadd.f32 0.0, %v328
  %v330 = vpop.f32.mrb[0].mxu0
  %331 = vdwg.mxu0
  %v332 = vsel %vm109, %v169, -inf
  %v333 = vsel %vm109, %v185, -inf
  %v334 = vmax.f32 %v332, %v333
  %v335 = vsel %vm109, %v201, -inf
  %v336 = vmax.f32 %v334, %v335
  %v337 = vsel %vm109, %v217, -inf
  %v338 = vmax.f32 %v336, %v337
  %v339 = vsel %vm109, %v172, -inf
  %v340 = vsel %vm109, %v188, -inf
  %v341 = vmax.f32 %v339, %v340
  %v342 = vsel %vm109, %v204, -inf
  %v343 = vmax.f32 %v341, %v342
  %v344 = vsel %vm109, %v220, -inf
  %v345 = vmax.f32 %v343, %v344
  %v346 = vsel %vm109, %v177, -inf
  %v347 = vsel %vm109, %v193, -inf
  %v348 = vmax.f32 %v346, %v347
  %v349 = vsel %vm109, %v209, -inf
  %v350 = vmax.f32 %v348, %v349
  %v351 = vsel %vm109, %v225, -inf
  %v352 = vmax.f32 %v350, %v351
  %v353 = vsel %vm109, %v180, -inf
  %v354 = vsel %vm109, %v196, -inf
  %v355 = vmax.f32 %v353, %v354
  %v356 = vsel %vm109, %v212, -inf
  %v357 = vmax.f32 %v355, %v356
  %v358 = vsel %vm109, %v228, -inf
  %v359 = vmax.f32 %v357, %v358
  %v360 = vadd.f32 %v338, %v318
  %v361 = vadd.f32 %v345, %v321
  %v362 = vadd.f32 %v352, %v326
  %v363 = vadd.f32 %v359, %v329
  %v364 = vld [vmem:[%s4] sm:$0x1]
  %v366 = vlaneseq
  %v367 = vshrl.u32 %v366, 7
  %v368 = vsub.s32 0, %v367
  %v369 = vrot.slane %v364, %v368
  %v371 = vadd.f32 %v360, %v369
  %v372 = vadd.f32 %v361, %v369
  %v373 = vadd.f32 %v362, %v369
  %v374 = vadd.f32 %v363, %v369
  %vm375 = vcmp.ge.f32.partialorder %v371, 0.0
  %vm376 = vcmp.ge.f32.partialorder %v372, 0.0
  %vm377 = vcmp.ge.f32.partialorder %v373, 0.0
  %vm378 = vcmp.ge.f32.partialorder %v374, 0.0
  %v379 = vmul.f32 %v371, 0.2
  %v380 = vmul.f32 %v372, 0.2
  %v381 = vmul.f32 %v373, 0.2
  %v382 = vmul.f32 %v374, 0.2
  %v383 = vsel %vm375, %v371, %v379
  %v384 = vsel %vm376, %v372, %v380
  %v385 = vsel %vm377, %v373, %v381
  %v386 = vsel %vm378, %v374, %v382
  %v387 = vpack.c.bf16 %v384, %v383
  %v388 = vpack.c.bf16 %v386, %v385
  %v391 = vunpack.c.l.b16 %v387
  %v392 = vunpack.c.h.b16 %v387
  %v393 = vunpack.c.l.b16 %v388
  %v394 = vunpack.c.h.b16 %v388
  %v395 = vpack.c.b16 %v391, %v391
  %v396 = vpack.c.b16 %v392, %v392
  %v397 = vpack.c.b16 %v393, %v393
  %v398 = vpack.c.b16 %v394, %v394
  %vm403 = vcmask 519168
  %404 = vst.msk [vmem:[%s5] sm:$0xf] %vm403, %v395
  %405 = vst.msk [vmem:[%s5 + $0x4] sm:$0xf] %vm403, %v396
  %406 = vst.msk [vmem:[%s5 + $0x8] sm:$0xf] %vm403, %v397
  %407 = vst.msk [vmem:[%s5 + $0xc] sm:$0xf] %vm403, %v398
  // Predicated region
  $region22: #{dgcnn_partseg_forward.22} parent=0 // pred_check
    _
  $region23: #{dgcnn_partseg_forward.22} parent=0 // pred_check_branch
    %409 = sbr.rel (0) target = $region25
  $region24: #{dgcnn_partseg_forward.22} parent=0 // pred_region
    _
  $region25: #{dgcnn_partseg_forward.22} parent=0 // pred_fallthru
    _
  // Predicated region
  $region26: #{dgcnn_partseg_forward.22} parent=0 // pred_check
    _
  $region27: #{dgcnn_partseg_forward.22} parent=0 // pred_check_branch
    %411 = sbr.rel (0) target = $region29
  $region28: #{dgcnn_partseg_forward.22} parent=0 // pred_region
    _
  $region29: #{dgcnn_partseg_forward.22} parent=0 // pred_fallthru
    _

// kernel: dgcnn_partseg_forward.20
$region0: #{dgcnn_partseg_forward.20}
  #allocation0 [shape = 'u32[]', space=smem, size = 0x4, offset = 0x4, fixed_abs, tag = 'smem constant byte address 0x4 - core index']
  #allocation1 [shape = 'u32[144,128]{1,0:T(1,128)}', space=vmem, size = 0x12000, scoped, tag = 'internal scratch']
  %s0 = inlined_call_operand.vmem [shape: bf16[4,32,64], index: 0, kind: input, shape index: {}]
  %s1 = inlined_call_operand.vmem [shape: bf16[32,64], index: 1, kind: input, shape index: {}]
  %s2 = inlined_call_operand.vmem [shape: bf16[64,64], index: 2, kind: input, shape index: {}]
  %s3 = inlined_call_operand.vmem [shape: bf16[64,64], index: 3, kind: input, shape index: {}]
  %s4 = inlined_call_operand.vmem [shape: f32[1,64], index: 4, kind: input, shape index: {}]
  %s5 = inlined_call_operand.vmem [shape: bf16[64,64], index: 5, kind: input, shape index: {}]
  %s6 = inlined_call_operand.vmem [shape: f32[1,64], index: 6, kind: input, shape index: {}]
  %s7 = inlined_call_operand.vmem [shape: bf16[32,64], index: 7, kind: output, shape index: {}]
  %s8 = sld [smem:[#allocation0]]
  $region38: #{dgcnn_partseg_forward.20} parent=0
    _
  %s10 = ssub.s32 1, %s8
  %s11 = scalar_select 0, %s10, %s8
  // Predicated region
  $region2: #{dgcnn_partseg_forward.20} parent=0 // pred_check
    _
  $region3: #{dgcnn_partseg_forward.20} parent=0 // pred_check_branch
    %13 = sbr.rel (0) target = $region5
  $region4: #{dgcnn_partseg_forward.20} parent=0 // pred_region
    _
  $region5: #{dgcnn_partseg_forward.20} parent=0 // pred_fallthru
    _
  // Predicated region
  $region6: #{dgcnn_partseg_forward.20} parent=0 // pred_check
    _
  $region7: #{dgcnn_partseg_forward.20} parent=0 // pred_check_branch
    %15 = sbr.rel (0) target = $region9
  $region8: #{dgcnn_partseg_forward.20} parent=0 // pred_region
    _
  $region9: #{dgcnn_partseg_forward.20} parent=0 // pred_fallthru
    _
  // Predicated region
  $region10: #{dgcnn_partseg_forward.20} parent=0 // pred_check
    _
  $region11: #{dgcnn_partseg_forward.20} parent=0 // pred_check_branch
    %17 = sbr.rel (0) target = $region13
  $region12: #{dgcnn_partseg_forward.20} parent=0 // pred_region
    _
  $region13: #{dgcnn_partseg_forward.20} parent=0 // pred_fallthru
    _
  // Predicated region
  $region14: #{dgcnn_partseg_forward.20} parent=0 // pred_check
    _
  $region15: #{dgcnn_partseg_forward.20} parent=0 // pred_check_branch
    %19 = sbr.rel (0) target = $region17
  $region16: #{dgcnn_partseg_forward.20} parent=0 // pred_region
    _
  $region17: #{dgcnn_partseg_forward.20} parent=0 // pred_fallthru
    _
  // Predicated region
  $region18: #{dgcnn_partseg_forward.20} parent=0 // pred_check
    _
  $region19: #{dgcnn_partseg_forward.20} parent=0 // pred_check_branch
    %21 = sbr.rel (0) target = $region21
  $region20: #{dgcnn_partseg_forward.20} parent=0 // pred_region
    _
  $region21: #{dgcnn_partseg_forward.20} parent=0 // pred_fallthru
    _
  // Predicated region
  $region22: #{dgcnn_partseg_forward.20} parent=0 // pred_check
    _
  $region23: #{dgcnn_partseg_forward.20} parent=0 // pred_check_branch
    %23 = sbr.rel (0) target = $region25
  $region24: #{dgcnn_partseg_forward.20} parent=0 // pred_region
    _
  $region25: #{dgcnn_partseg_forward.20} parent=0 // pred_fallthru
    _
  // Predicated region
  $region26: #{dgcnn_partseg_forward.20} parent=0 // pred_check
    _
  $region27: #{dgcnn_partseg_forward.20} parent=0 // pred_check_branch
    %25 = sbr.rel (0) target = $region29
  $region28: #{dgcnn_partseg_forward.20} parent=0 // pred_region
    _
  $region29: #{dgcnn_partseg_forward.20} parent=0 // pred_fallthru
    _
  %v27 = vld [vmem:[%s0] sm:$0xf]
  %v28 = vld [vmem:[%s0 + $0x4] sm:$0xf]
  %v29 = vld [vmem:[%s0 + $0x8] sm:$0xf]
  %v30 = vld [vmem:[%s0 + $0xc] sm:$0xf]
  %v31 = vld [vmem:[%s0 + $0x10] sm:$0xf]
  %v32 = vld [vmem:[%s0 + $0x14] sm:$0xf]
  %v33 = vld [vmem:[%s0 + $0x18] sm:$0xf]
  %v34 = vld [vmem:[%s0 + $0x1c] sm:$0xf]
  %v35 = vld [vmem:[%s0 + $0x20] sm:$0xf]
  %v36 = vld [vmem:[%s0 + $0x24] sm:$0xf]
  %v37 = vld [vmem:[%s0 + $0x28] sm:$0xf]
  %v38 = vld [vmem:[%s0 + $0x2c] sm:$0xf]
  %v39 = vld [vmem:[%s0 + $0x30] sm:$0xf]
  %v40 = vld [vmem:[%s0 + $0x34] sm:$0xf]
  %v41 = vld [vmem:[%s0 + $0x38] sm:$0xf]
  %v42 = vld [vmem:[%s0 + $0x3c] sm:$0xf]
  %v43 = vld [vmem:[%s2] sm:$0xf]
  %v44 = vld [vmem:[%s2 + $0x4] sm:$0xf]
  %v45 = vld [vmem:[%s2 + $0x8] sm:$0xf]
  %v46 = vld [vmem:[%s2 + $0xc] sm:$0xf]
  %v47 = vld [vmem:[%s2 + $0x10] sm:$0xf]
  %v48 = vld [vmem:[%s2 + $0x14] sm:$0xf]
  %v49 = vld [vmem:[%s2 + $0x18] sm:$0xf]
  %v50 = vld [vmem:[%s2 + $0x1c] sm:$0xf]
  %v67 = vunpack.c.l.b16 %v27
  %v68 = vunpack.c.l.b16 %v28
  %v69 = vunpack.c.l.b16 %v29
  %v70 = vunpack.c.l.b16 %v30
  %v71 = vunpack.c.l.b16 %v31
  %v72 = vunpack.c.l.b16 %v32
  %v73 = vunpack.c.l.b16 %v33
  %v74 = vunpack.c.l.b16 %v34
  %v75 = vunpack.c.l.b16 %v35
  %v76 = vunpack.c.l.b16 %v36
  %v77 = vunpack.c.l.b16 %v37
  %v78 = vunpack.c.l.b16 %v38
  %v79 = vunpack.c.l.b16 %v39
  %v80 = vunpack.c.l.b16 %v40
  %v81 = vunpack.c.l.b16 %v41
  %v82 = vunpack.c.l.b16 %v42
  %v83 = vpack.c.b16 %v68, %v67
  %v84 = vpack.c.b16 %v70, %v69
  %v85 = vpack.c.b16 %v72, %v71
  %v86 = vpack.c.b16 %v74, %v73
  %v87 = vpack.c.b16 %v76, %v75
  %v88 = vpack.c.b16 %v78, %v77
  %v89 = vpack.c.b16 %v80, %v79
  %v90 = vpack.c.b16 %v82, %v81
  %v99 = vunpack.c.l.b16 %v43
  %v100 = vunpack.c.l.b16 %v44
  %v101 = vunpack.c.l.b16 %v45
  %v102 = vunpack.c.l.b16 %v46
  %v103 = vunpack.c.l.b16 %v47
  %v104 = vunpack.c.l.b16 %v48
  %v105 = vunpack.c.l.b16 %v49
  %v106 = vunpack.c.l.b16 %v50
  %v107 = vpack.c.b16 %v100, %v99
  %v108 = vpack.c.b16 %v102, %v101
  %v109 = vpack.c.b16 %v104, %v103
  %v110 = vpack.c.b16 %v106, %v105
  %vm115 = vcmask 523264
  %v117 = vsel %vm115, %v83, 0
  %v120 = vsel %vm115, %v84, 0
  %v123 = vsel %vm115, %v85, 0
  %v126 = vsel %vm115, %v86, 0
  %v129 = vsel %vm115, %v87, 0
  %v132 = vsel %vm115, %v88, 0
  %v135 = vsel %vm115, %v89, 0
  %v138 = vsel %vm115, %v90, 0
  %140 = vmatprep.subr.bf16.mxu0 0
  %141 = vmatpush1.bf16.msra.mxu0 %v107
  %142 = vmatprep.subr.bf16.mxu0 0
  %143 = vmatpush1.bf16.msra.mxu0 %v108
  %144 = vmatprep.subr.bf16.mxu0 0
  %145 = vmatpush1.bf16.msra.mxu0 %v109
  %146 = vmatprep.subr.bf16.mxu0 0
  %147 = vmatpush1.bf16.msra.mxu0 %v110
  %148 = vmatprep.subr.bf16.mxu0 0
  %149 = vmatpush1.bf16.msra.mxu0 0
  %150 = vmatprep.subr.bf16.mxu0 0
  %151 = vmatpush1.bf16.msra.mxu0 0
  %152 = vmatprep.subr.bf16.mxu0 0
  %153 = vmatpush1.bf16.msra.mxu0 0
  %154 = vmatprep.subr.bf16.mxu0 0
  %155 = vmatpush1.bf16.msra.mxu0 0
  %156 = vmatprep.subr.bf16.mxu0 0
  %157 = vmatpush1.bf16.msra.mxu0 0
  %158 = vmatprep.subr.bf16.mxu0 0
  %159 = vmatpush1.bf16.msra.mxu0 0
  %160 = vmatprep.subr.bf16.mxu0 0
  %161 = vmatpush1.bf16.msra.mxu0 0
  %162 = vmatprep.subr.bf16.mxu0 0
  %163 = vmatpush1.bf16.msra.mxu0 0
  %164 = vmatprep.subr.bf16.mxu0 0
  %165 = vmatpush1.bf16.msra.mxu0 0
  %166 = vmatprep.subr.bf16.mxu0 0
  %167 = vmatpush1.bf16.msra.mxu0 0
  %168 = vmatprep.subr.bf16.mxu0 0
  %169 = vmatpush1.bf16.msra.mxu0 0
  %170 = vmatprep.subr.bf16.mxu0 0
  %171 = vmatpush1.bf16.msra.mxu0 0
  %172 = vmatprep.mubr.bf16.mxu0 0
  %173 = vmatmul.mubr.bf16.gmra.mrb[0].mxu0 %v117
  %v174 = vpop.f32.mrb[0].mxu0
  %v175 = vadd.f32 0.0, %v174
  %v176 = vpop.f32.mrb[0].mxu0
  %v177 = vpop.f32.mrb[0].mxu0
  %v178 = vadd.f32 0.0, %v177
  %v179 = vpop.f32.mrb[0].mxu0
  %180 = vmatprep.mubr.bf16.mxu0 0
  %181 = vmatmul.mubr.bf16.gmra.mrb[0].mxu0 %v120
  %v182 = vpop.f32.mrb[0].mxu0
  %v183 = vadd.f32 0.0, %v182
  %v184 = vpop.f32.mrb[0].mxu0
  %v185 = vpop.f32.mrb[0].mxu0
  %v186 = vadd.f32 0.0, %v185
  %v187 = vpop.f32.mrb[0].mxu0
  %188 = vmatprep.mubr.bf16.mxu0 0
  %189 = vmatmul.mubr.bf16.gmra.mrb[0].mxu0 %v123
  %v190 = vpop.f32.mrb[0].mxu0
  %v191 = vadd.f32 0.0, %v190
  %v192 = vpop.f32.mrb[0].mxu0
  %v193 = vpop.f32.mrb[0].mxu0
  %v194 = vadd.f32 0.0, %v193
  %v195 = vpop.f32.mrb[0].mxu0
  %196 = vmatprep.mubr.bf16.mxu0 0
  %197 = vmatmul.mubr.bf16.gmra.mrb[0].mxu0 %v126
  %v198 = vpop.f32.mrb[0].mxu0
  %v199 = vadd.f32 0.0, %v198
  %v200 = vpop.f32.mrb[0].mxu0
  %v201 = vpop.f32.mrb[0].mxu0
  %v202 = vadd.f32 0.0, %v201
  %v203 = vpop.f32.mrb[0].mxu0
  %204 = vmatprep.mubr.bf16.mxu0 0
  %205 = vmatmul.mubr.bf16.gmra.mrb[0].mxu0 %v129
  %v206 = vpop.f32.mrb[0].mxu0
  %v207 = vadd.f32 0.0, %v206
  %v208 = vpop.f32.mrb[0].mxu0
  %v209 = vpop.f32.mrb[0].mxu0
  %v210 = vadd.f32 0.0, %v209
  %v211 = vpop.f32.mrb[0].mxu0
  %212 = vmatprep.mubr.bf16.mxu0 0
  %213 = vmatmul.mubr.bf16.gmra.mrb[0].mxu0 %v132
  %v214 = vpop.f32.mrb[0].mxu0
  %v215 = vadd.f32 0.0, %v214
  %v216 = vpop.f32.mrb[0].mxu0
  %v217 = vpop.f32.mrb[0].mxu0
  %v218 = vadd.f32 0.0, %v217
  %v219 = vpop.f32.mrb[0].mxu0
  %220 = vmatprep.mubr.bf16.mxu0 0
  %221 = vmatmul.mubr.bf16.gmra.mrb[0].mxu0 %v135
  %v222 = vpop.f32.mrb[0].mxu0
  %v223 = vadd.f32 0.0, %v222
  %v224 = vpop.f32.mrb[0].mxu0
  %v225 = vpop.f32.mrb[0].mxu0
  %v226 = vadd.f32 0.0, %v225
  %v227 = vpop.f32.mrb[0].mxu0
  %228 = vmatprep.mubr.bf16.mxu0 0
  %229 = vmatmul.mubr.bf16.gmra.mrb[0].mxu0 %v138
  %v230 = vpop.f32.mrb[0].mxu0
  %v231 = vadd.f32 0.0, %v230
  %v232 = vpop.f32.mrb[0].mxu0
  %v233 = vpop.f32.mrb[0].mxu0
  %v234 = vadd.f32 0.0, %v233
  %v235 = vpop.f32.mrb[0].mxu0
  %236 = vdwg.mxu0
  %v237 = vld [vmem:[%s1] sm:$0xf]
  %v238 = vld [vmem:[%s1 + $0x4] sm:$0xf]
  %v239 = vld [vmem:[%s1 + $0x8] sm:$0xf]
  %v240 = vld [vmem:[%s1 + $0xc] sm:$0xf]
  %v241 = vld [vmem:[%s3] sm:$0xf]
  %v242 = vld [vmem:[%s3 + $0x4] sm:$0xf]
  %v243 = vld [vmem:[%s3 + $0x8] sm:$0xf]
  %v244 = vld [vmem:[%s3 + $0xc] sm:$0xf]
  %v245 = vld [vmem:[%s3 + $0x10] sm:$0xf]
  %v246 = vld [vmem:[%s3 + $0x14] sm:$0xf]
  %v247 = vld [vmem:[%s3 + $0x18] sm:$0xf]
  %v248 = vld [vmem:[%s3 + $0x1c] sm:$0xf]
  %v249 = vld [vmem:[%s4] sm:$0x1]
  %v251 = vlaneseq
  %v252 = vshrl.u32 %v251, 7
  %v253 = vsub.s32 0, %v252
  %v254 = vrot.slane %v249, %v253
  %v260 = vunpack.c.l.b16 %v237
  %v261 = vunpack.c.l.b16 %v238
  %v262 = vunpack.c.l.b16 %v239
  %v263 = vunpack.c.l.b16 %v240
  %v264 = vpack.c.b16 %v261, %v260
  %v265 = vpack.c.b16 %v263, %v262
  %v274 = vunpack.c.l.b16 %v241
  %v275 = vunpack.c.l.b16 %v242
  %v276 = vunpack.c.l.b16 %v243
  %v277 = vunpack.c.l.b16 %v244
  %v278 = vunpack.c.l.b16 %v245
  %v279 = vunpack.c.l.b16 %v246
  %v280 = vunpack.c.l.b16 %v247
  %v281 = vunpack.c.l.b16 %v248
  %v282 = vpack.c.b16 %v275, %v274
  %v283 = vpack.c.b16 %v277, %v276
  %v284 = vpack.c.b16 %v279, %v278
  %v285 = vpack.c.b16 %v281, %v280
  %v291 = vsel %vm115, %v264, 0
  %v294 = vsel %vm115, %v265, 0
  %296 = vmatprep.subr.bf16.mxu0 0
  %297 = vmatpush1.bf16.msra.mxu0 %v282
  %298 = vmatprep.subr.bf16.mxu0 0
  %299 = vmatpush1.bf16.msra.mxu0 %v283
  %300 = vmatprep.subr.bf16.mxu0 0
  %301 = vmatpush1.bf16.msra.mxu0 %v284
  %302 = vmatprep.subr.bf16.mxu0 0
  %303 = vmatpush1.bf16.msra.mxu0 %v285
  %304 = vmatprep.subr.bf16.mxu0 0
  %305 = vmatpush1.bf16.msra.mxu0 0
  %306 = vmatprep.subr.bf16.mxu0 0
  %307 = vmatpush1.bf16.msra.mxu0 0
  %308 = vmatprep.subr.bf16.mxu0 0
  %309 = vmatpush1.bf16.msra.mxu0 0
  %310 = vmatprep.subr.bf16.mxu0 0
  %311 = vmatpush1.bf16.msra.mxu0 0
  %312 = vmatprep.subr.bf16.mxu0 0
  %313 = vmatpush1.bf16.msra.mxu0 0
  %314 = vmatprep.subr.bf16.mxu0 0
  %315 = vmatpush1.bf16.msra.mxu0 0
  %316 = vmatprep.subr.bf16.mxu0 0
  %317 = vmatpush1.bf16.msra.mxu0 0
  %318 = vmatprep.subr.bf16.mxu0 0
  %319 = vmatpush1.bf16.msra.mxu0 0
  %320 = vmatprep.subr.bf16.mxu0 0
  %321 = vmatpush1.bf16.msra.mxu0 0
  %322 = vmatprep.subr.bf16.mxu0 0
  %323 = vmatpush1.bf16.msra.mxu0 0
  %324 = vmatprep.subr.bf16.mxu0 0
  %325 = vmatpush1.bf16.msra.mxu0 0
  %326 = vmatprep.subr.bf16.mxu0 0
  %327 = vmatpush1.bf16.msra.mxu0 0
  %328 = vmatprep.mubr.bf16.mxu0 0
  %329 = vmatmul.mubr.bf16.gmra.mrb[0].mxu0 %v291
  %v330 = vpop.f32.mrb[0].mxu0
  %v331 = vadd.f32 %v254, %v330
  %v332 = vpop.f32.mrb[0].mxu0
  %v333 = vpop.f32.mrb[0].mxu0
  %v334 = vadd.f32 %v254, %v333
  %v335 = vpop.f32.mrb[0].mxu0
  %336 = vmatprep.mubr.bf16.mxu0 0
  %337 = vmatmul.mubr.bf16.gmra.mrb[0].mxu0 %v294
  %v338 = vpop.f32.mrb[0].mxu0
  %v339 = vadd.f32 %v254, %v338
  %v340 = vpop.f32.mrb[0].mxu0
  %v341 = vpop.f32.mrb[0].mxu0
  %v342 = vadd.f32 %v254, %v341
  %v343 = vpop.f32.mrb[0].mxu0
  %344 = vdwg.mxu0
  %v345 = vadd.f32 %v175, %v331
  %v346 = vadd.f32 %v178, %v334
  %v347 = vadd.f32 %v183, %v339
  %v348 = vadd.f32 %v186, %v342
  %v349 = vadd.f32 %v191, %v331
  %v350 = vadd.f32 %v194, %v334
  %v351 = vadd.f32 %v199, %v339
  %v352 = vadd.f32 %v202, %v342
  %v353 = vadd.f32 %v207, %v331
  %v354 = vadd.f32 %v210, %v334
  %v355 = vadd.f32 %v215, %v339
  %v356 = vadd.f32 %v218, %v342
  %v357 = vadd.f32 %v223, %v331
  %v358 = vadd.f32 %v226, %v334
  %v359 = vadd.f32 %v231, %v339
  %v360 = vadd.f32 %v234, %v342
  %vm361 = vcmp.ge.f32.partialorder %v345, 0.0
  %vm362 = vcmp.ge.f32.partialorder %v346, 0.0
  %vm363 = vcmp.ge.f32.partialorder %v347, 0.0
  %vm364 = vcmp.ge.f32.partialorder %v348, 0.0
  %vm365 = vcmp.ge.f32.partialorder %v349, 0.0
  %vm366 = vcmp.ge.f32.partialorder %v350, 0.0
  %vm367 = vcmp.ge.f32.partialorder %v351, 0.0
  %vm368 = vcmp.ge.f32.partialorder %v352, 0.0
  %vm369 = vcmp.ge.f32.partialorder %v353, 0.0
  %vm370 = vcmp.ge.f32.partialorder %v354, 0.0
  %vm371 = vcmp.ge.f32.partialorder %v355, 0.0
  %vm372 = vcmp.ge.f32.partialorder %v356, 0.0
  %vm373 = vcmp.ge.f32.partialorder %v357, 0.0
  %vm374 = vcmp.ge.f32.partialorder %v358, 0.0
  %vm375 = vcmp.ge.f32.partialorder %v359, 0.0
  %vm376 = vcmp.ge.f32.partialorder %v360, 0.0
  %v377 = vmul.f32 %v345, 0.2
  %v378 = vmul.f32 %v346, 0.2
  %v379 = vmul.f32 %v347, 0.2
  %v380 = vmul.f32 %v348, 0.2
  %v381 = vmul.f32 %v349, 0.2
  %v382 = vmul.f32 %v350, 0.2
  %v383 = vmul.f32 %v351, 0.2
  %v384 = vmul.f32 %v352, 0.2
  %v385 = vmul.f32 %v353, 0.2
  %v386 = vmul.f32 %v354, 0.2
  %v387 = vmul.f32 %v355, 0.2
  %v388 = vmul.f32 %v356, 0.2
  %v389 = vmul.f32 %v357, 0.2
  %v390 = vmul.f32 %v358, 0.2
  %v391 = vmul.f32 %v359, 0.2
  %v392 = vmul.f32 %v360, 0.2
  %v393 = vsel %vm361, %v345, %v377
  %v394 = vsel %vm362, %v346, %v378
  %v395 = vsel %vm363, %v347, %v379
  %v396 = vsel %vm364, %v348, %v380
  %v397 = vsel %vm365, %v349, %v381
  %v398 = vsel %vm366, %v350, %v382
  %v399 = vsel %vm367, %v351, %v383
  %v400 = vsel %vm368, %v352, %v384
  %v401 = vsel %vm369, %v353, %v385
  %v402 = vsel %vm370, %v354, %v386
  %v403 = vsel %vm371, %v355, %v387
  %v404 = vsel %vm372, %v356, %v388
  %v405 = vsel %vm373, %v357, %v389
  %v406 = vsel %vm374, %v358, %v390
  %v407 = vsel %vm375, %v359, %v391
  %v408 = vsel %vm376, %v360, %v392
  %v409 = vpack.c.bf16 %v394, %v393
  %v410 = vpack.c.bf16 %v396, %v395
  %v411 = vpack.c.bf16 %v398, %v397
  %v412 = vpack.c.bf16 %v400, %v399
  %v413 = vpack.c.bf16 %v402, %v401
  %v414 = vpack.c.bf16 %v404, %v403
  %v415 = vpack.c.bf16 %v406, %v405
  %v416 = vpack.c.bf16 %v408, %v407
  %v417 = vld [vmem:[%s5] sm:$0xf]
  %v418 = vld [vmem:[%s5 + $0x4] sm:$0xf]
  %v419 = vld [vmem:[%s5 + $0x8] sm:$0xf]
  %v420 = vld [vmem:[%s5 + $0xc] sm:$0xf]
  %v421 = vld [vmem:[%s5 + $0x10] sm:$0xf]
  %v422 = vld [vmem:[%s5 + $0x14] sm:$0xf]
  %v423 = vld [vmem:[%s5 + $0x18] sm:$0xf]
  %v424 = vld [vmem:[%s5 + $0x1c] sm:$0xf]
  %v433 = vunpack.c.l.b16 %v417
  %v434 = vunpack.c.l.b16 %v418
  %v435 = vunpack.c.l.b16 %v419
  %v436 = vunpack.c.l.b16 %v420
  %v437 = vunpack.c.l.b16 %v421
  %v438 = vunpack.c.l.b16 %v422
  %v439 = vunpack.c.l.b16 %v423
  %v440 = vunpack.c.l.b16 %v424
  %v441 = vpack.c.b16 %v434, %v433
  %v442 = vpack.c.b16 %v436, %v435
  %v443 = vpack.c.b16 %v438, %v437
  %v444 = vpack.c.b16 %v440, %v439
  %v450 = vsel %vm115, %v409, 0
  %v453 = vsel %vm115, %v410, 0
  %v456 = vsel %vm115, %v411, 0
  %v459 = vsel %vm115, %v412, 0
  %v462 = vsel %vm115, %v413, 0
  %v465 = vsel %vm115, %v414, 0
  %v468 = vsel %vm115, %v415, 0
  %v471 = vsel %vm115, %v416, 0
  %473 = vmatprep.subr.bf16.mxu0 0
  %474 = vmatpush1.bf16.msra.mxu0 %v441
  %475 = vmatprep.subr.bf16.mxu0 0
  %476 = vmatpush1.bf16.msra.mxu0 %v442
  %477 = vmatprep.subr.bf16.mxu0 0
  %478 = vmatpush1.bf16.msra.mxu0 %v443
  %479 = vmatprep.subr.bf16.mxu0 0
  %480 = vmatpush1.bf16.msra.mxu0 %v444
  %481 = vmatprep.subr.bf16.mxu0 0
  %482 = vmatpush1.bf16.msra.mxu0 0
  %483 = vmatprep.subr.bf16.mxu0 0
  %484 = vmatpush1.bf16.msra.mxu0 0
  %485 = vmatprep.subr.bf16.mxu0 0
  %486 = vmatpush1.bf16.msra.mxu0 0
  %487 = vmatprep.subr.bf16.mxu0 0
  %488 = vmatpush1.bf16.msra.mxu0 0
  %489 = vmatprep.subr.bf16.mxu0 0
  %490 = vmatpush1.bf16.msra.mxu0 0
  %491 = vmatprep.subr.bf16.mxu0 0
  %492 = vmatpush1.bf16.msra.mxu0 0
  %493 = vmatprep.subr.bf16.mxu0 0
  %494 = vmatpush1.bf16.msra.mxu0 0
  %495 = vmatprep.subr.bf16.mxu0 0
  %496 = vmatpush1.bf16.msra.mxu0 0
  %497 = vmatprep.subr.bf16.mxu0 0
  %498 = vmatpush1.bf16.msra.mxu0 0
  %499 = vmatprep.subr.bf16.mxu0 0
  %500 = vmatpush1.bf16.msra.mxu0 0
  %501 = vmatprep.subr.bf16.mxu0 0
  %502 = vmatpush1.bf16.msra.mxu0 0
  %503 = vmatprep.subr.bf16.mxu0 0
  %504 = vmatpush1.bf16.msra.mxu0 0
  %505 = vmatprep.mubr.bf16.mxu0 0
  %506 = vmatmul.mubr.bf16.gmra.mrb[0].mxu0 %v450
  %v507 = vpop.f32.mrb[0].mxu0
  %v508 = vadd.f32 0.0, %v507
  %v509 = vpop.f32.mrb[0].mxu0
  %v510 = vpop.f32.mrb[0].mxu0
  %v511 = vadd.f32 0.0, %v510
  %v512 = vpop.f32.mrb[0].mxu0
  %513 = vmatprep.mubr.bf16.mxu0 0
  %514 = vmatmul.mubr.bf16.gmra.mrb[0].mxu0 %v453
  %v515 = vpop.f32.mrb[0].mxu0
  %v516 = vadd.f32 0.0, %v515
  %v517 = vpop.f32.mrb[0].mxu0
  %v518 = vpop.f32.mrb[0].mxu0
  %v519 = vadd.f32 0.0, %v518
  %v520 = vpop.f32.mrb[0].mxu0
  %521 = vmatprep.mubr.bf16.mxu0 0
  %522 = vmatmul.mubr.bf16.gmra.mrb[0].mxu0 %v456
  %v523 = vpop.f32.mrb[0].mxu0
  %v524 = vadd.f32 0.0, %v523
  %v525 = vpop.f32.mrb[0].mxu0
  %v526 = vpop.f32.mrb[0].mxu0
  %v527 = vadd.f32 0.0, %v526
  %v528 = vpop.f32.mrb[0].mxu0
  %529 = vmatprep.mubr.bf16.mxu0 0
  %530 = vmatmul.mubr.bf16.gmra.mrb[0].mxu0 %v459
  %v531 = vpop.f32.mrb[0].mxu0
  %v532 = vadd.f32 0.0, %v531
  %v533 = vpop.f32.mrb[0].mxu0
  %v534 = vpop.f32.mrb[0].mxu0
  %v535 = vadd.f32 0.0, %v534
  %v536 = vpop.f32.mrb[0].mxu0
  %537 = vmatprep.mubr.bf16.mxu0 0
  %538 = vmatmul.mubr.bf16.gmra.mrb[0].mxu0 %v462
  %v539 = vpop.f32.mrb[0].mxu0
  %v540 = vadd.f32 0.0, %v539
  %v541 = vpop.f32.mrb[0].mxu0
  %v542 = vpop.f32.mrb[0].mxu0
  %v543 = vadd.f32 0.0, %v542
  %v544 = vpop.f32.mrb[0].mxu0
  %545 = vmatprep.mubr.bf16.mxu0 0
  %546 = vmatmul.mubr.bf16.gmra.mrb[0].mxu0 %v465
  %v547 = vpop.f32.mrb[0].mxu0
  %v548 = vadd.f32 0.0, %v547
  %v549 = vpop.f32.mrb[0].mxu0
  %v550 = vpop.f32.mrb[0].mxu0
  %v551 = vadd.f32 0.0, %v550
  %v552 = vpop.f32.mrb[0].mxu0
  %553 = vmatprep.mubr.bf16.mxu0 0
  %554 = vmatmul.mubr.bf16.gmra.mrb[0].mxu0 %v468
  %v555 = vpop.f32.mrb[0].mxu0
  %v556 = vadd.f32 0.0, %v555
  %v557 = vpop.f32.mrb[0].mxu0
  %v558 = vpop.f32.mrb[0].mxu0
  %v559 = vadd.f32 0.0, %v558
  %v560 = vpop.f32.mrb[0].mxu0
  %561 = vmatprep.mubr.bf16.mxu0 0
  %562 = vmatmul.mubr.bf16.gmra.mrb[0].mxu0 %v471
  %v563 = vpop.f32.mrb[0].mxu0
  %v564 = vadd.f32 0.0, %v563
  %v565 = vpop.f32.mrb[0].mxu0
  %v566 = vpop.f32.mrb[0].mxu0
  %v567 = vadd.f32 0.0, %v566
  %v568 = vpop.f32.mrb[0].mxu0
  %569 = vdwg.mxu0
  %v570 = vsel %vm115, %v508, -inf
  %v571 = vsel %vm115, %v524, -inf
  %v572 = vmax.f32 %v570, %v571
  %v573 = vsel %vm115, %v540, -inf
  %v574 = vmax.f32 %v572, %v573
  %v575 = vsel %vm115, %v556, -inf
  %v576 = vmax.f32 %v574, %v575
  %v577 = vsel %vm115, %v511, -inf
  %v578 = vsel %vm115, %v527, -inf
  %v579 = vmax.f32 %v577, %v578
  %v580 = vsel %vm115, %v543, -inf
  %v581 = vmax.f32 %v579, %v580
  %v582 = vsel %vm115, %v559, -inf
  %v583 = vmax.f32 %v581, %v582
  %v584 = vsel %vm115, %v516, -inf
  %v585 = vsel %vm115, %v532, -inf
  %v586 = vmax.f32 %v584, %v585
  %v587 = vsel %vm115, %v548, -inf
  %v588 = vmax.f32 %v586, %v587
  %v589 = vsel %vm115, %v564, -inf
  %v590 = vmax.f32 %v588, %v589
  %v591 = vsel %vm115, %v519, -inf
  %v592 = vsel %vm115, %v535, -inf
  %v593 = vmax.f32 %v591, %v592
  %v594 = vsel %vm115, %v551, -inf
  %v595 = vmax.f32 %v593, %v594
  %v596 = vsel %vm115, %v567, -inf
  %v597 = vmax.f32 %v595, %v596
  %v598 = vld [vmem:[%s6] sm:$0x1]
  %v600 = vlaneseq
  %v601 = vshrl.u32 %v600, 7
  %v602 = vsub.s32 0, %v601
  %v603 = vrot.slane %v598, %v602
  %v605 = vadd.f32 %v576, %v603
  %v606 = vadd.f32 %v583, %v603
  %v607 = vadd.f32 %v590, %v603
  %v608 = vadd.f32 %v597, %v603
  %vm609 = vcmp.ge.f32.partialorder %v605, 0.0
  %vm610 = vcmp.ge.f32.partialorder %v606, 0.0
  %vm611 = vcmp.ge.f32.partialorder %v607, 0.0
  %vm612 = vcmp.ge.f32.partialorder %v608, 0.0
  %v613 = vmul.f32 %v605, 0.2
  %v614 = vmul.f32 %v606, 0.2
  %v615 = vmul.f32 %v607, 0.2
  %v616 = vmul.f32 %v608, 0.2
  %v617 = vsel %vm609, %v605, %v613
  %v618 = vsel %vm610, %v606, %v614
  %v619 = vsel %vm611, %v607, %v615
  %v620 = vsel %vm612, %v608, %v616
  %v621 = vpack.c.bf16 %v618, %v617
  %v622 = vpack.c.bf16 %v620, %v619
  %v625 = vunpack.c.l.b16 %v621
  %v626 = vunpack.c.h.b16 %v621
  %v627 = vunpack.c.l.b16 %v622
  %v628 = vunpack.c.h.b16 %v622
  %v629 = vpack.c.b16 %v625, %v625
  %v630 = vpack.c.b16 %v626, %v626
  %v631 = vpack.c.b16 %v627, %v627
  %v632 = vpack.c.b16 %v628, %v628
  %vm637 = vcmask 519168
  %638 = vst.msk [vmem:[%s7] sm:$0xf] %vm637, %v629
  %639 = vst.msk [vmem:[%s7 + $0x4] sm:$0xf] %vm637, %v630
  %640 = vst.msk [vmem:[%s7 + $0x8] sm:$0xf] %vm637, %v631
  %641 = vst.msk [vmem:[%s7 + $0xc] sm:$0xf] %vm637, %v632
  // Predicated region
  $region30: #{dgcnn_partseg_forward.20} parent=0 // pred_check
    _
  $region31: #{dgcnn_partseg_forward.20} parent=0 // pred_check_branch
    %643 = sbr.rel (0) target = $region33
  $region32: #{dgcnn_partseg_forward.20} parent=0 // pred_region
    _
  $region33: #{dgcnn_partseg_forward.20} parent=0 // pred_fallthru
    _
  // Predicated region
  $region34: #{dgcnn_partseg_forward.20} parent=0 // pred_check
    _
  $region35: #{dgcnn_partseg_forward.20} parent=0 // pred_check_branch
    %645 = sbr.rel (0) target = $region37
  $region36: #{dgcnn_partseg_forward.20} parent=0 // pred_region
    _
  $region37: #{dgcnn_partseg_forward.20} parent=0 // pred_fallthru
    _

// kernel: dgcnn_partseg_forward.23
$region0: #{dgcnn_partseg_forward.23}
  #allocation0 [shape = 'u32[]', space=smem, size = 0x4, offset = 0x4, fixed_abs, tag = 'smem constant byte address 0x4 - core index']
  #allocation1 [shape = 'u32[144,128]{1,0:T(1,128)}', space=vmem, size = 0x12000, scoped, tag = 'internal scratch']
  %s0 = inlined_call_operand.vmem [shape: bf16[2,16,64], index: 0, kind: input, shape index: {}]
  %s1 = inlined_call_operand.vmem [shape: bf16[2,16,64], index: 1, kind: input, shape index: {}]
  %s2 = inlined_call_operand.vmem [shape: bf16[2,16,64], index: 2, kind: input, shape index: {}]
  %s3 = inlined_call_operand.vmem [shape: bf16[64,1024], index: 3, kind: input, shape index: {}]
  %s4 = inlined_call_operand.vmem [shape: bf16[64,1024], index: 4, kind: input, shape index: {}]
  %s5 = inlined_call_operand.vmem [shape: bf16[64,1024], index: 5, kind: input, shape index: {}]
  %s6 = inlined_call_operand.vmem [shape: f32[1,1024], index: 6, kind: input, shape index: {}]
  %s7 = inlined_call_operand.vmem [shape: f32[2,1,1024], index: 7, kind: output, shape index: {}]
  %s8 = sld [smem:[#allocation0]]
  $region73: #{dgcnn_partseg_forward.23} parent=0
    _
  %s10 = ssub.s32 1, %s8
  %s11 = scalar_select 0, %s10, %s8
  loop: start=0, step=1, limit=4
  $region2: #{dgcnn_partseg_forward.23} parent=0 // loop_pre_header
    _
  $region3: #{dgcnn_partseg_forward.23} parent=0 // loop_header
    %s13 = sphi 0, %s17
    %p14 = scmp.ge.s32.totalorder %s13, 4
    %s20 = sphi 0, %s32
    %s21 = sphi 0, %s28
    %s22 = sphi 0, %s20
    %s23 = sphi 0, %s21
    %s24 = sphi 0, %s22
    %s25 = sphi 0, %s23
    %s37 = sphi 0, %s39
    %s40 = sphi 0, %s37
    %s41 = sphi 0, %s40
    %s57 = sphi 0, %s41
    %s65 = sphi 0, %s67
    %s68 = sphi 0, %s65
    %s69 = sphi 0, %s68
    %s85 = sphi 0, %s69
    %s93 = sphi 0, %s95
    %s96 = sphi 0, %s93
    %s97 = sphi 0, %s96
    %s113 = sphi 0, %s97
    %s117 = sphi 0, %s117
    %s119 = sphi 0, %s117
    %s120 = sphi 0, %s119
    %s134 = sphi 0, %s120
    %s138 = sphi 0, %s138
    %s140 = sphi 0, %s138
    %s141 = sphi 0, %s140
    %s155 = sphi 0, %s141
    %s159 = sphi 0, %s159
    %s161 = sphi 0, %s159
    %s162 = sphi 0, %s161
    %s176 = sphi 0, %s162
    %s180 = sphi 0, %s180
    %s182 = sphi 0, %s180
    %s183 = sphi 0, %s182
    %s197 = sphi 0, %s183
    %s203 = sphi 0, %s205
    %s206 = sphi 0, %s203
    %s207 = sphi 0, %s206
    %s223 = sphi 0, %s207
  $region4: #{dgcnn_partseg_forward.23} parent=0 // loop_header_branch
    %16 = sbr.rel (%p14) target = $region8
  $region5: #{dgcnn_partseg_forward.23} parent=0 // loop_body
    %s18 = ssub.s32 %s13, 1
    %s19 = ssub.s32 %s13, 2
    %s26 = sadd.s32 1, %s21
    %p27 = scmp.ge.s32.totalorder %s26, 1
    %s28 = scalar_select %p27, 0, %s26
    %s29 = sadd.s32 1, %s20
    %s30 = scalar_select %p27, %s29, %s20
    %p31 = scmp.ge.s32.totalorder %s30, 2
    %s32 = scalar_select %p31, 0, %s30
    %s33 = ssub.s32 %s20, %s32
    %s34 = ssub.s32 %s21, %s28
    %s35 = sor.u32 %s33, %s34
    %p36 = scmp.eq.s32.totalorder %s35, 0
    %s38 = sadd.s32 %s37, 1
    %s39 = scalar_select %p36, %s37, %s38
    %p42 = pneg %p36
    %p43 = scmp.eq.s32.totalorder %s13, 1
    %p44 = por %p42, %p43
    %p45 = scmp.ne.s32.totalorder %s37, %s40
    %p46 = scmp.eq.s32.totalorder %s13, 0
    %p47 = por %p45, %p46
    %p48 = scmp.ne.s32.totalorder %s37, %s40
    %p49 = scmp.eq.s32.totalorder %s18, 1
    %p50 = por %p48, %p49
    %p51 = scmp.ne.s32.totalorder %s40, %s41
    %p52 = scmp.eq.s32.totalorder %s18, 0
    %p53 = por %p51, %p52
    %p54 = scmp.ne.s32.totalorder %s40, %s41
    %p55 = scmp.eq.s32.totalorder %s19, 1
    %p56 = por %p54, %p55
    %p58 = scmp.ne.s32.totalorder %s41, %s57
    %p59 = scmp.eq.s32.totalorder %s19, 0
    %p60 = por %p58, %p59
    %s61 = ssub.s32 %s20, %s32
    %s62 = ssub.s32 %s21, %s28
    %s63 = sor.u32 %s61, %s62
    %p64 = scmp.eq.s32.totalorder %s63, 0
    %s66 = sadd.s32 %s65, 1
    %s67 = scalar_select %p64, %s65, %s66
    %p70 = pneg %p64
    %p71 = scmp.eq.s32.totalorder %s13, 1
    %p72 = por %p70, %p71
    %p73 = scmp.ne.s32.totalorder %s65, %s68
    %p74 = scmp.eq.s32.totalorder %s13, 0
    %p75 = por %p73, %p74
    %p76 = scmp.ne.s32.totalorder %s65, %s68
    %p77 = scmp.eq.s32.totalorder %s18, 1
    %p78 = por %p76, %p77
    %p79 = scmp.ne.s32.totalorder %s68, %s69
    %p80 = scmp.eq.s32.totalorder %s18, 0
    %p81 = por %p79, %p80
    %p82 = scmp.ne.s32.totalorder %s68, %s69
    %p83 = scmp.eq.s32.totalorder %s19, 1
    %p84 = por %p82, %p83
    %p86 = scmp.ne.s32.totalorder %s69, %s85
    %p87 = scmp.eq.s32.totalorder %s19, 0
    %p88 = por %p86, %p87
    %s89 = ssub.s32 %s20, %s32
    %s90 = ssub.s32 %s21, %s28
    %s91 = sor.u32 %s89, %s90
    %p92 = scmp.eq.s32.totalorder %s91, 0
    %s94 = sadd.s32 %s93, 1
    %s95 = scalar_select %p92, %s93, %s94
    %p98 = pneg %p92
    %p99 = scmp.eq.s32.totalorder %s13, 1
    %p100 = por %p98, %p99
    %p101 = scmp.ne.s32.totalorder %s93, %s96
    %p102 = scmp.eq.s32.totalorder %s13, 0
    %p103 = por %p101, %p102
    %p104 = scmp.ne.s32.totalorder %s93, %s96
    %p105 = scmp.eq.s32.totalorder %s18, 1
    %p106 = por %p104, %p105
    %p107 = scmp.ne.s32.totalorder %s96, %s97
    %p108 = scmp.eq.s32.totalorder %s18, 0
    %p109 = por %p107, %p108
    %p110 = scmp.ne.s32.totalorder %s96, %s97
    %p111 = scmp.eq.s32.totalorder %s19, 1
    %p112 = por %p110, %p111
    %p114 = scmp.ne.s32.totalorder %s97, %s113
    %p115 = scmp.eq.s32.totalorder %s19, 0
    %p116 = por %p114, %p115
    %s118 = sadd.s32 %s117, 1
    %p121 = scmp.eq.s32.totalorder %s13, 1
    %p122 = scmp.ne.s32.totalorder %s117, %s119
    %p123 = scmp.eq.s32.totalorder %s13, 0
    %p124 = por %p122, %p123
    %p125 = scmp.ne.s32.totalorder %s117, %s119
    %p126 = scmp.eq.s32.totalorder %s18, 1
    %p127 = por %p125, %p126
    %p128 = scmp.ne.s32.totalorder %s119, %s120
    %p129 = scmp.eq.s32.totalorder %s18, 0
    %p130 = por %p128, %p129
    %p131 = scmp.ne.s32.totalorder %s119, %s120
    %p132 = scmp.eq.s32.totalorder %s19, 1
    %p133 = por %p131, %p132
    %p135 = scmp.ne.s32.totalorder %s120, %s134
    %p136 = scmp.eq.s32.totalorder %s19, 0
    %p137 = por %p135, %p136
    %s139 = sadd.s32 %s138, 1
    %p142 = scmp.eq.s32.totalorder %s13, 1
    %p143 = scmp.ne.s32.totalorder %s138, %s140
    %p144 = scmp.eq.s32.totalorder %s13, 0
    %p145 = por %p143, %p144
    %p146 = scmp.ne.s32.totalorder %s138, %s140
    %p147 = scmp.eq.s32.totalorder %s18, 1
    %p148 = por %p146, %p147
    %p149 = scmp.ne.s32.totalorder %s140, %s141
    %p150 = scmp.eq.s32.totalorder %s18, 0
    %p151 = por %p149, %p150
    %p152 = scmp.ne.s32.totalorder %s140, %s141
    %p153 = scmp.eq.s32.totalorder %s19, 1
    %p154 = por %p152, %p153
    %p156 = scmp.ne.s32.totalorder %s141, %s155
    %p157 = scmp.eq.s32.totalorder %s19, 0
    %p158 = por %p156, %p157
    %s160 = sadd.s32 %s159, 1
    %p163 = scmp.eq.s32.totalorder %s13, 1
    %p164 = scmp.ne.s32.totalorder %s159, %s161
    %p165 = scmp.eq.s32.totalorder %s13, 0
    %p166 = por %p164, %p165
    %p167 = scmp.ne.s32.totalorder %s159, %s161
    %p168 = scmp.eq.s32.totalorder %s18, 1
    %p169 = por %p167, %p168
    %p170 = scmp.ne.s32.totalorder %s161, %s162
    %p171 = scmp.eq.s32.totalorder %s18, 0
    %p172 = por %p170, %p171
    %p173 = scmp.ne.s32.totalorder %s161, %s162
    %p174 = scmp.eq.s32.totalorder %s19, 1
    %p175 = por %p173, %p174
    %p177 = scmp.ne.s32.totalorder %s162, %s176
    %p178 = scmp.eq.s32.totalorder %s19, 0
    %p179 = por %p177, %p178
    %s181 = sadd.s32 %s180, 1
    %p184 = scmp.eq.s32.totalorder %s13, 1
    %p185 = scmp.ne.s32.totalorder %s180, %s182
    %p186 = scmp.eq.s32.totalorder %s13, 0
    %p187 = por %p185, %p186
    %p188 = scmp.ne.s32.totalorder %s180, %s182
    %p189 = scmp.eq.s32.totalorder %s18, 1
    %p190 = por %p188, %p189
    %p191 = scmp.ne.s32.totalorder %s182, %s183
    %p192 = scmp.eq.s32.totalorder %s18, 0
    %p193 = por %p191, %p192
    %p194 = scmp.ne.s32.totalorder %s182, %s183
    %p195 = scmp.eq.s32.totalorder %s19, 1
    %p196 = por %p194, %p195
    %p198 = scmp.ne.s32.totalorder %s183, %s197
    %p199 = scmp.eq.s32.totalorder %s19, 0
    %p200 = por %p198, %p199
    %s201 = ssub.s32 %s20, %s32
    %p202 = scmp.eq.s32.totalorder %s201, 0
    %s204 = sadd.s32 %s203, 1
    %s205 = scalar_select %p202, %s203, %s204
    %p208 = pneg %p202
    %p209 = scmp.eq.s32.totalorder %s13, 1
    %p210 = por %p208, %p209
    %p211 = scmp.ne.s32.totalorder %s203, %s206
    %p212 = scmp.eq.s32.totalorder %s13, 0
    %p213 = por %p211, %p212
    %p214 = scmp.ne.s32.totalorder %s203, %s206
    %p215 = scmp.eq.s32.totalorder %s18, 1
    %p216 = por %p214, %p215
    %p217 = scmp.ne.s32.totalorder %s206, %s207
    %p218 = scmp.eq.s32.totalorder %s18, 0
    %p219 = por %p217, %p218
    %p220 = scmp.ne.s32.totalorder %s206, %s207
    %p221 = scmp.eq.s32.totalorder %s19, 1
    %p222 = por %p220, %p221
    %p224 = scmp.ne.s32.totalorder %s207, %s223
    %p225 = scmp.eq.s32.totalorder %s19, 0
    %p226 = por %p224, %p225
    %p227 = scmp.le.s32.totalorder 1, %s13
    %p228 = scmp.lt.s32.totalorder %s13, 3
    %p229 = pnand %p227, %p228
    %p230 = pneg %p229
    // Predicated region
    $region9: #{dgcnn_partseg_forward.23} parent=5 // pred_check
      _
    $region10: #{dgcnn_partseg_forward.23} parent=5 // pred_check_branch
      %232 = sbr.rel (%p229) target = $region12
    $region11: #{dgcnn_partseg_forward.23} parent=5 // pred_region
      %s233 = ssub.s32 %s13, 1
      // Predicated region
      $region13: #{dgcnn_partseg_forward.23} parent=11 // pred_check
        %p234 = pneg %p130
      $region14: #{dgcnn_partseg_forward.23} parent=11 // pred_check_branch
        %236 = sbr.rel (%p234) target = $region16
      $region15: #{dgcnn_partseg_forward.23} parent=11 // pred_region
        _
      $region16: #{dgcnn_partseg_forward.23} parent=11 // pred_fallthru
        _
      // Predicated region
      $region17: #{dgcnn_partseg_forward.23} parent=11 // pred_check
        %p237 = pneg %p151
      $region18: #{dgcnn_partseg_forward.23} parent=11 // pred_check_branch
        %239 = sbr.rel (%p237) target = $region20
      $region19: #{dgcnn_partseg_forward.23} parent=11 // pred_region
        _
      $region20: #{dgcnn_partseg_forward.23} parent=11 // pred_fallthru
        _
      // Predicated region
      $region21: #{dgcnn_partseg_forward.23} parent=11 // pred_check
        %p240 = pneg %p172
      $region22: #{dgcnn_partseg_forward.23} parent=11 // pred_check_branch
        %242 = sbr.rel (%p240) target = $region24
      $region23: #{dgcnn_partseg_forward.23} parent=11 // pred_region
        _
      $region24: #{dgcnn_partseg_forward.23} parent=11 // pred_fallthru
        _
      // Predicated region
      $region25: #{dgcnn_partseg_forward.23} parent=11 // pred_check
        %p243 = pneg %p193
      $region26: #{dgcnn_partseg_forward.23} parent=11 // pred_check_branch
        %245 = sbr.rel (%p243) target = $region28
      $region27: #{dgcnn_partseg_forward.23} parent=11 // pred_region
        _
      $region28: #{dgcnn_partseg_forward.23} parent=11 // pred_fallthru
        _
    $region12: #{dgcnn_partseg_forward.23} parent=5 // pred_fallthru
      _
    %p246 = scmp.lt.s32.totalorder %s13, 2
    // Predicated region
    $region29: #{dgcnn_partseg_forward.23} parent=5 // pred_check
      %p247 = pneg %p246
    $region30: #{dgcnn_partseg_forward.23} parent=5 // pred_check_branch
      %249 = sbr.rel (%p247) target = $region32
    $region31: #{dgcnn_partseg_forward.23} parent=5 // pred_region
      // Predicated region
      $region33: #{dgcnn_partseg_forward.23} parent=31 // pred_check
        %p250 = pneg %p47
      $region34: #{dgcnn_partseg_forward.23} parent=31 // pred_check_branch
        %252 = sbr.rel (%p250) target = $region36
      $region35: #{dgcnn_partseg_forward.23} parent=31 // pred_region
        %s253 = smul.u32 2, %s21
        %p254 = scmp.lt.s32.totalorder %s20, 1
        %s255 = scalar_select %p254, %s20, 1
        %p256 = scmp.lt.s32.totalorder %s253, 1
        %s257 = scalar_select %p256, %s253, 1
        %s258 = smul.addr %s255, 2
        %s259 = sadd.s32 %s257, %s258
        %s260 = smul.addr %s259, 4
        %s261 = scalar_lea.vmem %s0, %s260
        %s262 = smul.u32 2, %s21
      $region36: #{dgcnn_partseg_forward.23} parent=31 // pred_fallthru
        _
      // Predicated region
      $region37: #{dgcnn_partseg_forward.23} parent=31 // pred_check
        %p263 = pneg %p75
      $region38: #{dgcnn_partseg_forward.23} parent=31 // pred_check_branch
        %265 = sbr.rel (%p263) target = $region40
      $region39: #{dgcnn_partseg_forward.23} parent=31 // pred_region
        %s266 = smul.u32 2, %s21
        %p267 = scmp.lt.s32.totalorder %s20, 1
        %s268 = scalar_select %p267, %s20, 1
        %p269 = scmp.lt.s32.totalorder %s266, 1
        %s270 = scalar_select %p269, %s266, 1
        %s271 = smul.addr %s268, 2
        %s272 = sadd.s32 %s270, %s271
        %s273 = smul.addr %s272, 4
        %s274 = scalar_lea.vmem %s1, %s273
        %s275 = smul.u32 2, %s21
      $region40: #{dgcnn_partseg_forward.23} parent=31 // pred_fallthru
        _
      // Predicated region
      $region41: #{dgcnn_partseg_forward.23} parent=31 // pred_check
        %p276 = pneg %p103
      $region42: #{dgcnn_partseg_forward.23} parent=31 // pred_check_branch
        %278 = sbr.rel (%p276) target = $region44
      $region43: #{dgcnn_partseg_forward.23} parent=31 // pred_region
        %s279 = smul.u32 2, %s21
        %p280 = scmp.lt.s32.totalorder %s20, 1
        %s281 = scalar_select %p280, %s20, 1
        %p282 = scmp.lt.s32.totalorder %s279, 1
        %s283 = scalar_select %p282, %s279, 1
        %s284 = smul.addr %s281, 2
        %s285 = sadd.s32 %s283, %s284
        %s286 = smul.addr %s285, 4
        %s287 = scalar_lea.vmem %s2, %s286
        %s288 = smul.u32 2, %s21
      $region44: #{dgcnn_partseg_forward.23} parent=31 // pred_fallthru
        _
    $region32: #{dgcnn_partseg_forward.23} parent=5 // pred_fallthru
      _
    %p289 = scmp.le.s32.totalorder 1, %s13
    %p290 = scmp.lt.s32.totalorder %s13, 3
    %p291 = pnand %p289, %p290
    %p292 = pneg %p291
    // Predicated region
    $region45: #{dgcnn_partseg_forward.23} parent=5 // pred_check
      _
    $region46: #{dgcnn_partseg_forward.23} parent=5 // pred_check_branch
      %294 = sbr.rel (%p291) target = $region48
    $region47: #{dgcnn_partseg_forward.23} parent=5 // pred_region
      %s295 = ssub.s32 %s13, 1
      %s296 = smul.u32 2, %s23
      %p297 = scmp.lt.s32.totalorder %s22, 1
      %s298 = scalar_select %p297, %s22, 1
      %p299 = scmp.lt.s32.totalorder %s296, 1
      %s300 = scalar_select %p299, %s296, 1
      %s301 = smul.addr %s298, 2
      %s302 = sadd.s32 %s300, %s301
      %s303 = smul.addr %s302, 4
      %s304 = scalar_lea.vmem %s0, %s303
      %p305 = pneg %p53
      %p306 = pneg %p50
      %s307 = smul.u32 2, %s23
      %p308 = scmp.lt.s32.totalorder %s22, 1
      %s309 = scalar_select %p308, %s22, 1
      %p310 = scmp.lt.s32.totalorder %s307, 1
      %s311 = scalar_select %p310, %s307, 1
      %s312 = smul.addr %s309, 2
      %s313 = sadd.s32 %s311, %s312
      %s314 = smul.addr %s313, 4
      %s315 = scalar_lea.vmem %s1, %s314
      %p316 = pneg %p81
      %p317 = pneg %p78
      %s318 = smul.u32 2, %s23
      %p319 = scmp.lt.s32.totalorder %s22, 1
      %s320 = scalar_select %p319, %s22, 1
      %p321 = scmp.lt.s32.totalorder %s318, 1
      %s322 = scalar_select %p321, %s318, 1
      %s323 = smul.addr %s320, 2
      %s324 = sadd.s32 %s322, %s323
      %s325 = smul.addr %s324, 4
      %s326 = scalar_lea.vmem %s2, %s325
      %p327 = pneg %p109
      %p328 = pneg %p106
      %p329 = pneg %p130
      %p330 = pneg %p127
      %p331 = pneg %p151
      %p332 = pneg %p148
      %p333 = pneg %p172
      %p334 = pneg %p169
      %p335 = pneg %p193
      %p336 = pneg %p190
      %p337 = pneg %p219
      %p338 = pneg %p216
      %p339 = scmp.lt.s32.totalorder %s22, 1
      %s340 = scalar_select %p339, %s22, 1
      %s341 = smul.addr %s340, 8
      %s342 = scalar_lea.vmem %s7, %s341
      %s343 = smul.u32 2, %s23
      %p344 = scmp.lt.s32.totalorder %s22, 1
      %s345 = scalar_select %p344, %s22, 1
      %p346 = scmp.lt.s32.totalorder %s343, 1
      %s347 = scalar_select %p346, %s343, 1
      %s348 = smul.addr %s345, 2
      %s349 = sadd.s32 %s347, %s348
      %s350 = smul.addr %s349, 4
      %s351 = scalar_lea.vmem %s0, %s350
      %s352 = smul.u32 2, %s23
      %s353 = smul.u32 2, %s23
      %p354 = scmp.lt.s32.totalorder %s22, 1
      %s355 = scalar_select %p354, %s22, 1
      %p356 = scmp.lt.s32.totalorder %s353, 1
      %s357 = scalar_select %p356, %s353, 1
      %s358 = smul.addr %s355, 2
      %s359 = sadd.s32 %s357, %s358
      %s360 = smul.addr %s359, 4
      %s361 = scalar_lea.vmem %s1, %s360
      %s362 = smul.u32 2, %s23
      %s363 = smul.u32 2, %s23
      %p364 = scmp.lt.s32.totalorder %s22, 1
      %s365 = scalar_select %p364, %s22, 1
      %p366 = scmp.lt.s32.totalorder %s363, 1
      %s367 = scalar_select %p366, %s363, 1
      %s368 = smul.addr %s365, 2
      %s369 = sadd.s32 %s367, %s368
      %s370 = smul.addr %s369, 4
      %s371 = scalar_lea.vmem %s2, %s370
      %s372 = smul.u32 2, %s23
      %p373 = scmp.lt.s32.totalorder %s22, 1
      %s374 = scalar_select %p373, %s22, 1
      %s375 = smul.addr %s374, 8
      %s376 = scalar_lea.vmem %s7, %s375
      %v378 = vld [vmem:[%s351] sm:$0xf]
      %v379 = vld [vmem:[%s351 + $0x4] sm:$0xf]
      %v380 = vld [vmem:[%s3] sm:$0xff]
      %v381 = vld [vmem:[%s3 + $0x8] sm:$0xff]
      %v382 = vld [vmem:[%s3 + $0x10] sm:$0xff]
      %v383 = vld [vmem:[%s3 + $0x18] sm:$0xff]
      %v384 = vld [vmem:[%s3 + $0x20] sm:$0xff]
      %v385 = vld [vmem:[%s3 + $0x28] sm:$0xff]
      %v386 = vld [vmem:[%s3 + $0x30] sm:$0xff]
      %v387 = vld [vmem:[%s3 + $0x38] sm:$0xff]
      %v388 = vld [vmem:[%s3 + $0x40] sm:$0xff]
      %v389 = vld [vmem:[%s3 + $0x48] sm:$0xff]
      %v390 = vld [vmem:[%s3 + $0x50] sm:$0xff]
      %v391 = vld [vmem:[%s3 + $0x58] sm:$0xff]
      %v392 = vld [vmem:[%s3 + $0x60] sm:$0xff]
      %v393 = vld [vmem:[%s3 + $0x68] sm:$0xff]
      %v394 = vld [vmem:[%s3 + $0x70] sm:$0xff]
      %v395 = vld [vmem:[%s3 + $0x78] sm:$0xff]
      %v396 = vld [vmem:[%s3 + $0x80] sm:$0xff]
      %v397 = vld [vmem:[%s3 + $0x88] sm:$0xff]
      %v398 = vld [vmem:[%s3 + $0x90] sm:$0xff]
      %v399 = vld [vmem:[%s3 + $0x98] sm:$0xff]
      %v400 = vld [vmem:[%s3 + $0xa0] sm:$0xff]
      %v401 = vld [vmem:[%s3 + $0xa8] sm:$0xff]
      %v402 = vld [vmem:[%s3 + $0xb0] sm:$0xff]
      %v403 = vld [vmem:[%s3 + $0xb8] sm:$0xff]
      %v404 = vld [vmem:[%s3 + $0xc0] sm:$0xff]
      %v405 = vld [vmem:[%s3 + $0xc8] sm:$0xff]
      %v406 = vld [vmem:[%s3 + $0xd0] sm:$0xff]
      %v407 = vld [vmem:[%s3 + $0xd8] sm:$0xff]
      %v408 = vld [vmem:[%s3 + $0xe0] sm:$0xff]
      %v409 = vld [vmem:[%s3 + $0xe8] sm:$0xff]
      %v410 = vld [vmem:[%s3 + $0xf0] sm:$0xff]
      %v411 = vld [vmem:[%s3 + $0xf8] sm:$0xff]
      %v412 = vld [vmem:[%s361] sm:$0xf]
      %v413 = vld [vmem:[%s361 + $0x4] sm:$0xf]
      %v414 = vld [vmem:[%s4] sm:$0xff]
      %v415 = vld [vmem:[%s4 + $0x8] sm:$0xff]
      %v416 = vld [vmem:[%s4 + $0x10] sm:$0xff]
      %v417 = vld [vmem:[%s4 + $0x18] sm:$0xff]
      %v418 = vld [vmem:[%s4 + $0x20] sm:$0xff]
      %v419 = vld [vmem:[%s4 + $0x28] sm:$0xff]
      %v420 = vld [vmem:[%s4 + $0x30] sm:$0xff]
      %v421 = vld [vmem:[%s4 + $0x38] sm:$0xff]
      %v422 = vld [vmem:[%s4 + $0x40] sm:$0xff]
      %v423 = vld [vmem:[%s4 + $0x48] sm:$0xff]
      %v424 = vld [vmem:[%s4 + $0x50] sm:$0xff]
      %v425 = vld [vmem:[%s4 + $0x58] sm:$0xff]
      %v426 = vld [vmem:[%s4 + $0x60] sm:$0xff]
      %v427 = vld [vmem:[%s4 + $0x68] sm:$0xff]
      %v428 = vld [vmem:[%s4 + $0x70] sm:$0xff]
      %v429 = vld [vmem:[%s4 + $0x78] sm:$0xff]
      %v430 = vld [vmem:[%s4 + $0x80] sm:$0xff]
      %v431 = vld [vmem:[%s4 + $0x88] sm:$0xff]
      %v432 = vld [vmem:[%s4 + $0x90] sm:$0xff]
      %v433 = vld [vmem:[%s4 + $0x98] sm:$0xff]
      %v434 = vld [vmem:[%s4 + $0xa0] sm:$0xff]
      %v435 = vld [vmem:[%s4 + $0xa8] sm:$0xff]
      %v436 = vld [vmem:[%s4 + $0xb0] sm:$0xff]
      %v437 = vld [vmem:[%s4 + $0xb8] sm:$0xff]
      %v438 = vld [vmem:[%s4 + $0xc0] sm:$0xff]
      %v439 = vld [vmem:[%s4 + $0xc8] sm:$0xff]
      %v440 = vld [vmem:[%s4 + $0xd0] sm:$0xff]
      %v441 = vld [vmem:[%s4 + $0xd8] sm:$0xff]
      %v442 = vld [vmem:[%s4 + $0xe0] sm:$0xff]
      %v443 = vld [vmem:[%s4 + $0xe8] sm:$0xff]
      %v444 = vld [vmem:[%s4 + $0xf0] sm:$0xff]
      %v445 = vld [vmem:[%s4 + $0xf8] sm:$0xff]
      %v448 = vunpack.c.l.b16 %v412
      %v449 = vunpack.c.l.b16 %v413
      %v450 = vpack.c.b16 %v449, %v448
      %v483 = vunpack.c.l.b16 %v414
      %v484 = vunpack.c.h.b16 %v414
      %v485 = vunpack.c.l.b16 %v415
      %v486 = vunpack.c.h.b16 %v415
      %v487 = vunpack.c.l.b16 %v416
      %v488 = vunpack.c.h.b16 %v416
      %v489 = vunpack.c.l.b16 %v417
      %v490 = vunpack.c.h.b16 %v417
      %v491 = vunpack.c.l.b16 %v418
      %v492 = vunpack.c.h.b16 %v418
      %v493 = vunpack.c.l.b16 %v419
      %v494 = vunpack.c.h.b16 %v419
      %v495 = vunpack.c.l.b16 %v420
      %v496 = vunpack.c.h.b16 %v420
      %v497 = vunpack.c.l.b16 %v421
      %v498 = vunpack.c.h.b16 %v421
      %v499 = vunpack.c.l.b16 %v422
      %v500 = vunpack.c.h.b16 %v422
      %v501 = vunpack.c.l.b16 %v423
      %v502 = vunpack.c.h.b16 %v423
      %v503 = vunpack.c.l.b16 %v424
      %v504 = vunpack.c.h.b16 %v424
      %v505 = vunpack.c.l.b16 %v425
      %v506 = vunpack.c.h.b16 %v425
      %v507 = vunpack.c.l.b16 %v426
      %v508 = vunpack.c.h.b16 %v426
      %v509 = vunpack.c.l.b16 %v427
      %v510 = vunpack.c.h.b16 %v427
      %v511 = vunpack.c.l.b16 %v428
      %v512 = vunpack.c.h.b16 %v428
      %v513 = vunpack.c.l.b16 %v429
      %v514 = vunpack.c.h.b16 %v429
      %v515 = vunpack.c.l.b16 %v430
      %v516 = vunpack.c.h.b16 %v430
      %v517 = vunpack.c.l.b16 %v431
      %v518 = vunpack.c.h.b16 %v431
      %v519 = vunpack.c.l.b16 %v432
      %v520 = vunpack.c.h.b16 %v432
      %v521 = vunpack.c.l.b16 %v433
      %v522 = vunpack.c.h.b16 %v433
      %v523 = vunpack.c.l.b16 %v434
      %v524 = vunpack.c.h.b16 %v434
      %v525 = vunpack.c.l.b16 %v435
      %v526 = vunpack.c.h.b16 %v435
      %v527 = vunpack.c.l.b16 %v436
      %v528 = vunpack.c.h.b16 %v436
      %v529 = vunpack.c.l.b16 %v437
      %v530 = vunpack.c.h.b16 %v437
      %v531 = vunpack.c.l.b16 %v438
      %v532 = vunpack.c.h.b16 %v438
      %v533 = vunpack.c.l.b16 %v439
      %v534 = vunpack.c.h.b16 %v439
      %v535 = vunpack.c.l.b16 %v440
      %v536 = vunpack.c.h.b16 %v440
      %v537 = vunpack.c.l.b16 %v441
      %v538 = vunpack.c.h.b16 %v441
      %v539 = vunpack.c.l.b16 %v442
      %v540 = vunpack.c.h.b16 %v442
      %v541 = vunpack.c.l.b16 %v443
      %v542 = vunpack.c.h.b16 %v443
      %v543 = vunpack.c.l.b16 %v444
      %v544 = vunpack.c.h.b16 %v444
      %v545 = vunpack.c.l.b16 %v445
      %v546 = vunpack.c.h.b16 %v445
      %v547 = vpack.c.b16 %v491, %v483
      %v548 = vpack.c.b16 %v492, %v484
      %v549 = vpack.c.b16 %v493, %v485
      %v550 = vpack.c.b16 %v494, %v486
      %v551 = vpack.c.b16 %v495, %v487
      %v552 = vpack.c.b16 %v496, %v488
      %v553 = vpack.c.b16 %v497, %v489
      %v554 = vpack.c.b16 %v498, %v490
      %v555 = vpack.c.b16 %v507, %v499
      %v556 = vpack.c.b16 %v508, %v500
      %v557 = vpack.c.b16 %v509, %v501
      %v558 = vpack.c.b16 %v510, %v502
      %v559 = vpack.c.b16 %v511, %v503
      %v560 = vpack.c.b16 %v512, %v504
      %v561 = vpack.c.b16 %v513, %v505
      %v562 = vpack.c.b16 %v514, %v506
      %v563 = vpack.c.b16 %v523, %v515
      %v564 = vpack.c.b16 %v524, %v516
      %v565 = vpack.c.b16 %v525, %v517
      %v566 = vpack.c.b16 %v526, %v518
      %v567 = vpack.c.b16 %v527, %v519
      %v568 = vpack.c.b16 %v528, %v520
      %v569 = vpack.c.b16 %v529, %v521
      %v570 = vpack.c.b16 %v530, %v522
      %v571 = vpack.c.b16 %v539, %v531
      %v572 = vpack.c.b16 %v540, %v532
      %v573 = vpack.c.b16 %v541, %v533
      %v574 = vpack.c.b16 %v542, %v534
      %v575 = vpack.c.b16 %v543, %v535
      %v576 = vpack.c.b16 %v544, %v536
      %v577 = vpack.c.b16 %v545, %v537
      %v578 = vpack.c.b16 %v546, %v538
      %vm611 = vcmask 523264
      %v613 = vsel %vm611, %v450, 0
      %615 = vmatprep.subr.bf16.mxu0 %v548
      %616 = vmatpush1.bf16.msra.mxu0 %v547
      %617 = vmatprep.subr.bf16.mxu0 %v556
      %618 = vmatpush1.bf16.msra.mxu0 %v555
      %619 = vmatprep.subr.bf16.mxu0 %v564
      %620 = vmatpush1.bf16.msra.mxu0 %v563
      %621 = vmatprep.subr.bf16.mxu0 %v572
      %622 = vmatpush1.bf16.msra.mxu0 %v571
      %623 = vmatprep.subr.bf16.mxu0 0
      %624 = vmatpush1.bf16.msra.mxu0 0
      %625 = vmatprep.subr.bf16.mxu0 0
      %626 = vmatpush1.bf16.msra.mxu0 0
      %627 = vmatprep.subr.bf16.mxu0 0
      %628 = vmatpush1.bf16.msra.mxu0 0
      %629 = vmatprep.subr.bf16.mxu0 0
      %630 = vmatpush1.bf16.msra.mxu0 0
      %631 = vmatprep.subr.bf16.mxu0 0
      %632 = vmatpush1.bf16.msra.mxu0 0
      %633 = vmatprep.subr.bf16.mxu0 0
      %634 = vmatpush1.bf16.msra.mxu0 0
      %635 = vmatprep.subr.bf16.mxu0 0
      %636 = vmatpush1.bf16.msra.mxu0 0
      %637 = vmatprep.subr.bf16.mxu0 0
      %638 = vmatpush1.bf16.msra.mxu0 0
      %639 = vmatprep.subr.bf16.mxu0 0
      %640 = vmatpush1.bf16.msra.mxu0 0
      %641 = vmatprep.subr.bf16.mxu0 0
      %642 = vmatpush1.bf16.msra.mxu0 0
      %643 = vmatprep.subr.bf16.mxu0 0
      %644 = vmatpush1.bf16.msra.mxu0 0
      %645 = vmatprep.subr.bf16.mxu0 0
      %646 = vmatpush1.bf16.msra.mxu0 0
      %647 = vmatprep.mubr.bf16.mxu0 0
      %648 = vmatmul.mubr.bf16.gmra.mrb[0].mxu0 %v613
      %v649 = vpop.f32.mrb[0].mxu0
      %v650 = vadd.f32 0.0, %v649
      %v651 = vpop.f32.mrb[0].mxu0
      %v652 = vadd.f32 0.0, %v651
      %v653 = vpop.f32.mrb[0].mxu0
      %v654 = vadd.f32 0.0, %v653
      %v655 = vpop.f32.mrb[0].mxu0
      %v656 = vadd.f32 0.0, %v655
      %657 = vdwg.mxu0
      %658 = vmatprep.subr.bf16.mxu0 %v550
      %659 = vmatpush1.bf16.msra.mxu0 %v549
      %660 = vmatprep.subr.bf16.mxu0 %v558
      %661 = vmatpush1.bf16.msra.mxu0 %v557
      %662 = vmatprep.subr.bf16.mxu0 %v566
      %663 = vmatpush1.bf16.msra.mxu0 %v565
      %664 = vmatprep.subr.bf16.mxu0 %v574
      %665 = vmatpush1.bf16.msra.mxu0 %v573
      %666 = vmatprep.subr.bf16.mxu0 0
      %667 = vmatpush1.bf16.msra.mxu0 0
      %668 = vmatprep.subr.bf16.mxu0 0
      %669 = vmatpush1.bf16.msra.mxu0 0
      %670 = vmatprep.subr.bf16.mxu0 0
      %671 = vmatpush1.bf16.msra.mxu0 0
      %672 = vmatprep.subr.bf16.mxu0 0
      %673 = vmatpush1.bf16.msra.mxu0 0
      %674 = vmatprep.subr.bf16.mxu0 0
      %675 = vmatpush1.bf16.msra.mxu0 0
      %676 = vmatprep.subr.bf16.mxu0 0
      %677 = vmatpush1.bf16.msra.mxu0 0
      %678 = vmatprep.subr.bf16.mxu0 0
      %679 = vmatpush1.bf16.msra.mxu0 0
      %680 = vmatprep.subr.bf16.mxu0 0
      %681 = vmatpush1.bf16.msra.mxu0 0
      %682 = vmatprep.subr.bf16.mxu0 0
      %683 = vmatpush1.bf16.msra.mxu0 0
      %684 = vmatprep.subr.bf16.mxu0 0
      %685 = vmatpush1.bf16.msra.mxu0 0
      %686 = vmatprep.subr.bf16.mxu0 0
      %687 = vmatpush1.bf16.msra.mxu0 0
      %688 = vmatprep.subr.bf16.mxu0 0
      %689 = vmatpush1.bf16.msra.mxu0 0
      %690 = vmatprep.mubr.bf16.mxu0 0
      %691 = vmatmul.mubr.bf16.gmra.mrb[0].mxu0 %v613
      %v692 = vpop.f32.mrb[0].mxu0
      %v693 = vadd.f32 0.0, %v692
      %v694 = vpop.f32.mrb[0].mxu0
      %v695 = vadd.f32 0.0, %v694
      %v696 = vpop.f32.mrb[0].mxu0
      %v697 = vadd.f32 0.0, %v696
      %v698 = vpop.f32.mrb[0].mxu0
      %v699 = vadd.f32 0.0, %v698
      %700 = vdwg.mxu0
      %701 = vmatprep.subr.bf16.mxu0 %v552
      %702 = vmatpush1.bf16.msra.mxu0 %v551
      %703 = vmatprep.subr.bf16.mxu0 %v560
      %704 = vmatpush1.bf16.msra.mxu0 %v559
      %705 = vmatprep.subr.bf16.mxu0 %v568
      %706 = vmatpush1.bf16.msra.mxu0 %v567
      %707 = vmatprep.subr.bf16.mxu0 %v576
      %708 = vmatpush1.bf16.msra.mxu0 %v575
      %709 = vmatprep.subr.bf16.mxu0 0
      %710 = vmatpush1.bf16.msra.mxu0 0
      %711 = vmatprep.subr.bf16.mxu0 0
      %712 = vmatpush1.bf16.msra.mxu0 0
      %713 = vmatprep.subr.bf16.mxu0 0
      %714 = vmatpush1.bf16.msra.mxu0 0
      %715 = vmatprep.subr.bf16.mxu0 0
      %716 = vmatpush1.bf16.msra.mxu0 0
      %717 = vmatprep.subr.bf16.mxu0 0
      %718 = vmatpush1.bf16.msra.mxu0 0
      %719 = vmatprep.subr.bf16.mxu0 0
      %720 = vmatpush1.bf16.msra.mxu0 0
      %721 = vmatprep.subr.bf16.mxu0 0
      %722 = vmatpush1.bf16.msra.mxu0 0
      %723 = vmatprep.subr.bf16.mxu0 0
      %724 = vmatpush1.bf16.msra.mxu0 0
      %725 = vmatprep.subr.bf16.mxu0 0
      %726 = vmatpush1.bf16.msra.mxu0 0
      %727 = vmatprep.subr.bf16.mxu0 0
      %728 = vmatpush1.bf16.msra.mxu0 0
      %729 = vmatprep.subr.bf16.mxu0 0
      %730 = vmatpush1.bf16.msra.mxu0 0
      %731 = vmatprep.subr.bf16.mxu0 0
      %732 = vmatpush1.bf16.msra.mxu0 0
      %733 = vmatprep.mubr.bf16.mxu0 0
      %734 = vmatmul.mubr.bf16.gmra.mrb[0].mxu0 %v613
      %v735 = vpop.f32.mrb[0].mxu0
      %v736 = vadd.f32 0.0, %v735
      %v737 = vpop.f32.mrb[0].mxu0
      %v738 = vadd.f32 0.0, %v737
      %v739 = vpop.f32.mrb[0].mxu0
      %v740 = vadd.f32 0.0, %v739
      %v741 = vpop.f32.mrb[0].mxu0
      %v742 = vadd.f32 0.0, %v741
      %743 = vdwg.mxu0
      %744 = vmatprep.subr.bf16.mxu0 %v554
      %745 = vmatpush1.bf16.msra.mxu0 %v553
      %746 = vmatprep.subr.bf16.mxu0 %v562
      %747 = vmatpush1.bf16.msra.mxu0 %v561
      %748 = vmatprep.subr.bf16.mxu0 %v570
      %749 = vmatpush1.bf16.msra.mxu0 %v569
      %750 = vmatprep.subr.bf16.mxu0 %v578
      %751 = vmatpush1.bf16.msra.mxu0 %v577
      %752 = vmatprep.subr.bf16.mxu0 0
      %753 = vmatpush1.bf16.msra.mxu0 0
      %754 = vmatprep.subr.bf16.mxu0 0
      %755 = vmatpush1.bf16.msra.mxu0 0
      %756 = vmatprep.subr.bf16.mxu0 0
      %757 = vmatpush1.bf16.msra.mxu0 0
      %758 = vmatprep.subr.bf16.mxu0 0
      %759 = vmatpush1.bf16.msra.mxu0 0
      %760 = vmatprep.subr.bf16.mxu0 0
      %761 = vmatpush1.bf16.msra.mxu0 0
      %762 = vmatprep.subr.bf16.mxu0 0
      %763 = vmatpush1.bf16.msra.mxu0 0
      %764 = vmatprep.subr.bf16.mxu0 0
      %765 = vmatpush1.bf16.msra.mxu0 0
      %766 = vmatprep.subr.bf16.mxu0 0
      %767 = vmatpush1.bf16.msra.mxu0 0
      %768 = vmatprep.subr.bf16.mxu0 0
      %769 = vmatpush1.bf16.msra.mxu0 0
      %770 = vmatprep.subr.bf16.mxu0 0
      %771 = vmatpush1.bf16.msra.mxu0 0
      %772 = vmatprep.subr.bf16.mxu0 0
      %773 = vmatpush1.bf16.msra.mxu0 0
      %774 = vmatprep.subr.bf16.mxu0 0
      %775 = vmatpush1.bf16.msra.mxu0 0
      %776 = vmatprep.mubr.bf16.mxu0 0
      %777 = vmatmul.mubr.bf16.gmra.mrb[0].mxu0 %v613
      %v778 = vpop.f32.mrb[0].mxu0
      %v779 = vadd.f32 0.0, %v778
      %v780 = vpop.f32.mrb[0].mxu0
      %v781 = vadd.f32 0.0, %v780
      %v782 = vpop.f32.mrb[0].mxu0
      %v783 = vadd.f32 0.0, %v782
      %v784 = vpop.f32.mrb[0].mxu0
      %v785 = vadd.f32 0.0, %v784
      %786 = vdwg.mxu0
      %v789 = vunpack.c.l.b16 %v378
      %v790 = vunpack.c.l.b16 %v379
      %v791 = vpack.c.b16 %v790, %v789
      %v824 = vunpack.c.l.b16 %v380
      %v825 = vunpack.c.h.b16 %v380
      %v826 = vunpack.c.l.b16 %v381
      %v827 = vunpack.c.h.b16 %v381
      %v828 = vunpack.c.l.b16 %v382
      %v829 = vunpack.c.h.b16 %v382
      %v830 = vunpack.c.l.b16 %v383
      %v831 = vunpack.c.h.b16 %v383
      %v832 = vunpack.c.l.b16 %v384
      %v833 = vunpack.c.h.b16 %v384
      %v834 = vunpack.c.l.b16 %v385
      %v835 = vunpack.c.h.b16 %v385
      %v836 = vunpack.c.l.b16 %v386
      %v837 = vunpack.c.h.b16 %v386
      %v838 = vunpack.c.l.b16 %v387
      %v839 = vunpack.c.h.b16 %v387
      %v840 = vunpack.c.l.b16 %v388
      %v841 = vunpack.c.h.b16 %v388
      %v842 = vunpack.c.l.b16 %v389
      %v843 = vunpack.c.h.b16 %v389
      %v844 = vunpack.c.l.b16 %v390
      %v845 = vunpack.c.h.b16 %v390
      %v846 = vunpack.c.l.b16 %v391
      %v847 = vunpack.c.h.b16 %v391
      %v848 = vunpack.c.l.b16 %v392
      %v849 = vunpack.c.h.b16 %v392
      %v850 = vunpack.c.l.b16 %v393
      %v851 = vunpack.c.h.b16 %v393
      %v852 = vunpack.c.l.b16 %v394
      %v853 = vunpack.c.h.b16 %v394
      %v854 = vunpack.c.l.b16 %v395
      %v855 = vunpack.c.h.b16 %v395
      %v856 = vunpack.c.l.b16 %v396
      %v857 = vunpack.c.h.b16 %v396
      %v858 = vunpack.c.l.b16 %v397
      %v859 = vunpack.c.h.b16 %v397
      %v860 = vunpack.c.l.b16 %v398
      %v861 = vunpack.c.h.b16 %v398
      %v862 = vunpack.c.l.b16 %v399
      %v863 = vunpack.c.h.b16 %v399
      %v864 = vunpack.c.l.b16 %v400
      %v865 = vunpack.c.h.b16 %v400
      %v866 = vunpack.c.l.b16 %v401
      %v867 = vunpack.c.h.b16 %v401
      %v868 = vunpack.c.l.b16 %v402
      %v869 = vunpack.c.h.b16 %v402
      %v870 = vunpack.c.l.b16 %v403
      %v871 = vunpack.c.h.b16 %v403
      %v872 = vunpack.c.l.b16 %v404
      %v873 = vunpack.c.h.b16 %v404
      %v874 = vunpack.c.l.b16 %v405
      %v875 = vunpack.c.h.b16 %v405
      %v876 = vunpack.c.l.b16 %v406
      %v877 = vunpack.c.h.b16 %v406
      %v878 = vunpack.c.l.b16 %v407
      %v879 = vunpack.c.h.b16 %v407
      %v880 = vunpack.c.l.b16 %v408
      %v881 = vunpack.c.h.b16 %v408
      %v882 = vunpack.c.l.b16 %v409
      %v883 = vunpack.c.h.b16 %v409
      %v884 = vunpack.c.l.b16 %v410
      %v885 = vunpack.c.h.b16 %v410
      %v886 = vunpack.c.l.b16 %v411
      %v887 = vunpack.c.h.b16 %v411
      %v888 = vpack.c.b16 %v832, %v824
      %v889 = vpack.c.b16 %v833, %v825
      %v890 = vpack.c.b16 %v834, %v826
      %v891 = vpack.c.b16 %v835, %v827
      %v892 = vpack.c.b16 %v836, %v828
      %v893 = vpack.c.b16 %v837, %v829
      %v894 = vpack.c.b16 %v838, %v830
      %v895 = vpack.c.b16 %v839, %v831
      %v896 = vpack.c.b16 %v848, %v840
      %v897 = vpack.c.b16 %v849, %v841
      %v898 = vpack.c.b16 %v850, %v842
      %v899 = vpack.c.b16 %v851, %v843
      %v900 = vpack.c.b16 %v852, %v844
      %v901 = vpack.c.b16 %v853, %v845
      %v902 = vpack.c.b16 %v854, %v846
      %v903 = vpack.c.b16 %v855, %v847
      %v904 = vpack.c.b16 %v864, %v856
      %v905 = vpack.c.b16 %v865, %v857
      %v906 = vpack.c.b16 %v866, %v858
      %v907 = vpack.c.b16 %v867, %v859
      %v908 = vpack.c.b16 %v868, %v860
      %v909 = vpack.c.b16 %v869, %v861
      %v910 = vpack.c.b16 %v870, %v862
      %v911 = vpack.c.b16 %v871, %v863
      %v912 = vpack.c.b16 %v880, %v872
      %v913 = vpack.c.b16 %v881, %v873
      %v914 = vpack.c.b16 %v882, %v874
      %v915 = vpack.c.b16 %v883, %v875
      %v916 = vpack.c.b16 %v884, %v876
      %v917 = vpack.c.b16 %v885, %v877
      %v918 = vpack.c.b16 %v886, %v878
      %v919 = vpack.c.b16 %v887, %v879
      %v953 = vsel %vm611, %v791, 0
      %955 = vmatprep.subr.bf16.mxu0 %v889
      %956 = vmatpush1.bf16.msra.mxu0 %v888
      %957 = vmatprep.subr.bf16.mxu0 %v897
      %958 = vmatpush1.bf16.msra.mxu0 %v896
      %959 = vmatprep.subr.bf16.mxu0 %v905
      %960 = vmatpush1.bf16.msra.mxu0 %v904
      %961 = vmatprep.subr.bf16.mxu0 %v913
      %962 = vmatpush1.bf16.msra.mxu0 %v912
      %963 = vmatprep.subr.bf16.mxu0 0
      %964 = vmatpush1.bf16.msra.mxu0 0
      %965 = vmatprep.subr.bf16.mxu0 0
      %966 = vmatpush1.bf16.msra.mxu0 0
      %967 = vmatprep.subr.bf16.mxu0 0
      %968 = vmatpush1.bf16.msra.mxu0 0
      %969 = vmatprep.subr.bf16.mxu0 0
      %970 = vmatpush1.bf16.msra.mxu0 0
      %971 = vmatprep.subr.bf16.mxu0 0
      %972 = vmatpush1.bf16.msra.mxu0 0
      %973 = vmatprep.subr.bf16.mxu0 0
      %974 = vmatpush1.bf16.msra.mxu0 0
      %975 = vmatprep.subr.bf16.mxu0 0
      %976 = vmatpush1.bf16.msra.mxu0 0
      %977 = vmatprep.subr.bf16.mxu0 0
      %978 = vmatpush1.bf16.msra.mxu0 0
      %979 = vmatprep.subr.bf16.mxu0 0
      %980 = vmatpush1.bf16.msra.mxu0 0
      %981 = vmatprep.subr.bf16.mxu0 0
      %982 = vmatpush1.bf16.msra.mxu0 0
      %983 = vmatprep.subr.bf16.mxu0 0
      %984 = vmatpush1.bf16.msra.mxu0 0
      %985 = vmatprep.subr.bf16.mxu0 0
      %986 = vmatpush1.bf16.msra.mxu0 0
      %987 = vmatprep.mubr.bf16.mxu0 0
      %988 = vmatmul.mubr.bf16.gmra.mrb[0].mxu0 %v953
      %v989 = vpop.f32.mrb[0].mxu0
      %v990 = vadd.f32 %v650, %v989
      %v991 = vpop.f32.mrb[0].mxu0
      %v992 = vadd.f32 %v652, %v991
      %v993 = vpop.f32.mrb[0].mxu0
      %v994 = vadd.f32 %v654, %v993
      %v995 = vpop.f32.mrb[0].mxu0
      %v996 = vadd.f32 %v656, %v995
      %997 = vdwg.mxu0
      %998 = vmatprep.subr.bf16.mxu0 %v891
      %999 = vmatpush1.bf16.msra.mxu0 %v890
      %1000 = vmatprep.subr.bf16.mxu0 %v899
      %1001 = vmatpush1.bf16.msra.mxu0 %v898
      %1002 = vmatprep.subr.bf16.mxu0 %v907
      %1003 = vmatpush1.bf16.msra.mxu0 %v906
      %1004 = vmatprep.subr.bf16.mxu0 %v915
      %1005 = vmatpush1.bf16.msra.mxu0 %v914
      %1006 = vmatprep.subr.bf16.mxu0 0
      %1007 = vmatpush1.bf16.msra.mxu0 0
      %1008 = vmatprep.subr.bf16.mxu0 0
      %1009 = vmatpush1.bf16.msra.mxu0 0
      %1010 = vmatprep.subr.bf16.mxu0 0
      %1011 = vmatpush1.bf16.msra.mxu0 0
      %1012 = vmatprep.subr.bf16.mxu0 0
      %1013 = vmatpush1.bf16.msra.mxu0 0
      %1014 = vmatprep.subr.bf16.mxu0 0
      %1015 = vmatpush1.bf16.msra.mxu0 0
      %1016 = vmatprep.subr.bf16.mxu0 0
      %1017 = vmatpush1.bf16.msra.mxu0 0
      %1018 = vmatprep.subr.bf16.mxu0 0
      %1019 = vmatpush1.bf16.msra.mxu0 0
      %1020 = vmatprep.subr.bf16.mxu0 0
      %1021 = vmatpush1.bf16.msra.mxu0 0
      %1022 = vmatprep.subr.bf16.mxu0 0
      %1023 = vmatpush1.bf16.msra.mxu0 0
      %1024 = vmatprep.subr.bf16.mxu0 0
      %1025 = vmatpush1.bf16.msra.mxu0 0
      %1026 = vmatprep.subr.bf16.mxu0 0
      %1027 = vmatpush1.bf16.msra.mxu0 0
      %1028 = vmatprep.subr.bf16.mxu0 0
      %1029 = vmatpush1.bf16.msra.mxu0 0
      %1030 = vmatprep.mubr.bf16.mxu0 0
      %1031 = vmatmul.mubr.bf16.gmra.mrb[0].mxu0 %v953
      %v1032 = vpop.f32.mrb[0].mxu0
      %v1033 = vadd.f32 %v693, %v1032
      %v1034 = vpop.f32.mrb[0].mxu0
      %v1035 = vadd.f32 %v695, %v1034
      %v1036 = vpop.f32.mrb[0].mxu0
      %v1037 = vadd.f32 %v697, %v1036
      %v1038 = vpop.f32.mrb[0].mxu0
      %v1039 = vadd.f32 %v699, %v1038
      %1040 = vdwg.mxu0
      %1041 = vmatprep.subr.bf16.mxu0 %v893
      %1042 = vmatpush1.bf16.msra.mxu0 %v892
      %1043 = vmatprep.subr.bf16.mxu0 %v901
      %1044 = vmatpush1.bf16.msra.mxu0 %v900
      %1045 = vmatprep.subr.bf16.mxu0 %v909
      %1046 = vmatpush1.bf16.msra.mxu0 %v908
      %1047 = vmatprep.subr.bf16.mxu0 %v917
      %1048 = vmatpush1.bf16.msra.mxu0 %v916
      %1049 = vmatprep.subr.bf16.mxu0 0
      %1050 = vmatpush1.bf16.msra.mxu0 0
      %1051 = vmatprep.subr.bf16.mxu0 0
      %1052 = vmatpush1.bf16.msra.mxu0 0
      %1053 = vmatprep.subr.bf16.mxu0 0
      %1054 = vmatpush1.bf16.msra.mxu0 0
      %1055 = vmatprep.subr.bf16.mxu0 0
      %1056 = vmatpush1.bf16.msra.mxu0 0
      %1057 = vmatprep.subr.bf16.mxu0 0
      %1058 = vmatpush1.bf16.msra.mxu0 0
      %1059 = vmatprep.subr.bf16.mxu0 0
      %1060 = vmatpush1.bf16.msra.mxu0 0
      %1061 = vmatprep.subr.bf16.mxu0 0
      %1062 = vmatpush1.bf16.msra.mxu0 0
      %1063 = vmatprep.subr.bf16.mxu0 0
      %1064 = vmatpush1.bf16.msra.mxu0 0
      %1065 = vmatprep.subr.bf16.mxu0 0
      %1066 = vmatpush1.bf16.msra.mxu0 0
      %1067 = vmatprep.subr.bf16.mxu0 0
      %1068 = vmatpush1.bf16.msra.mxu0 0
      %1069 = vmatprep.subr.bf16.mxu0 0
      %1070 = vmatpush1.bf16.msra.mxu0 0
      %1071 = vmatprep.subr.bf16.mxu0 0
      %1072 = vmatpush1.bf16.msra.mxu0 0
      %1073 = vmatprep.mubr.bf16.mxu0 0
      %1074 = vmatmul.mubr.bf16.gmra.mrb[0].mxu0 %v953
      %v1075 = vpop.f32.mrb[0].mxu0
      %v1076 = vadd.f32 %v736, %v1075
      %v1077 = vpop.f32.mrb[0].mxu0
      %v1078 = vadd.f32 %v738, %v1077
      %v1079 = vpop.f32.mrb[0].mxu0
      %v1080 = vadd.f32 %v740, %v1079
      %v1081 = vpop.f32.mrb[0].mxu0
      %v1082 = vadd.f32 %v742, %v1081
      %1083 = vdwg.mxu0
      %1084 = vmatprep.subr.bf16.mxu0 %v895
      %1085 = vmatpush1.bf16.msra.mxu0 %v894
      %1086 = vmatprep.subr.bf16.mxu0 %v903
      %1087 = vmatpush1.bf16.msra.mxu0 %v902
      %1088 = vmatprep.subr.bf16.mxu0 %v911
      %1089 = vmatpush1.bf16.msra.mxu0 %v910
      %1090 = vmatprep.subr.bf16.mxu0 %v919
      %1091 = vmatpush1.bf16.msra.mxu0 %v918
      %1092 = vmatprep.subr.bf16.mxu0 0
      %1093 = vmatpush1.bf16.msra.mxu0 0
      %1094 = vmatprep.subr.bf16.mxu0 0
      %1095 = vmatpush1.bf16.msra.mxu0 0
      %1096 = vmatprep.subr.bf16.mxu0 0
      %1097 = vmatpush1.bf16.msra.mxu0 0
      %1098 = vmatprep.subr.bf16.mxu0 0
      %1099 = vmatpush1.bf16.msra.mxu0 0
      %1100 = vmatprep.subr.bf16.mxu0 0
      %1101 = vmatpush1.bf16.msra.mxu0 0
      %1102 = vmatprep.subr.bf16.mxu0 0
      %1103 = vmatpush1.bf16.msra.mxu0 0
      %1104 = vmatprep.subr.bf16.mxu0 0
      %1105 = vmatpush1.bf16.msra.mxu0 0
      %1106 = vmatprep.subr.bf16.mxu0 0
      %1107 = vmatpush1.bf16.msra.mxu0 0
      %1108 = vmatprep.subr.bf16.mxu0 0
      %1109 = vmatpush1.bf16.msra.mxu0 0
      %1110 = vmatprep.subr.bf16.mxu0 0
      %1111 = vmatpush1.bf16.msra.mxu0 0
      %1112 = vmatprep.subr.bf16.mxu0 0
      %1113 = vmatpush1.bf16.msra.mxu0 0
      %1114 = vmatprep.subr.bf16.mxu0 0
      %1115 = vmatpush1.bf16.msra.mxu0 0
      %1116 = vmatprep.mubr.bf16.mxu0 0
      %1117 = vmatmul.mubr.bf16.gmra.mrb[0].mxu0 %v953
      %v1118 = vpop.f32.mrb[0].mxu0
      %v1119 = vadd.f32 %v779, %v1118
      %v1120 = vpop.f32.mrb[0].mxu0
      %v1121 = vadd.f32 %v781, %v1120
      %v1122 = vpop.f32.mrb[0].mxu0
      %v1123 = vadd.f32 %v783, %v1122
      %v1124 = vpop.f32.mrb[0].mxu0
      %v1125 = vadd.f32 %v785, %v1124
      %1126 = vdwg.mxu0
      %v1127 = vld [vmem:[%s371] sm:$0xf]
      %v1128 = vld [vmem:[%s371 + $0x4] sm:$0xf]
      %v1129 = vld [vmem:[%s5] sm:$0xff]
      %v1130 = vld [vmem:[%s5 + $0x8] sm:$0xff]
      %v1131 = vld [vmem:[%s5 + $0x10] sm:$0xff]
      %v1132 = vld [vmem:[%s5 + $0x18] sm:$0xff]
      %v1133 = vld [vmem:[%s5 + $0x20] sm:$0xff]
      %v1134 = vld [vmem:[%s5 + $0x28] sm:$0xff]
      %v1135 = vld [vmem:[%s5 + $0x30] sm:$0xff]
      %v1136 = vld [vmem:[%s5 + $0x38] sm:$0xff]
      %v1137 = vld [vmem:[%s5 + $0x40] sm:$0xff]
      %v1138 = vld [vmem:[%s5 + $0x48] sm:$0xff]
      %v1139 = vld [vmem:[%s5 + $0x50] sm:$0xff]
      %v1140 = vld [vmem:[%s5 + $0x58] sm:$0xff]
      %v1141 = vld [vmem:[%s5 + $0x60] sm:$0xff]
      %v1142 = vld [vmem:[%s5 + $0x68] sm:$0xff]
      %v1143 = vld [vmem:[%s5 + $0x70] sm:$0xff]
      %v1144 = vld [vmem:[%s5 + $0x78] sm:$0xff]
      %v1145 = vld [vmem:[%s5 + $0x80] sm:$0xff]
      %v1146 = vld [vmem:[%s5 + $0x88] sm:$0xff]
      %v1147 = vld [vmem:[%s5 + $0x90] sm:$0xff]
      %v1148 = vld [vmem:[%s5 + $0x98] sm:$0xff]
      %v1149 = vld [vmem:[%s5 + $0xa0] sm:$0xff]
      %v1150 = vld [vmem:[%s5 + $0xa8] sm:$0xff]
      %v1151 = vld [vmem:[%s5 + $0xb0] sm:$0xff]
      %v1152 = vld [vmem:[%s5 + $0xb8] sm:$0xff]
      %v1153 = vld [vmem:[%s5 + $0xc0] sm:$0xff]
      %v1154 = vld [vmem:[%s5 + $0xc8] sm:$0xff]
      %v1155 = vld [vmem:[%s5 + $0xd0] sm:$0xff]
      %v1156 = vld [vmem:[%s5 + $0xd8] sm:$0xff]
      %v1157 = vld [vmem:[%s5 + $0xe0] sm:$0xff]
      %v1158 = vld [vmem:[%s5 + $0xe8] sm:$0xff]
      %v1159 = vld [vmem:[%s5 + $0xf0] sm:$0xff]
      %v1160 = vld [vmem:[%s5 + $0xf8] sm:$0xff]
      %v1163 = vunpack.c.l.b16 %v1127
      %v1164 = vunpack.c.l.b16 %v1128
      %v1165 = vpack.c.b16 %v1164, %v1163
      %v1198 = vunpack.c.l.b16 %v1129
      %v1199 = vunpack.c.h.b16 %v1129
      %v1200 = vunpack.c.l.b16 %v1130
      %v1201 = vunpack.c.h.b16 %v1130
      %v1202 = vunpack.c.l.b16 %v1131
      %v1203 = vunpack.c.h.b16 %v1131
      %v1204 = vunpack.c.l.b16 %v1132
      %v1205 = vunpack.c.h.b16 %v1132
      %v1206 = vunpack.c.l.b16 %v1133
      %v1207 = vunpack.c.h.b16 %v1133
      %v1208 = vunpack.c.l.b16 %v1134
      %v1209 = vunpack.c.h.b16 %v1134
      %v1210 = vunpack.c.l.b16 %v1135
      %v1211 = vunpack.c.h.b16 %v1135
      %v1212 = vunpack.c.l.b16 %v1136
      %v1213 = vunpack.c.h.b16 %v1136
      %v1214 = vunpack.c.l.b16 %v1137
      %v1215 = vunpack.c.h.b16 %v1137
      %v1216 = vunpack.c.l.b16 %v1138
      %v1217 = vunpack.c.h.b16 %v1138
      %v1218 = vunpack.c.l.b16 %v1139
      %v1219 = vunpack.c.h.b16 %v1139
      %v1220 = vunpack.c.l.b16 %v1140
      %v1221 = vunpack.c.h.b16 %v1140
      %v1222 = vunpack.c.l.b16 %v1141
      %v1223 = vunpack.c.h.b16 %v1141
      %v1224 = vunpack.c.l.b16 %v1142
      %v1225 = vunpack.c.h.b16 %v1142
      %v1226 = vunpack.c.l.b16 %v1143
      %v1227 = vunpack.c.h.b16 %v1143
      %v1228 = vunpack.c.l.b16 %v1144
      %v1229 = vunpack.c.h.b16 %v1144
      %v1230 = vunpack.c.l.b16 %v1145
      %v1231 = vunpack.c.h.b16 %v1145
      %v1232 = vunpack.c.l.b16 %v1146
      %v1233 = vunpack.c.h.b16 %v1146
      %v1234 = vunpack.c.l.b16 %v1147
      %v1235 = vunpack.c.h.b16 %v1147
      %v1236 = vunpack.c.l.b16 %v1148
      %v1237 = vunpack.c.h.b16 %v1148
      %v1238 = vunpack.c.l.b16 %v1149
      %v1239 = vunpack.c.h.b16 %v1149
      %v1240 = vunpack.c.l.b16 %v1150
      %v1241 = vunpack.c.h.b16 %v1150
      %v1242 = vunpack.c.l.b16 %v1151
      %v1243 = vunpack.c.h.b16 %v1151
      %v1244 = vunpack.c.l.b16 %v1152
      %v1245 = vunpack.c.h.b16 %v1152
      %v1246 = vunpack.c.l.b16 %v1153
      %v1247 = vunpack.c.h.b16 %v1153
      %v1248 = vunpack.c.l.b16 %v1154
      %v1249 = vunpack.c.h.b16 %v1154
      %v1250 = vunpack.c.l.b16 %v1155
      %v1251 = vunpack.c.h.b16 %v1155
      %v1252 = vunpack.c.l.b16 %v1156
      %v1253 = vunpack.c.h.b16 %v1156
      %v1254 = vunpack.c.l.b16 %v1157
      %v1255 = vunpack.c.h.b16 %v1157
      %v1256 = vunpack.c.l.b16 %v1158
      %v1257 = vunpack.c.h.b16 %v1158
      %v1258 = vunpack.c.l.b16 %v1159
      %v1259 = vunpack.c.h.b16 %v1159
      %v1260 = vunpack.c.l.b16 %v1160
      %v1261 = vunpack.c.h.b16 %v1160
      %v1262 = vpack.c.b16 %v1206, %v1198
      %v1263 = vpack.c.b16 %v1207, %v1199
      %v1264 = vpack.c.b16 %v1208, %v1200
      %v1265 = vpack.c.b16 %v1209, %v1201
      %v1266 = vpack.c.b16 %v1210, %v1202
      %v1267 = vpack.c.b16 %v1211, %v1203
      %v1268 = vpack.c.b16 %v1212, %v1204
      %v1269 = vpack.c.b16 %v1213, %v1205
      %v1270 = vpack.c.b16 %v1222, %v1214
      %v1271 = vpack.c.b16 %v1223, %v1215
      %v1272 = vpack.c.b16 %v1224, %v1216
      %v1273 = vpack.c.b16 %v1225, %v1217
      %v1274 = vpack.c.b16 %v1226, %v1218
      %v1275 = vpack.c.b16 %v1227, %v1219
      %v1276 = vpack.c.b16 %v1228, %v1220
      %v1277 = vpack.c.b16 %v1229, %v1221
      %v1278 = vpack.c.b16 %v1238, %v1230
      %v1279 = vpack.c.b16 %v1239, %v1231
      %v1280 = vpack.c.b16 %v1240, %v1232
      %v1281 = vpack.c.b16 %v1241, %v1233
      %v1282 = vpack.c.b16 %v1242, %v1234
      %v1283 = vpack.c.b16 %v1243, %v1235
      %v1284 = vpack.c.b16 %v1244, %v1236
      %v1285 = vpack.c.b16 %v1245, %v1237
      %v1286 = vpack.c.b16 %v1254, %v1246
      %v1287 = vpack.c.b16 %v1255, %v1247
      %v1288 = vpack.c.b16 %v1256, %v1248
      %v1289 = vpack.c.b16 %v1257, %v1249
      %v1290 = vpack.c.b16 %v1258, %v1250
      %v1291 = vpack.c.b16 %v1259, %v1251
      %v1292 = vpack.c.b16 %v1260, %v1252
      %v1293 = vpack.c.b16 %v1261, %v1253
      %v1327 = vsel %vm611, %v1165, 0
      %1329 = vmatprep.subr.bf16.mxu0 %v1263
      %1330 = vmatpush1.bf16.msra.mxu0 %v1262
      %1331 = vmatprep.subr.bf16.mxu0 %v1271
      %1332 = vmatpush1.bf16.msra.mxu0 %v1270
      %1333 = vmatprep.subr.bf16.mxu0 %v1279
      %1334 = vmatpush1.bf16.msra.mxu0 %v1278
      %1335 = vmatprep.subr.bf16.mxu0 %v1287
      %1336 = vmatpush1.bf16.msra.mxu0 %v1286
      %1337 = vmatprep.subr.bf16.mxu0 0
      %1338 = vmatpush1.bf16.msra.mxu0 0
      %1339 = vmatprep.subr.bf16.mxu0 0
      %1340 = vmatpush1.bf16.msra.mxu0 0
      %1341 = vmatprep.subr.bf16.mxu0 0
      %1342 = vmatpush1.bf16.msra.mxu0 0
      %1343 = vmatprep.subr.bf16.mxu0 0
      %1344 = vmatpush1.bf16.msra.mxu0 0
      %1345 = vmatprep.subr.bf16.mxu0 0
      %1346 = vmatpush1.bf16.msra.mxu0 0
      %1347 = vmatprep.subr.bf16.mxu0 0
      %1348 = vmatpush1.bf16.msra.mxu0 0
      %1349 = vmatprep.subr.bf16.mxu0 0
      %1350 = vmatpush1.bf16.msra.mxu0 0
      %1351 = vmatprep.subr.bf16.mxu0 0
      %1352 = vmatpush1.bf16.msra.mxu0 0
      %1353 = vmatprep.subr.bf16.mxu0 0
      %1354 = vmatpush1.bf16.msra.mxu0 0
      %1355 = vmatprep.subr.bf16.mxu0 0
      %1356 = vmatpush1.bf16.msra.mxu0 0
      %1357 = vmatprep.subr.bf16.mxu0 0
      %1358 = vmatpush1.bf16.msra.mxu0 0
      %1359 = vmatprep.subr.bf16.mxu0 0
      %1360 = vmatpush1.bf16.msra.mxu0 0
      %1361 = vmatprep.mubr.bf16.mxu0 0
      %1362 = vmatmul.mubr.bf16.gmra.mrb[0].mxu0 %v1327
      %v1363 = vpop.f32.mrb[0].mxu0
      %v1364 = vadd.f32 0.0, %v1363
      %v1365 = vpop.f32.mrb[0].mxu0
      %v1366 = vadd.f32 0.0, %v1365
      %v1367 = vpop.f32.mrb[0].mxu0
      %v1368 = vadd.f32 0.0, %v1367
      %v1369 = vpop.f32.mrb[0].mxu0
      %v1370 = vadd.f32 0.0, %v1369
      %1371 = vdwg.mxu0
      %1372 = vmatprep.subr.bf16.mxu0 %v1265
      %1373 = vmatpush1.bf16.msra.mxu0 %v1264
      %1374 = vmatprep.subr.bf16.mxu0 %v1273
      %1375 = vmatpush1.bf16.msra.mxu0 %v1272
      %1376 = vmatprep.subr.bf16.mxu0 %v1281
      %1377 = vmatpush1.bf16.msra.mxu0 %v1280
      %1378 = vmatprep.subr.bf16.mxu0 %v1289
      %1379 = vmatpush1.bf16.msra.mxu0 %v1288
      %1380 = vmatprep.subr.bf16.mxu0 0
      %1381 = vmatpush1.bf16.msra.mxu0 0
      %1382 = vmatprep.subr.bf16.mxu0 0
      %1383 = vmatpush1.bf16.msra.mxu0 0
      %1384 = vmatprep.subr.bf16.mxu0 0
      %1385 = vmatpush1.bf16.msra.mxu0 0
      %1386 = vmatprep.subr.bf16.mxu0 0
      %1387 = vmatpush1.bf16.msra.mxu0 0
      %1388 = vmatprep.subr.bf16.mxu0 0
      %1389 = vmatpush1.bf16.msra.mxu0 0
      %1390 = vmatprep.subr.bf16.mxu0 0
      %1391 = vmatpush1.bf16.msra.mxu0 0
      %1392 = vmatprep.subr.bf16.mxu0 0
      %1393 = vmatpush1.bf16.msra.mxu0 0
      %1394 = vmatprep.subr.bf16.mxu0 0
      %1395 = vmatpush1.bf16.msra.mxu0 0
      %1396 = vmatprep.subr.bf16.mxu0 0
      %1397 = vmatpush1.bf16.msra.mxu0 0
      %1398 = vmatprep.subr.bf16.mxu0 0
      %1399 = vmatpush1.bf16.msra.mxu0 0
      %1400 = vmatprep.subr.bf16.mxu0 0
      %1401 = vmatpush1.bf16.msra.mxu0 0
      %1402 = vmatprep.subr.bf16.mxu0 0
      %1403 = vmatpush1.bf16.msra.mxu0 0
      %1404 = vmatprep.mubr.bf16.mxu0 0
      %1405 = vmatmul.mubr.bf16.gmra.mrb[0].mxu0 %v1327
      %v1406 = vpop.f32.mrb[0].mxu0
      %v1407 = vadd.f32 0.0, %v1406
      %v1408 = vpop.f32.mrb[0].mxu0
      %v1409 = vadd.f32 0.0, %v1408
      %v1410 = vpop.f32.mrb[0].mxu0
      %v1411 = vadd.f32 0.0, %v1410
      %v1412 = vpop.f32.mrb[0].mxu0
      %v1413 = vadd.f32 0.0, %v1412
      %1414 = vdwg.mxu0
      %1415 = vmatprep.subr.bf16.mxu0 %v1267
      %1416 = vmatpush1.bf16.msra.mxu0 %v1266
      %1417 = vmatprep.subr.bf16.mxu0 %v1275
      %1418 = vmatpush1.bf16.msra.mxu0 %v1274
      %1419 = vmatprep.subr.bf16.mxu0 %v1283
      %1420 = vmatpush1.bf16.msra.mxu0 %v1282
      %1421 = vmatprep.subr.bf16.mxu0 %v1291
      %1422 = vmatpush1.bf16.msra.mxu0 %v1290
      %1423 = vmatprep.subr.bf16.mxu0 0
      %1424 = vmatpush1.bf16.msra.mxu0 0
      %1425 = vmatprep.subr.bf16.mxu0 0
      %1426 = vmatpush1.bf16.msra.mxu0 0
      %1427 = vmatprep.subr.bf16.mxu0 0
      %1428 = vmatpush1.bf16.msra.mxu0 0
      %1429 = vmatprep.subr.bf16.mxu0 0
      %1430 = vmatpush1.bf16.msra.mxu0 0
      %1431 = vmatprep.subr.bf16.mxu0 0
      %1432 = vmatpush1.bf16.msra.mxu0 0
      %1433 = vmatprep.subr.bf16.mxu0 0
      %1434 = vmatpush1.bf16.msra.mxu0 0
      %1435 = vmatprep.subr.bf16.mxu0 0
      %1436 = vmatpush1.bf16.msra.mxu0 0
      %1437 = vmatprep.subr.bf16.mxu0 0
      %1438 = vmatpush1.bf16.msra.mxu0 0
      %1439 = vmatprep.subr.bf16.mxu0 0
      %1440 = vmatpush1.bf16.msra.mxu0 0
      %1441 = vmatprep.subr.bf16.mxu0 0
      %1442 = vmatpush1.bf16.msra.mxu0 0
      %1443 = vmatprep.subr.bf16.mxu0 0
      %1444 = vmatpush1.bf16.msra.mxu0 0
      %1445 = vmatprep.subr.bf16.mxu0 0
      %1446 = vmatpush1.bf16.msra.mxu0 0
      %1447 = vmatprep.mubr.bf16.mxu0 0
      %1448 = vmatmul.mubr.bf16.gmra.mrb[0].mxu0 %v1327
      %v1449 = vpop.f32.mrb[0].mxu0
      %v1450 = vadd.f32 0.0, %v1449
      %v1451 = vpop.f32.mrb[0].mxu0
      %v1452 = vadd.f32 0.0, %v1451
      %v1453 = vpop.f32.mrb[0].mxu0
      %v1454 = vadd.f32 0.0, %v1453
      %v1455 = vpop.f32.mrb[0].mxu0
      %v1456 = vadd.f32 0.0, %v1455
      %1457 = vdwg.mxu0
      %1458 = vmatprep.subr.bf16.mxu0 %v1269
      %1459 = vmatpush1.bf16.msra.mxu0 %v1268
      %1460 = vmatprep.subr.bf16.mxu0 %v1277
      %1461 = vmatpush1.bf16.msra.mxu0 %v1276
      %1462 = vmatprep.subr.bf16.mxu0 %v1285
      %1463 = vmatpush1.bf16.msra.mxu0 %v1284
      %1464 = vmatprep.subr.bf16.mxu0 %v1293
      %1465 = vmatpush1.bf16.msra.mxu0 %v1292
      %1466 = vmatprep.subr.bf16.mxu0 0
      %1467 = vmatpush1.bf16.msra.mxu0 0
      %1468 = vmatprep.subr.bf16.mxu0 0
      %1469 = vmatpush1.bf16.msra.mxu0 0
      %1470 = vmatprep.subr.bf16.mxu0 0
      %1471 = vmatpush1.bf16.msra.mxu0 0
      %1472 = vmatprep.subr.bf16.mxu0 0
      %1473 = vmatpush1.bf16.msra.mxu0 0
      %1474 = vmatprep.subr.bf16.mxu0 0
      %1475 = vmatpush1.bf16.msra.mxu0 0
      %1476 = vmatprep.subr.bf16.mxu0 0
      %1477 = vmatpush1.bf16.msra.mxu0 0
      %1478 = vmatprep.subr.bf16.mxu0 0
      %1479 = vmatpush1.bf16.msra.mxu0 0
      %1480 = vmatprep.subr.bf16.mxu0 0
      %1481 = vmatpush1.bf16.msra.mxu0 0
      %1482 = vmatprep.subr.bf16.mxu0 0
      %1483 = vmatpush1.bf16.msra.mxu0 0
      %1484 = vmatprep.subr.bf16.mxu0 0
      %1485 = vmatpush1.bf16.msra.mxu0 0
      %1486 = vmatprep.subr.bf16.mxu0 0
      %1487 = vmatpush1.bf16.msra.mxu0 0
      %1488 = vmatprep.subr.bf16.mxu0 0
      %1489 = vmatpush1.bf16.msra.mxu0 0
      %1490 = vmatprep.mubr.bf16.mxu0 0
      %1491 = vmatmul.mubr.bf16.gmra.mrb[0].mxu0 %v1327
      %v1492 = vpop.f32.mrb[0].mxu0
      %v1493 = vadd.f32 0.0, %v1492
      %v1494 = vpop.f32.mrb[0].mxu0
      %v1495 = vadd.f32 0.0, %v1494
      %v1496 = vpop.f32.mrb[0].mxu0
      %v1497 = vadd.f32 0.0, %v1496
      %v1498 = vpop.f32.mrb[0].mxu0
      %v1499 = vadd.f32 0.0, %v1498
      %1500 = vdwg.mxu0
      %v1501 = vadd.f32 %v990, %v1364
      %v1502 = vadd.f32 %v992, %v1366
      %v1503 = vadd.f32 %v1033, %v1407
      %v1504 = vadd.f32 %v1035, %v1409
      %v1505 = vadd.f32 %v1076, %v1450
      %v1506 = vadd.f32 %v1078, %v1452
      %v1507 = vadd.f32 %v1119, %v1493
      %v1508 = vadd.f32 %v1121, %v1495
      %v1509 = vadd.f32 %v994, %v1368
      %v1510 = vadd.f32 %v996, %v1370
      %v1511 = vadd.f32 %v1037, %v1411
      %v1512 = vadd.f32 %v1039, %v1413
      %v1513 = vadd.f32 %v1080, %v1454
      %v1514 = vadd.f32 %v1082, %v1456
      %v1515 = vadd.f32 %v1123, %v1497
      %v1516 = vadd.f32 %v1125, %v1499
      %v1517 = vmax.f32 %v1501, %v1509
      %v1518 = vrot.slane %v1517, 4
      %v1519 = vmax.f32 %v1517, %v1518
      %v1520 = vrot.slane %v1519, 2
      %v1521 = vmax.f32 %v1519, %v1520
      %v1522 = vrot.slane %v1521, 1
      %v1523 = vmax.f32 %v1521, %v1522
      %v1524 = vmax.f32 %v1502, %v1510
      %v1525 = vrot.slane %v1524, 4
      %v1526 = vmax.f32 %v1524, %v1525
      %v1527 = vrot.slane %v1526, 2
      %v1528 = vmax.f32 %v1526, %v1527
      %v1529 = vrot.slane %v1528, 1
      %v1530 = vmax.f32 %v1528, %v1529
      %v1531 = vmax.f32 %v1503, %v1511
      %v1532 = vrot.slane %v1531, 4
      %v1533 = vmax.f32 %v1531, %v1532
      %v1534 = vrot.slane %v1533, 2
      %v1535 = vmax.f32 %v1533, %v1534
      %v1536 = vrot.slane %v1535, 1
      %v1537 = vmax.f32 %v1535, %v1536
      %v1538 = vmax.f32 %v1504, %v1512
      %v1539 = vrot.slane %v1538, 4
      %v1540 = vmax.f32 %v1538, %v1539
      %v1541 = vrot.slane %v1540, 2
      %v1542 = vmax.f32 %v1540, %v1541
      %v1543 = vrot.slane %v1542, 1
      %v1544 = vmax.f32 %v1542, %v1543
      %v1545 = vmax.f32 %v1505, %v1513
      %v1546 = vrot.slane %v1545, 4
      %v1547 = vmax.f32 %v1545, %v1546
      %v1548 = vrot.slane %v1547, 2
      %v1549 = vmax.f32 %v1547, %v1548
      %v1550 = vrot.slane %v1549, 1
      %v1551 = vmax.f32 %v1549, %v1550
      %v1552 = vmax.f32 %v1506, %v1514
      %v1553 = vrot.slane %v1552, 4
      %v1554 = vmax.f32 %v1552, %v1553
      %v1555 = vrot.slane %v1554, 2
      %v1556 = vmax.f32 %v1554, %v1555
      %v1557 = vrot.slane %v1556, 1
      %v1558 = vmax.f32 %v1556, %v1557
      %v1559 = vmax.f32 %v1507, %v1515
      %v1560 = vrot.slane %v1559, 4
      %v1561 = vmax.f32 %v1559, %v1560
      %v1562 = vrot.slane %v1561, 2
      %v1563 = vmax.f32 %v1561, %v1562
      %v1564 = vrot.slane %v1563, 1
      %v1565 = vmax.f32 %v1563, %v1564
      %v1566 = vmax.f32 %v1508, %v1516
      %v1567 = vrot.slane %v1566, 4
      %v1568 = vmax.f32 %v1566, %v1567
      %v1569 = vrot.slane %v1568, 2
      %v1570 = vmax.f32 %v1568, %v1569
      %v1571 = vrot.slane %v1570, 1
      %v1572 = vmax.f32 %v1570, %v1571
      %p1573 = scmp.eq.s32.totalorder %s23, 0
      // Predicated region
      $region49: #{dgcnn_partseg_forward.23} parent=47 // pred_check
        %p1574 = pneg %p1573
      $region50: #{dgcnn_partseg_forward.23} parent=47 // pred_check_branch
        %1576 = sbr.rel (%p1574) target = $region52
      $region51: #{dgcnn_partseg_forward.23} parent=47 // pred_region
        %v1585 = vcombine.low %v1523, %v1530
        %v1586 = vcombine.low %v1537, %v1544
        %v1587 = vcombine.low %v1551, %v1558
        %v1588 = vcombine.low %v1565, %v1572
        %v1590 = vunpack.c.l.s4 1966171168
        %v1591 = vunpack.c.0.s8 %v1590
        %v1592 = vlaneseq
        %v1593 = vshrl.u32 %v1592, 7
        %v1594 = vsub.s32 %v1591, %v1593
        %v1595 = vrot.slane %v1585, %v1594
        %v1597 = vunpack.c.l.s4 1966171168
        %v1598 = vunpack.c.0.s8 %v1597
        %v1599 = vlaneseq
        %v1600 = vshrl.u32 %v1599, 7
        %v1601 = vsub.s32 %v1598, %v1600
        %v1602 = vrot.slane %v1586, %v1601
        %v1604 = vunpack.c.l.s4 1966171168
        %v1605 = vunpack.c.0.s8 %v1604
        %v1606 = vlaneseq
        %v1607 = vshrl.u32 %v1606, 7
        %v1608 = vsub.s32 %v1605, %v1607
        %v1609 = vrot.slane %v1587, %v1608
        %v1611 = vunpack.c.l.s4 1966171168
        %v1612 = vunpack.c.0.s8 %v1611
        %v1613 = vlaneseq
        %v1614 = vshrl.u32 %v1613, 7
        %v1615 = vsub.s32 %v1612, %v1614
        %v1616 = vrot.slane %v1588, %v1615
        %v1617 = vcombine.low %v1595, %v1602
        %v1618 = vcombine.low %v1609, %v1616
        %v1620 = vunpack.c.l.s4 1966171168
        %v1621 = vunpack.c.0.s8 %v1620
        %v1622 = vlaneseq
        %v1623 = vshrl.u32 %v1622, 7
        %v1624 = vsub.s32 %v1621, %v1623
        %v1625 = vrot.slane %v1617, %v1624
        %v1627 = vunpack.c.l.s4 1966171168
        %v1628 = vunpack.c.0.s8 %v1627
        %v1629 = vlaneseq
        %v1630 = vshrl.u32 %v1629, 7
        %v1631 = vsub.s32 %v1628, %v1630
        %v1632 = vrot.slane %v1618, %v1631
        %v1633 = vcombine.low %v1625, %v1632
        %1635 = vst [vmem:[%s376] sm:$0xff] %v1633
      $region52: #{dgcnn_partseg_forward.23} parent=47 // pred_fallthru
        _
      %p1636 = scmp.ne.s32.totalorder %s23, 0
      // Predicated region
      $region53: #{dgcnn_partseg_forward.23} parent=47 // pred_check
        %p1637 = pneg %p1636
      $region54: #{dgcnn_partseg_forward.23} parent=47 // pred_check_branch
        %1639 = sbr.rel (%p1637) target = $region56
      $region55: #{dgcnn_partseg_forward.23} parent=47 // pred_region
        %v1640 = vld [vmem:[%s376] sm:$0xff]
        %v1649 = vcombine.low %v1523, %v1530
        %v1650 = vcombine.low %v1537, %v1544
        %v1651 = vcombine.low %v1551, %v1558
        %v1652 = vcombine.low %v1565, %v1572
        %v1654 = vunpack.c.l.s4 1966171168
        %v1655 = vunpack.c.0.s8 %v1654
        %v1656 = vlaneseq
        %v1657 = vshrl.u32 %v1656, 7
        %v1658 = vsub.s32 %v1655, %v1657
        %v1659 = vrot.slane %v1649, %v1658
        %v1661 = vunpack.c.l.s4 1966171168
        %v1662 = vunpack.c.0.s8 %v1661
        %v1663 = vlaneseq
        %v1664 = vshrl.u32 %v1663, 7
        %v1665 = vsub.s32 %v1662, %v1664
        %v1666 = vrot.slane %v1650, %v1665
        %v1668 = vunpack.c.l.s4 1966171168
        %v1669 = vunpack.c.0.s8 %v1668
        %v1670 = vlaneseq
        %v1671 = vshrl.u32 %v1670, 7
        %v1672 = vsub.s32 %v1669, %v1671
        %v1673 = vrot.slane %v1651, %v1672
        %v1675 = vunpack.c.l.s4 1966171168
        %v1676 = vunpack.c.0.s8 %v1675
        %v1677 = vlaneseq
        %v1678 = vshrl.u32 %v1677, 7
        %v1679 = vsub.s32 %v1676, %v1678
        %v1680 = vrot.slane %v1652, %v1679
        %v1681 = vcombine.low %v1659, %v1666
        %v1682 = vcombine.low %v1673, %v1680
        %v1684 = vunpack.c.l.s4 1966171168
        %v1685 = vunpack.c.0.s8 %v1684
        %v1686 = vlaneseq
        %v1687 = vshrl.u32 %v1686, 7
        %v1688 = vsub.s32 %v1685, %v1687
        %v1689 = vrot.slane %v1681, %v1688
        %v1691 = vunpack.c.l.s4 1966171168
        %v1692 = vunpack.c.0.s8 %v1691
        %v1693 = vlaneseq
        %v1694 = vshrl.u32 %v1693, 7
        %v1695 = vsub.s32 %v1692, %v1694
        %v1696 = vrot.slane %v1682, %v1695
        %v1697 = vcombine.low %v1689, %v1696
        %v1699 = vmax.f32 %v1640, %v1697
        %1700 = vst [vmem:[%s376] sm:$0xff] %v1699
      $region56: #{dgcnn_partseg_forward.23} parent=47 // pred_fallthru
        _
      // Predicated region
      $region57: #{dgcnn_partseg_forward.23} parent=47 // pred_check
        %p1701 = pneg %p1573
      $region58: #{dgcnn_partseg_forward.23} parent=47 // pred_check_branch
        %1703 = sbr.rel (%p1701) target = $region60
      $region59: #{dgcnn_partseg_forward.23} parent=47 // pred_region
        %v1704 = vld [vmem:[%s376] sm:$0xff]
        %v1705 = vld [vmem:[%s6] sm:$0xff]
        %v1706 = vadd.f32 %v1704, %v1705
        %vm1707 = vcmp.ge.f32.partialorder %v1706, 0.0
        %v1708 = vmul.f32 %v1706, 0.2
        %v1709 = vsel %vm1707, %v1706, %v1708
        %1710 = vst [vmem:[%s376] sm:$0xff] %v1709
      $region60: #{dgcnn_partseg_forward.23} parent=47 // pred_fallthru
        _
      %p1711 = scmp.lt.s32.totalorder %s22, 1
      %s1712 = scalar_select %p1711, %s22, 1
      %s1713 = smul.addr %s1712, 8
      %s1714 = scalar_lea.vmem %s7, %s1713
      // Predicated region
      $region61: #{dgcnn_partseg_forward.23} parent=47 // pred_check
        %p1715 = pneg %p216
      $region62: #{dgcnn_partseg_forward.23} parent=47 // pred_check_branch
        %1717 = sbr.rel (%p1715) target = $region64
      $region63: #{dgcnn_partseg_forward.23} parent=47 // pred_region
        _
      $region64: #{dgcnn_partseg_forward.23} parent=47 // pred_fallthru
        _
    $region48: #{dgcnn_partseg_forward.23} parent=5 // pred_fallthru
      _
    %p1718 = scmp.le.s32.totalorder 2, %s13
    // Predicated region
    $region65: #{dgcnn_partseg_forward.23} parent=5 // pred_check
      %p1719 = pneg %p1718
    $region66: #{dgcnn_partseg_forward.23} parent=5 // pred_check_branch
      %1721 = sbr.rel (%p1719) target = $region68
    $region67: #{dgcnn_partseg_forward.23} parent=5 // pred_region
      %s1722 = ssub.s32 %s13, 2
      // Predicated region
      $region69: #{dgcnn_partseg_forward.23} parent=67 // pred_check
        %p1723 = pneg %p222
      $region70: #{dgcnn_partseg_forward.23} parent=67 // pred_check_branch
        %1725 = sbr.rel (%p1723) target = $region72
      $region71: #{dgcnn_partseg_forward.23} parent=67 // pred_region
        %p1726 = scmp.lt.s32.totalorder %s24, 1
        %s1727 = scalar_select %p1726, %s24, 1
        %s1728 = smul.addr %s1727, 8
        %s1729 = scalar_lea.vmem %s7, %s1728
      $region72: #{dgcnn_partseg_forward.23} parent=67 // pred_fallthru
        _
    $region68: #{dgcnn_partseg_forward.23} parent=5 // pred_fallthru
      _
  $region6: #{dgcnn_partseg_forward.23} parent=0 // loop_footer
    %s17 = sadd.s32 1, %s13
  $region7: #{dgcnn_partseg_forward.23} parent=0 // loop_footer_branch
    %12 = sbr.rel target = $region3
  $region8: #{dgcnn_partseg_forward.23} parent=0 // loop_exit
    _

// kernel: dgcnn_partseg_forward.24
$region0: #{dgcnn_partseg_forward.24}
  #allocation0 [shape = 'u32[]', space=smem, size = 0x4, offset = 0x4, fixed_abs, tag = 'smem constant byte address 0x4 - core index']
  #allocation1 [shape = 'u32[144,128]{1,0:T(1,128)}', space=vmem, size = 0x12000, scoped, tag = 'internal scratch']
  %s0 = inlined_call_operand.vmem [shape: f32[2,1024], index: 0, kind: input, shape index: {}]
  %s1 = inlined_call_operand.vmem [shape: f32[2,16], index: 1, kind: input, shape index: {}]
  %s2 = inlined_call_operand.vmem [shape: f32[16,64], index: 2, kind: input, shape index: {}]
  %s3 = inlined_call_operand.vmem [shape: f32[1,64], index: 3, kind: input, shape index: {}]
  %s4 = inlined_call_operand.vmem [shape: f32[1024,256], index: 4, kind: input, shape index: {}]
  %s5 = inlined_call_operand.vmem [shape: f32[64,256], index: 5, kind: input, shape index: {}]
  %s6 = inlined_call_operand.vmem [shape: f32[1,256], index: 6, kind: input, shape index: {}]
  %s7 = inlined_call_operand.vmem [shape: f32[2,256], index: 7, kind: output, shape index: {}]
  %s8 = sld [smem:[#allocation0]]
  $region38: #{dgcnn_partseg_forward.24} parent=0
    _
  %s10 = ssub.s32 1, %s8
  %s11 = scalar_select 0, %s10, %s8
  // Predicated region
  $region2: #{dgcnn_partseg_forward.24} parent=0 // pred_check
    _
  $region3: #{dgcnn_partseg_forward.24} parent=0 // pred_check_branch
    %13 = sbr.rel (0) target = $region5
  $region4: #{dgcnn_partseg_forward.24} parent=0 // pred_region
    _
  $region5: #{dgcnn_partseg_forward.24} parent=0 // pred_fallthru
    _
  // Predicated region
  $region6: #{dgcnn_partseg_forward.24} parent=0 // pred_check
    _
  $region7: #{dgcnn_partseg_forward.24} parent=0 // pred_check_branch
    %15 = sbr.rel (0) target = $region9
  $region8: #{dgcnn_partseg_forward.24} parent=0 // pred_region
    _
  $region9: #{dgcnn_partseg_forward.24} parent=0 // pred_fallthru
    _
  // Predicated region
  $region10: #{dgcnn_partseg_forward.24} parent=0 // pred_check
    _
  $region11: #{dgcnn_partseg_forward.24} parent=0 // pred_check_branch
    %17 = sbr.rel (0) target = $region13
  $region12: #{dgcnn_partseg_forward.24} parent=0 // pred_region
    _
  $region13: #{dgcnn_partseg_forward.24} parent=0 // pred_fallthru
    _
  // Predicated region
  $region14: #{dgcnn_partseg_forward.24} parent=0 // pred_check
    _
  $region15: #{dgcnn_partseg_forward.24} parent=0 // pred_check_branch
    %19 = sbr.rel (0) target = $region17
  $region16: #{dgcnn_partseg_forward.24} parent=0 // pred_region
    _
  $region17: #{dgcnn_partseg_forward.24} parent=0 // pred_fallthru
    _
  // Predicated region
  $region18: #{dgcnn_partseg_forward.24} parent=0 // pred_check
    _
  $region19: #{dgcnn_partseg_forward.24} parent=0 // pred_check_branch
    %21 = sbr.rel (0) target = $region21
  $region20: #{dgcnn_partseg_forward.24} parent=0 // pred_region
    _
  $region21: #{dgcnn_partseg_forward.24} parent=0 // pred_fallthru
    _
  // Predicated region
  $region22: #{dgcnn_partseg_forward.24} parent=0 // pred_check
    _
  $region23: #{dgcnn_partseg_forward.24} parent=0 // pred_check_branch
    %23 = sbr.rel (0) target = $region25
  $region24: #{dgcnn_partseg_forward.24} parent=0 // pred_region
    _
  $region25: #{dgcnn_partseg_forward.24} parent=0 // pred_fallthru
    _
  // Predicated region
  $region26: #{dgcnn_partseg_forward.24} parent=0 // pred_check
    _
  $region27: #{dgcnn_partseg_forward.24} parent=0 // pred_check_branch
    %25 = sbr.rel (0) target = $region29
  $region28: #{dgcnn_partseg_forward.24} parent=0 // pred_region
    _
  $region29: #{dgcnn_partseg_forward.24} parent=0 // pred_fallthru
    _
  %v26 = vld [vmem:[%s1] sm:$0x3]
  %v27 = vld [vmem:[%s2] sm:$0xff]
  %v28 = vld [vmem:[%s2 + $0x8] sm:$0xff]
  %v29 = vld [vmem:[%s3] sm:$0x1]
  %v31 = vlaneseq
  %v32 = vshrl.u32 %v31, 7
  %v33 = vsub.s32 0, %v32
  %v34 = vrot.slane %v29, %v33
  %vm36 = vcmask 130048
  %v38 = vsel %vm36, %v26, 0
  %40 = vmatprep.subr.mxu0 0.0
  %41 = vmatpush1.msra.mxu0 %v27
  %42 = vmatprep.subr.mxu0 0.0
  %43 = vmatpush1.msra.mxu0 %v28
  %44 = vmatprep.subr.mxu0 0.0
  %45 = vmatpush1.msra.mxu0 0.0
  %46 = vmatprep.subr.mxu0 0.0
  %47 = vmatpush1.msra.mxu0 0.0
  %48 = vmatprep.subr.mxu0 0.0
  %49 = vmatpush1.msra.mxu0 0.0
  %50 = vmatprep.subr.mxu0 0.0
  %51 = vmatpush1.msra.mxu0 0.0
  %52 = vmatprep.subr.mxu0 0.0
  %53 = vmatpush1.msra.mxu0 0.0
  %54 = vmatprep.subr.mxu0 0.0
  %55 = vmatpush1.msra.mxu0 0.0
  %56 = vmatprep.subr.mxu0 0.0
  %57 = vmatpush1.msra.mxu0 0.0
  %58 = vmatprep.subr.mxu0 0.0
  %59 = vmatpush1.msra.mxu0 0.0
  %60 = vmatprep.subr.mxu0 0.0
  %61 = vmatpush1.msra.mxu0 0.0
  %62 = vmatprep.subr.mxu0 0.0
  %63 = vmatpush1.msra.mxu0 0.0
  %64 = vmatprep.subr.mxu0 0.0
  %65 = vmatpush1.msra.mxu0 0.0
  %66 = vmatprep.subr.mxu0 0.0
  %67 = vmatpush1.msra.mxu0 0.0
  %68 = vmatprep.subr.mxu0 0.0
  %69 = vmatpush1.msra.mxu0 0.0
  %70 = vmatprep.subr.mxu0 0.0
  %71 = vmatpush1.msra.mxu0 0.0
  %72 = vmatprep.subr.mxu0 0.0
  %73 = vmatpush1.msra.mxu0 0.0
  %74 = vmatprep.subr.mxu0 0.0
  %75 = vmatpush1.msra.mxu0 0.0
  %76 = vmatprep.subr.mxu0 0.0
  %77 = vmatpush1.msra.mxu0 0.0
  %78 = vmatprep.subr.mxu0 0.0
  %79 = vmatpush1.msra.mxu0 0.0
  %80 = vmatprep.subr.mxu0 0.0
  %81 = vmatpush1.msra.mxu0 0.0
  %82 = vmatprep.subr.mxu0 0.0
  %83 = vmatpush1.msra.mxu0 0.0
  %84 = vmatprep.subr.mxu0 0.0
  %85 = vmatpush1.msra.mxu0 0.0
  %86 = vmatprep.subr.mxu0 0.0
  %87 = vmatpush1.msra.mxu0 0.0
  %88 = vmatprep.subr.mxu0 0.0
  %89 = vmatpush1.msra.mxu0 0.0
  %90 = vmatprep.subr.mxu0 0.0
  %91 = vmatpush1.msra.mxu0 0.0
  %92 = vmatprep.subr.mxu0 0.0
  %93 = vmatpush1.msra.mxu0 0.0
  %94 = vmatprep.subr.mxu0 0.0
  %95 = vmatpush1.msra.mxu0 0.0
  %96 = vmatprep.subr.mxu0 0.0
  %97 = vmatpush1.msra.mxu0 0.0
  %98 = vmatprep.subr.mxu0 0.0
  %99 = vmatpush1.msra.mxu0 0.0
  %100 = vmatprep.subr.mxu0 0.0
  %101 = vmatpush1.msra.mxu0 0.0
  %102 = vmatprep.subr.mxu0 0.0
  %103 = vmatpush1.msra.mxu0 0.0
  %104 = vmatprep.mubr.f32.mxu0 0.0
  %105 = vmatmul.mubr.f32.gmra.mrb[0].mxu0 %v38
  %v106 = vpop.f32.mrb[0].mxu0
  %v107 = vadd.f32 %v34, %v106
  %v108 = vpop.f32.mrb[0].mxu0
  %109 = vdwg.mxu0
  %vm110 = vcmp.ge.f32.partialorder %v107, 0.0
  %v111 = vmul.f32 %v107, 0.2
  %v112 = vsel %vm110, %v107, %v111
  %v113 = vld [vmem:[%s0] sm:$0xff]
  %v114 = vld [vmem:[%s0 + $0x8] sm:$0xff]
  %v115 = vld [vmem:[%s4] sm:$0xff]
  %v116 = vld [vmem:[%s4 + $0x8] sm:$0xff]
  %v117 = vld [vmem:[%s4 + $0x10] sm:$0xff]
  %v118 = vld [vmem:[%s4 + $0x18] sm:$0xff]
  %v119 = vld [vmem:[%s4 + $0x20] sm:$0xff]
  %v120 = vld [vmem:[%s4 + $0x28] sm:$0xff]
  %v121 = vld [vmem:[%s4 + $0x30] sm:$0xff]
  %v122 = vld [vmem:[%s4 + $0x38] sm:$0xff]
  %v123 = vld [vmem:[%s4 + $0x40] sm:$0xff]
  %v124 = vld [vmem:[%s4 + $0x48] sm:$0xff]
  %v125 = vld [vmem:[%s4 + $0x50] sm:$0xff]
  %v126 = vld [vmem:[%s4 + $0x58] sm:$0xff]
  %v127 = vld [vmem:[%s4 + $0x60] sm:$0xff]
  %v128 = vld [vmem:[%s4 + $0x68] sm:$0xff]
  %v129 = vld [vmem:[%s4 + $0x70] sm:$0xff]
  %v130 = vld [vmem:[%s4 + $0x78] sm:$0xff]
  %v131 = vld [vmem:[%s4 + $0x80] sm:$0xff]
  %v132 = vld [vmem:[%s4 + $0x88] sm:$0xff]
  %v133 = vld [vmem:[%s4 + $0x90] sm:$0xff]
  %v134 = vld [vmem:[%s4 + $0x98] sm:$0xff]
  %v135 = vld [vmem:[%s4 + $0xa0] sm:$0xff]
  %v136 = vld [vmem:[%s4 + $0xa8] sm:$0xff]
  %v137 = vld [vmem:[%s4 + $0xb0] sm:$0xff]
  %v138 = vld [vmem:[%s4 + $0xb8] sm:$0xff]
  %v139 = vld [vmem:[%s4 + $0xc0] sm:$0xff]
  %v140 = vld [vmem:[%s4 + $0xc8] sm:$0xff]
  %v141 = vld [vmem:[%s4 + $0xd0] sm:$0xff]
  %v142 = vld [vmem:[%s4 + $0xd8] sm:$0xff]
  %v143 = vld [vmem:[%s4 + $0xe0] sm:$0xff]
  %v144 = vld [vmem:[%s4 + $0xe8] sm:$0xff]
  %v145 = vld [vmem:[%s4 + $0xf0] sm:$0xff]
  %v146 = vld [vmem:[%s4 + $0xf8] sm:$0xff]
  %v147 = vld [vmem:[%s4 + $0x100] sm:$0xff]
  %v148 = vld [vmem:[%s4 + $0x108] sm:$0xff]
  %v149 = vld [vmem:[%s4 + $0x110] sm:$0xff]
  %v150 = vld [vmem:[%s4 + $0x118] sm:$0xff]
  %v151 = vld [vmem:[%s4 + $0x120] sm:$0xff]
  %v152 = vld [vmem:[%s4 + $0x128] sm:$0xff]
  %v153 = vld [vmem:[%s4 + $0x130] sm:$0xff]
  %v154 = vld [vmem:[%s4 + $0x138] sm:$0xff]
  %v155 = vld [vmem:[%s4 + $0x140] sm:$0xff]
  %v156 = vld [vmem:[%s4 + $0x148] sm:$0xff]
  %v157 = vld [vmem:[%s4 + $0x150] sm:$0xff]
  %v158 = vld [vmem:[%s4 + $0x158] sm:$0xff]
  %v159 = vld [vmem:[%s4 + $0x160] sm:$0xff]
  %v160 = vld [vmem:[%s4 + $0x168] sm:$0xff]
  %v161 = vld [vmem:[%s4 + $0x170] sm:$0xff]
  %v162 = vld [vmem:[%s4 + $0x178] sm:$0xff]
  %v163 = vld [vmem:[%s4 + $0x180] sm:$0xff]
  %v164 = vld [vmem:[%s4 + $0x188] sm:$0xff]
  %v165 = vld [vmem:[%s4 + $0x190] sm:$0xff]
  %v166 = vld [vmem:[%s4 + $0x198] sm:$0xff]
  %v167 = vld [vmem:[%s4 + $0x1a0] sm:$0xff]
  %v168 = vld [vmem:[%s4 + $0x1a8] sm:$0xff]
  %v169 = vld [vmem:[%s4 + $0x1b0] sm:$0xff]
  %v170 = vld [vmem:[%s4 + $0x1b8] sm:$0xff]
  %v171 = vld [vmem:[%s4 + $0x1c0] sm:$0xff]
  %v172 = vld [vmem:[%s4 + $0x1c8] sm:$0xff]
  %v173 = vld [vmem:[%s4 + $0x1d0] sm:$0xff]
  %v174 = vld [vmem:[%s4 + $0x1d8] sm:$0xff]
  %v175 = vld [vmem:[%s4 + $0x1e0] sm:$0xff]
  %v176 = vld [vmem:[%s4 + $0x1e8] sm:$0xff]
  %v177 = vld [vmem:[%s4 + $0x1f0] sm:$0xff]
  %v178 = vld [vmem:[%s4 + $0x1f8] sm:$0xff]
  %v179 = vld [vmem:[%s4 + $0x200] sm:$0xff]
  %v180 = vld [vmem:[%s4 + $0x208] sm:$0xff]
  %v181 = vld [vmem:[%s4 + $0x210] sm:$0xff]
  %v182 = vld [vmem:[%s4 + $0x218] sm:$0xff]
  %v183 = vld [vmem:[%s4 + $0x220] sm:$0xff]
  %v184 = vld [vmem:[%s4 + $0x228] sm:$0xff]
  %v185 = vld [vmem:[%s4 + $0x230] sm:$0xff]
  %v186 = vld [vmem:[%s4 + $0x238] sm:$0xff]
  %v187 = vld [vmem:[%s4 + $0x240] sm:$0xff]
  %v188 = vld [vmem:[%s4 + $0x248] sm:$0xff]
  %v189 = vld [vmem:[%s4 + $0x250] sm:$0xff]
  %v190 = vld [vmem:[%s4 + $0x258] sm:$0xff]
  %v191 = vld [vmem:[%s4 + $0x260] sm:$0xff]
  %v192 = vld [vmem:[%s4 + $0x268] sm:$0xff]
  %v193 = vld [vmem:[%s4 + $0x270] sm:$0xff]
  %v194 = vld [vmem:[%s4 + $0x278] sm:$0xff]
  %v195 = vld [vmem:[%s4 + $0x280] sm:$0xff]
  %v196 = vld [vmem:[%s4 + $0x288] sm:$0xff]
  %v197 = vld [vmem:[%s4 + $0x290] sm:$0xff]
  %v198 = vld [vmem:[%s4 + $0x298] sm:$0xff]
  %v199 = vld [vmem:[%s4 + $0x2a0] sm:$0xff]
  %v200 = vld [vmem:[%s4 + $0x2a8] sm:$0xff]
  %v201 = vld [vmem:[%s4 + $0x2b0] sm:$0xff]
  %v202 = vld [vmem:[%s4 + $0x2b8] sm:$0xff]
  %v203 = vld [vmem:[%s4 + $0x2c0] sm:$0xff]
  %v204 = vld [vmem:[%s4 + $0x2c8] sm:$0xff]
  %v205 = vld [vmem:[%s4 + $0x2d0] sm:$0xff]
  %v206 = vld [vmem:[%s4 + $0x2d8] sm:$0xff]
  %v207 = vld [vmem:[%s4 + $0x2e0] sm:$0xff]
  %v208 = vld [vmem:[%s4 + $0x2e8] sm:$0xff]
  %v209 = vld [vmem:[%s4 + $0x2f0] sm:$0xff]
  %v210 = vld [vmem:[%s4 + $0x2f8] sm:$0xff]
  %v211 = vld [vmem:[%s4 + $0x300] sm:$0xff]
  %v212 = vld [vmem:[%s4 + $0x308] sm:$0xff]
  %v213 = vld [vmem:[%s4 + $0x310] sm:$0xff]
  %v214 = vld [vmem:[%s4 + $0x318] sm:$0xff]
  %v215 = vld [vmem:[%s4 + $0x320] sm:$0xff]
  %v216 = vld [vmem:[%s4 + $0x328] sm:$0xff]
  %v217 = vld [vmem:[%s4 + $0x330] sm:$0xff]
  %v218 = vld [vmem:[%s4 + $0x338] sm:$0xff]
  %v219 = vld [vmem:[%s4 + $0x340] sm:$0xff]
  %v220 = vld [vmem:[%s4 + $0x348] sm:$0xff]
  %v221 = vld [vmem:[%s4 + $0x350] sm:$0xff]
  %v222 = vld [vmem:[%s4 + $0x358] sm:$0xff]
  %v223 = vld [vmem:[%s4 + $0x360] sm:$0xff]
  %v224 = vld [vmem:[%s4 + $0x368] sm:$0xff]
  %v225 = vld [vmem:[%s4 + $0x370] sm:$0xff]
  %v226 = vld [vmem:[%s4 + $0x378] sm:$0xff]
  %v227 = vld [vmem:[%s4 + $0x380] sm:$0xff]
  %v228 = vld [vmem:[%s4 + $0x388] sm:$0xff]
  %v229 = vld [vmem:[%s4 + $0x390] sm:$0xff]
  %v230 = vld [vmem:[%s4 + $0x398] sm:$0xff]
  %v231 = vld [vmem:[%s4 + $0x3a0] sm:$0xff]
  %v232 = vld [vmem:[%s4 + $0x3a8] sm:$0xff]
  %v233 = vld [vmem:[%s4 + $0x3b0] sm:$0xff]
  %v234 = vld [vmem:[%s4 + $0x3b8] sm:$0xff]
  %v235 = vld [vmem:[%s4 + $0x3c0] sm:$0xff]
  %v236 = vld [vmem:[%s4 + $0x3c8] sm:$0xff]
  %v237 = vld [vmem:[%s4 + $0x3d0] sm:$0xff]
  %v238 = vld [vmem:[%s4 + $0x3d8] sm:$0xff]
  %v239 = vld [vmem:[%s4 + $0x3e0] sm:$0xff]
  %v240 = vld [vmem:[%s4 + $0x3e8] sm:$0xff]
  %v241 = vld [vmem:[%s4 + $0x3f0] sm:$0xff]
  %v242 = vld [vmem:[%s4 + $0x3f8] sm:$0xff]
  %v243 = vld [vmem:[%s4 + $0x400] sm:$0xff]
  %v244 = vld [vmem:[%s4 + $0x408] sm:$0xff]
  %v245 = vld [vmem:[%s4 + $0x410] sm:$0xff]
  %v246 = vld [vmem:[%s4 + $0x418] sm:$0xff]
  %v247 = vld [vmem:[%s4 + $0x420] sm:$0xff]
  %v248 = vld [vmem:[%s4 + $0x428] sm:$0xff]
  %v249 = vld [vmem:[%s4 + $0x430] sm:$0xff]
  %v250 = vld [vmem:[%s4 + $0x438] sm:$0xff]
  %v251 = vld [vmem:[%s4 + $0x440] sm:$0xff]
  %v252 = vld [vmem:[%s4 + $0x448] sm:$0xff]
  %v253 = vld [vmem:[%s4 + $0x450] sm:$0xff]
  %v254 = vld [vmem:[%s4 + $0x458] sm:$0xff]
  %v255 = vld [vmem:[%s4 + $0x460] sm:$0xff]
  %v256 = vld [vmem:[%s4 + $0x468] sm:$0xff]
  %v257 = vld [vmem:[%s4 + $0x470] sm:$0xff]
  %v258 = vld [vmem:[%s4 + $0x478] sm:$0xff]
  %v259 = vld [vmem:[%s4 + $0x480] sm:$0xff]
  %v260 = vld [vmem:[%s4 + $0x488] sm:$0xff]
  %v261 = vld [vmem:[%s4 + $0x490] sm:$0xff]
  %v262 = vld [vmem:[%s4 + $0x498] sm:$0xff]
  %v263 = vld [vmem:[%s4 + $0x4a0] sm:$0xff]
  %v264 = vld [vmem:[%s4 + $0x4a8] sm:$0xff]
  %v265 = vld [vmem:[%s4 + $0x4b0] sm:$0xff]
  %v266 = vld [vmem:[%s4 + $0x4b8] sm:$0xff]
  %v267 = vld [vmem:[%s4 + $0x4c0] sm:$0xff]
  %v268 = vld [vmem:[%s4 + $0x4c8] sm:$0xff]
  %v269 = vld [vmem:[%s4 + $0x4d0] sm:$0xff]
  %v270 = vld [vmem:[%s4 + $0x4d8] sm:$0xff]
  %v271 = vld [vmem:[%s4 + $0x4e0] sm:$0xff]
  %v272 = vld [vmem:[%s4 + $0x4e8] sm:$0xff]
  %v273 = vld [vmem:[%s4 + $0x4f0] sm:$0xff]
  %v274 = vld [vmem:[%s4 + $0x4f8] sm:$0xff]
  %v275 = vld [vmem:[%s4 + $0x500] sm:$0xff]
  %v276 = vld [vmem:[%s4 + $0x508] sm:$0xff]
  %v277 = vld [vmem:[%s4 + $0x510] sm:$0xff]
  %v278 = vld [vmem:[%s4 + $0x518] sm:$0xff]
  %v279 = vld [vmem:[%s4 + $0x520] sm:$0xff]
  %v280 = vld [vmem:[%s4 + $0x528] sm:$0xff]
  %v281 = vld [vmem:[%s4 + $0x530] sm:$0xff]
  %v282 = vld [vmem:[%s4 + $0x538] sm:$0xff]
  %v283 = vld [vmem:[%s4 + $0x540] sm:$0xff]
  %v284 = vld [vmem:[%s4 + $0x548] sm:$0xff]
  %v285 = vld [vmem:[%s4 + $0x550] sm:$0xff]
  %v286 = vld [vmem:[%s4 + $0x558] sm:$0xff]
  %v287 = vld [vmem:[%s4 + $0x560] sm:$0xff]
  %v288 = vld [vmem:[%s4 + $0x568] sm:$0xff]
  %v289 = vld [vmem:[%s4 + $0x570] sm:$0xff]
  %v290 = vld [vmem:[%s4 + $0x578] sm:$0xff]
  %v291 = vld [vmem:[%s4 + $0x580] sm:$0xff]
  %v292 = vld [vmem:[%s4 + $0x588] sm:$0xff]
  %v293 = vld [vmem:[%s4 + $0x590] sm:$0xff]
  %v294 = vld [vmem:[%s4 + $0x598] sm:$0xff]
  %v295 = vld [vmem:[%s4 + $0x5a0] sm:$0xff]
  %v296 = vld [vmem:[%s4 + $0x5a8] sm:$0xff]
  %v297 = vld [vmem:[%s4 + $0x5b0] sm:$0xff]
  %v298 = vld [vmem:[%s4 + $0x5b8] sm:$0xff]
  %v299 = vld [vmem:[%s4 + $0x5c0] sm:$0xff]
  %v300 = vld [vmem:[%s4 + $0x5c8] sm:$0xff]
  %v301 = vld [vmem:[%s4 + $0x5d0] sm:$0xff]
  %v302 = vld [vmem:[%s4 + $0x5d8] sm:$0xff]
  %v303 = vld [vmem:[%s4 + $0x5e0] sm:$0xff]
  %v304 = vld [vmem:[%s4 + $0x5e8] sm:$0xff]
  %v305 = vld [vmem:[%s4 + $0x5f0] sm:$0xff]
  %v306 = vld [vmem:[%s4 + $0x5f8] sm:$0xff]
  %v307 = vld [vmem:[%s4 + $0x600] sm:$0xff]
  %v308 = vld [vmem:[%s4 + $0x608] sm:$0xff]
  %v309 = vld [vmem:[%s4 + $0x610] sm:$0xff]
  %v310 = vld [vmem:[%s4 + $0x618] sm:$0xff]
  %v311 = vld [vmem:[%s4 + $0x620] sm:$0xff]
  %v312 = vld [vmem:[%s4 + $0x628] sm:$0xff]
  %v313 = vld [vmem:[%s4 + $0x630] sm:$0xff]
  %v314 = vld [vmem:[%s4 + $0x638] sm:$0xff]
  %v315 = vld [vmem:[%s4 + $0x640] sm:$0xff]
  %v316 = vld [vmem:[%s4 + $0x648] sm:$0xff]
  %v317 = vld [vmem:[%s4 + $0x650] sm:$0xff]
  %v318 = vld [vmem:[%s4 + $0x658] sm:$0xff]
  %v319 = vld [vmem:[%s4 + $0x660] sm:$0xff]
  %v320 = vld [vmem:[%s4 + $0x668] sm:$0xff]
  %v321 = vld [vmem:[%s4 + $0x670] sm:$0xff]
  %v322 = vld [vmem:[%s4 + $0x678] sm:$0xff]
  %v323 = vld [vmem:[%s4 + $0x680] sm:$0xff]
  %v324 = vld [vmem:[%s4 + $0x688] sm:$0xff]
  %v325 = vld [vmem:[%s4 + $0x690] sm:$0xff]
  %v326 = vld [vmem:[%s4 + $0x698] sm:$0xff]
  %v327 = vld [vmem:[%s4 + $0x6a0] sm:$0xff]
  %v328 = vld [vmem:[%s4 + $0x6a8] sm:$0xff]
  %v329 = vld [vmem:[%s4 + $0x6b0] sm:$0xff]
  %v330 = vld [vmem:[%s4 + $0x6b8] sm:$0xff]
  %v331 = vld [vmem:[%s4 + $0x6c0] sm:$0xff]
  %v332 = vld [vmem:[%s4 + $0x6c8] sm:$0xff]
  %v333 = vld [vmem:[%s4 + $0x6d0] sm:$0xff]
  %v334 = vld [vmem:[%s4 + $0x6d8] sm:$0xff]
  %v335 = vld [vmem:[%s4 + $0x6e0] sm:$0xff]
  %v336 = vld [vmem:[%s4 + $0x6e8] sm:$0xff]
  %v337 = vld [vmem:[%s4 + $0x6f0] sm:$0xff]
  %v338 = vld [vmem:[%s4 + $0x6f8] sm:$0xff]
  %v339 = vld [vmem:[%s4 + $0x700] sm:$0xff]
  %v340 = vld [vmem:[%s4 + $0x708] sm:$0xff]
  %v341 = vld [vmem:[%s4 + $0x710] sm:$0xff]
  %v342 = vld [vmem:[%s4 + $0x718] sm:$0xff]
  %v343 = vld [vmem:[%s4 + $0x720] sm:$0xff]
  %v344 = vld [vmem:[%s4 + $0x728] sm:$0xff]
  %v345 = vld [vmem:[%s4 + $0x730] sm:$0xff]
  %v346 = vld [vmem:[%s4 + $0x738] sm:$0xff]
  %v347 = vld [vmem:[%s4 + $0x740] sm:$0xff]
  %v348 = vld [vmem:[%s4 + $0x748] sm:$0xff]
  %v349 = vld [vmem:[%s4 + $0x750] sm:$0xff]
  %v350 = vld [vmem:[%s4 + $0x758] sm:$0xff]
  %v351 = vld [vmem:[%s4 + $0x760] sm:$0xff]
  %v352 = vld [vmem:[%s4 + $0x768] sm:$0xff]
  %v353 = vld [vmem:[%s4 + $0x770] sm:$0xff]
  %v354 = vld [vmem:[%s4 + $0x778] sm:$0xff]
  %v355 = vld [vmem:[%s4 + $0x780] sm:$0xff]
  %v356 = vld [vmem:[%s4 + $0x788] sm:$0xff]
  %v357 = vld [vmem:[%s4 + $0x790] sm:$0xff]
  %v358 = vld [vmem:[%s4 + $0x798] sm:$0xff]
  %v359 = vld [vmem:[%s4 + $0x7a0] sm:$0xff]
  %v360 = vld [vmem:[%s4 + $0x7a8] sm:$0xff]
  %v361 = vld [vmem:[%s4 + $0x7b0] sm:$0xff]
  %v362 = vld [vmem:[%s4 + $0x7b8] sm:$0xff]
  %v363 = vld [vmem:[%s4 + $0x7c0] sm:$0xff]
  %v364 = vld [vmem:[%s4 + $0x7c8] sm:$0xff]
  %v365 = vld [vmem:[%s4 + $0x7d0] sm:$0xff]
  %v366 = vld [vmem:[%s4 + $0x7d8] sm:$0xff]
  %v367 = vld [vmem:[%s4 + $0x7e0] sm:$0xff]
  %v368 = vld [vmem:[%s4 + $0x7e8] sm:$0xff]
  %v369 = vld [vmem:[%s4 + $0x7f0] sm:$0xff]
  %v370 = vld [vmem:[%s4 + $0x7f8] sm:$0xff]
  %v371 = vld [vmem:[%s5] sm:$0xff]
  %v372 = vld [vmem:[%s5 + $0x8] sm:$0xff]
  %v373 = vld [vmem:[%s5 + $0x10] sm:$0xff]
  %v374 = vld [vmem:[%s5 + $0x18] sm:$0xff]
  %v375 = vld [vmem:[%s5 + $0x20] sm:$0xff]
  %v376 = vld [vmem:[%s5 + $0x28] sm:$0xff]
  %v377 = vld [vmem:[%s5 + $0x30] sm:$0xff]
  %v378 = vld [vmem:[%s5 + $0x38] sm:$0xff]
  %v379 = vld [vmem:[%s5 + $0x40] sm:$0xff]
  %v380 = vld [vmem:[%s5 + $0x48] sm:$0xff]
  %v381 = vld [vmem:[%s5 + $0x50] sm:$0xff]
  %v382 = vld [vmem:[%s5 + $0x58] sm:$0xff]
  %v383 = vld [vmem:[%s5 + $0x60] sm:$0xff]
  %v384 = vld [vmem:[%s5 + $0x68] sm:$0xff]
  %v385 = vld [vmem:[%s5 + $0x70] sm:$0xff]
  %v386 = vld [vmem:[%s5 + $0x78] sm:$0xff]
  %vm387 = vcmask 523264
  %v389 = vsel %vm387, %v112, 0
  %391 = vmatprep.subr.mxu0 %v372
  %392 = vmatpush1.msra.mxu0 %v371
  %393 = vmatprep.subr.mxu0 %v374
  %394 = vmatpush1.msra.mxu0 %v373
  %395 = vmatprep.subr.mxu0 %v376
  %396 = vmatpush1.msra.mxu0 %v375
  %397 = vmatprep.subr.mxu0 %v378
  %398 = vmatpush1.msra.mxu0 %v377
  %399 = vmatprep.subr.mxu0 %v380
  %400 = vmatpush1.msra.mxu0 %v379
  %401 = vmatprep.subr.mxu0 %v382
  %402 = vmatpush1.msra.mxu0 %v381
  %403 = vmatprep.subr.mxu0 %v384
  %404 = vmatpush1.msra.mxu0 %v383
  %405 = vmatprep.subr.mxu0 %v386
  %406 = vmatpush1.msra.mxu0 %v385
  %407 = vmatprep.subr.mxu0 0.0
  %408 = vmatpush1.msra.mxu0 0.0
  %409 = vmatprep.subr.mxu0 0.0
  %410 = vmatpush1.msra.mxu0 0.0
  %411 = vmatprep.subr.mxu0 0.0
  %412 = vmatpush1.msra.mxu0 0.0
  %413 = vmatprep.subr.mxu0 0.0
  %414 = vmatpush1.msra.mxu0 0.0
  %415 = vmatprep.subr.mxu0 0.0
  %416 = vmatpush1.msra.mxu0 0.0
  %417 = vmatprep.subr.mxu0 0.0
  %418 = vmatpush1.msra.mxu0 0.0
  %419 = vmatprep.subr.mxu0 0.0
  %420 = vmatpush1.msra.mxu0 0.0
  %421 = vmatprep.subr.mxu0 0.0
  %422 = vmatpush1.msra.mxu0 0.0
  %423 = vmatprep.subr.mxu0 0.0
  %424 = vmatpush1.msra.mxu0 0.0
  %425 = vmatprep.subr.mxu0 0.0
  %426 = vmatpush1.msra.mxu0 0.0
  %427 = vmatprep.subr.mxu0 0.0
  %428 = vmatpush1.msra.mxu0 0.0
  %429 = vmatprep.subr.mxu0 0.0
  %430 = vmatpush1.msra.mxu0 0.0
  %431 = vmatprep.subr.mxu0 0.0
  %432 = vmatpush1.msra.mxu0 0.0
  %433 = vmatprep.subr.mxu0 0.0
  %434 = vmatpush1.msra.mxu0 0.0
  %435 = vmatprep.subr.mxu0 0.0
  %436 = vmatpush1.msra.mxu0 0.0
  %437 = vmatprep.subr.mxu0 0.0
  %438 = vmatpush1.msra.mxu0 0.0
  %439 = vmatprep.subr.mxu0 0.0
  %440 = vmatpush1.msra.mxu0 0.0
  %441 = vmatprep.subr.mxu0 0.0
  %442 = vmatpush1.msra.mxu0 0.0
  %443 = vmatprep.subr.mxu0 0.0
  %444 = vmatpush1.msra.mxu0 0.0
  %445 = vmatprep.subr.mxu0 0.0
  %446 = vmatpush1.msra.mxu0 0.0
  %447 = vmatprep.subr.mxu0 0.0
  %448 = vmatpush1.msra.mxu0 0.0
  %449 = vmatprep.subr.mxu0 0.0
  %450 = vmatpush1.msra.mxu0 0.0
  %451 = vmatprep.subr.mxu0 0.0
  %452 = vmatpush1.msra.mxu0 0.0
  %453 = vmatprep.subr.mxu0 0.0
  %454 = vmatpush1.msra.mxu0 0.0
  %455 = vmatprep.mubr.f32.mxu0 0.0
  %456 = vmatmul.mubr.f32.gmra.mrb[0].mxu0 %v389
  %v457 = vpop.f32.mrb[0].mxu0
  %v458 = vadd.f32 0.0, %v457
  %v459 = vpop.f32.mrb[0].mxu0
  %v460 = vadd.f32 0.0, %v459
  %461 = vdwg.mxu0
  %v464 = vcombine.high %v113, %v113
  %v466 = vunpack.c.l.s4 1983009808
  %v467 = vunpack.c.0.s8 %v466
  %v468 = vlaneseq
  %v469 = vshrl.u32 %v468, 7
  %v470 = vsub.s32 %v467, %v469
  %v471 = vrot.slane %v113, %v470
  %v473 = vunpack.c.l.s4 1983009808
  %v474 = vunpack.c.0.s8 %v473
  %v475 = vlaneseq
  %v476 = vshrl.u32 %v475, 7
  %v477 = vsub.s32 %v474, %v476
  %v478 = vrot.slane %v464, %v477
  %v479 = vcombine.high %v471, %v471
  %v480 = vcombine.high %v478, %v478
  %v481 = vcombine.high %v114, %v114
  %v483 = vunpack.c.l.s4 1983009808
  %v484 = vunpack.c.0.s8 %v483
  %v485 = vlaneseq
  %v486 = vshrl.u32 %v485, 7
  %v487 = vsub.s32 %v484, %v486
  %v488 = vrot.slane %v114, %v487
  %v490 = vunpack.c.l.s4 1983009808
  %v491 = vunpack.c.0.s8 %v490
  %v492 = vlaneseq
  %v493 = vshrl.u32 %v492, 7
  %v494 = vsub.s32 %v491, %v493
  %v495 = vrot.slane %v481, %v494
  %v496 = vcombine.high %v488, %v488
  %v497 = vcombine.high %v495, %v495
  %506 = vmatprep.subr.mxu0 %v116
  %507 = vmatpush1.msra.mxu0 %v115
  %508 = vmatprep.subr.mxu0 %v118
  %509 = vmatpush1.msra.mxu0 %v117
  %510 = vmatprep.subr.mxu0 %v120
  %511 = vmatpush1.msra.mxu0 %v119
  %512 = vmatprep.subr.mxu0 %v122
  %513 = vmatpush1.msra.mxu0 %v121
  %514 = vmatprep.subr.mxu0 %v124
  %515 = vmatpush1.msra.mxu0 %v123
  %516 = vmatprep.subr.mxu0 %v126
  %517 = vmatpush1.msra.mxu0 %v125
  %518 = vmatprep.subr.mxu0 %v128
  %519 = vmatpush1.msra.mxu0 %v127
  %520 = vmatprep.subr.mxu0 %v130
  %521 = vmatpush1.msra.mxu0 %v129
  %522 = vmatprep.subr.mxu0 %v132
  %523 = vmatpush1.msra.mxu0 %v131
  %524 = vmatprep.subr.mxu0 %v134
  %525 = vmatpush1.msra.mxu0 %v133
  %526 = vmatprep.subr.mxu0 %v136
  %527 = vmatpush1.msra.mxu0 %v135
  %528 = vmatprep.subr.mxu0 %v138
  %529 = vmatpush1.msra.mxu0 %v137
  %530 = vmatprep.subr.mxu0 %v140
  %531 = vmatpush1.msra.mxu0 %v139
  %532 = vmatprep.subr.mxu0 %v142
  %533 = vmatpush1.msra.mxu0 %v141
  %534 = vmatprep.subr.mxu0 %v144
  %535 = vmatpush1.msra.mxu0 %v143
  %536 = vmatprep.subr.mxu0 %v146
  %537 = vmatpush1.msra.mxu0 %v145
  %538 = vmatprep.subr.mxu0 %v148
  %539 = vmatpush1.msra.mxu0 %v147
  %540 = vmatprep.subr.mxu0 %v150
  %541 = vmatpush1.msra.mxu0 %v149
  %542 = vmatprep.subr.mxu0 %v152
  %543 = vmatpush1.msra.mxu0 %v151
  %544 = vmatprep.subr.mxu0 %v154
  %545 = vmatpush1.msra.mxu0 %v153
  %546 = vmatprep.subr.mxu0 %v156
  %547 = vmatpush1.msra.mxu0 %v155
  %548 = vmatprep.subr.mxu0 %v158
  %549 = vmatpush1.msra.mxu0 %v157
  %550 = vmatprep.subr.mxu0 %v160
  %551 = vmatpush1.msra.mxu0 %v159
  %552 = vmatprep.subr.mxu0 %v162
  %553 = vmatpush1.msra.mxu0 %v161
  %554 = vmatprep.subr.mxu0 %v164
  %555 = vmatpush1.msra.mxu0 %v163
  %556 = vmatprep.subr.mxu0 %v166
  %557 = vmatpush1.msra.mxu0 %v165
  %558 = vmatprep.subr.mxu0 %v168
  %559 = vmatpush1.msra.mxu0 %v167
  %560 = vmatprep.subr.mxu0 %v170
  %561 = vmatpush1.msra.mxu0 %v169
  %562 = vmatprep.subr.mxu0 %v172
  %563 = vmatpush1.msra.mxu0 %v171
  %564 = vmatprep.subr.mxu0 %v174
  %565 = vmatpush1.msra.mxu0 %v173
  %566 = vmatprep.subr.mxu0 %v176
  %567 = vmatpush1.msra.mxu0 %v175
  %568 = vmatprep.subr.mxu0 %v178
  %569 = vmatpush1.msra.mxu0 %v177
  %570 = vmatprep.mubr.f32.mxu0 %v479
  %571 = vmatmul.mubr.f32.gmra.mrb[0].mxu0 %v471
  %v572 = vpop.f32.mrb[0].mxu0
  %v573 = vadd.f32 %v458, %v572
  %v574 = vpop.f32.mrb[0].mxu0
  %v575 = vadd.f32 %v460, %v574
  %576 = vdwg.mxu0
  %577 = vmatprep.subr.mxu0 %v180
  %578 = vmatpush1.msra.mxu0 %v179
  %579 = vmatprep.subr.mxu0 %v182
  %580 = vmatpush1.msra.mxu0 %v181
  %581 = vmatprep.subr.mxu0 %v184
  %582 = vmatpush1.msra.mxu0 %v183
  %583 = vmatprep.subr.mxu0 %v186
  %584 = vmatpush1.msra.mxu0 %v185
  %585 = vmatprep.subr.mxu0 %v188
  %586 = vmatpush1.msra.mxu0 %v187
  %587 = vmatprep.subr.mxu0 %v190
  %588 = vmatpush1.msra.mxu0 %v189
  %589 = vmatprep.subr.mxu0 %v192
  %590 = vmatpush1.msra.mxu0 %v191
  %591 = vmatprep.subr.mxu0 %v194
  %592 = vmatpush1.msra.mxu0 %v193
  %593 = vmatprep.subr.mxu0 %v196
  %594 = vmatpush1.msra.mxu0 %v195
  %595 = vmatprep.subr.mxu0 %v198
  %596 = vmatpush1.msra.mxu0 %v197
  %597 = vmatprep.subr.mxu0 %v200
  %598 = vmatpush1.msra.mxu0 %v199
  %599 = vmatprep.subr.mxu0 %v202
  %600 = vmatpush1.msra.mxu0 %v201
  %601 = vmatprep.subr.mxu0 %v204
  %602 = vmatpush1.msra.mxu0 %v203
  %603 = vmatprep.subr.mxu0 %v206
  %604 = vmatpush1.msra.mxu0 %v205
  %605 = vmatprep.subr.mxu0 %v208
  %606 = vmatpush1.msra.mxu0 %v207
  %607 = vmatprep.subr.mxu0 %v210
  %608 = vmatpush1.msra.mxu0 %v209
  %609 = vmatprep.subr.mxu0 %v212
  %610 = vmatpush1.msra.mxu0 %v211
  %611 = vmatprep.subr.mxu0 %v214
  %612 = vmatpush1.msra.mxu0 %v213
  %613 = vmatprep.subr.mxu0 %v216
  %614 = vmatpush1.msra.mxu0 %v215
  %615 = vmatprep.subr.mxu0 %v218
  %616 = vmatpush1.msra.mxu0 %v217
  %617 = vmatprep.subr.mxu0 %v220
  %618 = vmatpush1.msra.mxu0 %v219
  %619 = vmatprep.subr.mxu0 %v222
  %620 = vmatpush1.msra.mxu0 %v221
  %621 = vmatprep.subr.mxu0 %v224
  %622 = vmatpush1.msra.mxu0 %v223
  %623 = vmatprep.subr.mxu0 %v226
  %624 = vmatpush1.msra.mxu0 %v225
  %625 = vmatprep.subr.mxu0 %v228
  %626 = vmatpush1.msra.mxu0 %v227
  %627 = vmatprep.subr.mxu0 %v230
  %628 = vmatpush1.msra.mxu0 %v229
  %629 = vmatprep.subr.mxu0 %v232
  %630 = vmatpush1.msra.mxu0 %v231
  %631 = vmatprep.subr.mxu0 %v234
  %632 = vmatpush1.msra.mxu0 %v233
  %633 = vmatprep.subr.mxu0 %v236
  %634 = vmatpush1.msra.mxu0 %v235
  %635 = vmatprep.subr.mxu0 %v238
  %636 = vmatpush1.msra.mxu0 %v237
  %637 = vmatprep.subr.mxu0 %v240
  %638 = vmatpush1.msra.mxu0 %v239
  %639 = vmatprep.subr.mxu0 %v242
  %640 = vmatpush1.msra.mxu0 %v241
  %641 = vmatprep.mubr.f32.mxu0 %v480
  %642 = vmatmul.mubr.f32.gmra.mrb[0].mxu0 %v478
  %v643 = vpop.f32.mrb[0].mxu0
  %v644 = vadd.f32 %v573, %v643
  %v645 = vpop.f32.mrb[0].mxu0
  %v646 = vadd.f32 %v575, %v645
  %647 = vdwg.mxu0
  %648 = vmatprep.subr.mxu0 %v244
  %649 = vmatpush1.msra.mxu0 %v243
  %650 = vmatprep.subr.mxu0 %v246
  %651 = vmatpush1.msra.mxu0 %v245
  %652 = vmatprep.subr.mxu0 %v248
  %653 = vmatpush1.msra.mxu0 %v247
  %654 = vmatprep.subr.mxu0 %v250
  %655 = vmatpush1.msra.mxu0 %v249
  %656 = vmatprep.subr.mxu0 %v252
  %657 = vmatpush1.msra.mxu0 %v251
  %658 = vmatprep.subr.mxu0 %v254
  %659 = vmatpush1.msra.mxu0 %v253
  %660 = vmatprep.subr.mxu0 %v256
  %661 = vmatpush1.msra.mxu0 %v255
  %662 = vmatprep.subr.mxu0 %v258
  %663 = vmatpush1.msra.mxu0 %v257
  %664 = vmatprep.subr.mxu0 %v260
  %665 = vmatpush1.msra.mxu0 %v259
  %666 = vmatprep.subr.mxu0 %v262
  %667 = vmatpush1.msra.mxu0 %v261
  %668 = vmatprep.subr.mxu0 %v264
  %669 = vmatpush1.msra.mxu0 %v263
  %670 = vmatprep.subr.mxu0 %v266
  %671 = vmatpush1.msra.mxu0 %v265
  %672 = vmatprep.subr.mxu0 %v268
  %673 = vmatpush1.msra.mxu0 %v267
  %674 = vmatprep.subr.mxu0 %v270
  %675 = vmatpush1.msra.mxu0 %v269
  %676 = vmatprep.subr.mxu0 %v272
  %677 = vmatpush1.msra.mxu0 %v271
  %678 = vmatprep.subr.mxu0 %v274
  %679 = vmatpush1.msra.mxu0 %v273
  %680 = vmatprep.subr.mxu0 %v276
  %681 = vmatpush1.msra.mxu0 %v275
  %682 = vmatprep.subr.mxu0 %v278
  %683 = vmatpush1.msra.mxu0 %v277
  %684 = vmatprep.subr.mxu0 %v280
  %685 = vmatpush1.msra.mxu0 %v279
  %686 = vmatprep.subr.mxu0 %v282
  %687 = vmatpush1.msra.mxu0 %v281
  %688 = vmatprep.subr.mxu0 %v284
  %689 = vmatpush1.msra.mxu0 %v283
  %690 = vmatprep.subr.mxu0 %v286
  %691 = vmatpush1.msra.mxu0 %v285
  %692 = vmatprep.subr.mxu0 %v288
  %693 = vmatpush1.msra.mxu0 %v287
  %694 = vmatprep.subr.mxu0 %v290
  %695 = vmatpush1.msra.mxu0 %v289
  %696 = vmatprep.subr.mxu0 %v292
  %697 = vmatpush1.msra.mxu0 %v291
  %698 = vmatprep.subr.mxu0 %v294
  %699 = vmatpush1.msra.mxu0 %v293
  %700 = vmatprep.subr.mxu0 %v296
  %701 = vmatpush1.msra.mxu0 %v295
  %702 = vmatprep.subr.mxu0 %v298
  %703 = vmatpush1.msra.mxu0 %v297
  %704 = vmatprep.subr.mxu0 %v300
  %705 = vmatpush1.msra.mxu0 %v299
  %706 = vmatprep.subr.mxu0 %v302
  %707 = vmatpush1.msra.mxu0 %v301
  %708 = vmatprep.subr.mxu0 %v304
  %709 = vmatpush1.msra.mxu0 %v303
  %710 = vmatprep.subr.mxu0 %v306
  %711 = vmatpush1.msra.mxu0 %v305
  %712 = vmatprep.mubr.f32.mxu0 %v496
  %713 = vmatmul.mubr.f32.gmra.mrb[0].mxu0 %v488
  %v714 = vpop.f32.mrb[0].mxu0
  %v715 = vadd.f32 %v644, %v714
  %v716 = vpop.f32.mrb[0].mxu0
  %v717 = vadd.f32 %v646, %v716
  %718 = vdwg.mxu0
  %719 = vmatprep.subr.mxu0 %v308
  %720 = vmatpush1.msra.mxu0 %v307
  %721 = vmatprep.subr.mxu0 %v310
  %722 = vmatpush1.msra.mxu0 %v309
  %723 = vmatprep.subr.mxu0 %v312
  %724 = vmatpush1.msra.mxu0 %v311
  %725 = vmatprep.subr.mxu0 %v314
  %726 = vmatpush1.msra.mxu0 %v313
  %727 = vmatprep.subr.mxu0 %v316
  %728 = vmatpush1.msra.mxu0 %v315
  %729 = vmatprep.subr.mxu0 %v318
  %730 = vmatpush1.msra.mxu0 %v317
  %731 = vmatprep.subr.mxu0 %v320
  %732 = vmatpush1.msra.mxu0 %v319
  %733 = vmatprep.subr.mxu0 %v322
  %734 = vmatpush1.msra.mxu0 %v321
  %735 = vmatprep.subr.mxu0 %v324
  %736 = vmatpush1.msra.mxu0 %v323
  %737 = vmatprep.subr.mxu0 %v326
  %738 = vmatpush1.msra.mxu0 %v325
  %739 = vmatprep.subr.mxu0 %v328
  %740 = vmatpush1.msra.mxu0 %v327
  %741 = vmatprep.subr.mxu0 %v330
  %742 = vmatpush1.msra.mxu0 %v329
  %743 = vmatprep.subr.mxu0 %v332
  %744 = vmatpush1.msra.mxu0 %v331
  %745 = vmatprep.subr.mxu0 %v334
  %746 = vmatpush1.msra.mxu0 %v333
  %747 = vmatprep.subr.mxu0 %v336
  %748 = vmatpush1.msra.mxu0 %v335
  %749 = vmatprep.subr.mxu0 %v338
  %750 = vmatpush1.msra.mxu0 %v337
  %751 = vmatprep.subr.mxu0 %v340
  %752 = vmatpush1.msra.mxu0 %v339
  %753 = vmatprep.subr.mxu0 %v342
  %754 = vmatpush1.msra.mxu0 %v341
  %755 = vmatprep.subr.mxu0 %v344
  %756 = vmatpush1.msra.mxu0 %v343
  %757 = vmatprep.subr.mxu0 %v346
  %758 = vmatpush1.msra.mxu0 %v345
  %759 = vmatprep.subr.mxu0 %v348
  %760 = vmatpush1.msra.mxu0 %v347
  %761 = vmatprep.subr.mxu0 %v350
  %762 = vmatpush1.msra.mxu0 %v349
  %763 = vmatprep.subr.mxu0 %v352
  %764 = vmatpush1.msra.mxu0 %v351
  %765 = vmatprep.subr.mxu0 %v354
  %766 = vmatpush1.msra.mxu0 %v353
  %767 = vmatprep.subr.mxu0 %v356
  %768 = vmatpush1.msra.mxu0 %v355
  %769 = vmatprep.subr.mxu0 %v358
  %770 = vmatpush1.msra.mxu0 %v357
  %771 = vmatprep.subr.mxu0 %v360
  %772 = vmatpush1.msra.mxu0 %v359
  %773 = vmatprep.subr.mxu0 %v362
  %774 = vmatpush1.msra.mxu0 %v361
  %775 = vmatprep.subr.mxu0 %v364
  %776 = vmatpush1.msra.mxu0 %v363
  %777 = vmatprep.subr.mxu0 %v366
  %778 = vmatpush1.msra.mxu0 %v365
  %779 = vmatprep.subr.mxu0 %v368
  %780 = vmatpush1.msra.mxu0 %v367
  %781 = vmatprep.subr.mxu0 %v370
  %782 = vmatpush1.msra.mxu0 %v369
  %783 = vmatprep.mubr.f32.mxu0 %v497
  %784 = vmatmul.mubr.f32.gmra.mrb[0].mxu0 %v495
  %v785 = vpop.f32.mrb[0].mxu0
  %v786 = vadd.f32 %v715, %v785
  %v787 = vpop.f32.mrb[0].mxu0
  %v788 = vadd.f32 %v717, %v787
  %789 = vdwg.mxu0
  %v790 = vld [vmem:[%s6] sm:$0x3]
  %v792 = vlaneseq
  %v793 = vshrl.u32 %v792, 7
  %v794 = vsub.s32 0, %v793
  %v795 = vrot.slane %v790, %v794
  %v796 = vlaneseq
  %v797 = vshrl.u32 %v796, 7
  %v798 = vsub.s32 1, %v797
  %v799 = vrot.slane %v790, %v798
  %v802 = vadd.f32 %v786, %v795
  %v803 = vadd.f32 %v788, %v799
  %v806 = vcombine.low %v802, %v803
  %v808 = vunpack.c.l.s4 1983009808
  %v809 = vunpack.c.0.s8 %v808
  %v810 = vlaneseq
  %v811 = vshrl.u32 %v810, 7
  %v812 = vsub.s32 %v809, %v811
  %v813 = vrot.slane %v806, %v812
  %815 = vst [vmem:[%s7] sm:$0xf] %v813
  // Predicated region
  $region30: #{dgcnn_partseg_forward.24} parent=0 // pred_check
    _
  $region31: #{dgcnn_partseg_forward.24} parent=0 // pred_check_branch
    %817 = sbr.rel (0) target = $region33
  $region32: #{dgcnn_partseg_forward.24} parent=0 // pred_region
    _
  $region33: #{dgcnn_partseg_forward.24} parent=0 // pred_fallthru
    _
  // Predicated region
  $region34: #{dgcnn_partseg_forward.24} parent=0 // pred_check
    _
  $region35: #{dgcnn_partseg_forward.24} parent=0 // pred_check_branch
    %819 = sbr.rel (0) target = $region37
  $region36: #{dgcnn_partseg_forward.24} parent=0 // pred_region
    _
  $region37: #{dgcnn_partseg_forward.24} parent=0 // pred_fallthru
    _

// kernel: dgcnn_partseg_forward.25
$region0: #{dgcnn_partseg_forward.25}
  #allocation0 [shape = 'u32[]', space=smem, size = 0x4, offset = 0x4, fixed_abs, tag = 'smem constant byte address 0x4 - core index']
  #allocation1 [shape = 'u32[144,128]{1,0:T(1,128)}', space=vmem, size = 0x12000, scoped, tag = 'internal scratch']
  %s0 = inlined_call_operand.vmem [shape: bf16[2,16,64], index: 0, kind: input, shape index: {}]
  %s1 = inlined_call_operand.vmem [shape: bf16[2,16,64], index: 1, kind: input, shape index: {}]
  %s2 = inlined_call_operand.vmem [shape: bf16[2,16,64], index: 2, kind: input, shape index: {}]
  %s3 = inlined_call_operand.vmem [shape: f32[2,1,256], index: 3, kind: input, shape index: {}]
  %s4 = inlined_call_operand.vmem [shape: bf16[64,256], index: 4, kind: input, shape index: {}]
  %s5 = inlined_call_operand.vmem [shape: bf16[64,256], index: 5, kind: input, shape index: {}]
  %s6 = inlined_call_operand.vmem [shape: bf16[64,256], index: 6, kind: input, shape index: {}]
  %s7 = inlined_call_operand.vmem [shape: bf16[256,256], index: 7, kind: input, shape index: {}]
  %s8 = inlined_call_operand.vmem [shape: f32[1,256], index: 8, kind: input, shape index: {}]
  %s9 = inlined_call_operand.vmem [shape: bf16[256,128], index: 9, kind: input, shape index: {}]
  %s10 = inlined_call_operand.vmem [shape: f32[1,128], index: 10, kind: input, shape index: {}]
  %s11 = inlined_call_operand.vmem [shape: bf16[8,128], index: 11, kind: input, shape index: {}]
  %s12 = inlined_call_operand.hbm [shape: f32[2,8,16], index: 12, kind: output, shape index: {}]
  %s13 = sld [smem:[#allocation0]]
  $region81: #{dgcnn_partseg_forward.25} parent=0
    _
  %s15 = ssub.s32 1, %s13
  %s16 = scalar_select 0, %s15, %s13
  $region1: #{dgcnn_partseg_forward.25} parent=0
    #allocation2 [shape = 'u8[8192]{0}', space=vmem, size = 0x2000, scoped, tag = 'output window, operand 0']
    #allocation3 [shape = 's32[2]{0}', space=sflag, size = 0x8, scoped, tag = 'scoped memory for dgcnn_partseg_forward.25']
    %17 = vsyncpa [#allocation3], 0
    %s18 = scalar_lea.sflag [#allocation3], 1
    %19 = vsyncpa %s18, 0
    loop: start=0, step=1, limit=4
    $region2: #{dgcnn_partseg_forward.25} parent=1 // loop_pre_header
      _
    $region3: #{dgcnn_partseg_forward.25} parent=1 // loop_header
      %s21 = sphi 0, %s25
      %p22 = scmp.ge.s32.totalorder %s21, 4
      %s28 = sphi 0, %s40
      %s29 = sphi 0, %s36
      %s30 = sphi 0, %s28
      %s31 = sphi 0, %s29
      %s32 = sphi 0, %s30
      %s33 = sphi 0, %s31
      %s45 = sphi 0, %s47
      %s48 = sphi 0, %s45
      %s49 = sphi 0, %s48
      %s65 = sphi 0, %s49
      %s73 = sphi 0, %s75
      %s76 = sphi 0, %s73
      %s77 = sphi 0, %s76
      %s93 = sphi 0, %s77
      %s101 = sphi 0, %s103
      %s104 = sphi 0, %s101
      %s105 = sphi 0, %s104
      %s121 = sphi 0, %s105
      %s127 = sphi 0, %s129
      %s130 = sphi 0, %s127
      %s131 = sphi 0, %s130
      %s147 = sphi 0, %s131
      %s151 = sphi 0, %s151
      %s153 = sphi 0, %s151
      %s154 = sphi 0, %s153
      %s168 = sphi 0, %s154
      %s172 = sphi 0, %s172
      %s174 = sphi 0, %s172
      %s175 = sphi 0, %s174
      %s189 = sphi 0, %s175
      %s193 = sphi 0, %s193
      %s195 = sphi 0, %s193
      %s196 = sphi 0, %s195
      %s210 = sphi 0, %s196
      %s214 = sphi 0, %s214
      %s216 = sphi 0, %s214
      %s217 = sphi 0, %s216
      %s231 = sphi 0, %s217
      %s235 = sphi 0, %s235
      %s237 = sphi 0, %s235
      %s238 = sphi 0, %s237
      %s252 = sphi 0, %s238
      %s256 = sphi 0, %s256
      %s258 = sphi 0, %s256
      %s259 = sphi 0, %s258
      %s273 = sphi 0, %s259
      %s277 = sphi 0, %s277
      %s279 = sphi 0, %s277
      %s280 = sphi 0, %s279
      %s294 = sphi 0, %s280
      %s298 = sphi 0, %s298
      %s300 = sphi 0, %s298
      %s301 = sphi 0, %s300
      %s315 = sphi 0, %s301
      %s323 = sphi 0, %s325
      %s326 = sphi 0, %s323
      %s327 = sphi 0, %s326
      %s343 = sphi 0, %s327
    $region4: #{dgcnn_partseg_forward.25} parent=1 // loop_header_branch
      %24 = sbr.rel (%p22) target = $region8
    $region5: #{dgcnn_partseg_forward.25} parent=1 // loop_body
      %s26 = ssub.s32 %s21, 1
      %s27 = ssub.s32 %s21, 2
      %s34 = sadd.s32 1, %s29
      %p35 = scmp.ge.s32.totalorder %s34, 1
      %s36 = scalar_select %p35, 0, %s34
      %s37 = sadd.s32 1, %s28
      %s38 = scalar_select %p35, %s37, %s28
      %p39 = scmp.ge.s32.totalorder %s38, 2
      %s40 = scalar_select %p39, 0, %s38
      %s41 = ssub.s32 %s28, %s40
      %s42 = ssub.s32 %s29, %s36
      %s43 = sor.u32 %s41, %s42
      %p44 = scmp.eq.s32.totalorder %s43, 0
      %s46 = sadd.s32 %s45, 1
      %s47 = scalar_select %p44, %s45, %s46
      %p50 = pneg %p44
      %p51 = scmp.eq.s32.totalorder %s21, 1
      %p52 = por %p50, %p51
      %p53 = scmp.ne.s32.totalorder %s45, %s48
      %p54 = scmp.eq.s32.totalorder %s21, 0
      %p55 = por %p53, %p54
      %p56 = scmp.ne.s32.totalorder %s45, %s48
      %p57 = scmp.eq.s32.totalorder %s26, 1
      %p58 = por %p56, %p57
      %p59 = scmp.ne.s32.totalorder %s48, %s49
      %p60 = scmp.eq.s32.totalorder %s26, 0
      %p61 = por %p59, %p60
      %p62 = scmp.ne.s32.totalorder %s48, %s49
      %p63 = scmp.eq.s32.totalorder %s27, 1
      %p64 = por %p62, %p63
      %p66 = scmp.ne.s32.totalorder %s49, %s65
      %p67 = scmp.eq.s32.totalorder %s27, 0
      %p68 = por %p66, %p67
      %s69 = ssub.s32 %s28, %s40
      %s70 = ssub.s32 %s29, %s36
      %s71 = sor.u32 %s69, %s70
      %p72 = scmp.eq.s32.totalorder %s71, 0
      %s74 = sadd.s32 %s73, 1
      %s75 = scalar_select %p72, %s73, %s74
      %p78 = pneg %p72
      %p79 = scmp.eq.s32.totalorder %s21, 1
      %p80 = por %p78, %p79
      %p81 = scmp.ne.s32.totalorder %s73, %s76
      %p82 = scmp.eq.s32.totalorder %s21, 0
      %p83 = por %p81, %p82
      %p84 = scmp.ne.s32.totalorder %s73, %s76
      %p85 = scmp.eq.s32.totalorder %s26, 1
      %p86 = por %p84, %p85
      %p87 = scmp.ne.s32.totalorder %s76, %s77
      %p88 = scmp.eq.s32.totalorder %s26, 0
      %p89 = por %p87, %p88
      %p90 = scmp.ne.s32.totalorder %s76, %s77
      %p91 = scmp.eq.s32.totalorder %s27, 1
      %p92 = por %p90, %p91
      %p94 = scmp.ne.s32.totalorder %s77, %s93
      %p95 = scmp.eq.s32.totalorder %s27, 0
      %p96 = por %p94, %p95
      %s97 = ssub.s32 %s28, %s40
      %s98 = ssub.s32 %s29, %s36
      %s99 = sor.u32 %s97, %s98
      %p100 = scmp.eq.s32.totalorder %s99, 0
      %s102 = sadd.s32 %s101, 1
      %s103 = scalar_select %p100, %s101, %s102
      %p106 = pneg %p100
      %p107 = scmp.eq.s32.totalorder %s21, 1
      %p108 = por %p106, %p107
      %p109 = scmp.ne.s32.totalorder %s101, %s104
      %p110 = scmp.eq.s32.totalorder %s21, 0
      %p111 = por %p109, %p110
      %p112 = scmp.ne.s32.totalorder %s101, %s104
      %p113 = scmp.eq.s32.totalorder %s26, 1
      %p114 = por %p112, %p113
      %p115 = scmp.ne.s32.totalorder %s104, %s105
      %p116 = scmp.eq.s32.totalorder %s26, 0
      %p117 = por %p115, %p116
      %p118 = scmp.ne.s32.totalorder %s104, %s105
      %p119 = scmp.eq.s32.totalorder %s27, 1
      %p120 = por %p118, %p119
      %p122 = scmp.ne.s32.totalorder %s105, %s121
      %p123 = scmp.eq.s32.totalorder %s27, 0
      %p124 = por %p122, %p123
      %s125 = ssub.s32 %s28, %s40
      %p126 = scmp.eq.s32.totalorder %s125, 0
      %s128 = sadd.s32 %s127, 1
      %s129 = scalar_select %p126, %s127, %s128
      %p132 = pneg %p126
      %p133 = scmp.eq.s32.totalorder %s21, 1
      %p134 = por %p132, %p133
      %p135 = scmp.ne.s32.totalorder %s127, %s130
      %p136 = scmp.eq.s32.totalorder %s21, 0
      %p137 = por %p135, %p136
      %p138 = scmp.ne.s32.totalorder %s127, %s130
      %p139 = scmp.eq.s32.totalorder %s26, 1
      %p140 = por %p138, %p139
      %p141 = scmp.ne.s32.totalorder %s130, %s131
      %p142 = scmp.eq.s32.totalorder %s26, 0
      %p143 = por %p141, %p142
      %p144 = scmp.ne.s32.totalorder %s130, %s131
      %p145 = scmp.eq.s32.totalorder %s27, 1
      %p146 = por %p144, %p145
      %p148 = scmp.ne.s32.totalorder %s131, %s147
      %p149 = scmp.eq.s32.totalorder %s27, 0
      %p150 = por %p148, %p149
      %s152 = sadd.s32 %s151, 1
      %p155 = scmp.eq.s32.totalorder %s21, 1
      %p156 = scmp.ne.s32.totalorder %s151, %s153
      %p157 = scmp.eq.s32.totalorder %s21, 0
      %p158 = por %p156, %p157
      %p159 = scmp.ne.s32.totalorder %s151, %s153
      %p160 = scmp.eq.s32.totalorder %s26, 1
      %p161 = por %p159, %p160
      %p162 = scmp.ne.s32.totalorder %s153, %s154
      %p163 = scmp.eq.s32.totalorder %s26, 0
      %p164 = por %p162, %p163
      %p165 = scmp.ne.s32.totalorder %s153, %s154
      %p166 = scmp.eq.s32.totalorder %s27, 1
      %p167 = por %p165, %p166
      %p169 = scmp.ne.s32.totalorder %s154, %s168
      %p170 = scmp.eq.s32.totalorder %s27, 0
      %p171 = por %p169, %p170
      %s173 = sadd.s32 %s172, 1
      %p176 = scmp.eq.s32.totalorder %s21, 1
      %p177 = scmp.ne.s32.totalorder %s172, %s174
      %p178 = scmp.eq.s32.totalorder %s21, 0
      %p179 = por %p177, %p178
      %p180 = scmp.ne.s32.totalorder %s172, %s174
      %p181 = scmp.eq.s32.totalorder %s26, 1
      %p182 = por %p180, %p181
      %p183 = scmp.ne.s32.totalorder %s174, %s175
      %p184 = scmp.eq.s32.totalorder %s26, 0
      %p185 = por %p183, %p184
      %p186 = scmp.ne.s32.totalorder %s174, %s175
      %p187 = scmp.eq.s32.totalorder %s27, 1
      %p188 = por %p186, %p187
      %p190 = scmp.ne.s32.totalorder %s175, %s189
      %p191 = scmp.eq.s32.totalorder %s27, 0
      %p192 = por %p190, %p191
      %s194 = sadd.s32 %s193, 1
      %p197 = scmp.eq.s32.totalorder %s21, 1
      %p198 = scmp.ne.s32.totalorder %s193, %s195
      %p199 = scmp.eq.s32.totalorder %s21, 0
      %p200 = por %p198, %p199
      %p201 = scmp.ne.s32.totalorder %s193, %s195
      %p202 = scmp.eq.s32.totalorder %s26, 1
      %p203 = por %p201, %p202
      %p204 = scmp.ne.s32.totalorder %s195, %s196
      %p205 = scmp.eq.s32.totalorder %s26, 0
      %p206 = por %p204, %p205
      %p207 = scmp.ne.s32.totalorder %s195, %s196
      %p208 = scmp.eq.s32.totalorder %s27, 1
      %p209 = por %p207, %p208
      %p211 = scmp.ne.s32.totalorder %s196, %s210
      %p212 = scmp.eq.s32.totalorder %s27, 0
      %p213 = por %p211, %p212
      %s215 = sadd.s32 %s214, 1
      %p218 = scmp.eq.s32.totalorder %s21, 1
      %p219 = scmp.ne.s32.totalorder %s214, %s216
      %p220 = scmp.eq.s32.totalorder %s21, 0
      %p221 = por %p219, %p220
      %p222 = scmp.ne.s32.totalorder %s214, %s216
      %p223 = scmp.eq.s32.totalorder %s26, 1
      %p224 = por %p222, %p223
      %p225 = scmp.ne.s32.totalorder %s216, %s217
      %p226 = scmp.eq.s32.totalorder %s26, 0
      %p227 = por %p225, %p226
      %p228 = scmp.ne.s32.totalorder %s216, %s217
      %p229 = scmp.eq.s32.totalorder %s27, 1
      %p230 = por %p228, %p229
      %p232 = scmp.ne.s32.totalorder %s217, %s231
      %p233 = scmp.eq.s32.totalorder %s27, 0
      %p234 = por %p232, %p233
      %s236 = sadd.s32 %s235, 1
      %p239 = scmp.eq.s32.totalorder %s21, 1
      %p240 = scmp.ne.s32.totalorder %s235, %s237
      %p241 = scmp.eq.s32.totalorder %s21, 0
      %p242 = por %p240, %p241
      %p243 = scmp.ne.s32.totalorder %s235, %s237
      %p244 = scmp.eq.s32.totalorder %s26, 1
      %p245 = por %p243, %p244
      %p246 = scmp.ne.s32.totalorder %s237, %s238
      %p247 = scmp.eq.s32.totalorder %s26, 0
      %p248 = por %p246, %p247
      %p249 = scmp.ne.s32.totalorder %s237, %s238
      %p250 = scmp.eq.s32.totalorder %s27, 1
      %p251 = por %p249, %p250
      %p253 = scmp.ne.s32.totalorder %s238, %s252
      %p254 = scmp.eq.s32.totalorder %s27, 0
      %p255 = por %p253, %p254
      %s257 = sadd.s32 %s256, 1
      %p260 = scmp.eq.s32.totalorder %s21, 1
      %p261 = scmp.ne.s32.totalorder %s256, %s258
      %p262 = scmp.eq.s32.totalorder %s21, 0
      %p263 = por %p261, %p262
      %p264 = scmp.ne.s32.totalorder %s256, %s258
      %p265 = scmp.eq.s32.totalorder %s26, 1
      %p266 = por %p264, %p265
      %p267 = scmp.ne.s32.totalorder %s258, %s259
      %p268 = scmp.eq.s32.totalorder %s26, 0
      %p269 = por %p267, %p268
      %p270 = scmp.ne.s32.totalorder %s258, %s259
      %p271 = scmp.eq.s32.totalorder %s27, 1
      %p272 = por %p270, %p271
      %p274 = scmp.ne.s32.totalorder %s259, %s273
      %p275 = scmp.eq.s32.totalorder %s27, 0
      %p276 = por %p274, %p275
      %s278 = sadd.s32 %s277, 1
      %p281 = scmp.eq.s32.totalorder %s21, 1
      %p282 = scmp.ne.s32.totalorder %s277, %s279
      %p283 = scmp.eq.s32.totalorder %s21, 0
      %p284 = por %p282, %p283
      %p285 = scmp.ne.s32.totalorder %s277, %s279
      %p286 = scmp.eq.s32.totalorder %s26, 1
      %p287 = por %p285, %p286
      %p288 = scmp.ne.s32.totalorder %s279, %s280
      %p289 = scmp.eq.s32.totalorder %s26, 0
      %p290 = por %p288, %p289
      %p291 = scmp.ne.s32.totalorder %s279, %s280
      %p292 = scmp.eq.s32.totalorder %s27, 1
      %p293 = por %p291, %p292
      %p295 = scmp.ne.s32.totalorder %s280, %s294
      %p296 = scmp.eq.s32.totalorder %s27, 0
      %p297 = por %p295, %p296
      %s299 = sadd.s32 %s298, 1
      %p302 = scmp.eq.s32.totalorder %s21, 1
      %p303 = scmp.ne.s32.totalorder %s298, %s300
      %p304 = scmp.eq.s32.totalorder %s21, 0
      %p305 = por %p303, %p304
      %p306 = scmp.ne.s32.totalorder %s298, %s300
      %p307 = scmp.eq.s32.totalorder %s26, 1
      %p308 = por %p306, %p307
      %p309 = scmp.ne.s32.totalorder %s300, %s301
      %p310 = scmp.eq.s32.totalorder %s26, 0
      %p311 = por %p309, %p310
      %p312 = scmp.ne.s32.totalorder %s300, %s301
      %p313 = scmp.eq.s32.totalorder %s27, 1
      %p314 = por %p312, %p313
      %p316 = scmp.ne.s32.totalorder %s301, %s315
      %p317 = scmp.eq.s32.totalorder %s27, 0
      %p318 = por %p316, %p317
      %s319 = ssub.s32 %s28, %s40
      %s320 = ssub.s32 %s29, %s36
      %s321 = sor.u32 %s319, %s320
      %p322 = scmp.eq.s32.totalorder %s321, 0
      %s324 = sadd.s32 %s323, 1
      %s325 = scalar_select %p322, %s323, %s324
      %p328 = pneg %p322
      %p329 = scmp.eq.s32.totalorder %s21, 1
      %p330 = por %p328, %p329
      %p331 = scmp.ne.s32.totalorder %s323, %s326
      %p332 = scmp.eq.s32.totalorder %s21, 0
      %p333 = por %p331, %p332
      %p334 = scmp.ne.s32.totalorder %s323, %s326
      %p335 = scmp.eq.s32.totalorder %s26, 1
      %p336 = por %p334, %p335
      %p337 = scmp.ne.s32.totalorder %s326, %s327
      %p338 = scmp.eq.s32.totalorder %s26, 0
      %p339 = por %p337, %p338
      %p340 = scmp.ne.s32.totalorder %s326, %s327
      %p341 = scmp.eq.s32.totalorder %s27, 1
      %p342 = por %p340, %p341
      %p344 = scmp.ne.s32.totalorder %s327, %s343
      %p345 = scmp.eq.s32.totalorder %s27, 0
      %p346 = por %p344, %p345
      %p347 = scmp.le.s32.totalorder 1, %s21
      %p348 = scmp.lt.s32.totalorder %s21, 3
      %p349 = pnand %p347, %p348
      %p350 = pneg %p349
      // Predicated region
      $region9: #{dgcnn_partseg_forward.25} parent=5 // pred_check
        _
      $region10: #{dgcnn_partseg_forward.25} parent=5 // pred_check_branch
        %352 = sbr.rel (%p349) target = $region12
      $region11: #{dgcnn_partseg_forward.25} parent=5 // pred_region
        %s353 = ssub.s32 %s21, 1
        // Predicated region
        $region13: #{dgcnn_partseg_forward.25} parent=11 // pred_check
          %p354 = pneg %p164
        $region14: #{dgcnn_partseg_forward.25} parent=11 // pred_check_branch
          %356 = sbr.rel (%p354) target = $region16
        $region15: #{dgcnn_partseg_forward.25} parent=11 // pred_region
          _
        $region16: #{dgcnn_partseg_forward.25} parent=11 // pred_fallthru
          _
        // Predicated region
        $region17: #{dgcnn_partseg_forward.25} parent=11 // pred_check
          %p357 = pneg %p185
        $region18: #{dgcnn_partseg_forward.25} parent=11 // pred_check_branch
          %359 = sbr.rel (%p357) target = $region20
        $region19: #{dgcnn_partseg_forward.25} parent=11 // pred_region
          _
        $region20: #{dgcnn_partseg_forward.25} parent=11 // pred_fallthru
          _
        // Predicated region
        $region21: #{dgcnn_partseg_forward.25} parent=11 // pred_check
          %p360 = pneg %p206
        $region22: #{dgcnn_partseg_forward.25} parent=11 // pred_check_branch
          %362 = sbr.rel (%p360) target = $region24
        $region23: #{dgcnn_partseg_forward.25} parent=11 // pred_region
          _
        $region24: #{dgcnn_partseg_forward.25} parent=11 // pred_fallthru
          _
        // Predicated region
        $region25: #{dgcnn_partseg_forward.25} parent=11 // pred_check
          %p363 = pneg %p227
        $region26: #{dgcnn_partseg_forward.25} parent=11 // pred_check_branch
          %365 = sbr.rel (%p363) target = $region28
        $region27: #{dgcnn_partseg_forward.25} parent=11 // pred_region
          _
        $region28: #{dgcnn_partseg_forward.25} parent=11 // pred_fallthru
          _
        // Predicated region
        $region29: #{dgcnn_partseg_forward.25} parent=11 // pred_check
          %p366 = pneg %p248
        $region30: #{dgcnn_partseg_forward.25} parent=11 // pred_check_branch
          %368 = sbr.rel (%p366) target = $region32
        $region31: #{dgcnn_partseg_forward.25} parent=11 // pred_region
          _
        $region32: #{dgcnn_partseg_forward.25} parent=11 // pred_fallthru
          _
        // Predicated region
        $region33: #{dgcnn_partseg_forward.25} parent=11 // pred_check
          %p369 = pneg %p269
        $region34: #{dgcnn_partseg_forward.25} parent=11 // pred_check_branch
          %371 = sbr.rel (%p369) target = $region36
        $region35: #{dgcnn_partseg_forward.25} parent=11 // pred_region
          _
        $region36: #{dgcnn_partseg_forward.25} parent=11 // pred_fallthru
          _
        // Predicated region
        $region37: #{dgcnn_partseg_forward.25} parent=11 // pred_check
          %p372 = pneg %p290
        $region38: #{dgcnn_partseg_forward.25} parent=11 // pred_check_branch
          %374 = sbr.rel (%p372) target = $region40
        $region39: #{dgcnn_partseg_forward.25} parent=11 // pred_region
          _
        $region40: #{dgcnn_partseg_forward.25} parent=11 // pred_fallthru
          _
        // Predicated region
        $region41: #{dgcnn_partseg_forward.25} parent=11 // pred_check
          %p375 = pneg %p311
        $region42: #{dgcnn_partseg_forward.25} parent=11 // pred_check_branch
          %377 = sbr.rel (%p375) target = $region44
        $region43: #{dgcnn_partseg_forward.25} parent=11 // pred_region
          _
        $region44: #{dgcnn_partseg_forward.25} parent=11 // pred_fallthru
          _
      $region12: #{dgcnn_partseg_forward.25} parent=5 // pred_fallthru
        _
      %p378 = scmp.lt.s32.totalorder %s21, 2
      // Predicated region
      $region45: #{dgcnn_partseg_forward.25} parent=5 // pred_check
        %p379 = pneg %p378
      $region46: #{dgcnn_partseg_forward.25} parent=5 // pred_check_branch
        %381 = sbr.rel (%p379) target = $region48
      $region47: #{dgcnn_partseg_forward.25} parent=5 // pred_region
        // Predicated region
        $region49: #{dgcnn_partseg_forward.25} parent=47 // pred_check
          %p382 = pneg %p55
        $region50: #{dgcnn_partseg_forward.25} parent=47 // pred_check_branch
          %384 = sbr.rel (%p382) target = $region52
        $region51: #{dgcnn_partseg_forward.25} parent=47 // pred_region
          %s385 = smul.u32 2, %s29
          %p386 = scmp.lt.s32.totalorder %s28, 1
          %s387 = scalar_select %p386, %s28, 1
          %p388 = scmp.lt.s32.totalorder %s385, 1
          %s389 = scalar_select %p388, %s385, 1
          %s390 = smul.addr %s387, 2
          %s391 = sadd.s32 %s389, %s390
          %s392 = smul.addr %s391, 4
          %s393 = scalar_lea.vmem %s0, %s392
          %s394 = smul.u32 2, %s29
        $region52: #{dgcnn_partseg_forward.25} parent=47 // pred_fallthru
          _
        // Predicated region
        $region53: #{dgcnn_partseg_forward.25} parent=47 // pred_check
          %p395 = pneg %p83
        $region54: #{dgcnn_partseg_forward.25} parent=47 // pred_check_branch
          %397 = sbr.rel (%p395) target = $region56
        $region55: #{dgcnn_partseg_forward.25} parent=47 // pred_region
          %s398 = smul.u32 2, %s29
          %p399 = scmp.lt.s32.totalorder %s28, 1
          %s400 = scalar_select %p399, %s28, 1
          %p401 = scmp.lt.s32.totalorder %s398, 1
          %s402 = scalar_select %p401, %s398, 1
          %s403 = smul.addr %s400, 2
          %s404 = sadd.s32 %s402, %s403
          %s405 = smul.addr %s404, 4
          %s406 = scalar_lea.vmem %s1, %s405
          %s407 = smul.u32 2, %s29
        $region56: #{dgcnn_partseg_forward.25} parent=47 // pred_fallthru
          _
        // Predicated region
        $region57: #{dgcnn_partseg_forward.25} parent=47 // pred_check
          %p408 = pneg %p111
        $region58: #{dgcnn_partseg_forward.25} parent=47 // pred_check_branch
          %410 = sbr.rel (%p408) target = $region60
        $region59: #{dgcnn_partseg_forward.25} parent=47 // pred_region
          %s411 = smul.u32 2, %s29
          %p412 = scmp.lt.s32.totalorder %s28, 1
          %s413 = scalar_select %p412, %s28, 1
          %p414 = scmp.lt.s32.totalorder %s411, 1
          %s415 = scalar_select %p414, %s411, 1
          %s416 = smul.addr %s413, 2
          %s417 = sadd.s32 %s415, %s416
          %s418 = smul.addr %s417, 4
          %s419 = scalar_lea.vmem %s2, %s418
          %s420 = smul.u32 2, %s29
        $region60: #{dgcnn_partseg_forward.25} parent=47 // pred_fallthru
          _
        // Predicated region
        $region61: #{dgcnn_partseg_forward.25} parent=47 // pred_check
          %p421 = pneg %p137
        $region62: #{dgcnn_partseg_forward.25} parent=47 // pred_check_branch
          %423 = sbr.rel (%p421) target = $region64
        $region63: #{dgcnn_partseg_forward.25} parent=47 // pred_region
          %p424 = scmp.lt.s32.totalorder %s28, 1
          %s425 = scalar_select %p424, %s28, 1
          %s426 = smul.addr %s425, 2
          %s427 = scalar_lea.vmem %s3, %s426
        $region64: #{dgcnn_partseg_forward.25} parent=47 // pred_fallthru
          _
      $region48: #{dgcnn_partseg_forward.25} parent=5 // pred_fallthru
        _
      %p428 = scmp.le.s32.totalorder 1, %s21
      %p429 = scmp.lt.s32.totalorder %s21, 3
      %p430 = pnand %p428, %p429
      %p431 = pneg %p430
      // Predicated region
      $region65: #{dgcnn_partseg_forward.25} parent=5 // pred_check
        _
      $region66: #{dgcnn_partseg_forward.25} parent=5 // pred_check_branch
        %433 = sbr.rel (%p430) target = $region68
      $region67: #{dgcnn_partseg_forward.25} parent=5 // pred_region
        %s434 = ssub.s32 %s21, 1
        %s435 = smul.u32 2, %s31
        %p436 = scmp.lt.s32.totalorder %s30, 1
        %s437 = scalar_select %p436, %s30, 1
        %p438 = scmp.lt.s32.totalorder %s435, 1
        %s439 = scalar_select %p438, %s435, 1
        %s440 = smul.addr %s437, 2
        %s441 = sadd.s32 %s439, %s440
        %s442 = smul.addr %s441, 4
        %s443 = scalar_lea.vmem %s0, %s442
        %p444 = pneg %p61
        %p445 = pneg %p58
        %s446 = smul.u32 2, %s31
        %p447 = scmp.lt.s32.totalorder %s30, 1
        %s448 = scalar_select %p447, %s30, 1
        %p449 = scmp.lt.s32.totalorder %s446, 1
        %s450 = scalar_select %p449, %s446, 1
        %s451 = smul.addr %s448, 2
        %s452 = sadd.s32 %s450, %s451
        %s453 = smul.addr %s452, 4
        %s454 = scalar_lea.vmem %s1, %s453
        %p455 = pneg %p89
        %p456 = pneg %p86
        %s457 = smul.u32 2, %s31
        %p458 = scmp.lt.s32.totalorder %s30, 1
        %s459 = scalar_select %p458, %s30, 1
        %p460 = scmp.lt.s32.totalorder %s457, 1
        %s461 = scalar_select %p460, %s457, 1
        %s462 = smul.addr %s459, 2
        %s463 = sadd.s32 %s461, %s462
        %s464 = smul.addr %s463, 4
        %s465 = scalar_lea.vmem %s2, %s464
        %p466 = pneg %p117
        %p467 = pneg %p114
        %p468 = scmp.lt.s32.totalorder %s30, 1
        %s469 = scalar_select %p468, %s30, 1
        %s470 = smul.addr %s469, 2
        %s471 = scalar_lea.vmem %s3, %s470
        %p472 = pneg %p143
        %p473 = pneg %p140
        %p474 = pneg %p164
        %p475 = pneg %p161
        %p476 = pneg %p185
        %p477 = pneg %p182
        %p478 = pneg %p206
        %p479 = pneg %p203
        %p480 = pneg %p227
        %p481 = pneg %p224
        %p482 = pneg %p248
        %p483 = pneg %p245
        %p484 = pneg %p269
        %p485 = pneg %p266
        %p486 = pneg %p290
        %p487 = pneg %p287
        %p488 = pneg %p311
        %p489 = pneg %p308
        %p490 = pneg %p339
        %p491 = pneg %p336
        %s492 = sand.u32 %s326, 1
        %s493 = scalar_lea.sflag [#allocation3], %s492
        %s494 = sand.u32 %s326, 1
        %s495 = smul.addr %s494, 8
        %s496 = scalar_lea.vmem [#allocation2], %s495
        %s497 = smul.u32 2, %s31
        %p498 = scmp.lt.s32.totalorder %s30, 1
        %s499 = scalar_select %p498, %s30, 1
        %p500 = scmp.lt.s32.totalorder %s497, 1
        %s501 = scalar_select %p500, %s497, 1
        %s502 = smul.addr %s499, 2
        %s503 = sadd.s32 %s501, %s502
        %s504 = smul.addr %s503, 4
        %s505 = scalar_lea.vmem %s0, %s504
        %s506 = smul.u32 2, %s31
        %s507 = smul.u32 2, %s31
        %p508 = scmp.lt.s32.totalorder %s30, 1
        %s509 = scalar_select %p508, %s30, 1
        %p510 = scmp.lt.s32.totalorder %s507, 1
        %s511 = scalar_select %p510, %s507, 1
        %s512 = smul.addr %s509, 2
        %s513 = sadd.s32 %s511, %s512
        %s514 = smul.addr %s513, 4
        %s515 = scalar_lea.vmem %s1, %s514
        %s516 = smul.u32 2, %s31
        %s517 = smul.u32 2, %s31
        %p518 = scmp.lt.s32.totalorder %s30, 1
        %s519 = scalar_select %p518, %s30, 1
        %p520 = scmp.lt.s32.totalorder %s517, 1
        %s521 = scalar_select %p520, %s517, 1
        %s522 = smul.addr %s519, 2
        %s523 = sadd.s32 %s521, %s522
        %s524 = smul.addr %s523, 4
        %s525 = scalar_lea.vmem %s2, %s524
        %s526 = smul.u32 2, %s31
        %p527 = scmp.lt.s32.totalorder %s30, 1
        %s528 = scalar_select %p527, %s30, 1
        %s529 = smul.addr %s528, 2
        %s530 = scalar_lea.vmem %s3, %s529
        %v532 = vld [vmem:[%s505] sm:$0xf]
        %v533 = vld [vmem:[%s505 + $0x4] sm:$0xf]
        %v534 = vld [vmem:[%s4] sm:$0xff]
        %v535 = vld [vmem:[%s4 + $0x8] sm:$0xff]
        %v536 = vld [vmem:[%s4 + $0x10] sm:$0xff]
        %v537 = vld [vmem:[%s4 + $0x18] sm:$0xff]
        %v538 = vld [vmem:[%s4 + $0x20] sm:$0xff]
        %v539 = vld [vmem:[%s4 + $0x28] sm:$0xff]
        %v540 = vld [vmem:[%s4 + $0x30] sm:$0xff]
        %v541 = vld [vmem:[%s4 + $0x38] sm:$0xff]
        %v542 = vld [vmem:[%s515] sm:$0xf]
        %v543 = vld [vmem:[%s515 + $0x4] sm:$0xf]
        %v544 = vld [vmem:[%s5] sm:$0xff]
        %v545 = vld [vmem:[%s5 + $0x8] sm:$0xff]
        %v546 = vld [vmem:[%s5 + $0x10] sm:$0xff]
        %v547 = vld [vmem:[%s5 + $0x18] sm:$0xff]
        %v548 = vld [vmem:[%s5 + $0x20] sm:$0xff]
        %v549 = vld [vmem:[%s5 + $0x28] sm:$0xff]
        %v550 = vld [vmem:[%s5 + $0x30] sm:$0xff]
        %v551 = vld [vmem:[%s5 + $0x38] sm:$0xff]
        %v554 = vunpack.c.l.b16 %v542
        %v555 = vunpack.c.l.b16 %v543
        %v556 = vpack.c.b16 %v555, %v554
        %v565 = vunpack.c.l.b16 %v544
        %v566 = vunpack.c.h.b16 %v544
        %v567 = vunpack.c.l.b16 %v545
        %v568 = vunpack.c.h.b16 %v545
        %v569 = vunpack.c.l.b16 %v546
        %v570 = vunpack.c.h.b16 %v546
        %v571 = vunpack.c.l.b16 %v547
        %v572 = vunpack.c.h.b16 %v547
        %v573 = vunpack.c.l.b16 %v548
        %v574 = vunpack.c.h.b16 %v548
        %v575 = vunpack.c.l.b16 %v549
        %v576 = vunpack.c.h.b16 %v549
        %v577 = vunpack.c.l.b16 %v550
        %v578 = vunpack.c.h.b16 %v550
        %v579 = vunpack.c.l.b16 %v551
        %v580 = vunpack.c.h.b16 %v551
        %v581 = vpack.c.b16 %v567, %v565
        %v582 = vpack.c.b16 %v568, %v566
        %v583 = vpack.c.b16 %v571, %v569
        %v584 = vpack.c.b16 %v572, %v570
        %v585 = vpack.c.b16 %v575, %v573
        %v586 = vpack.c.b16 %v576, %v574
        %v587 = vpack.c.b16 %v579, %v577
        %v588 = vpack.c.b16 %v580, %v578
        %vm597 = vcmask 523264
        %v599 = vsel %vm597, %v556, 0
        %601 = vmatprep.subr.bf16.mxu0 %v582
        %602 = vmatpush1.bf16.msra.mxu0 %v581
        %603 = vmatprep.subr.bf16.mxu0 %v584
        %604 = vmatpush1.bf16.msra.mxu0 %v583
        %605 = vmatprep.subr.bf16.mxu0 %v586
        %606 = vmatpush1.bf16.msra.mxu0 %v585
        %607 = vmatprep.subr.bf16.mxu0 %v588
        %608 = vmatpush1.bf16.msra.mxu0 %v587
        %609 = vmatprep.subr.bf16.mxu0 0
        %610 = vmatpush1.bf16.msra.mxu0 0
        %611 = vmatprep.subr.bf16.mxu0 0
        %612 = vmatpush1.bf16.msra.mxu0 0
        %613 = vmatprep.subr.bf16.mxu0 0
        %614 = vmatpush1.bf16.msra.mxu0 0
        %615 = vmatprep.subr.bf16.mxu0 0
        %616 = vmatpush1.bf16.msra.mxu0 0
        %617 = vmatprep.subr.bf16.mxu0 0
        %618 = vmatpush1.bf16.msra.mxu0 0
        %619 = vmatprep.subr.bf16.mxu0 0
        %620 = vmatpush1.bf16.msra.mxu0 0
        %621 = vmatprep.subr.bf16.mxu0 0
        %622 = vmatpush1.bf16.msra.mxu0 0
        %623 = vmatprep.subr.bf16.mxu0 0
        %624 = vmatpush1.bf16.msra.mxu0 0
        %625 = vmatprep.subr.bf16.mxu0 0
        %626 = vmatpush1.bf16.msra.mxu0 0
        %627 = vmatprep.subr.bf16.mxu0 0
        %628 = vmatpush1.bf16.msra.mxu0 0
        %629 = vmatprep.subr.bf16.mxu0 0
        %630 = vmatpush1.bf16.msra.mxu0 0
        %631 = vmatprep.subr.bf16.mxu0 0
        %632 = vmatpush1.bf16.msra.mxu0 0
        %633 = vmatprep.mubr.bf16.mxu0 0
        %634 = vmatmul.mubr.bf16.gmra.mrb[0].mxu0 %v599
        %v635 = vpop.f32.mrb[0].mxu0
        %v636 = vadd.f32 0.0, %v635
        %v637 = vpop.f32.mrb[0].mxu0
        %v638 = vadd.f32 0.0, %v637
        %v639 = vpop.f32.mrb[0].mxu0
        %v640 = vadd.f32 0.0, %v639
        %v641 = vpop.f32.mrb[0].mxu0
        %v642 = vadd.f32 0.0, %v641
        %643 = vdwg.mxu0
        %v646 = vunpack.c.l.b16 %v532
        %v647 = vunpack.c.l.b16 %v533
        %v648 = vpack.c.b16 %v647, %v646
        %v657 = vunpack.c.l.b16 %v534
        %v658 = vunpack.c.h.b16 %v534
        %v659 = vunpack.c.l.b16 %v535
        %v660 = vunpack.c.h.b16 %v535
        %v661 = vunpack.c.l.b16 %v536
        %v662 = vunpack.c.h.b16 %v536
        %v663 = vunpack.c.l.b16 %v537
        %v664 = vunpack.c.h.b16 %v537
        %v665 = vunpack.c.l.b16 %v538
        %v666 = vunpack.c.h.b16 %v538
        %v667 = vunpack.c.l.b16 %v539
        %v668 = vunpack.c.h.b16 %v539
        %v669 = vunpack.c.l.b16 %v540
        %v670 = vunpack.c.h.b16 %v540
        %v671 = vunpack.c.l.b16 %v541
        %v672 = vunpack.c.h.b16 %v541
        %v673 = vpack.c.b16 %v659, %v657
        %v674 = vpack.c.b16 %v660, %v658
        %v675 = vpack.c.b16 %v663, %v661
        %v676 = vpack.c.b16 %v664, %v662
        %v677 = vpack.c.b16 %v667, %v665
        %v678 = vpack.c.b16 %v668, %v666
        %v679 = vpack.c.b16 %v671, %v669
        %v680 = vpack.c.b16 %v672, %v670
        %v690 = vsel %vm597, %v648, 0
        %692 = vmatprep.subr.bf16.mxu0 %v674
        %693 = vmatpush1.bf16.msra.mxu0 %v673
        %694 = vmatprep.subr.bf16.mxu0 %v676
        %695 = vmatpush1.bf16.msra.mxu0 %v675
        %696 = vmatprep.subr.bf16.mxu0 %v678
        %697 = vmatpush1.bf16.msra.mxu0 %v677
        %698 = vmatprep.subr.bf16.mxu0 %v680
        %699 = vmatpush1.bf16.msra.mxu0 %v679
        %700 = vmatprep.subr.bf16.mxu0 0
        %701 = vmatpush1.bf16.msra.mxu0 0
        %702 = vmatprep.subr.bf16.mxu0 0
        %703 = vmatpush1.bf16.msra.mxu0 0
        %704 = vmatprep.subr.bf16.mxu0 0
        %705 = vmatpush1.bf16.msra.mxu0 0
        %706 = vmatprep.subr.bf16.mxu0 0
        %707 = vmatpush1.bf16.msra.mxu0 0
        %708 = vmatprep.subr.bf16.mxu0 0
        %709 = vmatpush1.bf16.msra.mxu0 0
        %710 = vmatprep.subr.bf16.mxu0 0
        %711 = vmatpush1.bf16.msra.mxu0 0
        %712 = vmatprep.subr.bf16.mxu0 0
        %713 = vmatpush1.bf16.msra.mxu0 0
        %714 = vmatprep.subr.bf16.mxu0 0
        %715 = vmatpush1.bf16.msra.mxu0 0
        %716 = vmatprep.subr.bf16.mxu0 0
        %717 = vmatpush1.bf16.msra.mxu0 0
        %718 = vmatprep.subr.bf16.mxu0 0
        %719 = vmatpush1.bf16.msra.mxu0 0
        %720 = vmatprep.subr.bf16.mxu0 0
        %721 = vmatpush1.bf16.msra.mxu0 0
        %722 = vmatprep.subr.bf16.mxu0 0
        %723 = vmatpush1.bf16.msra.mxu0 0
        %724 = vmatprep.mubr.bf16.mxu0 0
        %725 = vmatmul.mubr.bf16.gmra.mrb[0].mxu0 %v690
        %v726 = vpop.f32.mrb[0].mxu0
        %v727 = vadd.f32 %v636, %v726
        %v728 = vpop.f32.mrb[0].mxu0
        %v729 = vadd.f32 %v638, %v728
        %v730 = vpop.f32.mrb[0].mxu0
        %v731 = vadd.f32 %v640, %v730
        %v732 = vpop.f32.mrb[0].mxu0
        %v733 = vadd.f32 %v642, %v732
        %734 = vdwg.mxu0
        %v735 = vld [vmem:[%s525] sm:$0xf]
        %v736 = vld [vmem:[%s525 + $0x4] sm:$0xf]
        %v737 = vld [vmem:[%s6] sm:$0xff]
        %v738 = vld [vmem:[%s6 + $0x8] sm:$0xff]
        %v739 = vld [vmem:[%s6 + $0x10] sm:$0xff]
        %v740 = vld [vmem:[%s6 + $0x18] sm:$0xff]
        %v741 = vld [vmem:[%s6 + $0x20] sm:$0xff]
        %v742 = vld [vmem:[%s6 + $0x28] sm:$0xff]
        %v743 = vld [vmem:[%s6 + $0x30] sm:$0xff]
        %v744 = vld [vmem:[%s6 + $0x38] sm:$0xff]
        %v747 = vunpack.c.l.b16 %v735
        %v748 = vunpack.c.l.b16 %v736
        %v749 = vpack.c.b16 %v748, %v747
        %v758 = vunpack.c.l.b16 %v737
        %v759 = vunpack.c.h.b16 %v737
        %v760 = vunpack.c.l.b16 %v738
        %v761 = vunpack.c.h.b16 %v738
        %v762 = vunpack.c.l.b16 %v739
        %v763 = vunpack.c.h.b16 %v739
        %v764 = vunpack.c.l.b16 %v740
        %v765 = vunpack.c.h.b16 %v740
        %v766 = vunpack.c.l.b16 %v741
        %v767 = vunpack.c.h.b16 %v741
        %v768 = vunpack.c.l.b16 %v742
        %v769 = vunpack.c.h.b16 %v742
        %v770 = vunpack.c.l.b16 %v743
        %v771 = vunpack.c.h.b16 %v743
        %v772 = vunpack.c.l.b16 %v744
        %v773 = vunpack.c.h.b16 %v744
        %v774 = vpack.c.b16 %v760, %v758
        %v775 = vpack.c.b16 %v761, %v759
        %v776 = vpack.c.b16 %v764, %v762
        %v777 = vpack.c.b16 %v765, %v763
        %v778 = vpack.c.b16 %v768, %v766
        %v779 = vpack.c.b16 %v769, %v767
        %v780 = vpack.c.b16 %v772, %v770
        %v781 = vpack.c.b16 %v773, %v771
        %v791 = vsel %vm597, %v749, 0
        %793 = vmatprep.subr.bf16.mxu0 %v775
        %794 = vmatpush1.bf16.msra.mxu0 %v774
        %795 = vmatprep.subr.bf16.mxu0 %v777
        %796 = vmatpush1.bf16.msra.mxu0 %v776
        %797 = vmatprep.subr.bf16.mxu0 %v779
        %798 = vmatpush1.bf16.msra.mxu0 %v778
        %799 = vmatprep.subr.bf16.mxu0 %v781
        %800 = vmatpush1.bf16.msra.mxu0 %v780
        %801 = vmatprep.subr.bf16.mxu0 0
        %802 = vmatpush1.bf16.msra.mxu0 0
        %803 = vmatprep.subr.bf16.mxu0 0
        %804 = vmatpush1.bf16.msra.mxu0 0
        %805 = vmatprep.subr.bf16.mxu0 0
        %806 = vmatpush1.bf16.msra.mxu0 0
        %807 = vmatprep.subr.bf16.mxu0 0
        %808 = vmatpush1.bf16.msra.mxu0 0
        %809 = vmatprep.subr.bf16.mxu0 0
        %810 = vmatpush1.bf16.msra.mxu0 0
        %811 = vmatprep.subr.bf16.mxu0 0
        %812 = vmatpush1.bf16.msra.mxu0 0
        %813 = vmatprep.subr.bf16.mxu0 0
        %814 = vmatpush1.bf16.msra.mxu0 0
        %815 = vmatprep.subr.bf16.mxu0 0
        %816 = vmatpush1.bf16.msra.mxu0 0
        %817 = vmatprep.subr.bf16.mxu0 0
        %818 = vmatpush1.bf16.msra.mxu0 0
        %819 = vmatprep.subr.bf16.mxu0 0
        %820 = vmatpush1.bf16.msra.mxu0 0
        %821 = vmatprep.subr.bf16.mxu0 0
        %822 = vmatpush1.bf16.msra.mxu0 0
        %823 = vmatprep.subr.bf16.mxu0 0
        %824 = vmatpush1.bf16.msra.mxu0 0
        %825 = vmatprep.mubr.bf16.mxu0 0
        %826 = vmatmul.mubr.bf16.gmra.mrb[0].mxu0 %v791
        %v827 = vpop.f32.mrb[0].mxu0
        %v828 = vadd.f32 0.0, %v827
        %v829 = vpop.f32.mrb[0].mxu0
        %v830 = vadd.f32 0.0, %v829
        %v831 = vpop.f32.mrb[0].mxu0
        %v832 = vadd.f32 0.0, %v831
        %v833 = vpop.f32.mrb[0].mxu0
        %v834 = vadd.f32 0.0, %v833
        %835 = vdwg.mxu0
        %v836 = vadd.f32 %v727, %v828
        %v837 = vadd.f32 %v729, %v830
        %v838 = vadd.f32 %v731, %v832
        %v839 = vadd.f32 %v733, %v834
        %v840 = vld [vmem:[%s530] sm:$0x3]
        %v842 = vlaneseq
        %v843 = vshrl.u32 %v842, 7
        %v844 = vsub.s32 0, %v843
        %v845 = vrot.slane %v840, %v844
        %v846 = vlaneseq
        %v847 = vshrl.u32 %v846, 7
        %v848 = vsub.s32 1, %v847
        %v849 = vrot.slane %v840, %v848
        %v852 = vadd.f32 %v836, %v845
        %v853 = vadd.f32 %v837, %v849
        %v854 = vadd.f32 %v838, %v845
        %v855 = vadd.f32 %v839, %v849
        %vm856 = vcmp.ge.f32.partialorder %v852, 0.0
        %vm857 = vcmp.ge.f32.partialorder %v853, 0.0
        %vm858 = vcmp.ge.f32.partialorder %v854, 0.0
        %vm859 = vcmp.ge.f32.partialorder %v855, 0.0
        %v860 = vmul.f32 %v852, 0.2
        %v861 = vmul.f32 %v853, 0.2
        %v862 = vmul.f32 %v854, 0.2
        %v863 = vmul.f32 %v855, 0.2
        %v864 = vsel %vm856, %v852, %v860
        %v865 = vsel %vm857, %v853, %v861
        %v866 = vsel %vm858, %v854, %v862
        %v867 = vsel %vm859, %v855, %v863
        %v868 = vpack.c.bf16 %v866, %v864
        %v869 = vpack.c.bf16 %v867, %v865
        %v870 = vld [vmem:[%s7] sm:$0xff]
        %v871 = vld [vmem:[%s7 + $0x8] sm:$0xff]
        %v872 = vld [vmem:[%s7 + $0x10] sm:$0xff]
        %v873 = vld [vmem:[%s7 + $0x18] sm:$0xff]
        %v874 = vld [vmem:[%s7 + $0x20] sm:$0xff]
        %v875 = vld [vmem:[%s7 + $0x28] sm:$0xff]
        %v876 = vld [vmem:[%s7 + $0x30] sm:$0xff]
        %v877 = vld [vmem:[%s7 + $0x38] sm:$0xff]
        %v878 = vld [vmem:[%s7 + $0x40] sm:$0xff]
        %v879 = vld [vmem:[%s7 + $0x48] sm:$0xff]
        %v880 = vld [vmem:[%s7 + $0x50] sm:$0xff]
        %v881 = vld [vmem:[%s7 + $0x58] sm:$0xff]
        %v882 = vld [vmem:[%s7 + $0x60] sm:$0xff]
        %v883 = vld [vmem:[%s7 + $0x68] sm:$0xff]
        %v884 = vld [vmem:[%s7 + $0x70] sm:$0xff]
        %v885 = vld [vmem:[%s7 + $0x78] sm:$0xff]
        %v886 = vld [vmem:[%s7 + $0x80] sm:$0xff]
        %v887 = vld [vmem:[%s7 + $0x88] sm:$0xff]
        %v888 = vld [vmem:[%s7 + $0x90] sm:$0xff]
        %v889 = vld [vmem:[%s7 + $0x98] sm:$0xff]
        %v890 = vld [vmem:[%s7 + $0xa0] sm:$0xff]
        %v891 = vld [vmem:[%s7 + $0xa8] sm:$0xff]
        %v892 = vld [vmem:[%s7 + $0xb0] sm:$0xff]
        %v893 = vld [vmem:[%s7 + $0xb8] sm:$0xff]
        %v894 = vld [vmem:[%s7 + $0xc0] sm:$0xff]
        %v895 = vld [vmem:[%s7 + $0xc8] sm:$0xff]
        %v896 = vld [vmem:[%s7 + $0xd0] sm:$0xff]
        %v897 = vld [vmem:[%s7 + $0xd8] sm:$0xff]
        %v898 = vld [vmem:[%s7 + $0xe0] sm:$0xff]
        %v899 = vld [vmem:[%s7 + $0xe8] sm:$0xff]
        %v900 = vld [vmem:[%s7 + $0xf0] sm:$0xff]
        %v901 = vld [vmem:[%s7 + $0xf8] sm:$0xff]
        %v902 = vld [vmem:[%s8] sm:$0x3]
        %v904 = vlaneseq
        %v905 = vshrl.u32 %v904, 7
        %v906 = vsub.s32 0, %v905
        %v907 = vrot.slane %v902, %v906
        %v908 = vlaneseq
        %v909 = vshrl.u32 %v908, 7
        %v910 = vsub.s32 1, %v909
        %v911 = vrot.slane %v902, %v910
        %v946 = vunpack.c.l.b16 %v870
        %v947 = vunpack.c.h.b16 %v870
        %v948 = vunpack.c.l.b16 %v871
        %v949 = vunpack.c.h.b16 %v871
        %v950 = vunpack.c.l.b16 %v872
        %v951 = vunpack.c.h.b16 %v872
        %v952 = vunpack.c.l.b16 %v873
        %v953 = vunpack.c.h.b16 %v873
        %v954 = vunpack.c.l.b16 %v874
        %v955 = vunpack.c.h.b16 %v874
        %v956 = vunpack.c.l.b16 %v875
        %v957 = vunpack.c.h.b16 %v875
        %v958 = vunpack.c.l.b16 %v876
        %v959 = vunpack.c.h.b16 %v876
        %v960 = vunpack.c.l.b16 %v877
        %v961 = vunpack.c.h.b16 %v877
        %v962 = vunpack.c.l.b16 %v878
        %v963 = vunpack.c.h.b16 %v878
        %v964 = vunpack.c.l.b16 %v879
        %v965 = vunpack.c.h.b16 %v879
        %v966 = vunpack.c.l.b16 %v880
        %v967 = vunpack.c.h.b16 %v880
        %v968 = vunpack.c.l.b16 %v881
        %v969 = vunpack.c.h.b16 %v881
        %v970 = vunpack.c.l.b16 %v882
        %v971 = vunpack.c.h.b16 %v882
        %v972 = vunpack.c.l.b16 %v883
        %v973 = vunpack.c.h.b16 %v883
        %v974 = vunpack.c.l.b16 %v884
        %v975 = vunpack.c.h.b16 %v884
        %v976 = vunpack.c.l.b16 %v885
        %v977 = vunpack.c.h.b16 %v885
        %v978 = vunpack.c.l.b16 %v886
        %v979 = vunpack.c.h.b16 %v886
        %v980 = vunpack.c.l.b16 %v887
        %v981 = vunpack.c.h.b16 %v887
        %v982 = vunpack.c.l.b16 %v888
        %v983 = vunpack.c.h.b16 %v888
        %v984 = vunpack.c.l.b16 %v889
        %v985 = vunpack.c.h.b16 %v889
        %v986 = vunpack.c.l.b16 %v890
        %v987 = vunpack.c.h.b16 %v890
        %v988 = vunpack.c.l.b16 %v891
        %v989 = vunpack.c.h.b16 %v891
        %v990 = vunpack.c.l.b16 %v892
        %v991 = vunpack.c.h.b16 %v892
        %v992 = vunpack.c.l.b16 %v893
        %v993 = vunpack.c.h.b16 %v893
        %v994 = vunpack.c.l.b16 %v894
        %v995 = vunpack.c.h.b16 %v894
        %v996 = vunpack.c.l.b16 %v895
        %v997 = vunpack.c.h.b16 %v895
        %v998 = vunpack.c.l.b16 %v896
        %v999 = vunpack.c.h.b16 %v896
        %v1000 = vunpack.c.l.b16 %v897
        %v1001 = vunpack.c.h.b16 %v897
        %v1002 = vunpack.c.l.b16 %v898
        %v1003 = vunpack.c.h.b16 %v898
        %v1004 = vunpack.c.l.b16 %v899
        %v1005 = vunpack.c.h.b16 %v899
        %v1006 = vunpack.c.l.b16 %v900
        %v1007 = vunpack.c.h.b16 %v900
        %v1008 = vunpack.c.l.b16 %v901
        %v1009 = vunpack.c.h.b16 %v901
        %v1010 = vpack.c.b16 %v948, %v946
        %v1011 = vpack.c.b16 %v949, %v947
        %v1012 = vpack.c.b16 %v952, %v950
        %v1013 = vpack.c.b16 %v953, %v951
        %v1014 = vpack.c.b16 %v956, %v954
        %v1015 = vpack.c.b16 %v957, %v955
        %v1016 = vpack.c.b16 %v960, %v958
        %v1017 = vpack.c.b16 %v961, %v959
        %v1018 = vpack.c.b16 %v964, %v962
        %v1019 = vpack.c.b16 %v965, %v963
        %v1020 = vpack.c.b16 %v968, %v966
        %v1021 = vpack.c.b16 %v969, %v967
        %v1022 = vpack.c.b16 %v972, %v970
        %v1023 = vpack.c.b16 %v973, %v971
        %v1024 = vpack.c.b16 %v976, %v974
        %v1025 = vpack.c.b16 %v977, %v975
        %v1026 = vpack.c.b16 %v980, %v978
        %v1027 = vpack.c.b16 %v981, %v979
        %v1028 = vpack.c.b16 %v984, %v982
        %v1029 = vpack.c.b16 %v985, %v983
        %v1030 = vpack.c.b16 %v988, %v986
        %v1031 = vpack.c.b16 %v989, %v987
        %v1032 = vpack.c.b16 %v992, %v990
        %v1033 = vpack.c.b16 %v993, %v991
        %v1034 = vpack.c.b16 %v996, %v994
        %v1035 = vpack.c.b16 %v997, %v995
        %v1036 = vpack.c.b16 %v1000, %v998
        %v1037 = vpack.c.b16 %v1001, %v999
        %v1038 = vpack.c.b16 %v1004, %v1002
        %v1039 = vpack.c.b16 %v1005, %v1003
        %v1040 = vpack.c.b16 %v1008, %v1006
        %v1041 = vpack.c.b16 %v1009, %v1007
        %1074 = vmatprep.subr.bf16.mxu0 %v1011
        %1075 = vmatpush1.bf16.msra.mxu0 %v1010
        %1076 = vmatprep.subr.bf16.mxu0 %v1013
        %1077 = vmatpush1.bf16.msra.mxu0 %v1012
        %1078 = vmatprep.subr.bf16.mxu0 %v1015
        %1079 = vmatpush1.bf16.msra.mxu0 %v1014
        %1080 = vmatprep.subr.bf16.mxu0 %v1017
        %1081 = vmatpush1.bf16.msra.mxu0 %v1016
        %1082 = vmatprep.subr.bf16.mxu0 %v1019
        %1083 = vmatpush1.bf16.msra.mxu0 %v1018
        %1084 = vmatprep.subr.bf16.mxu0 %v1021
        %1085 = vmatpush1.bf16.msra.mxu0 %v1020
        %1086 = vmatprep.subr.bf16.mxu0 %v1023
        %1087 = vmatpush1.bf16.msra.mxu0 %v1022
        %1088 = vmatprep.subr.bf16.mxu0 %v1025
        %1089 = vmatpush1.bf16.msra.mxu0 %v1024
        %1090 = vmatprep.subr.bf16.mxu0 %v1027
        %1091 = vmatpush1.bf16.msra.mxu0 %v1026
        %1092 = vmatprep.subr.bf16.mxu0 %v1029
        %1093 = vmatpush1.bf16.msra.mxu0 %v1028
        %1094 = vmatprep.subr.bf16.mxu0 %v1031
        %1095 = vmatpush1.bf16.msra.mxu0 %v1030
        %1096 = vmatprep.subr.bf16.mxu0 %v1033
        %1097 = vmatpush1.bf16.msra.mxu0 %v1032
        %1098 = vmatprep.subr.bf16.mxu0 %v1035
        %1099 = vmatpush1.bf16.msra.mxu0 %v1034
        %1100 = vmatprep.subr.bf16.mxu0 %v1037
        %1101 = vmatpush1.bf16.msra.mxu0 %v1036
        %1102 = vmatprep.subr.bf16.mxu0 %v1039
        %1103 = vmatpush1.bf16.msra.mxu0 %v1038
        %1104 = vmatprep.subr.bf16.mxu0 %v1041
        %1105 = vmatpush1.bf16.msra.mxu0 %v1040
        %1106 = vmatprep.mubr.bf16.mxu0 %v869
        %1107 = vmatmul.mubr.bf16.gmra.mrb[0].mxu0 %v868
        %v1108 = vpop.f32.mrb[0].mxu0
        %v1109 = vadd.f32 %v907, %v1108
        %v1110 = vpop.f32.mrb[0].mxu0
        %v1111 = vadd.f32 %v911, %v1110
        %v1112 = vpop.f32.mrb[0].mxu0
        %v1113 = vadd.f32 %v907, %v1112
        %v1114 = vpop.f32.mrb[0].mxu0
        %v1115 = vadd.f32 %v911, %v1114
        %1116 = vdwg.mxu0
        %vm1117 = vcmp.ge.f32.partialorder %v1109, 0.0
        %vm1118 = vcmp.ge.f32.partialorder %v1111, 0.0
        %vm1119 = vcmp.ge.f32.partialorder %v1113, 0.0
        %vm1120 = vcmp.ge.f32.partialorder %v1115, 0.0
        %v1121 = vmul.f32 %v1109, 0.2
        %v1122 = vmul.f32 %v1111, 0.2
        %v1123 = vmul.f32 %v1113, 0.2
        %v1124 = vmul.f32 %v1115, 0.2
        %v1125 = vsel %vm1117, %v1109, %v1121
        %v1126 = vsel %vm1118, %v1111, %v1122
        %v1127 = vsel %vm1119, %v1113, %v1123
        %v1128 = vsel %vm1120, %v1115, %v1124
        %v1129 = vpack.c.bf16 %v1127, %v1125
        %v1130 = vpack.c.bf16 %v1128, %v1126
        %v1131 = vld [vmem:[%s9] sm:$0xf]
        %v1132 = vld [vmem:[%s9 + $0x4] sm:$0xf]
        %v1133 = vld [vmem:[%s9 + $0x8] sm:$0xf]
        %v1134 = vld [vmem:[%s9 + $0xc] sm:$0xf]
        %v1135 = vld [vmem:[%s9 + $0x10] sm:$0xf]
        %v1136 = vld [vmem:[%s9 + $0x14] sm:$0xf]
        %v1137 = vld [vmem:[%s9 + $0x18] sm:$0xf]
        %v1138 = vld [vmem:[%s9 + $0x1c] sm:$0xf]
        %v1139 = vld [vmem:[%s9 + $0x20] sm:$0xf]
        %v1140 = vld [vmem:[%s9 + $0x24] sm:$0xf]
        %v1141 = vld [vmem:[%s9 + $0x28] sm:$0xf]
        %v1142 = vld [vmem:[%s9 + $0x2c] sm:$0xf]
        %v1143 = vld [vmem:[%s9 + $0x30] sm:$0xf]
        %v1144 = vld [vmem:[%s9 + $0x34] sm:$0xf]
        %v1145 = vld [vmem:[%s9 + $0x38] sm:$0xf]
        %v1146 = vld [vmem:[%s9 + $0x3c] sm:$0xf]
        %v1147 = vld [vmem:[%s9 + $0x40] sm:$0xf]
        %v1148 = vld [vmem:[%s9 + $0x44] sm:$0xf]
        %v1149 = vld [vmem:[%s9 + $0x48] sm:$0xf]
        %v1150 = vld [vmem:[%s9 + $0x4c] sm:$0xf]
        %v1151 = vld [vmem:[%s9 + $0x50] sm:$0xf]
        %v1152 = vld [vmem:[%s9 + $0x54] sm:$0xf]
        %v1153 = vld [vmem:[%s9 + $0x58] sm:$0xf]
        %v1154 = vld [vmem:[%s9 + $0x5c] sm:$0xf]
        %v1155 = vld [vmem:[%s9 + $0x60] sm:$0xf]
        %v1156 = vld [vmem:[%s9 + $0x64] sm:$0xf]
        %v1157 = vld [vmem:[%s9 + $0x68] sm:$0xf]
        %v1158 = vld [vmem:[%s9 + $0x6c] sm:$0xf]
        %v1159 = vld [vmem:[%s9 + $0x70] sm:$0xf]
        %v1160 = vld [vmem:[%s9 + $0x74] sm:$0xf]
        %v1161 = vld [vmem:[%s9 + $0x78] sm:$0xf]
        %v1162 = vld [vmem:[%s9 + $0x7c] sm:$0xf]
        %v1163 = vld [vmem:[%s10] sm:$0x1]
        %v1165 = vlaneseq
        %v1166 = vshrl.u32 %v1165, 7
        %v1167 = vsub.s32 0, %v1166
        %v1168 = vrot.slane %v1163, %v1167
        %v1202 = vunpack.c.l.b16 %v1131
        %v1203 = vunpack.c.l.b16 %v1132
        %v1204 = vunpack.c.l.b16 %v1133
        %v1205 = vunpack.c.l.b16 %v1134
        %v1206 = vunpack.c.l.b16 %v1135
        %v1207 = vunpack.c.l.b16 %v1136
        %v1208 = vunpack.c.l.b16 %v1137
        %v1209 = vunpack.c.l.b16 %v1138
        %v1210 = vunpack.c.l.b16 %v1139
        %v1211 = vunpack.c.l.b16 %v1140
        %v1212 = vunpack.c.l.b16 %v1141
        %v1213 = vunpack.c.l.b16 %v1142
        %v1214 = vunpack.c.l.b16 %v1143
        %v1215 = vunpack.c.l.b16 %v1144
        %v1216 = vunpack.c.l.b16 %v1145
        %v1217 = vunpack.c.l.b16 %v1146
        %v1218 = vunpack.c.l.b16 %v1147
        %v1219 = vunpack.c.l.b16 %v1148
        %v1220 = vunpack.c.l.b16 %v1149
        %v1221 = vunpack.c.l.b16 %v1150
        %v1222 = vunpack.c.l.b16 %v1151
        %v1223 = vunpack.c.l.b16 %v1152
        %v1224 = vunpack.c.l.b16 %v1153
        %v1225 = vunpack.c.l.b16 %v1154
        %v1226 = vunpack.c.l.b16 %v1155
        %v1227 = vunpack.c.l.b16 %v1156
        %v1228 = vunpack.c.l.b16 %v1157
        %v1229 = vunpack.c.l.b16 %v1158
        %v1230 = vunpack.c.l.b16 %v1159
        %v1231 = vunpack.c.l.b16 %v1160
        %v1232 = vunpack.c.l.b16 %v1161
        %v1233 = vunpack.c.l.b16 %v1162
        %v1234 = vpack.c.b16 %v1203, %v1202
        %v1235 = vpack.c.b16 %v1205, %v1204
        %v1236 = vpack.c.b16 %v1207, %v1206
        %v1237 = vpack.c.b16 %v1209, %v1208
        %v1238 = vpack.c.b16 %v1211, %v1210
        %v1239 = vpack.c.b16 %v1213, %v1212
        %v1240 = vpack.c.b16 %v1215, %v1214
        %v1241 = vpack.c.b16 %v1217, %v1216
        %v1242 = vpack.c.b16 %v1219, %v1218
        %v1243 = vpack.c.b16 %v1221, %v1220
        %v1244 = vpack.c.b16 %v1223, %v1222
        %v1245 = vpack.c.b16 %v1225, %v1224
        %v1246 = vpack.c.b16 %v1227, %v1226
        %v1247 = vpack.c.b16 %v1229, %v1228
        %v1248 = vpack.c.b16 %v1231, %v1230
        %v1249 = vpack.c.b16 %v1233, %v1232
        %1266 = vmatprep.subr.bf16.mxu0 0
        %1267 = vmatpush1.bf16.msra.mxu0 %v1234
        %1268 = vmatprep.subr.bf16.mxu0 0
        %1269 = vmatpush1.bf16.msra.mxu0 %v1235
        %1270 = vmatprep.subr.bf16.mxu0 0
        %1271 = vmatpush1.bf16.msra.mxu0 %v1236
        %1272 = vmatprep.subr.bf16.mxu0 0
        %1273 = vmatpush1.bf16.msra.mxu0 %v1237
        %1274 = vmatprep.subr.bf16.mxu0 0
        %1275 = vmatpush1.bf16.msra.mxu0 %v1238
        %1276 = vmatprep.subr.bf16.mxu0 0
        %1277 = vmatpush1.bf16.msra.mxu0 %v1239
        %1278 = vmatprep.subr.bf16.mxu0 0
        %1279 = vmatpush1.bf16.msra.mxu0 %v1240
        %1280 = vmatprep.subr.bf16.mxu0 0
        %1281 = vmatpush1.bf16.msra.mxu0 %v1241
        %1282 = vmatprep.subr.bf16.mxu0 0
        %1283 = vmatpush1.bf16.msra.mxu0 %v1242
        %1284 = vmatprep.subr.bf16.mxu0 0
        %1285 = vmatpush1.bf16.msra.mxu0 %v1243
        %1286 = vmatprep.subr.bf16.mxu0 0
        %1287 = vmatpush1.bf16.msra.mxu0 %v1244
        %1288 = vmatprep.subr.bf16.mxu0 0
        %1289 = vmatpush1.bf16.msra.mxu0 %v1245
        %1290 = vmatprep.subr.bf16.mxu0 0
        %1291 = vmatpush1.bf16.msra.mxu0 %v1246
        %1292 = vmatprep.subr.bf16.mxu0 0
        %1293 = vmatpush1.bf16.msra.mxu0 %v1247
        %1294 = vmatprep.subr.bf16.mxu0 0
        %1295 = vmatpush1.bf16.msra.mxu0 %v1248
        %1296 = vmatprep.subr.bf16.mxu0 0
        %1297 = vmatpush1.bf16.msra.mxu0 %v1249
        %1298 = vmatprep.mubr.bf16.mxu0 %v1130
        %1299 = vmatmul.mubr.bf16.gmra.mrb[0].mxu0 %v1129
        %v1300 = vpop.f32.mrb[0].mxu0
        %v1301 = vadd.f32 %v1168, %v1300
        %v1302 = vpop.f32.mrb[0].mxu0
        %v1303 = vpop.f32.mrb[0].mxu0
        %v1304 = vadd.f32 %v1168, %v1303
        %v1305 = vpop.f32.mrb[0].mxu0
        %1306 = vdwg.mxu0
        %vm1307 = vcmp.ge.f32.partialorder %v1301, 0.0
        %vm1308 = vcmp.ge.f32.partialorder %v1304, 0.0
        %v1309 = vmul.f32 %v1301, 0.2
        %v1310 = vmul.f32 %v1304, 0.2
        %v1311 = vsel %vm1307, %v1301, %v1309
        %v1312 = vsel %vm1308, %v1304, %v1310
        %v1313 = vld [vmem:[%s11] sm:$0xf]
        %v1314 = vpack.c.bf16 %v1312, %v1311
        %1315 = vmatprep.subr.bf16.mxu0 0
        %1316 = vmatpush1.bf16.xpose.msra.mxu0 %v1314
        %1317 = vmatprep.subr.bf16.mxu0 0
        %1318 = vmatpush1.bf16.xpose.msra.mxu0 0
        %1319 = vmatprep.subr.bf16.mxu0 0
        %1320 = vmatpush1.bf16.xpose.msra.mxu0 0
        %1321 = vmatprep.subr.bf16.mxu0 0
        %1322 = vmatpush1.bf16.xpose.msra.mxu0 0
        %1323 = vmatprep.subr.bf16.mxu0 0
        %1324 = vmatpush1.bf16.xpose.msra.mxu0 0
        %1325 = vmatprep.subr.bf16.mxu0 0
        %1326 = vmatpush1.bf16.xpose.msra.mxu0 0
        %1327 = vmatprep.subr.bf16.mxu0 0
        %1328 = vmatpush1.bf16.xpose.msra.mxu0 0
        %1329 = vmatprep.subr.bf16.mxu0 0
        %1330 = vmatpush1.bf16.xpose.msra.mxu0 0
        %1331 = vmatprep.subr.bf16.mxu0 0
        %1332 = vmatpush1.bf16.xpose.msra.mxu0 0
        %1333 = vmatprep.subr.bf16.mxu0 0
        %1334 = vmatpush1.bf16.xpose.msra.mxu0 0
        %1335 = vmatprep.subr.bf16.mxu0 0
        %1336 = vmatpush1.bf16.xpose.msra.mxu0 0
        %1337 = vmatprep.subr.bf16.mxu0 0
        %1338 = vmatpush1.bf16.xpose.msra.mxu0 0
        %1339 = vmatprep.subr.bf16.mxu0 0
        %1340 = vmatpush1.bf16.xpose.msra.mxu0 0
        %1341 = vmatprep.subr.bf16.mxu0 0
        %1342 = vmatpush1.bf16.xpose.msra.mxu0 0
        %1343 = vmatprep.subr.bf16.mxu0 0
        %1344 = vmatpush1.bf16.xpose.msra.mxu0 0
        %1345 = vmatprep.subr.bf16.mxu0 0
        %1346 = vmatpush1.bf16.xpose.msra.mxu0 0
        %1347 = vmatprep.mubr.bf16.mxu0 0
        %1348 = vmatmul.mubr.bf16.gmra.mrb[0].mxu0 %v1313
        %v1349 = vpop.f32.mrb[0].mxu0
        %v1350 = vadd.f32 0.0, %v1349
        %v1351 = vpop.f32.mrb[0].mxu0
        %v1352 = vpop.f32.mrb[0].mxu0
        %v1353 = vpop.f32.mrb[0].mxu0
        %1354 = vdwg.mxu0
        %vm1355 = vcmask 130048
        %1356 = vst.msk [vmem:[%s496] sm:$0xff] %vm1355, %v1350
        %s1357 = sand.u32 %s326, 1
        %s1358 = scalar_lea.sflag [#allocation3], %s1357
        %s1359 = sand.u32 %s326, 1
        %s1360 = smul.addr %s1359, 8
        %s1361 = scalar_lea.vmem [#allocation2], %s1360
        // Predicated region
        $region69: #{dgcnn_partseg_forward.25} parent=67 // pred_check
          %p1362 = pneg %p336
        $region70: #{dgcnn_partseg_forward.25} parent=67 // pred_check_branch
          %1364 = sbr.rel (%p1362) target = $region72
        $region71: #{dgcnn_partseg_forward.25} parent=67 // pred_region
          %s1366 = ssub.s32 128, 128
          %1367 = vsyncadd %s1358, %s1366
          %s1368 = sadd.s32 %s31, %s30
          %s1369 = smul.addr %s1368, 128
          %s1370 = scalar_lea.hbm %s12, %s1369
          %s1372 = sshll.u32 %s1361, 4
          %s1373 = int_to_ptr.vmem [resolvable:$true] %s1372
          %1375 = dma.vmem_to_hbm [thread:$0]  %s1373, 128, %s1370, %s1358
        $region72: #{dgcnn_partseg_forward.25} parent=67 // pred_fallthru
          _
      $region68: #{dgcnn_partseg_forward.25} parent=5 // pred_fallthru
        _
      %p1376 = scmp.le.s32.totalorder 2, %s21
      // Predicated region
      $region73: #{dgcnn_partseg_forward.25} parent=5 // pred_check
        %p1377 = pneg %p1376
      $region74: #{dgcnn_partseg_forward.25} parent=5 // pred_check_branch
        %1379 = sbr.rel (%p1377) target = $region76
      $region75: #{dgcnn_partseg_forward.25} parent=5 // pred_region
        %s1380 = ssub.s32 %s21, 2
        // Predicated region
        $region77: #{dgcnn_partseg_forward.25} parent=75 // pred_check
          %p1381 = pneg %p342
        $region78: #{dgcnn_partseg_forward.25} parent=75 // pred_check_branch
          %1383 = sbr.rel (%p1381) target = $region80
        $region79: #{dgcnn_partseg_forward.25} parent=75 // pred_region
          %s1384 = sand.u32 %s327, 1
          %s1385 = scalar_lea.sflag [#allocation3], %s1384
          %s1386 = sand.u32 %s327, 1
          %s1387 = smul.addr %s1386, 8
          %s1388 = scalar_lea.vmem [#allocation2], %s1387
          %1389 = dma.done %s1385, 128
        $region80: #{dgcnn_partseg_forward.25} parent=75 // pred_fallthru
          _
      $region76: #{dgcnn_partseg_forward.25} parent=5 // pred_fallthru
        _
    $region6: #{dgcnn_partseg_forward.25} parent=1 // loop_footer
      %s25 = sadd.s32 1, %s21
    $region7: #{dgcnn_partseg_forward.25} parent=1 // loop_footer_branch
      %20 = sbr.rel target = $region3
    $region8: #{dgcnn_partseg_forward.25} parent=1 // loop_exit
      _
    %1390 = vsyncpa [#allocation3], 1
    %s1391 = scalar_lea.sflag [#allocation3], 1
    %1392 = vsyncpa %s1391, 1

</llo_original>
